<compile_context>
chip_gen: v6e
topology: v6e:2x2x1
jax: 0.10.0
libtpu: 0.0.40
codegen_flags: <defaults>
</compile_context>

<pallas_src>
import jax
import jax.numpy as jnp
from jax.experimental import pallas as pl
from jax.experimental.pallas import tpu as pltpu


# ----------------------------- Pallas kernels ------------------------------

def _conv3x3_flat(fs_ref, w_ref, b_ref, H, W, mask_l, mask_r):
    """'same' 3x3 conv in channel-first flat-spatial layout.

    fs_ref : (Cin, L) bf16 scratch, L = H*W + 2*(W+1).  Valid pixels live in
             columns [W+1, W+1+H*W); both aprons are zero.
    w_ref  : (Cout, 9*Cin) bf16, column index = (dy*3 + dx)*Cin + ci.
    b_ref  : (Cout, 1) f32.
    mask_l / mask_r : (1, H*W) bf16 lane masks zeroing x==0 / x==W-1 taps.

    Accumulates 3 row-tap matmuls (K = 3*Cin each) in f32; returns the ReLU'd
    (Cout, H*W) f32 accumulator (lane dim = H*W -> full MXU column fill).
    """
    cin = fs_ref.shape[0]
    hw = H * W
    base = W + 1
    acc = None
    for dy in range(3):                      # static, fully unrolled
        taps = []
        for dx in range(3):
            s = (dy - 1) * W + (dx - 1)
            t = fs_ref[:, base + s: base + s + hw]          # (Cin, H*W) lane shift
            if dx == 0:
                t = t * mask_l               # left neighbour invalid at x == 0
            elif dx == 2:
                t = t * mask_r               # right neighbour invalid at x == W-1
            taps.append(t)
        patch = jnp.concatenate(taps, axis=0)               # (3*Cin, H*W), sublane-major
        w_dy = w_ref[:, dy * 3 * cin: (dy + 1) * 3 * cin]   # (Cout, 3*Cin)
        part = jnp.dot(w_dy, patch, preferred_element_type=jnp.float32)
        acc = part if acc is None else acc + part
    acc = acc + b_ref[...]                                  # (Cout, 1) f32 broadcast
    return jnp.maximum(acc, 0.0)


def _make_block_kernel(num_inputs, has_head, H, W):
    """Fused UNet++ node: [concat ->] conv3x3+ReLU -> conv3x3+ReLU [-> 1x1 head]."""
    hw = H * W
    base = W + 1

    def kernel(*args):
        x_refs = args[:num_inputs]
        i = num_inputs
        w1, b1, w2, b2 = args[i:i + 4]
        i += 4
        if has_head:
            wh, bh = args[i:i + 2]
            i += 2
        o_ref = args[i]
        fs1, fs2 = args[i + 1:i + 3]

        # Hoisted lane-position masks (reused by both convs).
        col = jax.lax.broadcasted_iota(jnp.int32, (1, hw), 1) % W
        mask_l = (col > 0).astype(jnp.bfloat16)
        mask_r = (col < (W - 1)).astype(jnp.bfloat16)

        # Zero only the (C, W+1) aprons; the interior is fully overwritten below.
        for fs in (fs1, fs2):
            c, full = fs.shape
            fs[:, 0:base] = jnp.zeros((c, base), fs.dtype)
            fs[:, base + hw:full] = jnp.zeros((c, full - base - hw), fs.dtype)

        # Concat-free skip fusion: each input lands at its channel offset.
        off = 0
        for x_ref in x_refs:
            c = x_ref.shape[1]
            fs1[off:off + c, base:base + hw] = x_ref[0]
            off += c

        h1 = _conv3x3_flat(fs1, w1, b1, H, W, mask_l, mask_r)   # (cmid, H*W) f32
        fs2[:, base:base + hw] = h1.astype(fs2.dtype)           # stays in VMEM
        h2 = _conv3x3_flat(fs2, w2, b2, H, W, mask_l, mask_r)   # (cout, H*W) f32

        if has_head:
            # 1x1 head: (n_class, cmid) @ (cmid, H*W) -> (n_class, H*W), lane-dense.
            logits = jnp.dot(wh[...], h2.astype(jnp.bfloat16),
                             preferred_element_type=jnp.float32)
            logits = logits + bh[...]
            o_ref[...] = logits[None].astype(o_ref.dtype)
        else:
            o_ref[...] = h2[None].astype(o_ref.dtype)

    return kernel


# ----------------------------- block wrapper --------------------------------

def conv_block(xs, p, H, W, head=None):
    """xs: list of (N, C_i, H*W) bf16 skips -> (N, C_out, H*W) bf16 (channel-first)."""
    N = xs[0].shape[0]
    hw = H * W
    L = hw + 2 * (W + 1)
    cin_total = sum(int(x.shape[1]) for x in xs)
    cmid = p["w1"].shape[0]
    cout = head["w"].shape[0] if head is not None else p["w2"].shape[0]
    assert p["w1"].shape[1] == 9 * cin_total

    kernel = _make_block_kernel(len(xs), head is not None, H, W)

    in_specs = [pl.BlockSpec((1, int(x.shape[1]), hw), lambda n: (n, 0, 0)) for x in xs]
    operands = list(xs) + [p["w1"], p["b1"], p["w2"], p["b2"]]
    for wb in (p["w1"], p["b1"], p["w2"], p["b2"]):
        in_specs.append(pl.BlockSpec(wb.shape, lambda n: (0, 0)))
    if head is not None:
        operands += [head["w"], head["b"]]
        in_specs += [pl.BlockSpec(head["w"].shape, lambda n: (0, 0)),
                     pl.BlockSpec(head["b"].shape, lambda n: (0, 0))]

    return pl.pallas_call(
        kernel,
        out_shape=jax.ShapeDtypeStruct((N, cout, hw), jnp.bfloat16),
        grid=(N,),
        in_specs=in_specs,
        out_specs=pl.BlockSpec((1, cout, hw), lambda n: (n, 0, 0)),
        scratch_shapes=[
            pltpu.VMEM((cin_total, L), jnp.bfloat16),   # padded-flat input / concat
            pltpu.VMEM((cmid, L), jnp.bfloat16),        # padded-flat intermediate
        ],
        compiler_params=pltpu.CompilerParams(
            dimension_semantics=("parallel",),
            vmem_limit_bytes=32 * 1024 * 1024,
        ),
    )(*operands)


# ------------------------------- JAX glue ------------------------------------

def _maxpool2x2(x_nchw):
    N, C, H, W = x_nchw.shape
    return jnp.max(x_nchw.reshape(N, C, H // 2, 2, W // 2, 2), axis=(3, 5))


def _upsample2x(x_nchw):        # nearest-neighbour (matches smp decoder interpolate)
    return jnp.repeat(jnp.repeat(x_nchw, 2, axis=2), 2, axis=3)


def _flat(x_nchw):              # (N,C,H,W) -> (N,C,H*W): free reshape in XLA
    N, C, H, W = x_nchw.shape
    return x_nchw.reshape(N, C, H * W)


def _unflat(x, H, W):
    N, C, _ = x.shape
    return x.reshape(N, C, H, W)


# ----------------------------- parameter init --------------------------------

def _init_conv3x3(key, cin, cout):
    fan_in = 9 * cin
    w = jax.random.normal(key, (3, 3, cin, cout), jnp.float32) * (2.0 / fan_in) ** 0.5
    # Channel-first flattening: column = (dy*3 + dx)*cin + ci, matching the
    # in-kernel row-tap slicing order.  Stored in bf16 (autocast operands).
    wf = jnp.transpose(w, (3, 0, 1, 2)).reshape(cout, 9 * cin).astype(jnp.bfloat16)
    return wf, jnp.zeros((cout, 1), jnp.float32)


def _init_block(key, cin, cout):
    k1, k2 = jax.random.split(key)
    w1, b1 = _init_conv3x3(k1, cin, cout)
    w2, b2 = _init_conv3x3(k2, cout, cout)
    return {"w1": w1, "b1": b1, "w2": w2, "b2": b2}


def init_params(key, n_class, in_ch=3, chans=(8, 16, 32)):
    c0, c1, c2 = chans
    keys = jax.random.split(key, 7)
    params = {
        "enc0": _init_block(keys[0], in_ch, c0),
        "enc1": _init_block(keys[1], c0, c1),
        "enc2": _init_block(keys[2], c1, c2),
        "dec01": _init_block(keys[3], c0 + c1, c0),
        "dec11": _init_block(keys[4], c1 + c2, c1),
        "dec02": _init_block(keys[5], c0 + c0 + c1, c0),
    }
    head_w = jax.random.normal(keys[6], (c0, n_class), jnp.float32) * (2.0 / c0) ** 0.5
    params["head"] = {"w": head_w.T.astype(jnp.bfloat16),       # (n_class, c0)
                      "b": jnp.zeros((n_class, 1), jnp.float32)}
    return params


# ------------------------------ forward pass ---------------------------------

def seg_qyl_forward(params, x_nchw):
    """UNet++ forward. x_nchw: (N, 3, H, W) -> (N, n_class, H, W) bf16 logits."""
    N, _, H, W = x_nchw.shape
    H2, W2, H4, W4 = H // 2, W // 2, H // 4, W // 4
    # autocast-style: bf16 activations / matmul operands, f32 accumulation.
    x = x_nchw.astype(jnp.bfloat16)

    # Encoder column X^{i,0}
    x00 = conv_block([_flat(x)], params["enc0"], H, W)                    # (N,c0,H*W)
    x00_4d = _unflat(x00, H, W)
    x10 = conv_block([_flat(_maxpool2x2(x00_4d))], params["enc1"], H2, W2)
    x10_4d = _unflat(x10, H2, W2)
    x20 = conv_block([_flat(_maxpool2x2(x10_4d))], params["enc2"], H4, W4)
    x20_4d = _unflat(x20, H4, W4)

    # Nested dense-skip decoder (channel concat fused into the consuming kernel).
    x01 = conv_block([x00, _flat(_upsample2x(x10_4d))], params["dec01"], H, W)
    x11 = conv_block([x10, _flat(_upsample2x(x20_4d))], params["dec11"], H2, W2)
    x11_4d = _unflat(x11, H2, W2)

    # Final block with fused 1x1 segmentation head; output already channel-first.
    logits = conv_block([x00, x01, _flat(_upsample2x(x11_4d))],
                        params["dec02"], H, W, head=params["head"])       # (N,nc,H*W)
    return _unflat(logits, H, W)


# ---------------------------------- main --------------------------------------

if __name__ == "__main__":
    n_class = 4
    key = jax.random.PRNGKey(0)
    k_x, k_p = jax.random.split(key)

    x = jax.random.normal(k_x, (2, 3, 16, 16), jnp.float32)   # NCHW input
    params = init_params(k_p, n_class)

    fwd = jax.jit(seg_qyl_forward)
    out = jax.block_until_ready(fwd(params, x))

    assert out.shape == (2, n_class, 16, 16), out.shape
    assert out.dtype == jnp.bfloat16, out.dtype
    print("KERNEL_OK")
</pallas_src>

<mosaic_0001>
module attributes {stable_mosaic.version = 11 : i64} {
  func.func @kernel(%arg0: i32, %arg1: memref<1x3x256xbf16, #tpu.memory_space<vmem>>, %arg2: memref<8x27xbf16, #tpu.memory_space<vmem>>, %arg3: memref<8x1xf32, #tpu.memory_space<vmem>>, %arg4: memref<8x72xbf16, #tpu.memory_space<vmem>>, %arg5: memref<8x1xf32, #tpu.memory_space<vmem>>, %arg6: memref<1x8x256xbf16, #tpu.memory_space<vmem>>, %arg7: memref<3x290xbf16, #tpu.memory_space<vmem>>, %arg8: memref<8x290xbf16, #tpu.memory_space<vmem>>) attributes {dimension_semantics = [#tpu.dimension_semantics<parallel>], iteration_bounds = array<i64: 2>, scalar_prefetch = 0 : i64, scratch_operands = 2 : i64, tpu.core_type = #tpu.core_type<tc>, window_params = [{transform_indices = @transform_0, window_bounds = array<i64: 1, 3, 256>}, {pipeline_mode = #tpu.pipeline_mode<synchronous>, transform_indices = @transform_1, window_bounds = array<i64: 8, 27>}, {pipeline_mode = #tpu.pipeline_mode<synchronous>, transform_indices = @transform_2, window_bounds = array<i64: 8, 1>}, {pipeline_mode = #tpu.pipeline_mode<synchronous>, transform_indices = @transform_3, window_bounds = array<i64: 8, 72>}, {pipeline_mode = #tpu.pipeline_mode<synchronous>, transform_indices = @transform_4, window_bounds = array<i64: 8, 1>}, {transform_indices = @transform_5, window_bounds = array<i64: 1, 8, 256>}]} {
    %0 = tpu.iota {dimensions = array<i32: 1>} : vector<1x256xi32>
    %c16_i32 = arith.constant 16 : i32
    %c0_i32 = arith.constant 0 : i32
    %1 = arith.cmpi eq, %c16_i32, %c0_i32 : i32
    %c1_i32 = arith.constant 1 : i32
    %2 = arith.select %1, %c1_i32, %c16_i32 : i32
    %3 = vector.broadcast %2 : i32 to vector<1x256xi32>
    %4 = arith.remsi %0, %3 : vector<1x256xi32>
    %c0_i32_0 = arith.constant 0 : i32
    %5 = vector.broadcast %c0_i32_0 : i32 to vector<1x256xi32>
    %6 = arith.cmpi ne, %4, %5 : vector<1x256xi32>
    %c0_i32_1 = arith.constant 0 : i32
    %7 = vector.broadcast %c0_i32_1 : i32 to vector<1x256xi32>
    %8 = arith.cmpi slt, %4, %7 : vector<1x256xi32>
    %c0_i32_2 = arith.constant 0 : i32
    %9 = arith.cmpi slt, %2, %c0_i32_2 : i32
    %10 = vector.broadcast %9 : i1 to vector<1x256xi1>
    %11 = vector.broadcast %10 : vector<1x256xi1> to vector<1x256xi1>
    %12 = arith.xori %8, %11 : vector<1x256xi1>
    %13 = arith.andi %12, %6 : vector<1x256xi1>
    %14 = vector.broadcast %2 : i32 to vector<1x256xi32>
    %15 = arith.addi %4, %14 : vector<1x256xi32>
    %16 = arith.select %13, %15, %4 : vector<1x256xi1>, vector<1x256xi32>
    %c0_i32_3 = arith.constant 0 : i32
    %17 = vector.broadcast %c0_i32_3 : i32 to vector<1x256xi32>
    %18 = arith.cmpi sgt, %16, %17 : vector<1x256xi32>
    %19 = arith.extui %18 : vector<1x256xi1> to vector<1x256xi32>
    %20 = arith.sitofp %19 : vector<1x256xi32> to vector<1x256xf32>
    %21 = arith.truncf %20 : vector<1x256xf32> to vector<1x256xbf16>
    %c15_i32 = arith.constant 15 : i32
    %22 = vector.broadcast %c15_i32 : i32 to vector<1x256xi32>
    %23 = arith.cmpi slt, %16, %22 : vector<1x256xi32>
    %24 = arith.extui %23 : vector<1x256xi1> to vector<1x256xi32>
    %25 = arith.sitofp %24 : vector<1x256xi32> to vector<1x256xf32>
    %26 = arith.truncf %25 : vector<1x256xf32> to vector<1x256xbf16>
    %cst = arith.constant 0.000000e+00 : bf16
    %27 = vector.broadcast %cst : bf16 to vector<3x17xbf16>
    %c0 = arith.constant 0 : index
    %c0_4 = arith.constant 0 : index
    %28 = vector.load %arg7[%c0, %c0_4] : memref<3x290xbf16, #tpu.memory_space<vmem>>, vector<3x17xbf16>
    tpu.vector_store %arg7[%c0, %c0_4], %27 {strides = array<i32>} : memref<3x290xbf16, #tpu.memory_space<vmem>>, vector<3x17xbf16>,
    %cst_5 = arith.constant 0.000000e+00 : bf16
    %29 = vector.broadcast %cst_5 : bf16 to vector<3x17xbf16>
    %c0_6 = arith.constant 0 : index
    %c273 = arith.constant 273 : index
    %30 = vector.load %arg7[%c0_6, %c273] : memref<3x290xbf16, #tpu.memory_space<vmem>>, vector<3x17xbf16>
    tpu.vector_store %arg7[%c0_6, %c273], %29 {strides = array<i32>} : memref<3x290xbf16, #tpu.memory_space<vmem>>, vector<3x17xbf16>,
    %cst_7 = arith.constant 0.000000e+00 : bf16
    %31 = vector.broadcast %cst_7 : bf16 to vector<8x17xbf16>
    %c0_8 = arith.constant 0 : index
    %c0_9 = arith.constant 0 : index
    %32 = vector.load %arg8[%c0_8, %c0_9] : memref<8x290xbf16, #tpu.memory_space<vmem>>, vector<8x17xbf16>
    tpu.vector_store %arg8[%c0_8, %c0_9], %31 {strides = array<i32>} : memref<8x290xbf16, #tpu.memory_space<vmem>>, vector<8x17xbf16>,
    %cst_10 = arith.constant 0.000000e+00 : bf16
    %33 = vector.broadcast %cst_10 : bf16 to vector<8x17xbf16>
    %c0_11 = arith.constant 0 : index
    %c273_12 = arith.constant 273 : index
    %34 = vector.load %arg8[%c0_11, %c273_12] : memref<8x290xbf16, #tpu.memory_space<vmem>>, vector<8x17xbf16>
    tpu.vector_store %arg8[%c0_11, %c273_12], %33 {strides = array<i32>} : memref<8x290xbf16, #tpu.memory_space<vmem>>, vector<8x17xbf16>,
    %c0_13 = arith.constant 0 : index
    %c0_14 = arith.constant 0 : index
    %c0_15 = arith.constant 0 : index
    %35 = vector.load %arg1[%c0_13, %c0_14, %c0_15] : memref<1x3x256xbf16, #tpu.memory_space<vmem>>, vector<1x3x256xbf16>
    %36 = vector.shape_cast %35 : vector<1x3x256xbf16> to vector<3x256xbf16>
    %c0_16 = arith.constant 0 : index
    %c17 = arith.constant 17 : index
    %37 = vector.load %arg7[%c0_16, %c17] : memref<3x290xbf16, #tpu.memory_space<vmem>>, vector<3x256xbf16>
    tpu.vector_store %arg7[%c0_16, %c17], %36 {strides = array<i32>} : memref<3x290xbf16, #tpu.memory_space<vmem>>, vector<3x256xbf16>,
    %c0_17 = arith.constant 0 : index
    %c0_18 = arith.constant 0 : index
    %38 = vector.load %arg7[%c0_17, %c0_18] : memref<3x290xbf16, #tpu.memory_space<vmem>>, vector<3x256xbf16>
    %39 = vector.broadcast %21 : vector<1x256xbf16> to vector<3x256xbf16>
    %40 = arith.mulf %38, %39 : vector<3x256xbf16>
    %c0_19 = arith.constant 0 : index
    %c1 = arith.constant 1 : index
    %41 = vector.load %arg7[%c0_19, %c1] : memref<3x290xbf16, #tpu.memory_space<vmem>>, vector<3x256xbf16>
    %c0_20 = arith.constant 0 : index
    %c2 = arith.constant 2 : index
    %42 = vector.load %arg7[%c0_20, %c2] : memref<3x290xbf16, #tpu.memory_space<vmem>>, vector<3x256xbf16>
    %43 = vector.broadcast %26 : vector<1x256xbf16> to vector<3x256xbf16>
    %44 = arith.mulf %42, %43 : vector<3x256xbf16>
    %45 = tpu.concatenate %40, %41, %44 in 0 : vector<3x256xbf16>, vector<3x256xbf16>, vector<3x256xbf16> -> vector<9x256xbf16>
    %c0_21 = arith.constant 0 : index
    %c0_22 = arith.constant 0 : index
    %46 = vector.load %arg2[%c0_21, %c0_22] : memref<8x27xbf16, #tpu.memory_space<vmem>>, vector<8x9xbf16>
    %cst_23 = arith.constant dense<0.000000e+00> : vector<8x256xf32>
    %47 = tpu.matmul %46, %45, %cst_23 {dimension_numbers = #tpu.dot_dimension_numbers<[1], [0], [0], [1], [0, 0, 1, 1], [], []>} : vector<8x9xbf16>, vector<9x256xbf16>, vector<8x256xf32> -> vector<8x256xf32>
    %c0_24 = arith.constant 0 : index
    %c16 = arith.constant 16 : index
    %48 = vector.load %arg7[%c0_24, %c16] : memref<3x290xbf16, #tpu.memory_space<vmem>>, vector<3x256xbf16>
    %49 = vector.broadcast %21 : vector<1x256xbf16> to vector<3x256xbf16>
    %50 = arith.mulf %48, %49 : vector<3x256xbf16>
    %c0_25 = arith.constant 0 : index
    %c17_26 = arith.constant 17 : index
    %51 = vector.load %arg7[%c0_25, %c17_26] : memref<3x290xbf16, #tpu.memory_space<vmem>>, vector<3x256xbf16>
    %c0_27 = arith.constant 0 : index
    %c18 = arith.constant 18 : index
    %52 = vector.load %arg7[%c0_27, %c18] : memref<3x290xbf16, #tpu.memory_space<vmem>>, vector<3x256xbf16>
    %53 = vector.broadcast %26 : vector<1x256xbf16> to vector<3x256xbf16>
    %54 = arith.mulf %52, %53 : vector<3x256xbf16>
    %55 = tpu.concatenate %50, %51, %54 in 0 : vector<3x256xbf16>, vector<3x256xbf16>, vector<3x256xbf16> -> vector<9x256xbf16>
    %c0_28 = arith.constant 0 : index
    %c9 = arith.constant 9 : index
    %56 = vector.load %arg2[%c0_28, %c9] : memref<8x27xbf16, #tpu.memory_space<vmem>>, vector<8x9xbf16>
    %cst_29 = arith.constant dense<0.000000e+00> : vector<8x256xf32>
    %57 = tpu.matmul %56, %55, %cst_29 {dimension_numbers = #tpu.dot_dimension_numbers<[1], [0], [0], [1], [0, 0, 1, 1], [], []>} : vector<8x9xbf16>, vector<9x256xbf16>, vector<8x256xf32> -> vector<8x256xf32>
    %58 = arith.addf %47, %57 : vector<8x256xf32>
    %c0_30 = arith.constant 0 : index
    %c32 = arith.constant 32 : index
    %59 = vector.load %arg7[%c0_30, %c32] : memref<3x290xbf16, #tpu.memory_space<vmem>>, vector<3x256xbf16>
    %60 = vector.broadcast %21 : vector<1x256xbf16> to vector<3x256xbf16>
    %61 = arith.mulf %59, %60 : vector<3x256xbf16>
    %c0_31 = arith.constant 0 : index
    %c33 = arith.constant 33 : index
    %62 = vector.load %arg7[%c0_31, %c33] : memref<3x290xbf16, #tpu.memory_space<vmem>>, vector<3x256xbf16>
    %c0_32 = arith.constant 0 : index
    %c34 = arith.constant 34 : index
    %63 = vector.load %arg7[%c0_32, %c34] : memref<3x290xbf16, #tpu.memory_space<vmem>>, vector<3x256xbf16>
    %64 = vector.broadcast %26 : vector<1x256xbf16> to vector<3x256xbf16>
    %65 = arith.mulf %63, %64 : vector<3x256xbf16>
    %66 = tpu.concatenate %61, %62, %65 in 0 : vector<3x256xbf16>, vector<3x256xbf16>, vector<3x256xbf16> -> vector<9x256xbf16>
    %c0_33 = arith.constant 0 : index
    %c18_34 = arith.constant 18 : index
    %67 = vector.load %arg2[%c0_33, %c18_34] : memref<8x27xbf16, #tpu.memory_space<vmem>>, vector<8x9xbf16>
    %cst_35 = arith.constant dense<0.000000e+00> : vector<8x256xf32>
    %68 = tpu.matmul %67, %66, %cst_35 {dimension_numbers = #tpu.dot_dimension_numbers<[1], [0], [0], [1], [0, 0, 1, 1], [], []>} : vector<8x9xbf16>, vector<9x256xbf16>, vector<8x256xf32> -> vector<8x256xf32>
    %69 = arith.addf %58, %68 : vector<8x256xf32>
    %c0_36 = arith.constant 0 : index
    %c0_37 = arith.constant 0 : index
    %70 = vector.load %arg3[%c0_36, %c0_37] : memref<8x1xf32, #tpu.memory_space<vmem>>, vector<8x1xf32>
    %71 = vector.broadcast %70 : vector<8x1xf32> to vector<8x256xf32>
    %72 = arith.addf %69, %71 : vector<8x256xf32>
    %cst_38 = arith.constant 0.000000e+00 : f32
    %73 = vector.broadcast %cst_38 : f32 to vector<8x256xf32>
    %74 = arith.maximumf %72, %73 : vector<8x256xf32>
    %75 = arith.truncf %74 : vector<8x256xf32> to vector<8x256xbf16>
    %c0_39 = arith.constant 0 : index
    %c17_40 = arith.constant 17 : index
    %76 = vector.load %arg8[%c0_39, %c17_40] : memref<8x290xbf16, #tpu.memory_space<vmem>>, vector<8x256xbf16>
    tpu.vector_store %arg8[%c0_39, %c17_40], %75 {strides = array<i32>} : memref<8x290xbf16, #tpu.memory_space<vmem>>, vector<8x256xbf16>,
    %c0_41 = arith.constant 0 : index
    %c0_42 = arith.constant 0 : index
    %77 = vector.load %arg8[%c0_41, %c0_42] : memref<8x290xbf16, #tpu.memory_space<vmem>>, vector<8x256xbf16>
    %78 = vector.broadcast %21 : vector<1x256xbf16> to vector<8x256xbf16>
    %79 = arith.mulf %77, %78 : vector<8x256xbf16>
    %c0_43 = arith.constant 0 : index
    %c1_44 = arith.constant 1 : index
    %80 = vector.load %arg8[%c0_43, %c1_44] : memref<8x290xbf16, #tpu.memory_space<vmem>>, vector<8x256xbf16>
    %c0_45 = arith.constant 0 : index
    %c2_46 = arith.constant 2 : index
    %81 = vector.load %arg8[%c0_45, %c2_46] : memref<8x290xbf16, #tpu.memory_space<vmem>>, vector<8x256xbf16>
    %82 = vector.broadcast %26 : vector<1x256xbf16> to vector<8x256xbf16>
    %83 = arith.mulf %81, %82 : vector<8x256xbf16>
    %84 = tpu.concatenate %79, %80, %83 in 0 : vector<8x256xbf16>, vector<8x256xbf16>, vector<8x256xbf16> -> vector<24x256xbf16>
    %c0_47 = arith.constant 0 : index
    %c0_48 = arith.constant 0 : index
    %85 = vector.load %arg4[%c0_47, %c0_48] : memref<8x72xbf16, #tpu.memory_space<vmem>>, vector<8x24xbf16>
    %cst_49 = arith.constant dense<0.000000e+00> : vector<8x256xf32>
    %86 = tpu.matmul %85, %84, %cst_49 {dimension_numbers = #tpu.dot_dimension_numbers<[1], [0], [0], [1], [0, 0, 1, 1], [], []>} : vector<8x24xbf16>, vector<24x256xbf16>, vector<8x256xf32> -> vector<8x256xf32>
    %c0_50 = arith.constant 0 : index
    %c16_51 = arith.constant 16 : index
    %87 = vector.load %arg8[%c0_50, %c16_51] : memref<8x290xbf16, #tpu.memory_space<vmem>>, vector<8x256xbf16>
    %88 = vector.broadcast %21 : vector<1x256xbf16> to vector<8x256xbf16>
    %89 = arith.mulf %87, %88 : vector<8x256xbf16>
    %c0_52 = arith.constant 0 : index
    %c17_53 = arith.constant 17 : index
    %90 = vector.load %arg8[%c0_52, %c17_53] : memref<8x290xbf16, #tpu.memory_space<vmem>>, vector<8x256xbf16>
    %c0_54 = arith.constant 0 : index
    %c18_55 = arith.constant 18 : index
    %91 = vector.load %arg8[%c0_54, %c18_55] : memref<8x290xbf16, #tpu.memory_space<vmem>>, vector<8x256xbf16>
    %92 = vector.broadcast %26 : vector<1x256xbf16> to vector<8x256xbf16>
    %93 = arith.mulf %91, %92 : vector<8x256xbf16>
    %94 = tpu.concatenate %89, %90, %93 in 0 : vector<8x256xbf16>, vector<8x256xbf16>, vector<8x256xbf16> -> vector<24x256xbf16>
    %c0_56 = arith.constant 0 : index
    %c24 = arith.constant 24 : index
    %95 = vector.load %arg4[%c0_56, %c24] : memref<8x72xbf16, #tpu.memory_space<vmem>>, vector<8x24xbf16>
    %cst_57 = arith.constant dense<0.000000e+00> : vector<8x256xf32>
    %96 = tpu.matmul %95, %94, %cst_57 {dimension_numbers = #tpu.dot_dimension_numbers<[1], [0], [0], [1], [0, 0, 1, 1], [], []>} : vector<8x24xbf16>, vector<24x256xbf16>, vector<8x256xf32> -> vector<8x256xf32>
    %97 = arith.addf %86, %96 : vector<8x256xf32>
    %c0_58 = arith.constant 0 : index
    %c32_59 = arith.constant 32 : index
    %98 = vector.load %arg8[%c0_58, %c32_59] : memref<8x290xbf16, #tpu.memory_space<vmem>>, vector<8x256xbf16>
    %99 = vector.broadcast %21 : vector<1x256xbf16> to vector<8x256xbf16>
    %100 = arith.mulf %98, %99 : vector<8x256xbf16>
    %c0_60 = arith.constant 0 : index
    %c33_61 = arith.constant 33 : index
    %101 = vector.load %arg8[%c0_60, %c33_61] : memref<8x290xbf16, #tpu.memory_space<vmem>>, vector<8x256xbf16>
    %c0_62 = arith.constant 0 : index
    %c34_63 = arith.constant 34 : index
    %102 = vector.load %arg8[%c0_62, %c34_63] : memref<8x290xbf16, #tpu.memory_space<vmem>>, vector<8x256xbf16>
    %103 = vector.broadcast %26 : vector<1x256xbf16> to vector<8x256xbf16>
    %104 = arith.mulf %102, %103 : vector<8x256xbf16>
    %105 = tpu.concatenate %100, %101, %104 in 0 : vector<8x256xbf16>, vector<8x256xbf16>, vector<8x256xbf16> -> vector<24x256xbf16>
    %c0_64 = arith.constant 0 : index
    %c48 = arith.constant 48 : index
    %106 = vector.load %arg4[%c0_64, %c48] : memref<8x72xbf16, #tpu.memory_space<vmem>>, vector<8x24xbf16>
    %cst_65 = arith.constant dense<0.000000e+00> : vector<8x256xf32>
    %107 = tpu.matmul %106, %105, %cst_65 {dimension_numbers = #tpu.dot_dimension_numbers<[1], [0], [0], [1], [0, 0, 1, 1], [], []>} : vector<8x24xbf16>, vector<24x256xbf16>, vector<8x256xf32> -> vector<8x256xf32>
    %108 = arith.addf %97, %107 : vector<8x256xf32>
    %c0_66 = arith.constant 0 : index
    %c0_67 = arith.constant 0 : index
    %109 = vector.load %arg5[%c0_66, %c0_67] : memref<8x1xf32, #tpu.memory_space<vmem>>, vector<8x1xf32>
    %110 = vector.broadcast %109 : vector<8x1xf32> to vector<8x256xf32>
    %111 = arith.addf %108, %110 : vector<8x256xf32>
    %cst_68 = arith.constant 0.000000e+00 : f32
    %112 = vector.broadcast %cst_68 : f32 to vector<8x256xf32>
    %113 = arith.maximumf %111, %112 : vector<8x256xf32>
    %114 = vector.shape_cast %113 : vector<8x256xf32> to vector<1x8x256xf32>
    %115 = arith.truncf %114 : vector<1x8x256xf32> to vector<1x8x256xbf16>
    %c0_69 = arith.constant 0 : index
    %c0_70 = arith.constant 0 : index
    %c0_71 = arith.constant 0 : index
    %116 = vector.load %arg6[%c0_69, %c0_70, %c0_71] : memref<1x8x256xbf16, #tpu.memory_space<vmem>>, vector<1x8x256xbf16>
    tpu.vector_store %arg6[%c0_69, %c0_70, %c0_71], %115 {strides = array<i32>} : memref<1x8x256xbf16, #tpu.memory_space<vmem>>, vector<1x8x256xbf16>,
    return
  }
  func.func @transform_0(%arg0: i32) -> (i32, i32, i32) {
    %c0_i32 = arith.constant 0 : i32
    %c0_i32_0 = arith.constant 0 : i32
    %c0_i32_1 = arith.constant 0 : i32
    return %arg0, %c0_i32, %c0_i32_0 : i32, i32, i32
  }
  func.func @transform_1(%arg0: i32) -> (i32, i32) {
    %c0_i32 = arith.constant 0 : i32
    %c0_i32_0 = arith.constant 0 : i32
    %c0_i32_1 = arith.constant 0 : i32
    return %c0_i32, %c0_i32_0 : i32, i32
  }
  func.func @transform_2(%arg0: i32) -> (i32, i32) {
    %c0_i32 = arith.constant 0 : i32
    %c0_i32_0 = arith.constant 0 : i32
    %c0_i32_1 = arith.constant 0 : i32
    return %c0_i32, %c0_i32_0 : i32, i32
  }
  func.func @transform_3(%arg0: i32) -> (i32, i32) {
    %c0_i32 = arith.constant 0 : i32
    %c0_i32_0 = arith.constant 0 : i32
    %c0_i32_1 = arith.constant 0 : i32
    return %c0_i32, %c0_i32_0 : i32, i32
  }
  func.func @transform_4(%arg0: i32) -> (i32, i32) {
    %c0_i32 = arith.constant 0 : i32
    %c0_i32_0 = arith.constant 0 : i32
    %c0_i32_1 = arith.constant 0 : i32
    return %c0_i32, %c0_i32_0 : i32, i32
  }
  func.func @transform_5(%arg0: i32) -> (i32, i32, i32) {
    %c0_i32 = arith.constant 0 : i32
    %c0_i32_0 = arith.constant 0 : i32
    %c0_i32_1 = arith.constant 0 : i32
    return %arg0, %c0_i32, %c0_i32_0 : i32, i32, i32
  }
}

module attributes {stable_mosaic.version = 11 : i64} {
  func.func @kernel(%arg0: i32, %arg1: memref<1x8x64xbf16, #tpu.memory_space<vmem>>, %arg2: memref<16x72xbf16, #tpu.memory_space<vmem>>, %arg3: memref<16x1xf32, #tpu.memory_space<vmem>>, %arg4: memref<16x144xbf16, #tpu.memory_space<vmem>>, %arg5: memref<16x1xf32, #tpu.memory_space<vmem>>, %arg6: memref<1x16x64xbf16, #tpu.memory_space<vmem>>, %arg7: memref<8x82xbf16, #tpu.memory_space<vmem>>, %arg8: memref<16x82xbf16, #tpu.memory_space<vmem>>) attributes {dimension_semantics = [#tpu.dimension_semantics<parallel>], iteration_bounds = array<i64: 2>, scalar_prefetch = 0 : i64, scratch_operands = 2 : i64, tpu.core_type = #tpu.core_type<tc>, window_params = [{transform_indices = @transform_0, window_bounds = array<i64: 1, 8, 64>}, {pipeline_mode = #tpu.pipeline_mode<synchronous>, transform_indices = @transform_1, window_bounds = array<i64: 16, 72>}, {pipeline_mode = #tpu.pipeline_mode<synchronous>, transform_indices = @transform_2, window_bounds = array<i64: 16, 1>}, {pipeline_mode = #tpu.pipeline_mode<synchronous>, transform_indices = @transform_3, window_bounds = array<i64: 16, 144>}, {pipeline_mode = #tpu.pipeline_mode<synchronous>, transform_indices = @transform_4, window_bounds = array<i64: 16, 1>}, {transform_indices = @transform_5, window_bounds = array<i64: 1, 16, 64>}]} {
    %0 = tpu.iota {dimensions = array<i32: 1>} : vector<1x64xi32>
    %c8_i32 = arith.constant 8 : i32
    %c0_i32 = arith.constant 0 : i32
    %1 = arith.cmpi eq, %c8_i32, %c0_i32 : i32
    %c1_i32 = arith.constant 1 : i32
    %2 = arith.select %1, %c1_i32, %c8_i32 : i32
    %3 = vector.broadcast %2 : i32 to vector<1x64xi32>
    %4 = arith.remsi %0, %3 : vector<1x64xi32>
    %c0_i32_0 = arith.constant 0 : i32
    %5 = vector.broadcast %c0_i32_0 : i32 to vector<1x64xi32>
    %6 = arith.cmpi ne, %4, %5 : vector<1x64xi32>
    %c0_i32_1 = arith.constant 0 : i32
    %7 = vector.broadcast %c0_i32_1 : i32 to vector<1x64xi32>
    %8 = arith.cmpi slt, %4, %7 : vector<1x64xi32>
    %c0_i32_2 = arith.constant 0 : i32
    %9 = arith.cmpi slt, %2, %c0_i32_2 : i32
    %10 = vector.broadcast %9 : i1 to vector<1x64xi1>
    %11 = vector.broadcast %10 : vector<1x64xi1> to vector<1x64xi1>
    %12 = arith.xori %8, %11 : vector<1x64xi1>
    %13 = arith.andi %12, %6 : vector<1x64xi1>
    %14 = vector.broadcast %2 : i32 to vector<1x64xi32>
    %15 = arith.addi %4, %14 : vector<1x64xi32>
    %16 = arith.select %13, %15, %4 : vector<1x64xi1>, vector<1x64xi32>
    %c0_i32_3 = arith.constant 0 : i32
    %17 = vector.broadcast %c0_i32_3 : i32 to vector<1x64xi32>
    %18 = arith.cmpi sgt, %16, %17 : vector<1x64xi32>
    %19 = arith.extui %18 : vector<1x64xi1> to vector<1x64xi32>
    %20 = arith.sitofp %19 : vector<1x64xi32> to vector<1x64xf32>
    %21 = arith.truncf %20 : vector<1x64xf32> to vector<1x64xbf16>
    %c7_i32 = arith.constant 7 : i32
    %22 = vector.broadcast %c7_i32 : i32 to vector<1x64xi32>
    %23 = arith.cmpi slt, %16, %22 : vector<1x64xi32>
    %24 = arith.extui %23 : vector<1x64xi1> to vector<1x64xi32>
    %25 = arith.sitofp %24 : vector<1x64xi32> to vector<1x64xf32>
    %26 = arith.truncf %25 : vector<1x64xf32> to vector<1x64xbf16>
    %cst = arith.constant 0.000000e+00 : bf16
    %27 = vector.broadcast %cst : bf16 to vector<8x9xbf16>
    %c0 = arith.constant 0 : index
    %c0_4 = arith.constant 0 : index
    %28 = vector.load %arg7[%c0, %c0_4] : memref<8x82xbf16, #tpu.memory_space<vmem>>, vector<8x9xbf16>
    tpu.vector_store %arg7[%c0, %c0_4], %27 {strides = array<i32>} : memref<8x82xbf16, #tpu.memory_space<vmem>>, vector<8x9xbf16>,
    %cst_5 = arith.constant 0.000000e+00 : bf16
    %29 = vector.broadcast %cst_5 : bf16 to vector<8x9xbf16>
    %c0_6 = arith.constant 0 : index
    %c73 = arith.constant 73 : index
    %30 = vector.load %arg7[%c0_6, %c73] : memref<8x82xbf16, #tpu.memory_space<vmem>>, vector<8x9xbf16>
    tpu.vector_store %arg7[%c0_6, %c73], %29 {strides = array<i32>} : memref<8x82xbf16, #tpu.memory_space<vmem>>, vector<8x9xbf16>,
    %cst_7 = arith.constant 0.000000e+00 : bf16
    %31 = vector.broadcast %cst_7 : bf16 to vector<16x9xbf16>
    %c0_8 = arith.constant 0 : index
    %c0_9 = arith.constant 0 : index
    %32 = vector.load %arg8[%c0_8, %c0_9] : memref<16x82xbf16, #tpu.memory_space<vmem>>, vector<16x9xbf16>
    tpu.vector_store %arg8[%c0_8, %c0_9], %31 {strides = array<i32>} : memref<16x82xbf16, #tpu.memory_space<vmem>>, vector<16x9xbf16>,
    %cst_10 = arith.constant 0.000000e+00 : bf16
    %33 = vector.broadcast %cst_10 : bf16 to vector<16x9xbf16>
    %c0_11 = arith.constant 0 : index
    %c73_12 = arith.constant 73 : index
    %34 = vector.load %arg8[%c0_11, %c73_12] : memref<16x82xbf16, #tpu.memory_space<vmem>>, vector<16x9xbf16>
    tpu.vector_store %arg8[%c0_11, %c73_12], %33 {strides = array<i32>} : memref<16x82xbf16, #tpu.memory_space<vmem>>, vector<16x9xbf16>,
    %c0_13 = arith.constant 0 : index
    %c0_14 = arith.constant 0 : index
    %c0_15 = arith.constant 0 : index
    %35 = vector.load %arg1[%c0_13, %c0_14, %c0_15] : memref<1x8x64xbf16, #tpu.memory_space<vmem>>, vector<1x8x64xbf16>
    %36 = vector.shape_cast %35 : vector<1x8x64xbf16> to vector<8x64xbf16>
    %c0_16 = arith.constant 0 : index
    %c9 = arith.constant 9 : index
    %37 = vector.load %arg7[%c0_16, %c9] : memref<8x82xbf16, #tpu.memory_space<vmem>>, vector<8x64xbf16>
    tpu.vector_store %arg7[%c0_16, %c9], %36 {strides = array<i32>} : memref<8x82xbf16, #tpu.memory_space<vmem>>, vector<8x64xbf16>,
    %c0_17 = arith.constant 0 : index
    %c0_18 = arith.constant 0 : index
    %38 = vector.load %arg7[%c0_17, %c0_18] : memref<8x82xbf16, #tpu.memory_space<vmem>>, vector<8x64xbf16>
    %39 = vector.broadcast %21 : vector<1x64xbf16> to vector<8x64xbf16>
    %40 = arith.mulf %38, %39 : vector<8x64xbf16>
    %c0_19 = arith.constant 0 : index
    %c1 = arith.constant 1 : index
    %41 = vector.load %arg7[%c0_19, %c1] : memref<8x82xbf16, #tpu.memory_space<vmem>>, vector<8x64xbf16>
    %c0_20 = arith.constant 0 : index
    %c2 = arith.constant 2 : index
    %42 = vector.load %arg7[%c0_20, %c2] : memref<8x82xbf16, #tpu.memory_space<vmem>>, vector<8x64xbf16>
    %43 = vector.broadcast %26 : vector<1x64xbf16> to vector<8x64xbf16>
    %44 = arith.mulf %42, %43 : vector<8x64xbf16>
    %45 = tpu.concatenate %40, %41, %44 in 0 : vector<8x64xbf16>, vector<8x64xbf16>, vector<8x64xbf16> -> vector<24x64xbf16>
    %c0_21 = arith.constant 0 : index
    %c0_22 = arith.constant 0 : index
    %46 = vector.load %arg2[%c0_21, %c0_22] : memref<16x72xbf16, #tpu.memory_space<vmem>>, vector<16x24xbf16>
    %cst_23 = arith.constant dense<0.000000e+00> : vector<16x64xf32>
    %47 = tpu.matmul %46, %45, %cst_23 {dimension_numbers = #tpu.dot_dimension_numbers<[1], [0], [0], [1], [0, 0, 1, 1], [], []>} : vector<16x24xbf16>, vector<24x64xbf16>, vector<16x64xf32> -> vector<16x64xf32>
    %c0_24 = arith.constant 0 : index
    %c8 = arith.constant 8 : index
    %48 = vector.load %arg7[%c0_24, %c8] : memref<8x82xbf16, #tpu.memory_space<vmem>>, vector<8x64xbf16>
    %49 = vector.broadcast %21 : vector<1x64xbf16> to vector<8x64xbf16>
    %50 = arith.mulf %48, %49 : vector<8x64xbf16>
    %c0_25 = arith.constant 0 : index
    %c9_26 = arith.constant 9 : index
    %51 = vector.load %arg7[%c0_25, %c9_26] : memref<8x82xbf16, #tpu.memory_space<vmem>>, vector<8x64xbf16>
    %c0_27 = arith.constant 0 : index
    %c10 = arith.constant 10 : index
    %52 = vector.load %arg7[%c0_27, %c10] : memref<8x82xbf16, #tpu.memory_space<vmem>>, vector<8x64xbf16>
    %53 = vector.broadcast %26 : vector<1x64xbf16> to vector<8x64xbf16>
    %54 = arith.mulf %52, %53 : vector<8x64xbf16>
    %55 = tpu.concatenate %50, %51, %54 in 0 : vector<8x64xbf16>, vector<8x64xbf16>, vector<8x64xbf16> -> vector<24x64xbf16>
    %c0_28 = arith.constant 0 : index
    %c24 = arith.constant 24 : index
    %56 = vector.load %arg2[%c0_28, %c24] : memref<16x72xbf16, #tpu.memory_space<vmem>>, vector<16x24xbf16>
    %cst_29 = arith.constant dense<0.000000e+00> : vector<16x64xf32>
    %57 = tpu.matmul %56, %55, %cst_29 {dimension_numbers = #tpu.dot_dimension_numbers<[1], [0], [0], [1], [0, 0, 1, 1], [], []>} : vector<16x24xbf16>, vector<24x64xbf16>, vector<16x64xf32> -> vector<16x64xf32>
    %58 = arith.addf %47, %57 : vector<16x64xf32>
    %c0_30 = arith.constant 0 : index
    %c16 = arith.constant 16 : index
    %59 = vector.load %arg7[%c0_30, %c16] : memref<8x82xbf16, #tpu.memory_space<vmem>>, vector<8x64xbf16>
    %60 = vector.broadcast %21 : vector<1x64xbf16> to vector<8x64xbf16>
    %61 = arith.mulf %59, %60 : vector<8x64xbf16>
    %c0_31 = arith.constant 0 : index
    %c17 = arith.constant 17 : index
    %62 = vector.load %arg7[%c0_31, %c17] : memref<8x82xbf16, #tpu.memory_space<vmem>>, vector<8x64xbf16>
    %c0_32 = arith.constant 0 : index
    %c18 = arith.constant 18 : index
    %63 = vector.load %arg7[%c0_32, %c18] : memref<8x82xbf16, #tpu.memory_space<vmem>>, vector<8x64xbf16>
    %64 = vector.broadcast %26 : vector<1x64xbf16> to vector<8x64xbf16>
    %65 = arith.mulf %63, %64 : vector<8x64xbf16>
    %66 = tpu.concatenate %61, %62, %65 in 0 : vector<8x64xbf16>, vector<8x64xbf16>, vector<8x64xbf16> -> vector<24x64xbf16>
    %c0_33 = arith.constant 0 : index
    %c48 = arith.constant 48 : index
    %67 = vector.load %arg2[%c0_33, %c48] : memref<16x72xbf16, #tpu.memory_space<vmem>>, vector<16x24xbf16>
    %cst_34 = arith.constant dense<0.000000e+00> : vector<16x64xf32>
    %68 = tpu.matmul %67, %66, %cst_34 {dimension_numbers = #tpu.dot_dimension_numbers<[1], [0], [0], [1], [0, 0, 1, 1], [], []>} : vector<16x24xbf16>, vector<24x64xbf16>, vector<16x64xf32> -> vector<16x64xf32>
    %69 = arith.addf %58, %68 : vector<16x64xf32>
    %c0_35 = arith.constant 0 : index
    %c0_36 = arith.constant 0 : index
    %70 = vector.load %arg3[%c0_35, %c0_36] : memref<16x1xf32, #tpu.memory_space<vmem>>, vector<16x1xf32>
    %71 = vector.broadcast %70 : vector<16x1xf32> to vector<16x64xf32>
    %72 = arith.addf %69, %71 : vector<16x64xf32>
    %cst_37 = arith.constant 0.000000e+00 : f32
    %73 = vector.broadcast %cst_37 : f32 to vector<16x64xf32>
    %74 = arith.maximumf %72, %73 : vector<16x64xf32>
    %75 = arith.truncf %74 : vector<16x64xf32> to vector<16x64xbf16>
    %c0_38 = arith.constant 0 : index
    %c9_39 = arith.constant 9 : index
    %76 = vector.load %arg8[%c0_38, %c9_39] : memref<16x82xbf16, #tpu.memory_space<vmem>>, vector<16x64xbf16>
    tpu.vector_store %arg8[%c0_38, %c9_39], %75 {strides = array<i32>} : memref<16x82xbf16, #tpu.memory_space<vmem>>, vector<16x64xbf16>,
    %c0_40 = arith.constant 0 : index
    %c0_41 = arith.constant 0 : index
    %77 = vector.load %arg8[%c0_40, %c0_41] : memref<16x82xbf16, #tpu.memory_space<vmem>>, vector<16x64xbf16>
    %78 = vector.broadcast %21 : vector<1x64xbf16> to vector<16x64xbf16>
    %79 = arith.mulf %77, %78 : vector<16x64xbf16>
    %c0_42 = arith.constant 0 : index
    %c1_43 = arith.constant 1 : index
    %80 = vector.load %arg8[%c0_42, %c1_43] : memref<16x82xbf16, #tpu.memory_space<vmem>>, vector<16x64xbf16>
    %c0_44 = arith.constant 0 : index
    %c2_45 = arith.constant 2 : index
    %81 = vector.load %arg8[%c0_44, %c2_45] : memref<16x82xbf16, #tpu.memory_space<vmem>>, vector<16x64xbf16>
    %82 = vector.broadcast %26 : vector<1x64xbf16> to vector<16x64xbf16>
    %83 = arith.mulf %81, %82 : vector<16x64xbf16>
    %84 = tpu.concatenate %79, %80, %83 in 0 : vector<16x64xbf16>, vector<16x64xbf16>, vector<16x64xbf16> -> vector<48x64xbf16>
    %c0_46 = arith.constant 0 : index
    %c0_47 = arith.constant 0 : index
    %85 = vector.load %arg4[%c0_46, %c0_47] : memref<16x144xbf16, #tpu.memory_space<vmem>>, vector<16x48xbf16>
    %cst_48 = arith.constant dense<0.000000e+00> : vector<16x64xf32>
    %86 = tpu.matmul %85, %84, %cst_48 {dimension_numbers = #tpu.dot_dimension_numbers<[1], [0], [0], [1], [0, 0, 1, 1], [], []>} : vector<16x48xbf16>, vector<48x64xbf16>, vector<16x64xf32> -> vector<16x64xf32>
    %c0_49 = arith.constant 0 : index
    %c8_50 = arith.constant 8 : index
    %87 = vector.load %arg8[%c0_49, %c8_50] : memref<16x82xbf16, #tpu.memory_space<vmem>>, vector<16x64xbf16>
    %88 = vector.broadcast %21 : vector<1x64xbf16> to vector<16x64xbf16>
    %89 = arith.mulf %87, %88 : vector<16x64xbf16>
    %c0_51 = arith.constant 0 : index
    %c9_52 = arith.constant 9 : index
    %90 = vector.load %arg8[%c0_51, %c9_52] : memref<16x82xbf16, #tpu.memory_space<vmem>>, vector<16x64xbf16>
    %c0_53 = arith.constant 0 : index
    %c10_54 = arith.constant 10 : index
    %91 = vector.load %arg8[%c0_53, %c10_54] : memref<16x82xbf16, #tpu.memory_space<vmem>>, vector<16x64xbf16>
    %92 = vector.broadcast %26 : vector<1x64xbf16> to vector<16x64xbf16>
    %93 = arith.mulf %91, %92 : vector<16x64xbf16>
    %94 = tpu.concatenate %89, %90, %93 in 0 : vector<16x64xbf16>, vector<16x64xbf16>, vector<16x64xbf16> -> vector<48x64xbf16>
    %c0_55 = arith.constant 0 : index
    %c48_56 = arith.constant 48 : index
    %95 = vector.load %arg4[%c0_55, %c48_56] : memref<16x144xbf16, #tpu.memory_space<vmem>>, vector<16x48xbf16>
    %cst_57 = arith.constant dense<0.000000e+00> : vector<16x64xf32>
    %96 = tpu.matmul %95, %94, %cst_57 {dimension_numbers = #tpu.dot_dimension_numbers<[1], [0], [0], [1], [0, 0, 1, 1], [], []>} : vector<16x48xbf16>, vector<48x64xbf16>, vector<16x64xf32> -> vector<16x64xf32>
    %97 = arith.addf %86, %96 : vector<16x64xf32>
    %c0_58 = arith.constant 0 : index
    %c16_59 = arith.constant 16 : index
    %98 = vector.load %arg8[%c0_58, %c16_59] : memref<16x82xbf16, #tpu.memory_space<vmem>>, vector<16x64xbf16>
    %99 = vector.broadcast %21 : vector<1x64xbf16> to vector<16x64xbf16>
    %100 = arith.mulf %98, %99 : vector<16x64xbf16>
    %c0_60 = arith.constant 0 : index
    %c17_61 = arith.constant 17 : index
    %101 = vector.load %arg8[%c0_60, %c17_61] : memref<16x82xbf16, #tpu.memory_space<vmem>>, vector<16x64xbf16>
    %c0_62 = arith.constant 0 : index
    %c18_63 = arith.constant 18 : index
    %102 = vector.load %arg8[%c0_62, %c18_63] : memref<16x82xbf16, #tpu.memory_space<vmem>>, vector<16x64xbf16>
    %103 = vector.broadcast %26 : vector<1x64xbf16> to vector<16x64xbf16>
    %104 = arith.mulf %102, %103 : vector<16x64xbf16>
    %105 = tpu.concatenate %100, %101, %104 in 0 : vector<16x64xbf16>, vector<16x64xbf16>, vector<16x64xbf16> -> vector<48x64xbf16>
    %c0_64 = arith.constant 0 : index
    %c96 = arith.constant 96 : index
    %106 = vector.load %arg4[%c0_64, %c96] : memref<16x144xbf16, #tpu.memory_space<vmem>>, vector<16x48xbf16>
    %cst_65 = arith.constant dense<0.000000e+00> : vector<16x64xf32>
    %107 = tpu.matmul %106, %105, %cst_65 {dimension_numbers = #tpu.dot_dimension_numbers<[1], [0], [0], [1], [0, 0, 1, 1], [], []>} : vector<16x48xbf16>, vector<48x64xbf16>, vector<16x64xf32> -> vector<16x64xf32>
    %108 = arith.addf %97, %107 : vector<16x64xf32>
    %c0_66 = arith.constant 0 : index
    %c0_67 = arith.constant 0 : index
    %109 = vector.load %arg5[%c0_66, %c0_67] : memref<16x1xf32, #tpu.memory_space<vmem>>, vector<16x1xf32>
    %110 = vector.broadcast %109 : vector<16x1xf32> to vector<16x64xf32>
    %111 = arith.addf %108, %110 : vector<16x64xf32>
    %cst_68 = arith.constant 0.000000e+00 : f32
    %112 = vector.broadcast %cst_68 : f32 to vector<16x64xf32>
    %113 = arith.maximumf %111, %112 : vector<16x64xf32>
    %114 = vector.shape_cast %113 : vector<16x64xf32> to vector<1x16x64xf32>
    %115 = arith.truncf %114 : vector<1x16x64xf32> to vector<1x16x64xbf16>
    %c0_69 = arith.constant 0 : index
    %c0_70 = arith.constant 0 : index
    %c0_71 = arith.constant 0 : index
    %116 = vector.load %arg6[%c0_69, %c0_70, %c0_71] : memref<1x16x64xbf16, #tpu.memory_space<vmem>>, vector<1x16x64xbf16>
    tpu.vector_store %arg6[%c0_69, %c0_70, %c0_71], %115 {strides = array<i32>} : memref<1x16x64xbf16, #tpu.memory_space<vmem>>, vector<1x16x64xbf16>,
    return
  }
  func.func @transform_0(%arg0: i32) -> (i32, i32, i32) {
    %c0_i32 = arith.constant 0 : i32
    %c0_i32_0 = arith.constant 0 : i32
    %c0_i32_1 = arith.constant 0 : i32
    return %arg0, %c0_i32, %c0_i32_0 : i32, i32, i32
  }
  func.func @transform_1(%arg0: i32) -> (i32, i32) {
    %c0_i32 = arith.constant 0 : i32
    %c0_i32_0 = arith.constant 0 : i32
    %c0_i32_1 = arith.constant 0 : i32
    return %c0_i32, %c0_i32_0 : i32, i32
  }
  func.func @transform_2(%arg0: i32) -> (i32, i32) {
    %c0_i32 = arith.constant 0 : i32
    %c0_i32_0 = arith.constant 0 : i32
    %c0_i32_1 = arith.constant 0 : i32
    return %c0_i32, %c0_i32_0 : i32, i32
  }
  func.func @transform_3(%arg0: i32) -> (i32, i32) {
    %c0_i32 = arith.constant 0 : i32
    %c0_i32_0 = arith.constant 0 : i32
    %c0_i32_1 = arith.constant 0 : i32
    return %c0_i32, %c0_i32_0 : i32, i32
  }
  func.func @transform_4(%arg0: i32) -> (i32, i32) {
    %c0_i32 = arith.constant 0 : i32
    %c0_i32_0 = arith.constant 0 : i32
    %c0_i32_1 = arith.constant 0 : i32
    return %c0_i32, %c0_i32_0 : i32, i32
  }
  func.func @transform_5(%arg0: i32) -> (i32, i32, i32) {
    %c0_i32 = arith.constant 0 : i32
    %c0_i32_0 = arith.constant 0 : i32
    %c0_i32_1 = arith.constant 0 : i32
    return %arg0, %c0_i32, %c0_i32_0 : i32, i32, i32
  }
}

module attributes {stable_mosaic.version = 11 : i64} {
  func.func @kernel(%arg0: i32, %arg1: memref<1x16x16xbf16, #tpu.memory_space<vmem>>, %arg2: memref<32x144xbf16, #tpu.memory_space<vmem>>, %arg3: memref<32x1xf32, #tpu.memory_space<vmem>>, %arg4: memref<32x288xbf16, #tpu.memory_space<vmem>>, %arg5: memref<32x1xf32, #tpu.memory_space<vmem>>, %arg6: memref<1x32x16xbf16, #tpu.memory_space<vmem>>, %arg7: memref<16x26xbf16, #tpu.memory_space<vmem>>, %arg8: memref<32x26xbf16, #tpu.memory_space<vmem>>) attributes {dimension_semantics = [#tpu.dimension_semantics<parallel>], iteration_bounds = array<i64: 2>, scalar_prefetch = 0 : i64, scratch_operands = 2 : i64, tpu.core_type = #tpu.core_type<tc>, window_params = [{transform_indices = @transform_0, window_bounds = array<i64: 1, 16, 16>}, {pipeline_mode = #tpu.pipeline_mode<synchronous>, transform_indices = @transform_1, window_bounds = array<i64: 32, 144>}, {pipeline_mode = #tpu.pipeline_mode<synchronous>, transform_indices = @transform_2, window_bounds = array<i64: 32, 1>}, {pipeline_mode = #tpu.pipeline_mode<synchronous>, transform_indices = @transform_3, window_bounds = array<i64: 32, 288>}, {pipeline_mode = #tpu.pipeline_mode<synchronous>, transform_indices = @transform_4, window_bounds = array<i64: 32, 1>}, {transform_indices = @transform_5, window_bounds = array<i64: 1, 32, 16>}]} {
    %0 = tpu.iota {dimensions = array<i32: 1>} : vector<1x16xi32>
    %c4_i32 = arith.constant 4 : i32
    %c0_i32 = arith.constant 0 : i32
    %1 = arith.cmpi eq, %c4_i32, %c0_i32 : i32
    %c1_i32 = arith.constant 1 : i32
    %2 = arith.select %1, %c1_i32, %c4_i32 : i32
    %3 = vector.broadcast %2 : i32 to vector<1x16xi32>
    %4 = arith.remsi %0, %3 : vector<1x16xi32>
    %c0_i32_0 = arith.constant 0 : i32
    %5 = vector.broadcast %c0_i32_0 : i32 to vector<1x16xi32>
    %6 = arith.cmpi ne, %4, %5 : vector<1x16xi32>
    %c0_i32_1 = arith.constant 0 : i32
    %7 = vector.broadcast %c0_i32_1 : i32 to vector<1x16xi32>
    %8 = arith.cmpi slt, %4, %7 : vector<1x16xi32>
    %c0_i32_2 = arith.constant 0 : i32
    %9 = arith.cmpi slt, %2, %c0_i32_2 : i32
    %10 = vector.broadcast %9 : i1 to vector<1x16xi1>
    %11 = vector.broadcast %10 : vector<1x16xi1> to vector<1x16xi1>
    %12 = arith.xori %8, %11 : vector<1x16xi1>
    %13 = arith.andi %12, %6 : vector<1x16xi1>
    %14 = vector.broadcast %2 : i32 to vector<1x16xi32>
    %15 = arith.addi %4, %14 : vector<1x16xi32>
    %16 = arith.select %13, %15, %4 : vector<1x16xi1>, vector<1x16xi32>
    %c0_i32_3 = arith.constant 0 : i32
    %17 = vector.broadcast %c0_i32_3 : i32 to vector<1x16xi32>
    %18 = arith.cmpi sgt, %16, %17 : vector<1x16xi32>
    %19 = arith.extui %18 : vector<1x16xi1> to vector<1x16xi32>
    %20 = arith.sitofp %19 : vector<1x16xi32> to vector<1x16xf32>
    %21 = arith.truncf %20 : vector<1x16xf32> to vector<1x16xbf16>
    %c3_i32 = arith.constant 3 : i32
    %22 = vector.broadcast %c3_i32 : i32 to vector<1x16xi32>
    %23 = arith.cmpi slt, %16, %22 : vector<1x16xi32>
    %24 = arith.extui %23 : vector<1x16xi1> to vector<1x16xi32>
    %25 = arith.sitofp %24 : vector<1x16xi32> to vector<1x16xf32>
    %26 = arith.truncf %25 : vector<1x16xf32> to vector<1x16xbf16>
    %cst = arith.constant 0.000000e+00 : bf16
    %27 = vector.broadcast %cst : bf16 to vector<16x5xbf16>
    %c0 = arith.constant 0 : index
    %c0_4 = arith.constant 0 : index
    %28 = vector.load %arg7[%c0, %c0_4] : memref<16x26xbf16, #tpu.memory_space<vmem>>, vector<16x5xbf16>
    tpu.vector_store %arg7[%c0, %c0_4], %27 {strides = array<i32>} : memref<16x26xbf16, #tpu.memory_space<vmem>>, vector<16x5xbf16>,
    %cst_5 = arith.constant 0.000000e+00 : bf16
    %29 = vector.broadcast %cst_5 : bf16 to vector<16x5xbf16>
    %c0_6 = arith.constant 0 : index
    %c21 = arith.constant 21 : index
    %30 = vector.load %arg7[%c0_6, %c21] : memref<16x26xbf16, #tpu.memory_space<vmem>>, vector<16x5xbf16>
    tpu.vector_store %arg7[%c0_6, %c21], %29 {strides = array<i32>} : memref<16x26xbf16, #tpu.memory_space<vmem>>, vector<16x5xbf16>,
    %cst_7 = arith.constant 0.000000e+00 : bf16
    %31 = vector.broadcast %cst_7 : bf16 to vector<32x5xbf16>
    %c0_8 = arith.constant 0 : index
    %c0_9 = arith.constant 0 : index
    %32 = vector.load %arg8[%c0_8, %c0_9] : memref<32x26xbf16, #tpu.memory_space<vmem>>, vector<32x5xbf16>
    tpu.vector_store %arg8[%c0_8, %c0_9], %31 {strides = array<i32>} : memref<32x26xbf16, #tpu.memory_space<vmem>>, vector<32x5xbf16>,
    %cst_10 = arith.constant 0.000000e+00 : bf16
    %33 = vector.broadcast %cst_10 : bf16 to vector<32x5xbf16>
    %c0_11 = arith.constant 0 : index
    %c21_12 = arith.constant 21 : index
    %34 = vector.load %arg8[%c0_11, %c21_12] : memref<32x26xbf16, #tpu.memory_space<vmem>>, vector<32x5xbf16>
    tpu.vector_store %arg8[%c0_11, %c21_12], %33 {strides = array<i32>} : memref<32x26xbf16, #tpu.memory_space<vmem>>, vector<32x5xbf16>,
    %c0_13 = arith.constant 0 : index
    %c0_14 = arith.constant 0 : index
    %c0_15 = arith.constant 0 : index
    %35 = vector.load %arg1[%c0_13, %c0_14, %c0_15] : memref<1x16x16xbf16, #tpu.memory_space<vmem>>, vector<1x16x16xbf16>
    %36 = vector.shape_cast %35 : vector<1x16x16xbf16> to vector<16x16xbf16>
    %c0_16 = arith.constant 0 : index
    %c5 = arith.constant 5 : index
    %37 = vector.load %arg7[%c0_16, %c5] : memref<16x26xbf16, #tpu.memory_space<vmem>>, vector<16x16xbf16>
    tpu.vector_store %arg7[%c0_16, %c5], %36 {strides = array<i32>} : memref<16x26xbf16, #tpu.memory_space<vmem>>, vector<16x16xbf16>,
    %c0_17 = arith.constant 0 : index
    %c0_18 = arith.constant 0 : index
    %38 = vector.load %arg7[%c0_17, %c0_18] : memref<16x26xbf16, #tpu.memory_space<vmem>>, vector<16x16xbf16>
    %39 = vector.broadcast %21 : vector<1x16xbf16> to vector<16x16xbf16>
    %40 = arith.mulf %38, %39 : vector<16x16xbf16>
    %c0_19 = arith.constant 0 : index
    %c1 = arith.constant 1 : index
    %41 = vector.load %arg7[%c0_19, %c1] : memref<16x26xbf16, #tpu.memory_space<vmem>>, vector<16x16xbf16>
    %c0_20 = arith.constant 0 : index
    %c2 = arith.constant 2 : index
    %42 = vector.load %arg7[%c0_20, %c2] : memref<16x26xbf16, #tpu.memory_space<vmem>>, vector<16x16xbf16>
    %43 = vector.broadcast %26 : vector<1x16xbf16> to vector<16x16xbf16>
    %44 = arith.mulf %42, %43 : vector<16x16xbf16>
    %45 = tpu.concatenate %40, %41, %44 in 0 : vector<16x16xbf16>, vector<16x16xbf16>, vector<16x16xbf16> -> vector<48x16xbf16>
    %c0_21 = arith.constant 0 : index
    %c0_22 = arith.constant 0 : index
    %46 = vector.load %arg2[%c0_21, %c0_22] : memref<32x144xbf16, #tpu.memory_space<vmem>>, vector<32x48xbf16>
    %cst_23 = arith.constant dense<0.000000e+00> : vector<32x16xf32>
    %47 = tpu.matmul %46, %45, %cst_23 {dimension_numbers = #tpu.dot_dimension_numbers<[1], [0], [0], [1], [0, 0, 1, 1], [], []>} : vector<32x48xbf16>, vector<48x16xbf16>, vector<32x16xf32> -> vector<32x16xf32>
    %c0_24 = arith.constant 0 : index
    %c4 = arith.constant 4 : index
    %48 = vector.load %arg7[%c0_24, %c4] : memref<16x26xbf16, #tpu.memory_space<vmem>>, vector<16x16xbf16>
    %49 = vector.broadcast %21 : vector<1x16xbf16> to vector<16x16xbf16>
    %50 = arith.mulf %48, %49 : vector<16x16xbf16>
    %c0_25 = arith.constant 0 : index
    %c5_26 = arith.constant 5 : index
    %51 = vector.load %arg7[%c0_25, %c5_26] : memref<16x26xbf16, #tpu.memory_space<vmem>>, vector<16x16xbf16>
    %c0_27 = arith.constant 0 : index
    %c6 = arith.constant 6 : index
    %52 = vector.load %arg7[%c0_27, %c6] : memref<16x26xbf16, #tpu.memory_space<vmem>>, vector<16x16xbf16>
    %53 = vector.broadcast %26 : vector<1x16xbf16> to vector<16x16xbf16>
    %54 = arith.mulf %52, %53 : vector<16x16xbf16>
    %55 = tpu.concatenate %50, %51, %54 in 0 : vector<16x16xbf16>, vector<16x16xbf16>, vector<16x16xbf16> -> vector<48x16xbf16>
    %c0_28 = arith.constant 0 : index
    %c48 = arith.constant 48 : index
    %56 = vector.load %arg2[%c0_28, %c48] : memref<32x144xbf16, #tpu.memory_space<vmem>>, vector<32x48xbf16>
    %cst_29 = arith.constant dense<0.000000e+00> : vector<32x16xf32>
    %57 = tpu.matmul %56, %55, %cst_29 {dimension_numbers = #tpu.dot_dimension_numbers<[1], [0], [0], [1], [0, 0, 1, 1], [], []>} : vector<32x48xbf16>, vector<48x16xbf16>, vector<32x16xf32> -> vector<32x16xf32>
    %58 = arith.addf %47, %57 : vector<32x16xf32>
    %c0_30 = arith.constant 0 : index
    %c8 = arith.constant 8 : index
    %59 = vector.load %arg7[%c0_30, %c8] : memref<16x26xbf16, #tpu.memory_space<vmem>>, vector<16x16xbf16>
    %60 = vector.broadcast %21 : vector<1x16xbf16> to vector<16x16xbf16>
    %61 = arith.mulf %59, %60 : vector<16x16xbf16>
    %c0_31 = arith.constant 0 : index
    %c9 = arith.constant 9 : index
    %62 = vector.load %arg7[%c0_31, %c9] : memref<16x26xbf16, #tpu.memory_space<vmem>>, vector<16x16xbf16>
    %c0_32 = arith.constant 0 : index
    %c10 = arith.constant 10 : index
    %63 = vector.load %arg7[%c0_32, %c10] : memref<16x26xbf16, #tpu.memory_space<vmem>>, vector<16x16xbf16>
    %64 = vector.broadcast %26 : vector<1x16xbf16> to vector<16x16xbf16>
    %65 = arith.mulf %63, %64 : vector<16x16xbf16>
    %66 = tpu.concatenate %61, %62, %65 in 0 : vector<16x16xbf16>, vector<16x16xbf16>, vector<16x16xbf16> -> vector<48x16xbf16>
    %c0_33 = arith.constant 0 : index
    %c96 = arith.constant 96 : index
    %67 = vector.load %arg2[%c0_33, %c96] : memref<32x144xbf16, #tpu.memory_space<vmem>>, vector<32x48xbf16>
    %cst_34 = arith.constant dense<0.000000e+00> : vector<32x16xf32>
    %68 = tpu.matmul %67, %66, %cst_34 {dimension_numbers = #tpu.dot_dimension_numbers<[1], [0], [0], [1], [0, 0, 1, 1], [], []>} : vector<32x48xbf16>, vector<48x16xbf16>, vector<32x16xf32> -> vector<32x16xf32>
    %69 = arith.addf %58, %68 : vector<32x16xf32>
    %c0_35 = arith.constant 0 : index
    %c0_36 = arith.constant 0 : index
    %70 = vector.load %arg3[%c0_35, %c0_36] : memref<32x1xf32, #tpu.memory_space<vmem>>, vector<32x1xf32>
    %71 = vector.broadcast %70 : vector<32x1xf32> to vector<32x16xf32>
    %72 = arith.addf %69, %71 : vector<32x16xf32>
    %cst_37 = arith.constant 0.000000e+00 : f32
    %73 = vector.broadcast %cst_37 : f32 to vector<32x16xf32>
    %74 = arith.maximumf %72, %73 : vector<32x16xf32>
    %75 = arith.truncf %74 : vector<32x16xf32> to vector<32x16xbf16>
    %c0_38 = arith.constant 0 : index
    %c5_39 = arith.constant 5 : index
    %76 = vector.load %arg8[%c0_38, %c5_39] : memref<32x26xbf16, #tpu.memory_space<vmem>>, vector<32x16xbf16>
    tpu.vector_store %arg8[%c0_38, %c5_39], %75 {strides = array<i32>} : memref<32x26xbf16, #tpu.memory_space<vmem>>, vector<32x16xbf16>,
    %c0_40 = arith.constant 0 : index
    %c0_41 = arith.constant 0 : index
    %77 = vector.load %arg8[%c0_40, %c0_41] : memref<32x26xbf16, #tpu.memory_space<vmem>>, vector<32x16xbf16>
    %78 = vector.broadcast %21 : vector<1x16xbf16> to vector<32x16xbf16>
    %79 = arith.mulf %77, %78 : vector<32x16xbf16>
    %c0_42 = arith.constant 0 : index
    %c1_43 = arith.constant 1 : index
    %80 = vector.load %arg8[%c0_42, %c1_43] : memref<32x26xbf16, #tpu.memory_space<vmem>>, vector<32x16xbf16>
    %c0_44 = arith.constant 0 : index
    %c2_45 = arith.constant 2 : index
    %81 = vector.load %arg8[%c0_44, %c2_45] : memref<32x26xbf16, #tpu.memory_space<vmem>>, vector<32x16xbf16>
    %82 = vector.broadcast %26 : vector<1x16xbf16> to vector<32x16xbf16>
    %83 = arith.mulf %81, %82 : vector<32x16xbf16>
    %84 = tpu.concatenate %79, %80, %83 in 0 : vector<32x16xbf16>, vector<32x16xbf16>, vector<32x16xbf16> -> vector<96x16xbf16>
    %c0_46 = arith.constant 0 : index
    %c0_47 = arith.constant 0 : index
    %85 = vector.load %arg4[%c0_46, %c0_47] : memref<32x288xbf16, #tpu.memory_space<vmem>>, vector<32x96xbf16>
    %cst_48 = arith.constant dense<0.000000e+00> : vector<32x16xf32>
    %86 = tpu.matmul %85, %84, %cst_48 {dimension_numbers = #tpu.dot_dimension_numbers<[1], [0], [0], [1], [0, 0, 1, 1], [], []>} : vector<32x96xbf16>, vector<96x16xbf16>, vector<32x16xf32> -> vector<32x16xf32>
    %c0_49 = arith.constant 0 : index
    %c4_50 = arith.constant 4 : index
    %87 = vector.load %arg8[%c0_49, %c4_50] : memref<32x26xbf16, #tpu.memory_space<vmem>>, vector<32x16xbf16>
    %88 = vector.broadcast %21 : vector<1x16xbf16> to vector<32x16xbf16>
    %89 = arith.mulf %87, %88 : vector<32x16xbf16>
    %c0_51 = arith.constant 0 : index
    %c5_52 = arith.constant 5 : index
    %90 = vector.load %arg8[%c0_51, %c5_52] : memref<32x26xbf16, #tpu.memory_space<vmem>>, vector<32x16xbf16>
    %c0_53 = arith.constant 0 : index
    %c6_54 = arith.constant 6 : index
    %91 = vector.load %arg8[%c0_53, %c6_54] : memref<32x26xbf16, #tpu.memory_space<vmem>>, vector<32x16xbf16>
    %92 = vector.broadcast %26 : vector<1x16xbf16> to vector<32x16xbf16>
    %93 = arith.mulf %91, %92 : vector<32x16xbf16>
    %94 = tpu.concatenate %89, %90, %93 in 0 : vector<32x16xbf16>, vector<32x16xbf16>, vector<32x16xbf16> -> vector<96x16xbf16>
    %c0_55 = arith.constant 0 : index
    %c96_56 = arith.constant 96 : index
    %95 = vector.load %arg4[%c0_55, %c96_56] : memref<32x288xbf16, #tpu.memory_space<vmem>>, vector<32x96xbf16>
    %cst_57 = arith.constant dense<0.000000e+00> : vector<32x16xf32>
    %96 = tpu.matmul %95, %94, %cst_57 {dimension_numbers = #tpu.dot_dimension_numbers<[1], [0], [0], [1], [0, 0, 1, 1], [], []>} : vector<32x96xbf16>, vector<96x16xbf16>, vector<32x16xf32> -> vector<32x16xf32>
    %97 = arith.addf %86, %96 : vector<32x16xf32>
    %c0_58 = arith.constant 0 : index
    %c8_59 = arith.constant 8 : index
    %98 = vector.load %arg8[%c0_58, %c8_59] : memref<32x26xbf16, #tpu.memory_space<vmem>>, vector<32x16xbf16>
    %99 = vector.broadcast %21 : vector<1x16xbf16> to vector<32x16xbf16>
    %100 = arith.mulf %98, %99 : vector<32x16xbf16>
    %c0_60 = arith.constant 0 : index
    %c9_61 = arith.constant 9 : index
    %101 = vector.load %arg8[%c0_60, %c9_61] : memref<32x26xbf16, #tpu.memory_space<vmem>>, vector<32x16xbf16>
    %c0_62 = arith.constant 0 : index
    %c10_63 = arith.constant 10 : index
    %102 = vector.load %arg8[%c0_62, %c10_63] : memref<32x26xbf16, #tpu.memory_space<vmem>>, vector<32x16xbf16>
    %103 = vector.broadcast %26 : vector<1x16xbf16> to vector<32x16xbf16>
    %104 = arith.mulf %102, %103 : vector<32x16xbf16>
    %105 = tpu.concatenate %100, %101, %104 in 0 : vector<32x16xbf16>, vector<32x16xbf16>, vector<32x16xbf16> -> vector<96x16xbf16>
    %c0_64 = arith.constant 0 : index
    %c192 = arith.constant 192 : index
    %106 = vector.load %arg4[%c0_64, %c192] : memref<32x288xbf16, #tpu.memory_space<vmem>>, vector<32x96xbf16>
    %cst_65 = arith.constant dense<0.000000e+00> : vector<32x16xf32>
    %107 = tpu.matmul %106, %105, %cst_65 {dimension_numbers = #tpu.dot_dimension_numbers<[1], [0], [0], [1], [0, 0, 1, 1], [], []>} : vector<32x96xbf16>, vector<96x16xbf16>, vector<32x16xf32> -> vector<32x16xf32>
    %108 = arith.addf %97, %107 : vector<32x16xf32>
    %c0_66 = arith.constant 0 : index
    %c0_67 = arith.constant 0 : index
    %109 = vector.load %arg5[%c0_66, %c0_67] : memref<32x1xf32, #tpu.memory_space<vmem>>, vector<32x1xf32>
    %110 = vector.broadcast %109 : vector<32x1xf32> to vector<32x16xf32>
    %111 = arith.addf %108, %110 : vector<32x16xf32>
    %cst_68 = arith.constant 0.000000e+00 : f32
    %112 = vector.broadcast %cst_68 : f32 to vector<32x16xf32>
    %113 = arith.maximumf %111, %112 : vector<32x16xf32>
    %114 = vector.shape_cast %113 : vector<32x16xf32> to vector<1x32x16xf32>
    %115 = arith.truncf %114 : vector<1x32x16xf32> to vector<1x32x16xbf16>
    %c0_69 = arith.constant 0 : index
    %c0_70 = arith.constant 0 : index
    %c0_71 = arith.constant 0 : index
    %116 = vector.load %arg6[%c0_69, %c0_70, %c0_71] : memref<1x32x16xbf16, #tpu.memory_space<vmem>>, vector<1x32x16xbf16>
    tpu.vector_store %arg6[%c0_69, %c0_70, %c0_71], %115 {strides = array<i32>} : memref<1x32x16xbf16, #tpu.memory_space<vmem>>, vector<1x32x16xbf16>,
    return
  }
  func.func @transform_0(%arg0: i32) -> (i32, i32, i32) {
    %c0_i32 = arith.constant 0 : i32
    %c0_i32_0 = arith.constant 0 : i32
    %c0_i32_1 = arith.constant 0 : i32
    return %arg0, %c0_i32, %c0_i32_0 : i32, i32, i32
  }
  func.func @transform_1(%arg0: i32) -> (i32, i32) {
    %c0_i32 = arith.constant 0 : i32
    %c0_i32_0 = arith.constant 0 : i32
    %c0_i32_1 = arith.constant 0 : i32
    return %c0_i32, %c0_i32_0 : i32, i32
  }
  func.func @transform_2(%arg0: i32) -> (i32, i32) {
    %c0_i32 = arith.constant 0 : i32
    %c0_i32_0 = arith.constant 0 : i32
    %c0_i32_1 = arith.constant 0 : i32
    return %c0_i32, %c0_i32_0 : i32, i32
  }
  func.func @transform_3(%arg0: i32) -> (i32, i32) {
    %c0_i32 = arith.constant 0 : i32
    %c0_i32_0 = arith.constant 0 : i32
    %c0_i32_1 = arith.constant 0 : i32
    return %c0_i32, %c0_i32_0 : i32, i32
  }
  func.func @transform_4(%arg0: i32) -> (i32, i32) {
    %c0_i32 = arith.constant 0 : i32
    %c0_i32_0 = arith.constant 0 : i32
    %c0_i32_1 = arith.constant 0 : i32
    return %c0_i32, %c0_i32_0 : i32, i32
  }
  func.func @transform_5(%arg0: i32) -> (i32, i32, i32) {
    %c0_i32 = arith.constant 0 : i32
    %c0_i32_0 = arith.constant 0 : i32
    %c0_i32_1 = arith.constant 0 : i32
    return %arg0, %c0_i32, %c0_i32_0 : i32, i32, i32
  }
}

module attributes {stable_mosaic.version = 11 : i64} {
  func.func @kernel(%arg0: i32, %arg1: memref<1x16x64xbf16, #tpu.memory_space<vmem>>, %arg2: memref<1x32x64xbf16, #tpu.memory_space<vmem>>, %arg3: memref<16x432xbf16, #tpu.memory_space<vmem>>, %arg4: memref<16x1xf32, #tpu.memory_space<vmem>>, %arg5: memref<16x144xbf16, #tpu.memory_space<vmem>>, %arg6: memref<16x1xf32, #tpu.memory_space<vmem>>, %arg7: memref<1x16x64xbf16, #tpu.memory_space<vmem>>, %arg8: memref<48x82xbf16, #tpu.memory_space<vmem>>, %arg9: memref<16x82xbf16, #tpu.memory_space<vmem>>) attributes {dimension_semantics = [#tpu.dimension_semantics<parallel>], iteration_bounds = array<i64: 2>, scalar_prefetch = 0 : i64, scratch_operands = 2 : i64, tpu.core_type = #tpu.core_type<tc>, window_params = [{transform_indices = @transform_0, window_bounds = array<i64: 1, 16, 64>}, {transform_indices = @transform_1, window_bounds = array<i64: 1, 32, 64>}, {pipeline_mode = #tpu.pipeline_mode<synchronous>, transform_indices = @transform_2, window_bounds = array<i64: 16, 432>}, {pipeline_mode = #tpu.pipeline_mode<synchronous>, transform_indices = @transform_3, window_bounds = array<i64: 16, 1>}, {pipeline_mode = #tpu.pipeline_mode<synchronous>, transform_indices = @transform_4, window_bounds = array<i64: 16, 144>}, {pipeline_mode = #tpu.pipeline_mode<synchronous>, transform_indices = @transform_5, window_bounds = array<i64: 16, 1>}, {transform_indices = @transform_6, window_bounds = array<i64: 1, 16, 64>}]} {
    %0 = tpu.iota {dimensions = array<i32: 1>} : vector<1x64xi32>
    %c8_i32 = arith.constant 8 : i32
    %c0_i32 = arith.constant 0 : i32
    %1 = arith.cmpi eq, %c8_i32, %c0_i32 : i32
    %c1_i32 = arith.constant 1 : i32
    %2 = arith.select %1, %c1_i32, %c8_i32 : i32
    %3 = vector.broadcast %2 : i32 to vector<1x64xi32>
    %4 = arith.remsi %0, %3 : vector<1x64xi32>
    %c0_i32_0 = arith.constant 0 : i32
    %5 = vector.broadcast %c0_i32_0 : i32 to vector<1x64xi32>
    %6 = arith.cmpi ne, %4, %5 : vector<1x64xi32>
    %c0_i32_1 = arith.constant 0 : i32
    %7 = vector.broadcast %c0_i32_1 : i32 to vector<1x64xi32>
    %8 = arith.cmpi slt, %4, %7 : vector<1x64xi32>
    %c0_i32_2 = arith.constant 0 : i32
    %9 = arith.cmpi slt, %2, %c0_i32_2 : i32
    %10 = vector.broadcast %9 : i1 to vector<1x64xi1>
    %11 = vector.broadcast %10 : vector<1x64xi1> to vector<1x64xi1>
    %12 = arith.xori %8, %11 : vector<1x64xi1>
    %13 = arith.andi %12, %6 : vector<1x64xi1>
    %14 = vector.broadcast %2 : i32 to vector<1x64xi32>
    %15 = arith.addi %4, %14 : vector<1x64xi32>
    %16 = arith.select %13, %15, %4 : vector<1x64xi1>, vector<1x64xi32>
    %c0_i32_3 = arith.constant 0 : i32
    %17 = vector.broadcast %c0_i32_3 : i32 to vector<1x64xi32>
    %18 = arith.cmpi sgt, %16, %17 : vector<1x64xi32>
    %19 = arith.extui %18 : vector<1x64xi1> to vector<1x64xi32>
    %20 = arith.sitofp %19 : vector<1x64xi32> to vector<1x64xf32>
    %21 = arith.truncf %20 : vector<1x64xf32> to vector<1x64xbf16>
    %c7_i32 = arith.constant 7 : i32
    %22 = vector.broadcast %c7_i32 : i32 to vector<1x64xi32>
    %23 = arith.cmpi slt, %16, %22 : vector<1x64xi32>
    %24 = arith.extui %23 : vector<1x64xi1> to vector<1x64xi32>
    %25 = arith.sitofp %24 : vector<1x64xi32> to vector<1x64xf32>
    %26 = arith.truncf %25 : vector<1x64xf32> to vector<1x64xbf16>
    %cst = arith.constant 0.000000e+00 : bf16
    %27 = vector.broadcast %cst : bf16 to vector<48x9xbf16>
    %c0 = arith.constant 0 : index
    %c0_4 = arith.constant 0 : index
    %28 = vector.load %arg8[%c0, %c0_4] : memref<48x82xbf16, #tpu.memory_space<vmem>>, vector<48x9xbf16>
    tpu.vector_store %arg8[%c0, %c0_4], %27 {strides = array<i32>} : memref<48x82xbf16, #tpu.memory_space<vmem>>, vector<48x9xbf16>,
    %cst_5 = arith.constant 0.000000e+00 : bf16
    %29 = vector.broadcast %cst_5 : bf16 to vector<48x9xbf16>
    %c0_6 = arith.constant 0 : index
    %c73 = arith.constant 73 : index
    %30 = vector.load %arg8[%c0_6, %c73] : memref<48x82xbf16, #tpu.memory_space<vmem>>, vector<48x9xbf16>
    tpu.vector_store %arg8[%c0_6, %c73], %29 {strides = array<i32>} : memref<48x82xbf16, #tpu.memory_space<vmem>>, vector<48x9xbf16>,
    %cst_7 = arith.constant 0.000000e+00 : bf16
    %31 = vector.broadcast %cst_7 : bf16 to vector<16x9xbf16>
    %c0_8 = arith.constant 0 : index
    %c0_9 = arith.constant 0 : index
    %32 = vector.load %arg9[%c0_8, %c0_9] : memref<16x82xbf16, #tpu.memory_space<vmem>>, vector<16x9xbf16>
    tpu.vector_store %arg9[%c0_8, %c0_9], %31 {strides = array<i32>} : memref<16x82xbf16, #tpu.memory_space<vmem>>, vector<16x9xbf16>,
    %cst_10 = arith.constant 0.000000e+00 : bf16
    %33 = vector.broadcast %cst_10 : bf16 to vector<16x9xbf16>
    %c0_11 = arith.constant 0 : index
    %c73_12 = arith.constant 73 : index
    %34 = vector.load %arg9[%c0_11, %c73_12] : memref<16x82xbf16, #tpu.memory_space<vmem>>, vector<16x9xbf16>
    tpu.vector_store %arg9[%c0_11, %c73_12], %33 {strides = array<i32>} : memref<16x82xbf16, #tpu.memory_space<vmem>>, vector<16x9xbf16>,
    %c0_13 = arith.constant 0 : index
    %c0_14 = arith.constant 0 : index
    %c0_15 = arith.constant 0 : index
    %35 = vector.load %arg1[%c0_13, %c0_14, %c0_15] : memref<1x16x64xbf16, #tpu.memory_space<vmem>>, vector<1x16x64xbf16>
    %36 = vector.shape_cast %35 : vector<1x16x64xbf16> to vector<16x64xbf16>
    %c0_16 = arith.constant 0 : index
    %c9 = arith.constant 9 : index
    %37 = vector.load %arg8[%c0_16, %c9] : memref<48x82xbf16, #tpu.memory_space<vmem>>, vector<16x64xbf16>
    tpu.vector_store %arg8[%c0_16, %c9], %36 {strides = array<i32>} : memref<48x82xbf16, #tpu.memory_space<vmem>>, vector<16x64xbf16>,
    %c0_17 = arith.constant 0 : index
    %c0_18 = arith.constant 0 : index
    %c0_19 = arith.constant 0 : index
    %38 = vector.load %arg2[%c0_17, %c0_18, %c0_19] : memref<1x32x64xbf16, #tpu.memory_space<vmem>>, vector<1x32x64xbf16>
    %39 = vector.shape_cast %38 : vector<1x32x64xbf16> to vector<32x64xbf16>
    %c16 = arith.constant 16 : index
    %c9_20 = arith.constant 9 : index
    %40 = vector.load %arg8[%c16, %c9_20] : memref<48x82xbf16, #tpu.memory_space<vmem>>, vector<32x64xbf16>
    tpu.vector_store %arg8[%c16, %c9_20], %39 {strides = array<i32>} : memref<48x82xbf16, #tpu.memory_space<vmem>>, vector<32x64xbf16>,
    %c0_21 = arith.constant 0 : index
    %c0_22 = arith.constant 0 : index
    %41 = vector.load %arg8[%c0_21, %c0_22] : memref<48x82xbf16, #tpu.memory_space<vmem>>, vector<48x64xbf16>
    %42 = vector.broadcast %21 : vector<1x64xbf16> to vector<48x64xbf16>
    %43 = arith.mulf %41, %42 : vector<48x64xbf16>
    %c0_23 = arith.constant 0 : index
    %c1 = arith.constant 1 : index
    %44 = vector.load %arg8[%c0_23, %c1] : memref<48x82xbf16, #tpu.memory_space<vmem>>, vector<48x64xbf16>
    %c0_24 = arith.constant 0 : index
    %c2 = arith.constant 2 : index
    %45 = vector.load %arg8[%c0_24, %c2] : memref<48x82xbf16, #tpu.memory_space<vmem>>, vector<48x64xbf16>
    %46 = vector.broadcast %26 : vector<1x64xbf16> to vector<48x64xbf16>
    %47 = arith.mulf %45, %46 : vector<48x64xbf16>
    %48 = tpu.concatenate %43, %44, %47 in 0 : vector<48x64xbf16>, vector<48x64xbf16>, vector<48x64xbf16> -> vector<144x64xbf16>
    %c0_25 = arith.constant 0 : index
    %c0_26 = arith.constant 0 : index
    %49 = vector.load %arg3[%c0_25, %c0_26] : memref<16x432xbf16, #tpu.memory_space<vmem>>, vector<16x144xbf16>
    %cst_27 = arith.constant dense<0.000000e+00> : vector<16x64xf32>
    %50 = tpu.matmul %49, %48, %cst_27 {dimension_numbers = #tpu.dot_dimension_numbers<[1], [0], [0], [1], [0, 0, 1, 1], [], []>} : vector<16x144xbf16>, vector<144x64xbf16>, vector<16x64xf32> -> vector<16x64xf32>
    %c0_28 = arith.constant 0 : index
    %c8 = arith.constant 8 : index
    %51 = vector.load %arg8[%c0_28, %c8] : memref<48x82xbf16, #tpu.memory_space<vmem>>, vector<48x64xbf16>
    %52 = vector.broadcast %21 : vector<1x64xbf16> to vector<48x64xbf16>
    %53 = arith.mulf %51, %52 : vector<48x64xbf16>
    %c0_29 = arith.constant 0 : index
    %c9_30 = arith.constant 9 : index
    %54 = vector.load %arg8[%c0_29, %c9_30] : memref<48x82xbf16, #tpu.memory_space<vmem>>, vector<48x64xbf16>
    %c0_31 = arith.constant 0 : index
    %c10 = arith.constant 10 : index
    %55 = vector.load %arg8[%c0_31, %c10] : memref<48x82xbf16, #tpu.memory_space<vmem>>, vector<48x64xbf16>
    %56 = vector.broadcast %26 : vector<1x64xbf16> to vector<48x64xbf16>
    %57 = arith.mulf %55, %56 : vector<48x64xbf16>
    %58 = tpu.concatenate %53, %54, %57 in 0 : vector<48x64xbf16>, vector<48x64xbf16>, vector<48x64xbf16> -> vector<144x64xbf16>
    %c0_32 = arith.constant 0 : index
    %c144 = arith.constant 144 : index
    %59 = vector.load %arg3[%c0_32, %c144] : memref<16x432xbf16, #tpu.memory_space<vmem>>, vector<16x144xbf16>
    %cst_33 = arith.constant dense<0.000000e+00> : vector<16x64xf32>
    %60 = tpu.matmul %59, %58, %cst_33 {dimension_numbers = #tpu.dot_dimension_numbers<[1], [0], [0], [1], [0, 0, 1, 1], [], []>} : vector<16x144xbf16>, vector<144x64xbf16>, vector<16x64xf32> -> vector<16x64xf32>
    %61 = arith.addf %50, %60 : vector<16x64xf32>
    %c0_34 = arith.constant 0 : index
    %c16_35 = arith.constant 16 : index
    %62 = vector.load %arg8[%c0_34, %c16_35] : memref<48x82xbf16, #tpu.memory_space<vmem>>, vector<48x64xbf16>
    %63 = vector.broadcast %21 : vector<1x64xbf16> to vector<48x64xbf16>
    %64 = arith.mulf %62, %63 : vector<48x64xbf16>
    %c0_36 = arith.constant 0 : index
    %c17 = arith.constant 17 : index
    %65 = vector.load %arg8[%c0_36, %c17] : memref<48x82xbf16, #tpu.memory_space<vmem>>, vector<48x64xbf16>
    %c0_37 = arith.constant 0 : index
    %c18 = arith.constant 18 : index
    %66 = vector.load %arg8[%c0_37, %c18] : memref<48x82xbf16, #tpu.memory_space<vmem>>, vector<48x64xbf16>
    %67 = vector.broadcast %26 : vector<1x64xbf16> to vector<48x64xbf16>
    %68 = arith.mulf %66, %67 : vector<48x64xbf16>
    %69 = tpu.concatenate %64, %65, %68 in 0 : vector<48x64xbf16>, vector<48x64xbf16>, vector<48x64xbf16> -> vector<144x64xbf16>
    %c0_38 = arith.constant 0 : index
    %c288 = arith.constant 288 : index
    %70 = vector.load %arg3[%c0_38, %c288] : memref<16x432xbf16, #tpu.memory_space<vmem>>, vector<16x144xbf16>
    %cst_39 = arith.constant dense<0.000000e+00> : vector<16x64xf32>
    %71 = tpu.matmul %70, %69, %cst_39 {dimension_numbers = #tpu.dot_dimension_numbers<[1], [0], [0], [1], [0, 0, 1, 1], [], []>} : vector<16x144xbf16>, vector<144x64xbf16>, vector<16x64xf32> -> vector<16x64xf32>
    %72 = arith.addf %61, %71 : vector<16x64xf32>
    %c0_40 = arith.constant 0 : index
    %c0_41 = arith.constant 0 : index
    %73 = vector.load %arg4[%c0_40, %c0_41] : memref<16x1xf32, #tpu.memory_space<vmem>>, vector<16x1xf32>
    %74 = vector.broadcast %73 : vector<16x1xf32> to vector<16x64xf32>
    %75 = arith.addf %72, %74 : vector<16x64xf32>
    %cst_42 = arith.constant 0.000000e+00 : f32
    %76 = vector.broadcast %cst_42 : f32 to vector<16x64xf32>
    %77 = arith.maximumf %75, %76 : vector<16x64xf32>
    %78 = arith.truncf %77 : vector<16x64xf32> to vector<16x64xbf16>
    %c0_43 = arith.constant 0 : index
    %c9_44 = arith.constant 9 : index
    %79 = vector.load %arg9[%c0_43, %c9_44] : memref<16x82xbf16, #tpu.memory_space<vmem>>, vector<16x64xbf16>
    tpu.vector_store %arg9[%c0_43, %c9_44], %78 {strides = array<i32>} : memref<16x82xbf16, #tpu.memory_space<vmem>>, vector<16x64xbf16>,
    %c0_45 = arith.constant 0 : index
    %c0_46 = arith.constant 0 : index
    %80 = vector.load %arg9[%c0_45, %c0_46] : memref<16x82xbf16, #tpu.memory_space<vmem>>, vector<16x64xbf16>
    %81 = vector.broadcast %21 : vector<1x64xbf16> to vector<16x64xbf16>
    %82 = arith.mulf %80, %81 : vector<16x64xbf16>
    %c0_47 = arith.constant 0 : index
    %c1_48 = arith.constant 1 : index
    %83 = vector.load %arg9[%c0_47, %c1_48] : memref<16x82xbf16, #tpu.memory_space<vmem>>, vector<16x64xbf16>
    %c0_49 = arith.constant 0 : index
    %c2_50 = arith.constant 2 : index
    %84 = vector.load %arg9[%c0_49, %c2_50] : memref<16x82xbf16, #tpu.memory_space<vmem>>, vector<16x64xbf16>
    %85 = vector.broadcast %26 : vector<1x64xbf16> to vector<16x64xbf16>
    %86 = arith.mulf %84, %85 : vector<16x64xbf16>
    %87 = tpu.concatenate %82, %83, %86 in 0 : vector<16x64xbf16>, vector<16x64xbf16>, vector<16x64xbf16> -> vector<48x64xbf16>
    %c0_51 = arith.constant 0 : index
    %c0_52 = arith.constant 0 : index
    %88 = vector.load %arg5[%c0_51, %c0_52] : memref<16x144xbf16, #tpu.memory_space<vmem>>, vector<16x48xbf16>
    %cst_53 = arith.constant dense<0.000000e+00> : vector<16x64xf32>
    %89 = tpu.matmul %88, %87, %cst_53 {dimension_numbers = #tpu.dot_dimension_numbers<[1], [0], [0], [1], [0, 0, 1, 1], [], []>} : vector<16x48xbf16>, vector<48x64xbf16>, vector<16x64xf32> -> vector<16x64xf32>
    %c0_54 = arith.constant 0 : index
    %c8_55 = arith.constant 8 : index
    %90 = vector.load %arg9[%c0_54, %c8_55] : memref<16x82xbf16, #tpu.memory_space<vmem>>, vector<16x64xbf16>
    %91 = vector.broadcast %21 : vector<1x64xbf16> to vector<16x64xbf16>
    %92 = arith.mulf %90, %91 : vector<16x64xbf16>
    %c0_56 = arith.constant 0 : index
    %c9_57 = arith.constant 9 : index
    %93 = vector.load %arg9[%c0_56, %c9_57] : memref<16x82xbf16, #tpu.memory_space<vmem>>, vector<16x64xbf16>
    %c0_58 = arith.constant 0 : index
    %c10_59 = arith.constant 10 : index
    %94 = vector.load %arg9[%c0_58, %c10_59] : memref<16x82xbf16, #tpu.memory_space<vmem>>, vector<16x64xbf16>
    %95 = vector.broadcast %26 : vector<1x64xbf16> to vector<16x64xbf16>
    %96 = arith.mulf %94, %95 : vector<16x64xbf16>
    %97 = tpu.concatenate %92, %93, %96 in 0 : vector<16x64xbf16>, vector<16x64xbf16>, vector<16x64xbf16> -> vector<48x64xbf16>
    %c0_60 = arith.constant 0 : index
    %c48 = arith.constant 48 : index
    %98 = vector.load %arg5[%c0_60, %c48] : memref<16x144xbf16, #tpu.memory_space<vmem>>, vector<16x48xbf16>
    %cst_61 = arith.constant dense<0.000000e+00> : vector<16x64xf32>
    %99 = tpu.matmul %98, %97, %cst_61 {dimension_numbers = #tpu.dot_dimension_numbers<[1], [0], [0], [1], [0, 0, 1, 1], [], []>} : vector<16x48xbf16>, vector<48x64xbf16>, vector<16x64xf32> -> vector<16x64xf32>
    %100 = arith.addf %89, %99 : vector<16x64xf32>
    %c0_62 = arith.constant 0 : index
    %c16_63 = arith.constant 16 : index
    %101 = vector.load %arg9[%c0_62, %c16_63] : memref<16x82xbf16, #tpu.memory_space<vmem>>, vector<16x64xbf16>
    %102 = vector.broadcast %21 : vector<1x64xbf16> to vector<16x64xbf16>
    %103 = arith.mulf %101, %102 : vector<16x64xbf16>
    %c0_64 = arith.constant 0 : index
    %c17_65 = arith.constant 17 : index
    %104 = vector.load %arg9[%c0_64, %c17_65] : memref<16x82xbf16, #tpu.memory_space<vmem>>, vector<16x64xbf16>
    %c0_66 = arith.constant 0 : index
    %c18_67 = arith.constant 18 : index
    %105 = vector.load %arg9[%c0_66, %c18_67] : memref<16x82xbf16, #tpu.memory_space<vmem>>, vector<16x64xbf16>
    %106 = vector.broadcast %26 : vector<1x64xbf16> to vector<16x64xbf16>
    %107 = arith.mulf %105, %106 : vector<16x64xbf16>
    %108 = tpu.concatenate %103, %104, %107 in 0 : vector<16x64xbf16>, vector<16x64xbf16>, vector<16x64xbf16> -> vector<48x64xbf16>
    %c0_68 = arith.constant 0 : index
    %c96 = arith.constant 96 : index
    %109 = vector.load %arg5[%c0_68, %c96] : memref<16x144xbf16, #tpu.memory_space<vmem>>, vector<16x48xbf16>
    %cst_69 = arith.constant dense<0.000000e+00> : vector<16x64xf32>
    %110 = tpu.matmul %109, %108, %cst_69 {dimension_numbers = #tpu.dot_dimension_numbers<[1], [0], [0], [1], [0, 0, 1, 1], [], []>} : vector<16x48xbf16>, vector<48x64xbf16>, vector<16x64xf32> -> vector<16x64xf32>
    %111 = arith.addf %100, %110 : vector<16x64xf32>
    %c0_70 = arith.constant 0 : index
    %c0_71 = arith.constant 0 : index
    %112 = vector.load %arg6[%c0_70, %c0_71] : memref<16x1xf32, #tpu.memory_space<vmem>>, vector<16x1xf32>
    %113 = vector.broadcast %112 : vector<16x1xf32> to vector<16x64xf32>
    %114 = arith.addf %111, %113 : vector<16x64xf32>
    %cst_72 = arith.constant 0.000000e+00 : f32
    %115 = vector.broadcast %cst_72 : f32 to vector<16x64xf32>
    %116 = arith.maximumf %114, %115 : vector<16x64xf32>
    %117 = vector.shape_cast %116 : vector<16x64xf32> to vector<1x16x64xf32>
    %118 = arith.truncf %117 : vector<1x16x64xf32> to vector<1x16x64xbf16>
    %c0_73 = arith.constant 0 : index
    %c0_74 = arith.constant 0 : index
    %c0_75 = arith.constant 0 : index
    %119 = vector.load %arg7[%c0_73, %c0_74, %c0_75] : memref<1x16x64xbf16, #tpu.memory_space<vmem>>, vector<1x16x64xbf16>
    tpu.vector_store %arg7[%c0_73, %c0_74, %c0_75], %118 {strides = array<i32>} : memref<1x16x64xbf16, #tpu.memory_space<vmem>>, vector<1x16x64xbf16>,
    return
  }
  func.func @transform_0(%arg0: i32) -> (i32, i32, i32) {
    %c0_i32 = arith.constant 0 : i32
    %c0_i32_0 = arith.constant 0 : i32
    %c0_i32_1 = arith.constant 0 : i32
    return %arg0, %c0_i32, %c0_i32_0 : i32, i32, i32
  }
  func.func @transform_1(%arg0: i32) -> (i32, i32, i32) {
    %c0_i32 = arith.constant 0 : i32
    %c0_i32_0 = arith.constant 0 : i32
    %c0_i32_1 = arith.constant 0 : i32
    return %arg0, %c0_i32, %c0_i32_0 : i32, i32, i32
  }
  func.func @transform_2(%arg0: i32) -> (i32, i32) {
    %c0_i32 = arith.constant 0 : i32
    %c0_i32_0 = arith.constant 0 : i32
    %c0_i32_1 = arith.constant 0 : i32
    return %c0_i32, %c0_i32_0 : i32, i32
  }
  func.func @transform_3(%arg0: i32) -> (i32, i32) {
    %c0_i32 = arith.constant 0 : i32
    %c0_i32_0 = arith.constant 0 : i32
    %c0_i32_1 = arith.constant 0 : i32
    return %c0_i32, %c0_i32_0 : i32, i32
  }
  func.func @transform_4(%arg0: i32) -> (i32, i32) {
    %c0_i32 = arith.constant 0 : i32
    %c0_i32_0 = arith.constant 0 : i32
    %c0_i32_1 = arith.constant 0 : i32
    return %c0_i32, %c0_i32_0 : i32, i32
  }
  func.func @transform_5(%arg0: i32) -> (i32, i32) {
    %c0_i32 = arith.constant 0 : i32
    %c0_i32_0 = arith.constant 0 : i32
    %c0_i32_1 = arith.constant 0 : i32
    return %c0_i32, %c0_i32_0 : i32, i32
  }
  func.func @transform_6(%arg0: i32) -> (i32, i32, i32) {
    %c0_i32 = arith.constant 0 : i32
    %c0_i32_0 = arith.constant 0 : i32
    %c0_i32_1 = arith.constant 0 : i32
    return %arg0, %c0_i32, %c0_i32_0 : i32, i32, i32
  }
}

module attributes {stable_mosaic.version = 11 : i64} {
  func.func @kernel(%arg0: i32, %arg1: memref<1x8x256xbf16, #tpu.memory_space<vmem>>, %arg2: memref<1x16x256xbf16, #tpu.memory_space<vmem>>, %arg3: memref<8x216xbf16, #tpu.memory_space<vmem>>, %arg4: memref<8x1xf32, #tpu.memory_space<vmem>>, %arg5: memref<8x72xbf16, #tpu.memory_space<vmem>>, %arg6: memref<8x1xf32, #tpu.memory_space<vmem>>, %arg7: memref<1x8x256xbf16, #tpu.memory_space<vmem>>, %arg8: memref<24x290xbf16, #tpu.memory_space<vmem>>, %arg9: memref<8x290xbf16, #tpu.memory_space<vmem>>) attributes {dimension_semantics = [#tpu.dimension_semantics<parallel>], iteration_bounds = array<i64: 2>, scalar_prefetch = 0 : i64, scratch_operands = 2 : i64, tpu.core_type = #tpu.core_type<tc>, window_params = [{transform_indices = @transform_0, window_bounds = array<i64: 1, 8, 256>}, {transform_indices = @transform_1, window_bounds = array<i64: 1, 16, 256>}, {pipeline_mode = #tpu.pipeline_mode<synchronous>, transform_indices = @transform_2, window_bounds = array<i64: 8, 216>}, {pipeline_mode = #tpu.pipeline_mode<synchronous>, transform_indices = @transform_3, window_bounds = array<i64: 8, 1>}, {pipeline_mode = #tpu.pipeline_mode<synchronous>, transform_indices = @transform_4, window_bounds = array<i64: 8, 72>}, {pipeline_mode = #tpu.pipeline_mode<synchronous>, transform_indices = @transform_5, window_bounds = array<i64: 8, 1>}, {transform_indices = @transform_6, window_bounds = array<i64: 1, 8, 256>}]} {
    %0 = tpu.iota {dimensions = array<i32: 1>} : vector<1x256xi32>
    %c16_i32 = arith.constant 16 : i32
    %c0_i32 = arith.constant 0 : i32
    %1 = arith.cmpi eq, %c16_i32, %c0_i32 : i32
    %c1_i32 = arith.constant 1 : i32
    %2 = arith.select %1, %c1_i32, %c16_i32 : i32
    %3 = vector.broadcast %2 : i32 to vector<1x256xi32>
    %4 = arith.remsi %0, %3 : vector<1x256xi32>
    %c0_i32_0 = arith.constant 0 : i32
    %5 = vector.broadcast %c0_i32_0 : i32 to vector<1x256xi32>
    %6 = arith.cmpi ne, %4, %5 : vector<1x256xi32>
    %c0_i32_1 = arith.constant 0 : i32
    %7 = vector.broadcast %c0_i32_1 : i32 to vector<1x256xi32>
    %8 = arith.cmpi slt, %4, %7 : vector<1x256xi32>
    %c0_i32_2 = arith.constant 0 : i32
    %9 = arith.cmpi slt, %2, %c0_i32_2 : i32
    %10 = vector.broadcast %9 : i1 to vector<1x256xi1>
    %11 = vector.broadcast %10 : vector<1x256xi1> to vector<1x256xi1>
    %12 = arith.xori %8, %11 : vector<1x256xi1>
    %13 = arith.andi %12, %6 : vector<1x256xi1>
    %14 = vector.broadcast %2 : i32 to vector<1x256xi32>
    %15 = arith.addi %4, %14 : vector<1x256xi32>
    %16 = arith.select %13, %15, %4 : vector<1x256xi1>, vector<1x256xi32>
    %c0_i32_3 = arith.constant 0 : i32
    %17 = vector.broadcast %c0_i32_3 : i32 to vector<1x256xi32>
    %18 = arith.cmpi sgt, %16, %17 : vector<1x256xi32>
    %19 = arith.extui %18 : vector<1x256xi1> to vector<1x256xi32>
    %20 = arith.sitofp %19 : vector<1x256xi32> to vector<1x256xf32>
    %21 = arith.truncf %20 : vector<1x256xf32> to vector<1x256xbf16>
    %c15_i32 = arith.constant 15 : i32
    %22 = vector.broadcast %c15_i32 : i32 to vector<1x256xi32>
    %23 = arith.cmpi slt, %16, %22 : vector<1x256xi32>
    %24 = arith.extui %23 : vector<1x256xi1> to vector<1x256xi32>
    %25 = arith.sitofp %24 : vector<1x256xi32> to vector<1x256xf32>
    %26 = arith.truncf %25 : vector<1x256xf32> to vector<1x256xbf16>
    %cst = arith.constant 0.000000e+00 : bf16
    %27 = vector.broadcast %cst : bf16 to vector<24x17xbf16>
    %c0 = arith.constant 0 : index
    %c0_4 = arith.constant 0 : index
    %28 = vector.load %arg8[%c0, %c0_4] : memref<24x290xbf16, #tpu.memory_space<vmem>>, vector<24x17xbf16>
    tpu.vector_store %arg8[%c0, %c0_4], %27 {strides = array<i32>} : memref<24x290xbf16, #tpu.memory_space<vmem>>, vector<24x17xbf16>,
    %cst_5 = arith.constant 0.000000e+00 : bf16
    %29 = vector.broadcast %cst_5 : bf16 to vector<24x17xbf16>
    %c0_6 = arith.constant 0 : index
    %c273 = arith.constant 273 : index
    %30 = vector.load %arg8[%c0_6, %c273] : memref<24x290xbf16, #tpu.memory_space<vmem>>, vector<24x17xbf16>
    tpu.vector_store %arg8[%c0_6, %c273], %29 {strides = array<i32>} : memref<24x290xbf16, #tpu.memory_space<vmem>>, vector<24x17xbf16>,
    %cst_7 = arith.constant 0.000000e+00 : bf16
    %31 = vector.broadcast %cst_7 : bf16 to vector<8x17xbf16>
    %c0_8 = arith.constant 0 : index
    %c0_9 = arith.constant 0 : index
    %32 = vector.load %arg9[%c0_8, %c0_9] : memref<8x290xbf16, #tpu.memory_space<vmem>>, vector<8x17xbf16>
    tpu.vector_store %arg9[%c0_8, %c0_9], %31 {strides = array<i32>} : memref<8x290xbf16, #tpu.memory_space<vmem>>, vector<8x17xbf16>,
    %cst_10 = arith.constant 0.000000e+00 : bf16
    %33 = vector.broadcast %cst_10 : bf16 to vector<8x17xbf16>
    %c0_11 = arith.constant 0 : index
    %c273_12 = arith.constant 273 : index
    %34 = vector.load %arg9[%c0_11, %c273_12] : memref<8x290xbf16, #tpu.memory_space<vmem>>, vector<8x17xbf16>
    tpu.vector_store %arg9[%c0_11, %c273_12], %33 {strides = array<i32>} : memref<8x290xbf16, #tpu.memory_space<vmem>>, vector<8x17xbf16>,
    %c0_13 = arith.constant 0 : index
    %c0_14 = arith.constant 0 : index
    %c0_15 = arith.constant 0 : index
    %35 = vector.load %arg1[%c0_13, %c0_14, %c0_15] : memref<1x8x256xbf16, #tpu.memory_space<vmem>>, vector<1x8x256xbf16>
    %36 = vector.shape_cast %35 : vector<1x8x256xbf16> to vector<8x256xbf16>
    %c0_16 = arith.constant 0 : index
    %c17 = arith.constant 17 : index
    %37 = vector.load %arg8[%c0_16, %c17] : memref<24x290xbf16, #tpu.memory_space<vmem>>, vector<8x256xbf16>
    tpu.vector_store %arg8[%c0_16, %c17], %36 {strides = array<i32>} : memref<24x290xbf16, #tpu.memory_space<vmem>>, vector<8x256xbf16>,
    %c0_17 = arith.constant 0 : index
    %c0_18 = arith.constant 0 : index
    %c0_19 = arith.constant 0 : index
    %38 = vector.load %arg2[%c0_17, %c0_18, %c0_19] : memref<1x16x256xbf16, #tpu.memory_space<vmem>>, vector<1x16x256xbf16>
    %39 = vector.shape_cast %38 : vector<1x16x256xbf16> to vector<16x256xbf16>
    %c8 = arith.constant 8 : index
    %c17_20 = arith.constant 17 : index
    %40 = vector.load %arg8[%c8, %c17_20] : memref<24x290xbf16, #tpu.memory_space<vmem>>, vector<16x256xbf16>
    tpu.vector_store %arg8[%c8, %c17_20], %39 {strides = array<i32>} : memref<24x290xbf16, #tpu.memory_space<vmem>>, vector<16x256xbf16>,
    %c0_21 = arith.constant 0 : index
    %c0_22 = arith.constant 0 : index
    %41 = vector.load %arg8[%c0_21, %c0_22] : memref<24x290xbf16, #tpu.memory_space<vmem>>, vector<24x256xbf16>
    %42 = vector.broadcast %21 : vector<1x256xbf16> to vector<24x256xbf16>
    %43 = arith.mulf %41, %42 : vector<24x256xbf16>
    %c0_23 = arith.constant 0 : index
    %c1 = arith.constant 1 : index
    %44 = vector.load %arg8[%c0_23, %c1] : memref<24x290xbf16, #tpu.memory_space<vmem>>, vector<24x256xbf16>
    %c0_24 = arith.constant 0 : index
    %c2 = arith.constant 2 : index
    %45 = vector.load %arg8[%c0_24, %c2] : memref<24x290xbf16, #tpu.memory_space<vmem>>, vector<24x256xbf16>
    %46 = vector.broadcast %26 : vector<1x256xbf16> to vector<24x256xbf16>
    %47 = arith.mulf %45, %46 : vector<24x256xbf16>
    %48 = tpu.concatenate %43, %44, %47 in 0 : vector<24x256xbf16>, vector<24x256xbf16>, vector<24x256xbf16> -> vector<72x256xbf16>
    %c0_25 = arith.constant 0 : index
    %c0_26 = arith.constant 0 : index
    %49 = vector.load %arg3[%c0_25, %c0_26] : memref<8x216xbf16, #tpu.memory_space<vmem>>, vector<8x72xbf16>
    %cst_27 = arith.constant dense<0.000000e+00> : vector<8x256xf32>
    %50 = tpu.matmul %49, %48, %cst_27 {dimension_numbers = #tpu.dot_dimension_numbers<[1], [0], [0], [1], [0, 0, 1, 1], [], []>} : vector<8x72xbf16>, vector<72x256xbf16>, vector<8x256xf32> -> vector<8x256xf32>
    %c0_28 = arith.constant 0 : index
    %c16 = arith.constant 16 : index
    %51 = vector.load %arg8[%c0_28, %c16] : memref<24x290xbf16, #tpu.memory_space<vmem>>, vector<24x256xbf16>
    %52 = vector.broadcast %21 : vector<1x256xbf16> to vector<24x256xbf16>
    %53 = arith.mulf %51, %52 : vector<24x256xbf16>
    %c0_29 = arith.constant 0 : index
    %c17_30 = arith.constant 17 : index
    %54 = vector.load %arg8[%c0_29, %c17_30] : memref<24x290xbf16, #tpu.memory_space<vmem>>, vector<24x256xbf16>
    %c0_31 = arith.constant 0 : index
    %c18 = arith.constant 18 : index
    %55 = vector.load %arg8[%c0_31, %c18] : memref<24x290xbf16, #tpu.memory_space<vmem>>, vector<24x256xbf16>
    %56 = vector.broadcast %26 : vector<1x256xbf16> to vector<24x256xbf16>
    %57 = arith.mulf %55, %56 : vector<24x256xbf16>
    %58 = tpu.concatenate %53, %54, %57 in 0 : vector<24x256xbf16>, vector<24x256xbf16>, vector<24x256xbf16> -> vector<72x256xbf16>
    %c0_32 = arith.constant 0 : index
    %c72 = arith.constant 72 : index
    %59 = vector.load %arg3[%c0_32, %c72] : memref<8x216xbf16, #tpu.memory_space<vmem>>, vector<8x72xbf16>
    %cst_33 = arith.constant dense<0.000000e+00> : vector<8x256xf32>
    %60 = tpu.matmul %59, %58, %cst_33 {dimension_numbers = #tpu.dot_dimension_numbers<[1], [0], [0], [1], [0, 0, 1, 1], [], []>} : vector<8x72xbf16>, vector<72x256xbf16>, vector<8x256xf32> -> vector<8x256xf32>
    %61 = arith.addf %50, %60 : vector<8x256xf32>
    %c0_34 = arith.constant 0 : index
    %c32 = arith.constant 32 : index
    %62 = vector.load %arg8[%c0_34, %c32] : memref<24x290xbf16, #tpu.memory_space<vmem>>, vector<24x256xbf16>
    %63 = vector.broadcast %21 : vector<1x256xbf16> to vector<24x256xbf16>
    %64 = arith.mulf %62, %63 : vector<24x256xbf16>
    %c0_35 = arith.constant 0 : index
    %c33 = arith.constant 33 : index
    %65 = vector.load %arg8[%c0_35, %c33] : memref<24x290xbf16, #tpu.memory_space<vmem>>, vector<24x256xbf16>
    %c0_36 = arith.constant 0 : index
    %c34 = arith.constant 34 : index
    %66 = vector.load %arg8[%c0_36, %c34] : memref<24x290xbf16, #tpu.memory_space<vmem>>, vector<24x256xbf16>
    %67 = vector.broadcast %26 : vector<1x256xbf16> to vector<24x256xbf16>
    %68 = arith.mulf %66, %67 : vector<24x256xbf16>
    %69 = tpu.concatenate %64, %65, %68 in 0 : vector<24x256xbf16>, vector<24x256xbf16>, vector<24x256xbf16> -> vector<72x256xbf16>
    %c0_37 = arith.constant 0 : index
    %c144 = arith.constant 144 : index
    %70 = vector.load %arg3[%c0_37, %c144] : memref<8x216xbf16, #tpu.memory_space<vmem>>, vector<8x72xbf16>
    %cst_38 = arith.constant dense<0.000000e+00> : vector<8x256xf32>
    %71 = tpu.matmul %70, %69, %cst_38 {dimension_numbers = #tpu.dot_dimension_numbers<[1], [0], [0], [1], [0, 0, 1, 1], [], []>} : vector<8x72xbf16>, vector<72x256xbf16>, vector<8x256xf32> -> vector<8x256xf32>
    %72 = arith.addf %61, %71 : vector<8x256xf32>
    %c0_39 = arith.constant 0 : index
    %c0_40 = arith.constant 0 : index
    %73 = vector.load %arg4[%c0_39, %c0_40] : memref<8x1xf32, #tpu.memory_space<vmem>>, vector<8x1xf32>
    %74 = vector.broadcast %73 : vector<8x1xf32> to vector<8x256xf32>
    %75 = arith.addf %72, %74 : vector<8x256xf32>
    %cst_41 = arith.constant 0.000000e+00 : f32
    %76 = vector.broadcast %cst_41 : f32 to vector<8x256xf32>
    %77 = arith.maximumf %75, %76 : vector<8x256xf32>
    %78 = arith.truncf %77 : vector<8x256xf32> to vector<8x256xbf16>
    %c0_42 = arith.constant 0 : index
    %c17_43 = arith.constant 17 : index
    %79 = vector.load %arg9[%c0_42, %c17_43] : memref<8x290xbf16, #tpu.memory_space<vmem>>, vector<8x256xbf16>
    tpu.vector_store %arg9[%c0_42, %c17_43], %78 {strides = array<i32>} : memref<8x290xbf16, #tpu.memory_space<vmem>>, vector<8x256xbf16>,
    %c0_44 = arith.constant 0 : index
    %c0_45 = arith.constant 0 : index
    %80 = vector.load %arg9[%c0_44, %c0_45] : memref<8x290xbf16, #tpu.memory_space<vmem>>, vector<8x256xbf16>
    %81 = vector.broadcast %21 : vector<1x256xbf16> to vector<8x256xbf16>
    %82 = arith.mulf %80, %81 : vector<8x256xbf16>
    %c0_46 = arith.constant 0 : index
    %c1_47 = arith.constant 1 : index
    %83 = vector.load %arg9[%c0_46, %c1_47] : memref<8x290xbf16, #tpu.memory_space<vmem>>, vector<8x256xbf16>
    %c0_48 = arith.constant 0 : index
    %c2_49 = arith.constant 2 : index
    %84 = vector.load %arg9[%c0_48, %c2_49] : memref<8x290xbf16, #tpu.memory_space<vmem>>, vector<8x256xbf16>
    %85 = vector.broadcast %26 : vector<1x256xbf16> to vector<8x256xbf16>
    %86 = arith.mulf %84, %85 : vector<8x256xbf16>
    %87 = tpu.concatenate %82, %83, %86 in 0 : vector<8x256xbf16>, vector<8x256xbf16>, vector<8x256xbf16> -> vector<24x256xbf16>
    %c0_50 = arith.constant 0 : index
    %c0_51 = arith.constant 0 : index
    %88 = vector.load %arg5[%c0_50, %c0_51] : memref<8x72xbf16, #tpu.memory_space<vmem>>, vector<8x24xbf16>
    %cst_52 = arith.constant dense<0.000000e+00> : vector<8x256xf32>
    %89 = tpu.matmul %88, %87, %cst_52 {dimension_numbers = #tpu.dot_dimension_numbers<[1], [0], [0], [1], [0, 0, 1, 1], [], []>} : vector<8x24xbf16>, vector<24x256xbf16>, vector<8x256xf32> -> vector<8x256xf32>
    %c0_53 = arith.constant 0 : index
    %c16_54 = arith.constant 16 : index
    %90 = vector.load %arg9[%c0_53, %c16_54] : memref<8x290xbf16, #tpu.memory_space<vmem>>, vector<8x256xbf16>
    %91 = vector.broadcast %21 : vector<1x256xbf16> to vector<8x256xbf16>
    %92 = arith.mulf %90, %91 : vector<8x256xbf16>
    %c0_55 = arith.constant 0 : index
    %c17_56 = arith.constant 17 : index
    %93 = vector.load %arg9[%c0_55, %c17_56] : memref<8x290xbf16, #tpu.memory_space<vmem>>, vector<8x256xbf16>
    %c0_57 = arith.constant 0 : index
    %c18_58 = arith.constant 18 : index
    %94 = vector.load %arg9[%c0_57, %c18_58] : memref<8x290xbf16, #tpu.memory_space<vmem>>, vector<8x256xbf16>
    %95 = vector.broadcast %26 : vector<1x256xbf16> to vector<8x256xbf16>
    %96 = arith.mulf %94, %95 : vector<8x256xbf16>
    %97 = tpu.concatenate %92, %93, %96 in 0 : vector<8x256xbf16>, vector<8x256xbf16>, vector<8x256xbf16> -> vector<24x256xbf16>
    %c0_59 = arith.constant 0 : index
    %c24 = arith.constant 24 : index
    %98 = vector.load %arg5[%c0_59, %c24] : memref<8x72xbf16, #tpu.memory_space<vmem>>, vector<8x24xbf16>
    %cst_60 = arith.constant dense<0.000000e+00> : vector<8x256xf32>
    %99 = tpu.matmul %98, %97, %cst_60 {dimension_numbers = #tpu.dot_dimension_numbers<[1], [0], [0], [1], [0, 0, 1, 1], [], []>} : vector<8x24xbf16>, vector<24x256xbf16>, vector<8x256xf32> -> vector<8x256xf32>
    %100 = arith.addf %89, %99 : vector<8x256xf32>
    %c0_61 = arith.constant 0 : index
    %c32_62 = arith.constant 32 : index
    %101 = vector.load %arg9[%c0_61, %c32_62] : memref<8x290xbf16, #tpu.memory_space<vmem>>, vector<8x256xbf16>
    %102 = vector.broadcast %21 : vector<1x256xbf16> to vector<8x256xbf16>
    %103 = arith.mulf %101, %102 : vector<8x256xbf16>
    %c0_63 = arith.constant 0 : index
    %c33_64 = arith.constant 33 : index
    %104 = vector.load %arg9[%c0_63, %c33_64] : memref<8x290xbf16, #tpu.memory_space<vmem>>, vector<8x256xbf16>
    %c0_65 = arith.constant 0 : index
    %c34_66 = arith.constant 34 : index
    %105 = vector.load %arg9[%c0_65, %c34_66] : memref<8x290xbf16, #tpu.memory_space<vmem>>, vector<8x256xbf16>
    %106 = vector.broadcast %26 : vector<1x256xbf16> to vector<8x256xbf16>
    %107 = arith.mulf %105, %106 : vector<8x256xbf16>
    %108 = tpu.concatenate %103, %104, %107 in 0 : vector<8x256xbf16>, vector<8x256xbf16>, vector<8x256xbf16> -> vector<24x256xbf16>
    %c0_67 = arith.constant 0 : index
    %c48 = arith.constant 48 : index
    %109 = vector.load %arg5[%c0_67, %c48] : memref<8x72xbf16, #tpu.memory_space<vmem>>, vector<8x24xbf16>
    %cst_68 = arith.constant dense<0.000000e+00> : vector<8x256xf32>
    %110 = tpu.matmul %109, %108, %cst_68 {dimension_numbers = #tpu.dot_dimension_numbers<[1], [0], [0], [1], [0, 0, 1, 1], [], []>} : vector<8x24xbf16>, vector<24x256xbf16>, vector<8x256xf32> -> vector<8x256xf32>
    %111 = arith.addf %100, %110 : vector<8x256xf32>
    %c0_69 = arith.constant 0 : index
    %c0_70 = arith.constant 0 : index
    %112 = vector.load %arg6[%c0_69, %c0_70] : memref<8x1xf32, #tpu.memory_space<vmem>>, vector<8x1xf32>
    %113 = vector.broadcast %112 : vector<8x1xf32> to vector<8x256xf32>
    %114 = arith.addf %111, %113 : vector<8x256xf32>
    %cst_71 = arith.constant 0.000000e+00 : f32
    %115 = vector.broadcast %cst_71 : f32 to vector<8x256xf32>
    %116 = arith.maximumf %114, %115 : vector<8x256xf32>
    %117 = vector.shape_cast %116 : vector<8x256xf32> to vector<1x8x256xf32>
    %118 = arith.truncf %117 : vector<1x8x256xf32> to vector<1x8x256xbf16>
    %c0_72 = arith.constant 0 : index
    %c0_73 = arith.constant 0 : index
    %c0_74 = arith.constant 0 : index
    %119 = vector.load %arg7[%c0_72, %c0_73, %c0_74] : memref<1x8x256xbf16, #tpu.memory_space<vmem>>, vector<1x8x256xbf16>
    tpu.vector_store %arg7[%c0_72, %c0_73, %c0_74], %118 {strides = array<i32>} : memref<1x8x256xbf16, #tpu.memory_space<vmem>>, vector<1x8x256xbf16>,
    return
  }
  func.func @transform_0(%arg0: i32) -> (i32, i32, i32) {
    %c0_i32 = arith.constant 0 : i32
    %c0_i32_0 = arith.constant 0 : i32
    %c0_i32_1 = arith.constant 0 : i32
    return %arg0, %c0_i32, %c0_i32_0 : i32, i32, i32
  }
  func.func @transform_1(%arg0: i32) -> (i32, i32, i32) {
    %c0_i32 = arith.constant 0 : i32
    %c0_i32_0 = arith.constant 0 : i32
    %c0_i32_1 = arith.constant 0 : i32
    return %arg0, %c0_i32, %c0_i32_0 : i32, i32, i32
  }
  func.func @transform_2(%arg0: i32) -> (i32, i32) {
    %c0_i32 = arith.constant 0 : i32
    %c0_i32_0 = arith.constant 0 : i32
    %c0_i32_1 = arith.constant 0 : i32
    return %c0_i32, %c0_i32_0 : i32, i32
  }
  func.func @transform_3(%arg0: i32) -> (i32, i32) {
    %c0_i32 = arith.constant 0 : i32
    %c0_i32_0 = arith.constant 0 : i32
    %c0_i32_1 = arith.constant 0 : i32
    return %c0_i32, %c0_i32_0 : i32, i32
  }
  func.func @transform_4(%arg0: i32) -> (i32, i32) {
    %c0_i32 = arith.constant 0 : i32
    %c0_i32_0 = arith.constant 0 : i32
    %c0_i32_1 = arith.constant 0 : i32
    return %c0_i32, %c0_i32_0 : i32, i32
  }
  func.func @transform_5(%arg0: i32) -> (i32, i32) {
    %c0_i32 = arith.constant 0 : i32
    %c0_i32_0 = arith.constant 0 : i32
    %c0_i32_1 = arith.constant 0 : i32
    return %c0_i32, %c0_i32_0 : i32, i32
  }
  func.func @transform_6(%arg0: i32) -> (i32, i32, i32) {
    %c0_i32 = arith.constant 0 : i32
    %c0_i32_0 = arith.constant 0 : i32
    %c0_i32_1 = arith.constant 0 : i32
    return %arg0, %c0_i32, %c0_i32_0 : i32, i32, i32
  }
}

module attributes {stable_mosaic.version = 11 : i64} {
  func.func @kernel(%arg0: i32, %arg1: memref<1x8x256xbf16, #tpu.memory_space<vmem>>, %arg2: memref<1x8x256xbf16, #tpu.memory_space<vmem>>, %arg3: memref<1x16x256xbf16, #tpu.memory_space<vmem>>, %arg4: memref<8x288xbf16, #tpu.memory_space<vmem>>, %arg5: memref<8x1xf32, #tpu.memory_space<vmem>>, %arg6: memref<8x72xbf16, #tpu.memory_space<vmem>>, %arg7: memref<8x1xf32, #tpu.memory_space<vmem>>, %arg8: memref<4x8xbf16, #tpu.memory_space<vmem>>, %arg9: memref<4x1xf32, #tpu.memory_space<vmem>>, %arg10: memref<1x4x256xbf16, #tpu.memory_space<vmem>>, %arg11: memref<32x290xbf16, #tpu.memory_space<vmem>>, %arg12: memref<8x290xbf16, #tpu.memory_space<vmem>>) attributes {dimension_semantics = [#tpu.dimension_semantics<parallel>], iteration_bounds = array<i64: 2>, scalar_prefetch = 0 : i64, scratch_operands = 2 : i64, tpu.core_type = #tpu.core_type<tc>, window_params = [{transform_indices = @transform_0, window_bounds = array<i64: 1, 8, 256>}, {transform_indices = @transform_1, window_bounds = array<i64: 1, 8, 256>}, {transform_indices = @transform_2, window_bounds = array<i64: 1, 16, 256>}, {pipeline_mode = #tpu.pipeline_mode<synchronous>, transform_indices = @transform_3, window_bounds = array<i64: 8, 288>}, {pipeline_mode = #tpu.pipeline_mode<synchronous>, transform_indices = @transform_4, window_bounds = array<i64: 8, 1>}, {pipeline_mode = #tpu.pipeline_mode<synchronous>, transform_indices = @transform_5, window_bounds = array<i64: 8, 72>}, {pipeline_mode = #tpu.pipeline_mode<synchronous>, transform_indices = @transform_6, window_bounds = array<i64: 8, 1>}, {pipeline_mode = #tpu.pipeline_mode<synchronous>, transform_indices = @transform_7, window_bounds = array<i64: 4, 8>}, {pipeline_mode = #tpu.pipeline_mode<synchronous>, transform_indices = @transform_8, window_bounds = array<i64: 4, 1>}, {transform_indices = @transform_9, window_bounds = array<i64: 1, 4, 256>}]} {
    %0 = tpu.iota {dimensions = array<i32: 1>} : vector<1x256xi32>
    %c16_i32 = arith.constant 16 : i32
    %c0_i32 = arith.constant 0 : i32
    %1 = arith.cmpi eq, %c16_i32, %c0_i32 : i32
    %c1_i32 = arith.constant 1 : i32
    %2 = arith.select %1, %c1_i32, %c16_i32 : i32
    %3 = vector.broadcast %2 : i32 to vector<1x256xi32>
    %4 = arith.remsi %0, %3 : vector<1x256xi32>
    %c0_i32_0 = arith.constant 0 : i32
    %5 = vector.broadcast %c0_i32_0 : i32 to vector<1x256xi32>
    %6 = arith.cmpi ne, %4, %5 : vector<1x256xi32>
    %c0_i32_1 = arith.constant 0 : i32
    %7 = vector.broadcast %c0_i32_1 : i32 to vector<1x256xi32>
    %8 = arith.cmpi slt, %4, %7 : vector<1x256xi32>
    %c0_i32_2 = arith.constant 0 : i32
    %9 = arith.cmpi slt, %2, %c0_i32_2 : i32
    %10 = vector.broadcast %9 : i1 to vector<1x256xi1>
    %11 = vector.broadcast %10 : vector<1x256xi1> to vector<1x256xi1>
    %12 = arith.xori %8, %11 : vector<1x256xi1>
    %13 = arith.andi %12, %6 : vector<1x256xi1>
    %14 = vector.broadcast %2 : i32 to vector<1x256xi32>
    %15 = arith.addi %4, %14 : vector<1x256xi32>
    %16 = arith.select %13, %15, %4 : vector<1x256xi1>, vector<1x256xi32>
    %c0_i32_3 = arith.constant 0 : i32
    %17 = vector.broadcast %c0_i32_3 : i32 to vector<1x256xi32>
    %18 = arith.cmpi sgt, %16, %17 : vector<1x256xi32>
    %19 = arith.extui %18 : vector<1x256xi1> to vector<1x256xi32>
    %20 = arith.sitofp %19 : vector<1x256xi32> to vector<1x256xf32>
    %21 = arith.truncf %20 : vector<1x256xf32> to vector<1x256xbf16>
    %c15_i32 = arith.constant 15 : i32
    %22 = vector.broadcast %c15_i32 : i32 to vector<1x256xi32>
    %23 = arith.cmpi slt, %16, %22 : vector<1x256xi32>
    %24 = arith.extui %23 : vector<1x256xi1> to vector<1x256xi32>
    %25 = arith.sitofp %24 : vector<1x256xi32> to vector<1x256xf32>
    %26 = arith.truncf %25 : vector<1x256xf32> to vector<1x256xbf16>
    %cst = arith.constant 0.000000e+00 : bf16
    %27 = vector.broadcast %cst : bf16 to vector<32x17xbf16>
    %c0 = arith.constant 0 : index
    %c0_4 = arith.constant 0 : index
    %28 = vector.load %arg11[%c0, %c0_4] : memref<32x290xbf16, #tpu.memory_space<vmem>>, vector<32x17xbf16>
    tpu.vector_store %arg11[%c0, %c0_4], %27 {strides = array<i32>} : memref<32x290xbf16, #tpu.memory_space<vmem>>, vector<32x17xbf16>,
    %cst_5 = arith.constant 0.000000e+00 : bf16
    %29 = vector.broadcast %cst_5 : bf16 to vector<32x17xbf16>
    %c0_6 = arith.constant 0 : index
    %c273 = arith.constant 273 : index
    %30 = vector.load %arg11[%c0_6, %c273] : memref<32x290xbf16, #tpu.memory_space<vmem>>, vector<32x17xbf16>
    tpu.vector_store %arg11[%c0_6, %c273], %29 {strides = array<i32>} : memref<32x290xbf16, #tpu.memory_space<vmem>>, vector<32x17xbf16>,
    %cst_7 = arith.constant 0.000000e+00 : bf16
    %31 = vector.broadcast %cst_7 : bf16 to vector<8x17xbf16>
    %c0_8 = arith.constant 0 : index
    %c0_9 = arith.constant 0 : index
    %32 = vector.load %arg12[%c0_8, %c0_9] : memref<8x290xbf16, #tpu.memory_space<vmem>>, vector<8x17xbf16>
    tpu.vector_store %arg12[%c0_8, %c0_9], %31 {strides = array<i32>} : memref<8x290xbf16, #tpu.memory_space<vmem>>, vector<8x17xbf16>,
    %cst_10 = arith.constant 0.000000e+00 : bf16
    %33 = vector.broadcast %cst_10 : bf16 to vector<8x17xbf16>
    %c0_11 = arith.constant 0 : index
    %c273_12 = arith.constant 273 : index
    %34 = vector.load %arg12[%c0_11, %c273_12] : memref<8x290xbf16, #tpu.memory_space<vmem>>, vector<8x17xbf16>
    tpu.vector_store %arg12[%c0_11, %c273_12], %33 {strides = array<i32>} : memref<8x290xbf16, #tpu.memory_space<vmem>>, vector<8x17xbf16>,
    %c0_13 = arith.constant 0 : index
    %c0_14 = arith.constant 0 : index
    %c0_15 = arith.constant 0 : index
    %35 = vector.load %arg1[%c0_13, %c0_14, %c0_15] : memref<1x8x256xbf16, #tpu.memory_space<vmem>>, vector<1x8x256xbf16>
    %36 = vector.shape_cast %35 : vector<1x8x256xbf16> to vector<8x256xbf16>
    %c0_16 = arith.constant 0 : index
    %c17 = arith.constant 17 : index
    %37 = vector.load %arg11[%c0_16, %c17] : memref<32x290xbf16, #tpu.memory_space<vmem>>, vector<8x256xbf16>
    tpu.vector_store %arg11[%c0_16, %c17], %36 {strides = array<i32>} : memref<32x290xbf16, #tpu.memory_space<vmem>>, vector<8x256xbf16>,
    %c0_17 = arith.constant 0 : index
    %c0_18 = arith.constant 0 : index
    %c0_19 = arith.constant 0 : index
    %38 = vector.load %arg2[%c0_17, %c0_18, %c0_19] : memref<1x8x256xbf16, #tpu.memory_space<vmem>>, vector<1x8x256xbf16>
    %39 = vector.shape_cast %38 : vector<1x8x256xbf16> to vector<8x256xbf16>
    %c8 = arith.constant 8 : index
    %c17_20 = arith.constant 17 : index
    %40 = vector.load %arg11[%c8, %c17_20] : memref<32x290xbf16, #tpu.memory_space<vmem>>, vector<8x256xbf16>
    tpu.vector_store %arg11[%c8, %c17_20], %39 {strides = array<i32>} : memref<32x290xbf16, #tpu.memory_space<vmem>>, vector<8x256xbf16>,
    %c0_21 = arith.constant 0 : index
    %c0_22 = arith.constant 0 : index
    %c0_23 = arith.constant 0 : index
    %41 = vector.load %arg3[%c0_21, %c0_22, %c0_23] : memref<1x16x256xbf16, #tpu.memory_space<vmem>>, vector<1x16x256xbf16>
    %42 = vector.shape_cast %41 : vector<1x16x256xbf16> to vector<16x256xbf16>
    %c16 = arith.constant 16 : index
    %c17_24 = arith.constant 17 : index
    %43 = vector.load %arg11[%c16, %c17_24] : memref<32x290xbf16, #tpu.memory_space<vmem>>, vector<16x256xbf16>
    tpu.vector_store %arg11[%c16, %c17_24], %42 {strides = array<i32>} : memref<32x290xbf16, #tpu.memory_space<vmem>>, vector<16x256xbf16>,
    %c0_25 = arith.constant 0 : index
    %c0_26 = arith.constant 0 : index
    %44 = vector.load %arg11[%c0_25, %c0_26] : memref<32x290xbf16, #tpu.memory_space<vmem>>, vector<32x256xbf16>
    %45 = vector.broadcast %21 : vector<1x256xbf16> to vector<32x256xbf16>
    %46 = arith.mulf %44, %45 : vector<32x256xbf16>
    %c0_27 = arith.constant 0 : index
    %c1 = arith.constant 1 : index
    %47 = vector.load %arg11[%c0_27, %c1] : memref<32x290xbf16, #tpu.memory_space<vmem>>, vector<32x256xbf16>
    %c0_28 = arith.constant 0 : index
    %c2 = arith.constant 2 : index
    %48 = vector.load %arg11[%c0_28, %c2] : memref<32x290xbf16, #tpu.memory_space<vmem>>, vector<32x256xbf16>
    %49 = vector.broadcast %26 : vector<1x256xbf16> to vector<32x256xbf16>
    %50 = arith.mulf %48, %49 : vector<32x256xbf16>
    %51 = tpu.concatenate %46, %47, %50 in 0 : vector<32x256xbf16>, vector<32x256xbf16>, vector<32x256xbf16> -> vector<96x256xbf16>
    %c0_29 = arith.constant 0 : index
    %c0_30 = arith.constant 0 : index
    %52 = vector.load %arg4[%c0_29, %c0_30] : memref<8x288xbf16, #tpu.memory_space<vmem>>, vector<8x96xbf16>
    %cst_31 = arith.constant dense<0.000000e+00> : vector<8x256xf32>
    %53 = tpu.matmul %52, %51, %cst_31 {dimension_numbers = #tpu.dot_dimension_numbers<[1], [0], [0], [1], [0, 0, 1, 1], [], []>} : vector<8x96xbf16>, vector<96x256xbf16>, vector<8x256xf32> -> vector<8x256xf32>
    %c0_32 = arith.constant 0 : index
    %c16_33 = arith.constant 16 : index
    %54 = vector.load %arg11[%c0_32, %c16_33] : memref<32x290xbf16, #tpu.memory_space<vmem>>, vector<32x256xbf16>
    %55 = vector.broadcast %21 : vector<1x256xbf16> to vector<32x256xbf16>
    %56 = arith.mulf %54, %55 : vector<32x256xbf16>
    %c0_34 = arith.constant 0 : index
    %c17_35 = arith.constant 17 : index
    %57 = vector.load %arg11[%c0_34, %c17_35] : memref<32x290xbf16, #tpu.memory_space<vmem>>, vector<32x256xbf16>
    %c0_36 = arith.constant 0 : index
    %c18 = arith.constant 18 : index
    %58 = vector.load %arg11[%c0_36, %c18] : memref<32x290xbf16, #tpu.memory_space<vmem>>, vector<32x256xbf16>
    %59 = vector.broadcast %26 : vector<1x256xbf16> to vector<32x256xbf16>
    %60 = arith.mulf %58, %59 : vector<32x256xbf16>
    %61 = tpu.concatenate %56, %57, %60 in 0 : vector<32x256xbf16>, vector<32x256xbf16>, vector<32x256xbf16> -> vector<96x256xbf16>
    %c0_37 = arith.constant 0 : index
    %c96 = arith.constant 96 : index
    %62 = vector.load %arg4[%c0_37, %c96] : memref<8x288xbf16, #tpu.memory_space<vmem>>, vector<8x96xbf16>
    %cst_38 = arith.constant dense<0.000000e+00> : vector<8x256xf32>
    %63 = tpu.matmul %62, %61, %cst_38 {dimension_numbers = #tpu.dot_dimension_numbers<[1], [0], [0], [1], [0, 0, 1, 1], [], []>} : vector<8x96xbf16>, vector<96x256xbf16>, vector<8x256xf32> -> vector<8x256xf32>
    %64 = arith.addf %53, %63 : vector<8x256xf32>
    %c0_39 = arith.constant 0 : index
    %c32 = arith.constant 32 : index
    %65 = vector.load %arg11[%c0_39, %c32] : memref<32x290xbf16, #tpu.memory_space<vmem>>, vector<32x256xbf16>
    %66 = vector.broadcast %21 : vector<1x256xbf16> to vector<32x256xbf16>
    %67 = arith.mulf %65, %66 : vector<32x256xbf16>
    %c0_40 = arith.constant 0 : index
    %c33 = arith.constant 33 : index
    %68 = vector.load %arg11[%c0_40, %c33] : memref<32x290xbf16, #tpu.memory_space<vmem>>, vector<32x256xbf16>
    %c0_41 = arith.constant 0 : index
    %c34 = arith.constant 34 : index
    %69 = vector.load %arg11[%c0_41, %c34] : memref<32x290xbf16, #tpu.memory_space<vmem>>, vector<32x256xbf16>
    %70 = vector.broadcast %26 : vector<1x256xbf16> to vector<32x256xbf16>
    %71 = arith.mulf %69, %70 : vector<32x256xbf16>
    %72 = tpu.concatenate %67, %68, %71 in 0 : vector<32x256xbf16>, vector<32x256xbf16>, vector<32x256xbf16> -> vector<96x256xbf16>
    %c0_42 = arith.constant 0 : index
    %c192 = arith.constant 192 : index
    %73 = vector.load %arg4[%c0_42, %c192] : memref<8x288xbf16, #tpu.memory_space<vmem>>, vector<8x96xbf16>
    %cst_43 = arith.constant dense<0.000000e+00> : vector<8x256xf32>
    %74 = tpu.matmul %73, %72, %cst_43 {dimension_numbers = #tpu.dot_dimension_numbers<[1], [0], [0], [1], [0, 0, 1, 1], [], []>} : vector<8x96xbf16>, vector<96x256xbf16>, vector<8x256xf32> -> vector<8x256xf32>
    %75 = arith.addf %64, %74 : vector<8x256xf32>
    %c0_44 = arith.constant 0 : index
    %c0_45 = arith.constant 0 : index
    %76 = vector.load %arg5[%c0_44, %c0_45] : memref<8x1xf32, #tpu.memory_space<vmem>>, vector<8x1xf32>
    %77 = vector.broadcast %76 : vector<8x1xf32> to vector<8x256xf32>
    %78 = arith.addf %75, %77 : vector<8x256xf32>
    %cst_46 = arith.constant 0.000000e+00 : f32
    %79 = vector.broadcast %cst_46 : f32 to vector<8x256xf32>
    %80 = arith.maximumf %78, %79 : vector<8x256xf32>
    %81 = arith.truncf %80 : vector<8x256xf32> to vector<8x256xbf16>
    %c0_47 = arith.constant 0 : index
    %c17_48 = arith.constant 17 : index
    %82 = vector.load %arg12[%c0_47, %c17_48] : memref<8x290xbf16, #tpu.memory_space<vmem>>, vector<8x256xbf16>
    tpu.vector_store %arg12[%c0_47, %c17_48], %81 {strides = array<i32>} : memref<8x290xbf16, #tpu.memory_space<vmem>>, vector<8x256xbf16>,
    %c0_49 = arith.constant 0 : index
    %c0_50 = arith.constant 0 : index
    %83 = vector.load %arg12[%c0_49, %c0_50] : memref<8x290xbf16, #tpu.memory_space<vmem>>, vector<8x256xbf16>
    %84 = vector.broadcast %21 : vector<1x256xbf16> to vector<8x256xbf16>
    %85 = arith.mulf %83, %84 : vector<8x256xbf16>
    %c0_51 = arith.constant 0 : index
    %c1_52 = arith.constant 1 : index
    %86 = vector.load %arg12[%c0_51, %c1_52] : memref<8x290xbf16, #tpu.memory_space<vmem>>, vector<8x256xbf16>
    %c0_53 = arith.constant 0 : index
    %c2_54 = arith.constant 2 : index
    %87 = vector.load %arg12[%c0_53, %c2_54] : memref<8x290xbf16, #tpu.memory_space<vmem>>, vector<8x256xbf16>
    %88 = vector.broadcast %26 : vector<1x256xbf16> to vector<8x256xbf16>
    %89 = arith.mulf %87, %88 : vector<8x256xbf16>
    %90 = tpu.concatenate %85, %86, %89 in 0 : vector<8x256xbf16>, vector<8x256xbf16>, vector<8x256xbf16> -> vector<24x256xbf16>
    %c0_55 = arith.constant 0 : index
    %c0_56 = arith.constant 0 : index
    %91 = vector.load %arg6[%c0_55, %c0_56] : memref<8x72xbf16, #tpu.memory_space<vmem>>, vector<8x24xbf16>
    %cst_57 = arith.constant dense<0.000000e+00> : vector<8x256xf32>
    %92 = tpu.matmul %91, %90, %cst_57 {dimension_numbers = #tpu.dot_dimension_numbers<[1], [0], [0], [1], [0, 0, 1, 1], [], []>} : vector<8x24xbf16>, vector<24x256xbf16>, vector<8x256xf32> -> vector<8x256xf32>
    %c0_58 = arith.constant 0 : index
    %c16_59 = arith.constant 16 : index
    %93 = vector.load %arg12[%c0_58, %c16_59] : memref<8x290xbf16, #tpu.memory_space<vmem>>, vector<8x256xbf16>
    %94 = vector.broadcast %21 : vector<1x256xbf16> to vector<8x256xbf16>
    %95 = arith.mulf %93, %94 : vector<8x256xbf16>
    %c0_60 = arith.constant 0 : index
    %c17_61 = arith.constant 17 : index
    %96 = vector.load %arg12[%c0_60, %c17_61] : memref<8x290xbf16, #tpu.memory_space<vmem>>, vector<8x256xbf16>
    %c0_62 = arith.constant 0 : index
    %c18_63 = arith.constant 18 : index
    %97 = vector.load %arg12[%c0_62, %c18_63] : memref<8x290xbf16, #tpu.memory_space<vmem>>, vector<8x256xbf16>
    %98 = vector.broadcast %26 : vector<1x256xbf16> to vector<8x256xbf16>
    %99 = arith.mulf %97, %98 : vector<8x256xbf16>
    %100 = tpu.concatenate %95, %96, %99 in 0 : vector<8x256xbf16>, vector<8x256xbf16>, vector<8x256xbf16> -> vector<24x256xbf16>
    %c0_64 = arith.constant 0 : index
    %c24 = arith.constant 24 : index
    %101 = vector.load %arg6[%c0_64, %c24] : memref<8x72xbf16, #tpu.memory_space<vmem>>, vector<8x24xbf16>
    %cst_65 = arith.constant dense<0.000000e+00> : vector<8x256xf32>
    %102 = tpu.matmul %101, %100, %cst_65 {dimension_numbers = #tpu.dot_dimension_numbers<[1], [0], [0], [1], [0, 0, 1, 1], [], []>} : vector<8x24xbf16>, vector<24x256xbf16>, vector<8x256xf32> -> vector<8x256xf32>
    %103 = arith.addf %92, %102 : vector<8x256xf32>
    %c0_66 = arith.constant 0 : index
    %c32_67 = arith.constant 32 : index
    %104 = vector.load %arg12[%c0_66, %c32_67] : memref<8x290xbf16, #tpu.memory_space<vmem>>, vector<8x256xbf16>
    %105 = vector.broadcast %21 : vector<1x256xbf16> to vector<8x256xbf16>
    %106 = arith.mulf %104, %105 : vector<8x256xbf16>
    %c0_68 = arith.constant 0 : index
    %c33_69 = arith.constant 33 : index
    %107 = vector.load %arg12[%c0_68, %c33_69] : memref<8x290xbf16, #tpu.memory_space<vmem>>, vector<8x256xbf16>
    %c0_70 = arith.constant 0 : index
    %c34_71 = arith.constant 34 : index
    %108 = vector.load %arg12[%c0_70, %c34_71] : memref<8x290xbf16, #tpu.memory_space<vmem>>, vector<8x256xbf16>
    %109 = vector.broadcast %26 : vector<1x256xbf16> to vector<8x256xbf16>
    %110 = arith.mulf %108, %109 : vector<8x256xbf16>
    %111 = tpu.concatenate %106, %107, %110 in 0 : vector<8x256xbf16>, vector<8x256xbf16>, vector<8x256xbf16> -> vector<24x256xbf16>
    %c0_72 = arith.constant 0 : index
    %c48 = arith.constant 48 : index
    %112 = vector.load %arg6[%c0_72, %c48] : memref<8x72xbf16, #tpu.memory_space<vmem>>, vector<8x24xbf16>
    %cst_73 = arith.constant dense<0.000000e+00> : vector<8x256xf32>
    %113 = tpu.matmul %112, %111, %cst_73 {dimension_numbers = #tpu.dot_dimension_numbers<[1], [0], [0], [1], [0, 0, 1, 1], [], []>} : vector<8x24xbf16>, vector<24x256xbf16>, vector<8x256xf32> -> vector<8x256xf32>
    %114 = arith.addf %103, %113 : vector<8x256xf32>
    %c0_74 = arith.constant 0 : index
    %c0_75 = arith.constant 0 : index
    %115 = vector.load %arg7[%c0_74, %c0_75] : memref<8x1xf32, #tpu.memory_space<vmem>>, vector<8x1xf32>
    %116 = vector.broadcast %115 : vector<8x1xf32> to vector<8x256xf32>
    %117 = arith.addf %114, %116 : vector<8x256xf32>
    %cst_76 = arith.constant 0.000000e+00 : f32
    %118 = vector.broadcast %cst_76 : f32 to vector<8x256xf32>
    %119 = arith.maximumf %117, %118 : vector<8x256xf32>
    %c0_77 = arith.constant 0 : index
    %c0_78 = arith.constant 0 : index
    %120 = vector.load %arg8[%c0_77, %c0_78] : memref<4x8xbf16, #tpu.memory_space<vmem>>, vector<4x8xbf16>
    %121 = arith.truncf %119 : vector<8x256xf32> to vector<8x256xbf16>
    %cst_79 = arith.constant dense<0.000000e+00> : vector<4x256xf32>
    %122 = tpu.matmul %120, %121, %cst_79 {dimension_numbers = #tpu.dot_dimension_numbers<[1], [0], [0], [1], [0, 0, 1, 1], [], []>} : vector<4x8xbf16>, vector<8x256xbf16>, vector<4x256xf32> -> vector<4x256xf32>
    %c0_80 = arith.constant 0 : index
    %c0_81 = arith.constant 0 : index
    %123 = vector.load %arg9[%c0_80, %c0_81] : memref<4x1xf32, #tpu.memory_space<vmem>>, vector<4x1xf32>
    %124 = vector.broadcast %123 : vector<4x1xf32> to vector<4x256xf32>
    %125 = arith.addf %122, %124 : vector<4x256xf32>
    %126 = vector.shape_cast %125 : vector<4x256xf32> to vector<1x4x256xf32>
    %127 = arith.truncf %126 : vector<1x4x256xf32> to vector<1x4x256xbf16>
    %c0_82 = arith.constant 0 : index
    %c0_83 = arith.constant 0 : index
    %c0_84 = arith.constant 0 : index
    %128 = vector.load %arg10[%c0_82, %c0_83, %c0_84] : memref<1x4x256xbf16, #tpu.memory_space<vmem>>, vector<1x4x256xbf16>
    tpu.vector_store %arg10[%c0_82, %c0_83, %c0_84], %127 {strides = array<i32>} : memref<1x4x256xbf16, #tpu.memory_space<vmem>>, vector<1x4x256xbf16>,
    return
  }
  func.func @transform_0(%arg0: i32) -> (i32, i32, i32) {
    %c0_i32 = arith.constant 0 : i32
    %c0_i32_0 = arith.constant 0 : i32
    %c0_i32_1 = arith.constant 0 : i32
    return %arg0, %c0_i32, %c0_i32_0 : i32, i32, i32
  }
  func.func @transform_1(%arg0: i32) -> (i32, i32, i32) {
    %c0_i32 = arith.constant 0 : i32
    %c0_i32_0 = arith.constant 0 : i32
    %c0_i32_1 = arith.constant 0 : i32
    return %arg0, %c0_i32, %c0_i32_0 : i32, i32, i32
  }
  func.func @transform_2(%arg0: i32) -> (i32, i32, i32) {
    %c0_i32 = arith.constant 0 : i32
    %c0_i32_0 = arith.constant 0 : i32
    %c0_i32_1 = arith.constant 0 : i32
    return %arg0, %c0_i32, %c0_i32_0 : i32, i32, i32
  }
  func.func @transform_3(%arg0: i32) -> (i32, i32) {
    %c0_i32 = arith.constant 0 : i32
    %c0_i32_0 = arith.constant 0 : i32
    %c0_i32_1 = arith.constant 0 : i32
    return %c0_i32, %c0_i32_0 : i32, i32
  }
  func.func @transform_4(%arg0: i32) -> (i32, i32) {
    %c0_i32 = arith.constant 0 : i32
    %c0_i32_0 = arith.constant 0 : i32
    %c0_i32_1 = arith.constant 0 : i32
    return %c0_i32, %c0_i32_0 : i32, i32
  }
  func.func @transform_5(%arg0: i32) -> (i32, i32) {
    %c0_i32 = arith.constant 0 : i32
    %c0_i32_0 = arith.constant 0 : i32
    %c0_i32_1 = arith.constant 0 : i32
    return %c0_i32, %c0_i32_0 : i32, i32
  }
  func.func @transform_6(%arg0: i32) -> (i32, i32) {
    %c0_i32 = arith.constant 0 : i32
    %c0_i32_0 = arith.constant 0 : i32
    %c0_i32_1 = arith.constant 0 : i32
    return %c0_i32, %c0_i32_0 : i32, i32
  }
  func.func @transform_7(%arg0: i32) -> (i32, i32) {
    %c0_i32 = arith.constant 0 : i32
    %c0_i32_0 = arith.constant 0 : i32
    %c0_i32_1 = arith.constant 0 : i32
    return %c0_i32, %c0_i32_0 : i32, i32
  }
  func.func @transform_8(%arg0: i32) -> (i32, i32) {
    %c0_i32 = arith.constant 0 : i32
    %c0_i32_0 = arith.constant 0 : i32
    %c0_i32_1 = arith.constant 0 : i32
    return %c0_i32, %c0_i32_0 : i32, i32
  }
  func.func @transform_9(%arg0: i32) -> (i32, i32, i32) {
    %c0_i32 = arith.constant 0 : i32
    %c0_i32_0 = arith.constant 0 : i32
    %c0_i32_1 = arith.constant 0 : i32
    return %arg0, %c0_i32, %c0_i32_0 : i32, i32, i32
  }
}

</mosaic_0001>

<llo_original>
// kernel: seg_qyl_forward.6
$region0: #{seg_qyl_forward.6}
  #allocation0 [shape = 'u32[]', space=smem, size = 0x4, offset = 0x4, fixed_abs, tag = 'smem constant byte address 0x4 - core index']
  #allocation1 [shape = 'u32[144,128]{1,0:T(1,128)}', space=vmem, size = 0x12000, scoped, tag = 'internal scratch']
  #allocation2 [shape = 'bf16[3,290]{1,0:T(4,128)(2,1)}', space=vmem, size = 0xc00, scoped, tag = 'scratch operand']
  #allocation3 [shape = 'bf16[8,290]{1,0:T(8,128)(2,1)}', space=vmem, size = 0x1800, scoped, tag = 'scratch operand']
  %s0 = inlined_call_operand.vmem [shape: bf16[2,3,256], index: 0, kind: input, shape index: {}]
  %s1 = inlined_call_operand.vmem [shape: bf16[8,27], index: 1, kind: input, shape index: {}]
  %s2 = inlined_call_operand.vmem [shape: f32[8,1], index: 2, kind: input, shape index: {}]
  %s3 = inlined_call_operand.vmem [shape: bf16[8,72], index: 3, kind: input, shape index: {}]
  %s4 = inlined_call_operand.vmem [shape: f32[8,1], index: 4, kind: input, shape index: {}]
  %s5 = inlined_call_operand.vmem [shape: bf16[2,8,256], index: 5, kind: output, shape index: {}]
  %s6 = sld [smem:[#allocation0]]
  $region53: #{seg_qyl_forward.6} parent=0
    _
  %s8 = ssub.s32 1, %s6
  %s9 = scalar_select 0, %s8, %s6
  loop: start=0, step=1, limit=4
  $region2: #{seg_qyl_forward.6} parent=0 // loop_pre_header
    _
  $region3: #{seg_qyl_forward.6} parent=0 // loop_header
    %s11 = sphi 0, %s15
    %p12 = scmp.ge.s32.totalorder %s11, 4
    %s21 = sphi 0, %s23
    %s24 = sphi 0, %s21
    %s25 = sphi 0, %s24
    %s41 = sphi 0, %s25
    %s45 = sphi 0, %s45
    %s47 = sphi 0, %s45
    %s48 = sphi 0, %s47
    %s62 = sphi 0, %s48
    %s66 = sphi 0, %s66
    %s68 = sphi 0, %s66
    %s69 = sphi 0, %s68
    %s83 = sphi 0, %s69
    %s87 = sphi 0, %s87
    %s89 = sphi 0, %s87
    %s90 = sphi 0, %s89
    %s104 = sphi 0, %s90
    %s108 = sphi 0, %s108
    %s110 = sphi 0, %s108
    %s111 = sphi 0, %s110
    %s125 = sphi 0, %s111
    %s131 = sphi 0, %s133
    %s134 = sphi 0, %s131
    %s135 = sphi 0, %s134
    %s151 = sphi 0, %s135
  $region4: #{seg_qyl_forward.6} parent=0 // loop_header_branch
    %14 = sbr.rel (%p12) target = $region8
  $region5: #{seg_qyl_forward.6} parent=0 // loop_body
    %s16 = ssub.s32 %s11, 1
    %s17 = ssub.s32 %s11, 2
    %s18 = sadd.s32 %s11, 1
    %s19 = ssub.s32 %s11, %s18
    %p20 = scmp.eq.s32.totalorder %s19, 0
    %s22 = sadd.s32 %s21, 1
    %s23 = scalar_select %p20, %s21, %s22
    %p26 = pneg %p20
    %p27 = scmp.eq.s32.totalorder %s11, 1
    %p28 = por %p26, %p27
    %p29 = scmp.ne.s32.totalorder %s21, %s24
    %p30 = scmp.eq.s32.totalorder %s11, 0
    %p31 = por %p29, %p30
    %p32 = scmp.ne.s32.totalorder %s21, %s24
    %p33 = scmp.eq.s32.totalorder %s16, 1
    %p34 = por %p32, %p33
    %p35 = scmp.ne.s32.totalorder %s24, %s25
    %p36 = scmp.eq.s32.totalorder %s16, 0
    %p37 = por %p35, %p36
    %p38 = scmp.ne.s32.totalorder %s24, %s25
    %p39 = scmp.eq.s32.totalorder %s17, 1
    %p40 = por %p38, %p39
    %p42 = scmp.ne.s32.totalorder %s25, %s41
    %p43 = scmp.eq.s32.totalorder %s17, 0
    %p44 = por %p42, %p43
    %s46 = sadd.s32 %s45, 1
    %p49 = scmp.eq.s32.totalorder %s11, 1
    %p50 = scmp.ne.s32.totalorder %s45, %s47
    %p51 = scmp.eq.s32.totalorder %s11, 0
    %p52 = por %p50, %p51
    %p53 = scmp.ne.s32.totalorder %s45, %s47
    %p54 = scmp.eq.s32.totalorder %s16, 1
    %p55 = por %p53, %p54
    %p56 = scmp.ne.s32.totalorder %s47, %s48
    %p57 = scmp.eq.s32.totalorder %s16, 0
    %p58 = por %p56, %p57
    %p59 = scmp.ne.s32.totalorder %s47, %s48
    %p60 = scmp.eq.s32.totalorder %s17, 1
    %p61 = por %p59, %p60
    %p63 = scmp.ne.s32.totalorder %s48, %s62
    %p64 = scmp.eq.s32.totalorder %s17, 0
    %p65 = por %p63, %p64
    %s67 = sadd.s32 %s66, 1
    %p70 = scmp.eq.s32.totalorder %s11, 1
    %p71 = scmp.ne.s32.totalorder %s66, %s68
    %p72 = scmp.eq.s32.totalorder %s11, 0
    %p73 = por %p71, %p72
    %p74 = scmp.ne.s32.totalorder %s66, %s68
    %p75 = scmp.eq.s32.totalorder %s16, 1
    %p76 = por %p74, %p75
    %p77 = scmp.ne.s32.totalorder %s68, %s69
    %p78 = scmp.eq.s32.totalorder %s16, 0
    %p79 = por %p77, %p78
    %p80 = scmp.ne.s32.totalorder %s68, %s69
    %p81 = scmp.eq.s32.totalorder %s17, 1
    %p82 = por %p80, %p81
    %p84 = scmp.ne.s32.totalorder %s69, %s83
    %p85 = scmp.eq.s32.totalorder %s17, 0
    %p86 = por %p84, %p85
    %s88 = sadd.s32 %s87, 1
    %p91 = scmp.eq.s32.totalorder %s11, 1
    %p92 = scmp.ne.s32.totalorder %s87, %s89
    %p93 = scmp.eq.s32.totalorder %s11, 0
    %p94 = por %p92, %p93
    %p95 = scmp.ne.s32.totalorder %s87, %s89
    %p96 = scmp.eq.s32.totalorder %s16, 1
    %p97 = por %p95, %p96
    %p98 = scmp.ne.s32.totalorder %s89, %s90
    %p99 = scmp.eq.s32.totalorder %s16, 0
    %p100 = por %p98, %p99
    %p101 = scmp.ne.s32.totalorder %s89, %s90
    %p102 = scmp.eq.s32.totalorder %s17, 1
    %p103 = por %p101, %p102
    %p105 = scmp.ne.s32.totalorder %s90, %s104
    %p106 = scmp.eq.s32.totalorder %s17, 0
    %p107 = por %p105, %p106
    %s109 = sadd.s32 %s108, 1
    %p112 = scmp.eq.s32.totalorder %s11, 1
    %p113 = scmp.ne.s32.totalorder %s108, %s110
    %p114 = scmp.eq.s32.totalorder %s11, 0
    %p115 = por %p113, %p114
    %p116 = scmp.ne.s32.totalorder %s108, %s110
    %p117 = scmp.eq.s32.totalorder %s16, 1
    %p118 = por %p116, %p117
    %p119 = scmp.ne.s32.totalorder %s110, %s111
    %p120 = scmp.eq.s32.totalorder %s16, 0
    %p121 = por %p119, %p120
    %p122 = scmp.ne.s32.totalorder %s110, %s111
    %p123 = scmp.eq.s32.totalorder %s17, 1
    %p124 = por %p122, %p123
    %p126 = scmp.ne.s32.totalorder %s111, %s125
    %p127 = scmp.eq.s32.totalorder %s17, 0
    %p128 = por %p126, %p127
    %s129 = ssub.s32 %s11, %s18
    %p130 = scmp.eq.s32.totalorder %s129, 0
    %s132 = sadd.s32 %s131, 1
    %s133 = scalar_select %p130, %s131, %s132
    %p136 = pneg %p130
    %p137 = scmp.eq.s32.totalorder %s11, 1
    %p138 = por %p136, %p137
    %p139 = scmp.ne.s32.totalorder %s131, %s134
    %p140 = scmp.eq.s32.totalorder %s11, 0
    %p141 = por %p139, %p140
    %p142 = scmp.ne.s32.totalorder %s131, %s134
    %p143 = scmp.eq.s32.totalorder %s16, 1
    %p144 = por %p142, %p143
    %p145 = scmp.ne.s32.totalorder %s134, %s135
    %p146 = scmp.eq.s32.totalorder %s16, 0
    %p147 = por %p145, %p146
    %p148 = scmp.ne.s32.totalorder %s134, %s135
    %p149 = scmp.eq.s32.totalorder %s17, 1
    %p150 = por %p148, %p149
    %p152 = scmp.ne.s32.totalorder %s135, %s151
    %p153 = scmp.eq.s32.totalorder %s17, 0
    %p154 = por %p152, %p153
    %p155 = scmp.le.s32.totalorder 1, %s11
    %p156 = scmp.lt.s32.totalorder %s11, 3
    %p157 = pnand %p155, %p156
    %p158 = pneg %p157
    // Predicated region
    $region9: #{seg_qyl_forward.6} parent=5 // pred_check
      _
    $region10: #{seg_qyl_forward.6} parent=5 // pred_check_branch
      %160 = sbr.rel (%p157) target = $region12
    $region11: #{seg_qyl_forward.6} parent=5 // pred_region
      %s161 = ssub.s32 %s11, 1
      // Predicated region
      $region13: #{seg_qyl_forward.6} parent=11 // pred_check
        %p162 = pneg %p58
      $region14: #{seg_qyl_forward.6} parent=11 // pred_check_branch
        %164 = sbr.rel (%p162) target = $region16
      $region15: #{seg_qyl_forward.6} parent=11 // pred_region
        _
      $region16: #{seg_qyl_forward.6} parent=11 // pred_fallthru
        _
      // Predicated region
      $region17: #{seg_qyl_forward.6} parent=11 // pred_check
        %p165 = pneg %p79
      $region18: #{seg_qyl_forward.6} parent=11 // pred_check_branch
        %167 = sbr.rel (%p165) target = $region20
      $region19: #{seg_qyl_forward.6} parent=11 // pred_region
        _
      $region20: #{seg_qyl_forward.6} parent=11 // pred_fallthru
        _
      // Predicated region
      $region21: #{seg_qyl_forward.6} parent=11 // pred_check
        %p168 = pneg %p100
      $region22: #{seg_qyl_forward.6} parent=11 // pred_check_branch
        %170 = sbr.rel (%p168) target = $region24
      $region23: #{seg_qyl_forward.6} parent=11 // pred_region
        _
      $region24: #{seg_qyl_forward.6} parent=11 // pred_fallthru
        _
      // Predicated region
      $region25: #{seg_qyl_forward.6} parent=11 // pred_check
        %p171 = pneg %p121
      $region26: #{seg_qyl_forward.6} parent=11 // pred_check_branch
        %173 = sbr.rel (%p171) target = $region28
      $region27: #{seg_qyl_forward.6} parent=11 // pred_region
        _
      $region28: #{seg_qyl_forward.6} parent=11 // pred_fallthru
        _
    $region12: #{seg_qyl_forward.6} parent=5 // pred_fallthru
      _
    %p174 = scmp.lt.s32.totalorder %s11, 2
    // Predicated region
    $region29: #{seg_qyl_forward.6} parent=5 // pred_check
      %p175 = pneg %p174
    $region30: #{seg_qyl_forward.6} parent=5 // pred_check_branch
      %177 = sbr.rel (%p175) target = $region32
    $region31: #{seg_qyl_forward.6} parent=5 // pred_region
      // Predicated region
      $region33: #{seg_qyl_forward.6} parent=31 // pred_check
        %p178 = pneg %p31
      $region34: #{seg_qyl_forward.6} parent=31 // pred_check_branch
        %180 = sbr.rel (%p178) target = $region36
      $region35: #{seg_qyl_forward.6} parent=31 // pred_region
        %p181 = scmp.lt.s32.totalorder %s11, 1
        %s182 = scalar_select %p181, %s11, 1
        %s183 = smul.addr %s182, 2
        %s184 = smul.addr %s183, 2
        %s185 = scalar_lea.vmem %s0, %s184
      $region36: #{seg_qyl_forward.6} parent=31 // pred_fallthru
        _
    $region32: #{seg_qyl_forward.6} parent=5 // pred_fallthru
      _
    %p186 = scmp.le.s32.totalorder 1, %s11
    %p187 = scmp.lt.s32.totalorder %s11, 3
    %p188 = pnand %p186, %p187
    %p189 = pneg %p188
    // Predicated region
    $region37: #{seg_qyl_forward.6} parent=5 // pred_check
      _
    $region38: #{seg_qyl_forward.6} parent=5 // pred_check_branch
      %191 = sbr.rel (%p188) target = $region40
    $region39: #{seg_qyl_forward.6} parent=5 // pred_region
      %s192 = ssub.s32 %s11, 1
      %p193 = scmp.lt.s32.totalorder %s16, 1
      %s194 = scalar_select %p193, %s16, 1
      %s195 = smul.addr %s194, 2
      %s196 = smul.addr %s195, 2
      %s197 = scalar_lea.vmem %s0, %s196
      %p198 = pneg %p37
      %p199 = pneg %p34
      %p200 = pneg %p58
      %p201 = pneg %p55
      %p202 = pneg %p79
      %p203 = pneg %p76
      %p204 = pneg %p100
      %p205 = pneg %p97
      %p206 = pneg %p121
      %p207 = pneg %p118
      %p208 = pneg %p147
      %p209 = pneg %p144
      %p210 = scmp.lt.s32.totalorder %s16, 1
      %s211 = scalar_select %p210, %s16, 1
      %s212 = smul.addr %s211, 2
      %s213 = smul.addr %s212, 4
      %s214 = scalar_lea.vmem %s5, %s213
      %p215 = scmp.lt.s32.totalorder %s16, 1
      %s216 = scalar_select %p215, %s16, 1
      %s217 = smul.addr %s216, 2
      %s218 = smul.addr %s217, 2
      %s219 = scalar_lea.vmem %s0, %s218
      %p220 = scmp.lt.s32.totalorder %s16, 1
      %s221 = scalar_select %p220, %s16, 1
      %s222 = smul.addr %s221, 2
      %s223 = smul.addr %s222, 4
      %s224 = scalar_lea.vmem %s5, %s223
      %v226 = vlaneseq
      %v227 = vand.u32 %v226, 127
      %v228 = vadd.s32 %v227, 128
      %vm229 = vcmp.lt.s32.totalorder %v227, 0
      %v230 = vsub.s32 0, %v227
      %v231 = vsel %vm229, %v230, %v227
      %v232 = vshrl.u32 %v231, 4
      %v233 = vand.u32 %v231, 15
      %v234 = vsub.s32 0, %v233
      %v235 = vsel %vm229, %v234, %v233
      %vm236 = vcmp.lt.s32.totalorder %v228, 0
      %v237 = vsub.s32 0, %v228
      %v238 = vsel %vm236, %v237, %v228
      %v239 = vshrl.u32 %v238, 4
      %v240 = vand.u32 %v238, 15
      %v241 = vsub.s32 0, %v240
      %v242 = vsel %vm236, %v241, %v240
      %vm243 = vcmp.ne.s32.totalorder %v235, 0
      %vm244 = vcmp.ne.s32.totalorder %v242, 0
      %vm245 = vcmp.lt.s32.totalorder %v235, 0
      %vm246 = vcmp.lt.s32.totalorder %v242, 0
      %vm247 = vmand %vm245, %vm243
      %vm248 = vmand %vm246, %vm244
      %v249 = vadd.s32 %v235, 16
      %v250 = vadd.s32 %v242, 16
      %v251 = vsel %vm247, %v249, %v235
      %v252 = vsel %vm248, %v250, %v242
      %vm253 = vcmp.gt.s32.totalorder %v251, 0
      %vm254 = vcmp.gt.s32.totalorder %v252, 0
      %v255 = vsel %vm253, 1, 0
      %v256 = vsel %vm254, 1, 0
      %v257 = vcvt.s32.f32 %v255
      %v258 = vcvt.s32.f32 %v256
      %v259 = vpack.c.bf16 %v257, %v257
      %v260 = vpack.c.bf16 %v258, %v258
      %vm261 = vcmp.lt.s32.totalorder %v251, 15
      %vm262 = vcmp.lt.s32.totalorder %v252, 15
      %v263 = vsel %vm261, 1, 0
      %v264 = vsel %vm262, 1, 0
      %v265 = vcvt.s32.f32 %v263
      %v266 = vcvt.s32.f32 %v264
      %v267 = vpack.c.bf16 %v265, %v265
      %v268 = vpack.c.bf16 %v266, %v266
      %vm269 = vcmask 132096
      %vm270 = vsmask.f32 1280
      %vm271 = vmand %vm269, %vm270
      %v272 = vld [vmem:[#allocation2] sm:$0x3]
      %v273 = vsel %vm271, 0, %v272
      %274 = vst [vmem:[#allocation2] sm:$0x3] %v273
      %vm275 = vcmask 271496
      %vm276 = vmand %vm275, %vm270
      %v277 = vld [vmem:[#allocation2 + $0x4] sm:$0x3]
      %v278 = vsel %vm276, 0, %v277
      %279 = vst [vmem:[#allocation2 + $0x4] sm:$0x3] %v278
      %vm280 = vcmask 134144
      %281 = vst.msk [vmem:[#allocation3] sm:$0xf] %vm280, 0
      %vm282 = vcmask 273544
      %283 = vst.msk [vmem:[#allocation3 + $0x8] sm:$0xf] %vm282, 0
      %v284 = vld [vmem:[%s219] sm:$0xf]
      %286 = vrot.lane.b32.xlu0 %v284, 17
      %v287 = vpop.permute.xlu0 %286
      %v288 = vrot.slane %v287, 6
      %vm289 = vcmask 138240
      %v290 = vsel %vm289, %v288, %v287
      %vm292 = vcmask 1041544
      %vm293 = vmand %vm292, %vm270
      %vm294 = vcmask 1043458
      %vm295 = vsmask.f32 3328
      %vm296 = vmand %vm294, %vm295
      %vm297 = vmor %vm296, %vm293
      %vm298 = vcmask 136196
      %vm299 = vsmask.f32 5376
      %vm300 = vmand %vm298, %vm299
      %vm301 = vmor %vm300, %vm297
      %v302 = vld [vmem:[#allocation2] sm:$0x3f]
      %v303 = vsel %vm301, %v290, %v302
      %304 = vst [vmem:[#allocation2] sm:$0x3f] %v303
      %v305 = vld [vmem:[#allocation2] sm:$0xf]
      %v308 = vcombine.low %v259, %v260
      %v310 = vunpack.c.l.s4 1983009808
      %v311 = vunpack.c.0.s8 %v310
      %v312 = vlaneseq
      %v313 = vshrl.u32 %v312, 7
      %v314 = vsub.s32 %v311, %v313
      %v315 = vrot.slane %v308, %v314
      %v317 = vmul.bf16 %v305, %v315
      %v318 = vld [vmem:[#allocation2] sm:$0x3f]
      %v321 = vcombine.low %v267, %v268
      %v323 = vunpack.c.l.s4 1983009808
      %v324 = vunpack.c.0.s8 %v323
      %v325 = vlaneseq
      %v326 = vshrl.u32 %v325, 7
      %v327 = vsub.s32 %v324, %v326
      %v328 = vrot.slane %v321, %v327
      %329 = vrot.lane.b32.xlu0 %v328, 2
      %v330 = vpop.permute.xlu0 %329
      %v331 = vrot.slane %v330, 6
      %vm332 = vcmask 15360
      %v333 = vsel %vm332, %v331, %v330
      %v335 = vmul.bf16 %v318, %v333
      %v338 = vunpack.c.l.s4 1983009808
      %v339 = vunpack.c.0.s8 %v338
      %v340 = vlaneseq
      %v341 = vshrl.u32 %v340, 7
      %v342 = vsub.s32 %v339, %v341
      %v343 = vrot.slane %v317, %v342
      %v344 = vcombine.high %v343, %v343
      %v348 = vcombine.high %v318, %v318
      %v350 = vunpack.c.l.s4 1983009808
      %v351 = vunpack.c.0.s8 %v350
      %v352 = vlaneseq
      %v353 = vshrl.u32 %v352, 7
      %v354 = vsub.s32 %v351, %v353
      %v355 = vrot.slane %v318, %v354
      %v357 = vunpack.c.l.s4 1983009808
      %v358 = vunpack.c.0.s8 %v357
      %v359 = vlaneseq
      %v360 = vshrl.u32 %v359, 7
      %v361 = vsub.s32 %v358, %v360
      %v362 = vrot.slane %v348, %v361
      %v363 = vcombine.high %v355, %v355
      %v365 = vshrl.u32 %v355, 16
      %v367 = vrot.slane %v365, 6
      %v368 = vshll.u32 %v355, 16
      %v370 = vrot.slane %v368, 7
      %v371 = vor.u32 %v367, %v370
      %v373 = vshrl.u32 %v363, 16
      %v375 = vrot.slane %v373, 6
      %v376 = vshll.u32 %v363, 16
      %v378 = vrot.slane %v376, 7
      %v379 = vor.u32 %v375, %v378
      %v381 = vshrl.u32 %v362, 16
      %v383 = vrot.slane %v381, 6
      %v384 = vshll.u32 %v362, 16
      %v386 = vrot.slane %v384, 7
      %v387 = vor.u32 %v383, %v386
      %388 = vrot.lane.b32.xlu0 %v371, 127
      %v389 = vpop.permute.xlu0 %388
      %390 = vrot.lane.b32.xlu0 %v379, 127
      %v391 = vpop.permute.xlu0 %390
      %392 = vrot.lane.b32.xlu0 %v387, 127
      %v393 = vpop.permute.xlu0 %392
      %vm394 = vcmask 1039360
      %v395 = vsel %vm394, %v389, %v391
      %v396 = vsel %vm394, %v391, %v393
      %v400 = vcombine.high %v335, %v335
      %v402 = vunpack.c.l.s4 1983009808
      %v403 = vunpack.c.0.s8 %v402
      %v404 = vlaneseq
      %v405 = vshrl.u32 %v404, 7
      %v406 = vsub.s32 %v403, %v405
      %v407 = vrot.slane %v335, %v406
      %v409 = vunpack.c.l.s4 1983009808
      %v410 = vunpack.c.0.s8 %v409
      %v411 = vlaneseq
      %v412 = vshrl.u32 %v411, 7
      %v413 = vsub.s32 %v410, %v412
      %v414 = vrot.slane %v400, %v413
      %v415 = vcombine.high %v407, %v407
      %v416 = vrot.slane %v407, 5
      %v417 = vrot.slane %v415, 5
      %v418 = vrot.slane %v414, 5
      %419 = vrot.lane.b32.xlu0 %v416, 126
      %v420 = vpop.permute.xlu0 %419
      %421 = vrot.lane.b32.xlu0 %v417, 126
      %v422 = vpop.permute.xlu0 %421
      %423 = vrot.lane.b32.xlu0 %v418, 126
      %v424 = vpop.permute.xlu0 %423
      %vm425 = vcmask 1031168
      %v426 = vsel %vm425, %v420, %v422
      %v427 = vsel %vm425, %v422, %v424
      %vm428 = vcmask 1041408
      %vm429 = vmand %vm428, %vm270
      %v430 = vsel %vm429, %v343, %v395
      %v431 = vsel %vm429, %v344, %v396
      %vm432 = vcmask 1042432
      %v435 = vsel %vm432, %v430, %v426
      %v438 = vsel %vm432, %v431, %v427
      %v439 = vld [vmem:[%s1] sm:$0xf]
      %440 = vrot.lane.b32.xlu0 %v315, 16
      %v441 = vpop.permute.xlu0 %440
      %v442 = vrot.slane %v441, 6
      %vm443 = vcmask 130048
      %v444 = vsel %vm443, %v442, %v441
      %v446 = vmul.bf16 %v318, %v444
      %447 = vrot.lane.b32.xlu0 %v328, 18
      %v448 = vpop.permute.xlu0 %447
      %v449 = vrot.slane %v448, 6
      %vm450 = vcmask 146432
      %v451 = vsel %vm450, %v449, %v448
      %v453 = vmul.bf16 %v318, %v451
      %v455 = vcombine.high %v446, %v446
      %v457 = vunpack.c.l.s4 1983009808
      %v458 = vunpack.c.0.s8 %v457
      %v459 = vlaneseq
      %v460 = vshrl.u32 %v459, 7
      %v461 = vsub.s32 %v458, %v460
      %v462 = vrot.slane %v446, %v461
      %v464 = vunpack.c.l.s4 1983009808
      %v465 = vunpack.c.0.s8 %v464
      %v466 = vlaneseq
      %v467 = vshrl.u32 %v466, 7
      %v468 = vsub.s32 %v465, %v467
      %v469 = vrot.slane %v455, %v468
      %v470 = vcombine.high %v462, %v462
      %v476 = vcombine.high %v453, %v453
      %v478 = vunpack.c.l.s4 1983009808
      %v479 = vunpack.c.0.s8 %v478
      %v480 = vlaneseq
      %v481 = vshrl.u32 %v480, 7
      %v482 = vsub.s32 %v479, %v481
      %v483 = vrot.slane %v453, %v482
      %v485 = vunpack.c.l.s4 1983009808
      %v486 = vunpack.c.0.s8 %v485
      %v487 = vlaneseq
      %v488 = vshrl.u32 %v487, 7
      %v489 = vsub.s32 %v486, %v488
      %v490 = vrot.slane %v476, %v489
      %v491 = vcombine.high %v483, %v483
      %v492 = vrot.slane %v483, 5
      %v493 = vrot.slane %v491, 5
      %v494 = vrot.slane %v490, 5
      %495 = vrot.lane.b32.xlu0 %v492, 126
      %v496 = vpop.permute.xlu0 %495
      %497 = vrot.lane.b32.xlu0 %v493, 126
      %v498 = vpop.permute.xlu0 %497
      %499 = vrot.lane.b32.xlu0 %v494, 126
      %v500 = vpop.permute.xlu0 %499
      %v501 = vsel %vm425, %v496, %v498
      %v502 = vsel %vm425, %v498, %v500
      %v503 = vsel %vm429, %v462, %v395
      %v504 = vsel %vm429, %v470, %v396
      %v505 = vsel %vm429, %v469, %v393
      %v508 = vsel %vm432, %v503, %v501
      %v511 = vsel %vm432, %v504, %v502
      %v514 = vsel %vm432, %v505, %v500
      %v516 = vunpack.c.l.b16 %v439
      %v517 = vpack.c.b16 %v516, %v516
      %518 = vrot.lane.b32.xlu0 %v517, 119
      %v519 = vpop.permute.xlu0 %518
      %523 = vrot.lane.b32.xlu0 %v508, 112
      %v524 = vpop.permute.xlu0 %523
      %525 = vrot.lane.b32.xlu0 %v511, 112
      %v526 = vpop.permute.xlu0 %525
      %527 = vrot.lane.b32.xlu0 %v514, 112
      %v528 = vpop.permute.xlu0 %527
      %vm529 = vcmask 916480
      %v530 = vsel %vm529, %v524, %v526
      %v531 = vsel %vm529, %v526, %v528
      %vm532 = vcmask 72704
      %v534 = vsel %vm532, %v519, 0
      %vm536 = vcmask 1043456
      %vm537 = vcmask 1044480
      %v538 = vsel %vm536, 4294967295, 65535
      %v539 = vsel %vm537, %v538, 0
      %v541 = vand.u32 %v530, %v539
      %v544 = vand.u32 %v531, %v539
      %546 = vmatprep.subr.bf16.mxu0 0
      %547 = vmatpush1.bf16.msra.mxu0 0
      %548 = vmatprep.subr.bf16.mxu0 0
      %549 = vmatpush1.bf16.msra.mxu0 0
      %550 = vmatprep.subr.bf16.mxu0 0
      %551 = vmatpush1.bf16.msra.mxu0 0
      %552 = vmatprep.subr.bf16.mxu0 0
      %553 = vmatpush1.bf16.msra.mxu0 0
      %554 = vmatprep.subr.bf16.mxu0 0
      %555 = vmatpush1.bf16.msra.mxu0 0
      %556 = vmatprep.subr.bf16.mxu0 0
      %557 = vmatpush1.bf16.msra.mxu0 0
      %558 = vmatprep.subr.bf16.mxu0 0
      %559 = vmatpush1.bf16.msra.mxu0 0
      %560 = vmatprep.subr.bf16.mxu0 %v544
      %561 = vmatpush1.bf16.msra.mxu0 %v541
      %562 = vmatprep.subr.bf16.mxu0 0
      %563 = vmatpush2.bf16.msra.mxu0 0
      %564 = vmatprep.subr.bf16.mxu0 0
      %565 = vmatpush2.bf16.msra.mxu0 0
      %566 = vmatprep.subr.bf16.mxu0 0
      %567 = vmatpush2.bf16.msra.mxu0 0
      %568 = vmatprep.subr.bf16.mxu0 0
      %569 = vmatpush2.bf16.msra.mxu0 0
      %570 = vmatprep.subr.bf16.mxu0 0
      %571 = vmatpush2.bf16.msra.mxu0 0
      %572 = vmatprep.subr.bf16.mxu0 0
      %573 = vmatpush2.bf16.msra.mxu0 0
      %574 = vmatprep.subr.bf16.mxu0 0
      %575 = vmatpush2.bf16.msra.mxu0 0
      %576 = vmatprep.subr.bf16.mxu0 0
      %577 = vmatpush2.bf16.msra.mxu0 0
      %578 = vmatprep.mubr.bf16.mxu0 0
      %579 = vmatmul.mubr.bf16.gmra.mxu0 %v534
      %v580 = vpop.f32.mrf.mxu0
      %v581 = vadd.f32 0.0, %v580
      %v582 = vpop.f32.mrf.mxu0
      %v583 = vadd.f32 0.0, %v582
      %v584 = vpop.f32.mrf.mxu0
      %v585 = vpop.f32.mrf.mxu0
      %586 = vdwg.mxu0
      %v588 = vsel %vm532, %v439, 0
      %v590 = vand.u32 %v435, %v539
      %v592 = vand.u32 %v438, %v539
      %594 = vmatprep.subr.bf16.mxu0 0
      %595 = vmatpush1.bf16.msra.mxu0 0
      %596 = vmatprep.subr.bf16.mxu0 0
      %597 = vmatpush1.bf16.msra.mxu0 0
      %598 = vmatprep.subr.bf16.mxu0 0
      %599 = vmatpush1.bf16.msra.mxu0 0
      %600 = vmatprep.subr.bf16.mxu0 0
      %601 = vmatpush1.bf16.msra.mxu0 0
      %602 = vmatprep.subr.bf16.mxu0 0
      %603 = vmatpush1.bf16.msra.mxu0 0
      %604 = vmatprep.subr.bf16.mxu0 0
      %605 = vmatpush1.bf16.msra.mxu0 0
      %606 = vmatprep.subr.bf16.mxu0 0
      %607 = vmatpush1.bf16.msra.mxu0 0
      %608 = vmatprep.subr.bf16.mxu0 %v592
      %609 = vmatpush1.bf16.msra.mxu0 %v590
      %610 = vmatprep.subr.bf16.mxu0 0
      %611 = vmatpush2.bf16.msra.mxu0 0
      %612 = vmatprep.subr.bf16.mxu0 0
      %613 = vmatpush2.bf16.msra.mxu0 0
      %614 = vmatprep.subr.bf16.mxu0 0
      %615 = vmatpush2.bf16.msra.mxu0 0
      %616 = vmatprep.subr.bf16.mxu0 0
      %617 = vmatpush2.bf16.msra.mxu0 0
      %618 = vmatprep.subr.bf16.mxu0 0
      %619 = vmatpush2.bf16.msra.mxu0 0
      %620 = vmatprep.subr.bf16.mxu0 0
      %621 = vmatpush2.bf16.msra.mxu0 0
      %622 = vmatprep.subr.bf16.mxu0 0
      %623 = vmatpush2.bf16.msra.mxu0 0
      %624 = vmatprep.subr.bf16.mxu0 0
      %625 = vmatpush2.bf16.msra.mxu0 0
      %626 = vmatprep.mubr.bf16.mxu0 0
      %627 = vmatmul.mubr.bf16.gmra.mxu0 %v588
      %v628 = vpop.f32.mrf.mxu0
      %v629 = vadd.f32 %v581, %v628
      %v630 = vpop.f32.mrf.mxu0
      %v631 = vadd.f32 %v583, %v630
      %v632 = vpop.f32.mrf.mxu0
      %v633 = vpop.f32.mrf.mxu0
      %634 = vdwg.mxu0
      %v635 = vld [vmem:[#allocation2] sm:$0x3f]
      %636 = vrot.lane.b32.xlu0 %v315, 32
      %v637 = vpop.permute.xlu0 %636
      %v638 = vrot.slane %v637, 6
      %vm639 = vcmask 261120
      %v640 = vsel %vm639, %v638, %v637
      %v642 = vmul.bf16 %v635, %v640
      %643 = vrot.lane.b32.xlu0 %v328, 34
      %v644 = vpop.permute.xlu0 %643
      %v645 = vrot.slane %v644, 6
      %vm646 = vcmask 277504
      %v647 = vsel %vm646, %v645, %v644
      %v649 = vmul.bf16 %v635, %v647
      %v651 = vcombine.high %v642, %v642
      %v653 = vunpack.c.l.s4 1983009808
      %v654 = vunpack.c.0.s8 %v653
      %v655 = vlaneseq
      %v656 = vshrl.u32 %v655, 7
      %v657 = vsub.s32 %v654, %v656
      %v658 = vrot.slane %v642, %v657
      %v660 = vunpack.c.l.s4 1983009808
      %v661 = vunpack.c.0.s8 %v660
      %v662 = vlaneseq
      %v663 = vshrl.u32 %v662, 7
      %v664 = vsub.s32 %v661, %v663
      %v665 = vrot.slane %v651, %v664
      %v666 = vcombine.high %v658, %v658
      %v671 = vcombine.high %v635, %v635
      %v673 = vunpack.c.l.s4 1983009808
      %v674 = vunpack.c.0.s8 %v673
      %v675 = vlaneseq
      %v676 = vshrl.u32 %v675, 7
      %v677 = vsub.s32 %v674, %v676
      %v678 = vrot.slane %v635, %v677
      %v680 = vunpack.c.l.s4 1983009808
      %v681 = vunpack.c.0.s8 %v680
      %v682 = vlaneseq
      %v683 = vshrl.u32 %v682, 7
      %v684 = vsub.s32 %v681, %v683
      %v685 = vrot.slane %v671, %v684
      %v686 = vcombine.high %v678, %v678
      %v688 = vshrl.u32 %v678, 16
      %v690 = vrot.slane %v688, 6
      %v691 = vshll.u32 %v678, 16
      %v693 = vrot.slane %v691, 7
      %v694 = vor.u32 %v690, %v693
      %v696 = vshrl.u32 %v686, 16
      %v698 = vrot.slane %v696, 6
      %v699 = vshll.u32 %v686, 16
      %v701 = vrot.slane %v699, 7
      %v702 = vor.u32 %v698, %v701
      %v704 = vshrl.u32 %v685, 16
      %v706 = vrot.slane %v704, 6
      %v707 = vshll.u32 %v685, 16
      %v709 = vrot.slane %v707, 7
      %v710 = vor.u32 %v706, %v709
      %711 = vrot.lane.b32.xlu0 %v694, 127
      %v712 = vpop.permute.xlu0 %711
      %713 = vrot.lane.b32.xlu0 %v702, 127
      %v714 = vpop.permute.xlu0 %713
      %715 = vrot.lane.b32.xlu0 %v710, 127
      %v716 = vpop.permute.xlu0 %715
      %v717 = vsel %vm394, %v712, %v714
      %v718 = vsel %vm394, %v714, %v716
      %v723 = vcombine.high %v649, %v649
      %v725 = vunpack.c.l.s4 1983009808
      %v726 = vunpack.c.0.s8 %v725
      %v727 = vlaneseq
      %v728 = vshrl.u32 %v727, 7
      %v729 = vsub.s32 %v726, %v728
      %v730 = vrot.slane %v649, %v729
      %v732 = vunpack.c.l.s4 1983009808
      %v733 = vunpack.c.0.s8 %v732
      %v734 = vlaneseq
      %v735 = vshrl.u32 %v734, 7
      %v736 = vsub.s32 %v733, %v735
      %v737 = vrot.slane %v723, %v736
      %v738 = vcombine.high %v730, %v730
      %v739 = vrot.slane %v730, 5
      %v740 = vrot.slane %v738, 5
      %v741 = vrot.slane %v737, 5
      %742 = vrot.lane.b32.xlu0 %v739, 126
      %v743 = vpop.permute.xlu0 %742
      %744 = vrot.lane.b32.xlu0 %v740, 126
      %v745 = vpop.permute.xlu0 %744
      %746 = vrot.lane.b32.xlu0 %v741, 126
      %v747 = vpop.permute.xlu0 %746
      %v748 = vsel %vm425, %v743, %v745
      %v749 = vsel %vm425, %v745, %v747
      %v750 = vsel %vm429, %v658, %v717
      %v751 = vsel %vm429, %v666, %v718
      %v752 = vsel %vm429, %v665, %v716
      %v755 = vsel %vm432, %v750, %v748
      %v758 = vsel %vm432, %v751, %v749
      %v761 = vsel %vm432, %v752, %v747
      %v762 = vld [vmem:[%s1] sm:$0xf]
      %v764 = vunpack.c.l.b16 %v762
      %v765 = vpack.c.b16 %v764, %v764
      %766 = vrot.lane.b32.xlu0 %v765, 110
      %v767 = vpop.permute.xlu0 %766
      %771 = vrot.lane.b32.xlu0 %v755, 96
      %v772 = vpop.permute.xlu0 %771
      %773 = vrot.lane.b32.xlu0 %v758, 96
      %v774 = vpop.permute.xlu0 %773
      %775 = vrot.lane.b32.xlu0 %v761, 96
      %v776 = vpop.permute.xlu0 %775
      %vm777 = vcmask 785408
      %v778 = vsel %vm777, %v772, %v774
      %v779 = vsel %vm777, %v774, %v776
      %v781 = vsel %vm532, %v767, 0
      %v784 = vand.u32 %v778, %v539
      %v787 = vand.u32 %v779, %v539
      %789 = vmatprep.subr.bf16.mxu0 0
      %790 = vmatpush1.bf16.msra.mxu0 0
      %791 = vmatprep.subr.bf16.mxu0 0
      %792 = vmatpush1.bf16.msra.mxu0 0
      %793 = vmatprep.subr.bf16.mxu0 0
      %794 = vmatpush1.bf16.msra.mxu0 0
      %795 = vmatprep.subr.bf16.mxu0 0
      %796 = vmatpush1.bf16.msra.mxu0 0
      %797 = vmatprep.subr.bf16.mxu0 0
      %798 = vmatpush1.bf16.msra.mxu0 0
      %799 = vmatprep.subr.bf16.mxu0 0
      %800 = vmatpush1.bf16.msra.mxu0 0
      %801 = vmatprep.subr.bf16.mxu0 0
      %802 = vmatpush1.bf16.msra.mxu0 0
      %803 = vmatprep.subr.bf16.mxu0 %v787
      %804 = vmatpush1.bf16.msra.mxu0 %v784
      %805 = vmatprep.subr.bf16.mxu0 0
      %806 = vmatpush2.bf16.msra.mxu0 0
      %807 = vmatprep.subr.bf16.mxu0 0
      %808 = vmatpush2.bf16.msra.mxu0 0
      %809 = vmatprep.subr.bf16.mxu0 0
      %810 = vmatpush2.bf16.msra.mxu0 0
      %811 = vmatprep.subr.bf16.mxu0 0
      %812 = vmatpush2.bf16.msra.mxu0 0
      %813 = vmatprep.subr.bf16.mxu0 0
      %814 = vmatpush2.bf16.msra.mxu0 0
      %815 = vmatprep.subr.bf16.mxu0 0
      %816 = vmatpush2.bf16.msra.mxu0 0
      %817 = vmatprep.subr.bf16.mxu0 0
      %818 = vmatpush2.bf16.msra.mxu0 0
      %819 = vmatprep.subr.bf16.mxu0 0
      %820 = vmatpush2.bf16.msra.mxu0 0
      %821 = vmatprep.mubr.bf16.mxu0 0
      %822 = vmatmul.mubr.bf16.gmra.mxu0 %v781
      %v823 = vpop.f32.mrf.mxu0
      %v824 = vadd.f32 0.0, %v823
      %v825 = vpop.f32.mrf.mxu0
      %v826 = vadd.f32 0.0, %v825
      %v827 = vpop.f32.mrf.mxu0
      %v828 = vpop.f32.mrf.mxu0
      %829 = vdwg.mxu0
      %v830 = vadd.f32 %v629, %v824
      %v831 = vadd.f32 %v631, %v826
      %v832 = vld [vmem:[%s2] sm:$0xff]
      %834 = vset.pattern.permute.xlu0 0
      %835 = vperm.xlu0 %834, %v832
      %v836 = vpop.permute.xlu0 %835
      %v838 = vadd.f32 %v830, %v836
      %v839 = vadd.f32 %v831, %v836
      %v840 = vmax.f32 %v838, 0.0
      %v841 = vmax.f32 %v839, 0.0
      %v842 = vpack.c.bf16 %v840, %v840
      %v843 = vpack.c.bf16 %v841, %v841
      %v846 = vunpack.c.l.b16 %v842
      %v847 = vunpack.c.l.b16 %v843
      %v848 = vpack.c.b16 %v847, %v846
      %849 = vrot.lane.b32.xlu0 %v848, 17
      %v850 = vpop.permute.xlu0 %849
      %v851 = vrot.slane %v850, 4
      %v852 = vsel %vm289, %v851, %v850
      %vm855 = vcmask 1043592
      %vm856 = vcmask 1047556
      %vm857 = vmor %vm856, %vm855
      %858 = vst.msk [vmem:[#allocation3] sm:$0xff] %vm857, %v852
      %859 = vst.msk [vmem:[#allocation3 + $0x8] sm:$0xf] %vm280, %v851
      %v860 = vld [vmem:[#allocation3] sm:$0xff]
      %v861 = vunpack.c.l.b16 %v259
      %v862 = vunpack.c.l.b16 %v260
      %v863 = vpack.c.b16 %v862, %v861
      %v865 = vmul.bf16 %v860, %v863
      %v866 = vld [vmem:[#allocation3 + $0x8] sm:$0xf]
      %v867 = vunpack.c.l.b16 %v267
      %v868 = vunpack.c.l.b16 %v268
      %v869 = vpack.c.b16 %v868, %v867
      %870 = vrot.lane.b32.xlu0 %v869, 2
      %v871 = vpop.permute.xlu0 %870
      %v872 = vrot.slane %v871, 4
      %v873 = vsel %vm332, %v872, %v871
      %v876 = vmul.bf16 %v860, %v873
      %v877 = vmul.bf16 %v866, %v872
      %v879 = vunpack.c.l.b16 %v865
      %v880 = vunpack.c.h.b16 %v865
      %v881 = vpack.c.b16 %v879, %v879
      %v882 = vpack.c.b16 %v880, %v880
      %v885 = vunpack.c.l.b16 %v860
      %v886 = vunpack.c.h.b16 %v860
      %v887 = vunpack.c.l.b16 %v866
      %v888 = vpack.c.b16 %v885, %v885
      %v889 = vpack.c.b16 %v886, %v886
      %v890 = vpack.c.b16 %v887, %v887
      %891 = vrot.lane.b32.xlu0 %v888, 127
      %v892 = vpop.permute.xlu0 %891
      %893 = vrot.lane.b32.xlu0 %v889, 127
      %v894 = vpop.permute.xlu0 %893
      %895 = vrot.lane.b32.xlu0 %v890, 127
      %v896 = vpop.permute.xlu0 %895
      %v897 = vsel %vm394, %v892, %v894
      %v898 = vsel %vm394, %v894, %v896
      %v901 = vunpack.c.l.b16 %v876
      %v902 = vunpack.c.h.b16 %v876
      %v903 = vunpack.c.l.b16 %v877
      %v904 = vpack.c.b16 %v901, %v901
      %v905 = vpack.c.b16 %v902, %v902
      %v906 = vpack.c.b16 %v903, %v903
      %907 = vrot.lane.b32.xlu0 %v904, 126
      %v908 = vpop.permute.xlu0 %907
      %909 = vrot.lane.b32.xlu0 %v905, 126
      %v910 = vpop.permute.xlu0 %909
      %911 = vrot.lane.b32.xlu0 %v906, 126
      %v912 = vpop.permute.xlu0 %911
      %v913 = vsel %vm425, %v908, %v910
      %v914 = vsel %vm425, %v910, %v912
      %v917 = vsel %vm536, %v881, %v897
      %v921 = vsel %vm536, %v882, %v898
      %v923 = vld [vmem:[%s3] sm:$0xf]
      %924 = vrot.lane.b32.xlu0 %v863, 16
      %v925 = vpop.permute.xlu0 %924
      %v926 = vrot.slane %v925, 4
      %v927 = vsel %vm443, %v926, %v925
      %v930 = vmul.bf16 %v860, %v927
      %v931 = vmul.bf16 %v866, %v926
      %932 = vrot.lane.b32.xlu0 %v869, 18
      %v933 = vpop.permute.xlu0 %932
      %v934 = vrot.slane %v933, 4
      %v935 = vsel %vm450, %v934, %v933
      %v938 = vmul.bf16 %v860, %v935
      %v939 = vmul.bf16 %v866, %v934
      %v942 = vunpack.c.l.b16 %v930
      %v943 = vunpack.c.h.b16 %v930
      %v944 = vunpack.c.l.b16 %v931
      %v945 = vpack.c.b16 %v942, %v942
      %v946 = vpack.c.b16 %v943, %v943
      %v947 = vpack.c.b16 %v944, %v944
      %v950 = vunpack.c.l.b16 %v938
      %v951 = vunpack.c.h.b16 %v938
      %v952 = vunpack.c.l.b16 %v939
      %v953 = vpack.c.b16 %v950, %v950
      %v954 = vpack.c.b16 %v951, %v951
      %v955 = vpack.c.b16 %v952, %v952
      %956 = vrot.lane.b32.xlu0 %v953, 126
      %v957 = vpop.permute.xlu0 %956
      %958 = vrot.lane.b32.xlu0 %v954, 126
      %v959 = vpop.permute.xlu0 %958
      %960 = vrot.lane.b32.xlu0 %v955, 126
      %v961 = vpop.permute.xlu0 %960
      %v962 = vsel %vm425, %v957, %v959
      %v963 = vsel %vm425, %v959, %v961
      %v965 = vsel %vm536, %v945, %v897
      %v967 = vsel %vm536, %v946, %v898
      %v970 = vsel %vm536, %v947, %v896
      %v972 = vunpack.c.l.b16 %v923
      %v973 = vpack.c.b16 %v972, %v972
      %974 = vrot.lane.b32.xlu0 %v973, 104
      %v975 = vpop.permute.xlu0 %974
      %979 = vrot.lane.b32.xlu0 %v965, 112
      %v980 = vpop.permute.xlu0 %979
      %981 = vrot.lane.b32.xlu0 %v967, 112
      %v982 = vpop.permute.xlu0 %981
      %983 = vrot.lane.b32.xlu0 %v970, 112
      %v984 = vpop.permute.xlu0 %983
      %985 = vrot.lane.b32.xlu0 %v962, 112
      %v986 = vpop.permute.xlu0 %985
      %987 = vrot.lane.b32.xlu0 %v963, 112
      %v988 = vpop.permute.xlu0 %987
      %989 = vrot.lane.b32.xlu0 %v961, 112
      %v990 = vpop.permute.xlu0 %989
      %v991 = vsel %vm529, %v980, %v982
      %v992 = vsel %vm529, %v982, %v984
      %v993 = vsel %vm529, %v986, %v988
      %v994 = vsel %vm529, %v988, %v990
      %vm997 = vcmask 195584
      %v999 = vsel %vm997, %v975, 0
      %v1002 = vsel %vm536, %v993, 0
      %v1005 = vsel %vm536, %v994, 0
      %1007 = vmatprep.subr.bf16.mxu0 0
      %1008 = vmatpush1.bf16.msra.mxu0 0
      %1009 = vmatprep.subr.bf16.mxu0 0
      %1010 = vmatpush1.bf16.msra.mxu0 0
      %1011 = vmatprep.subr.bf16.mxu0 0
      %1012 = vmatpush1.bf16.msra.mxu0 0
      %1013 = vmatprep.subr.bf16.mxu0 0
      %1014 = vmatpush1.bf16.msra.mxu0 0
      %1015 = vmatprep.subr.bf16.mxu0 0
      %1016 = vmatpush1.bf16.msra.mxu0 0
      %1017 = vmatprep.subr.bf16.mxu0 0
      %1018 = vmatpush1.bf16.msra.mxu0 0
      %1019 = vmatprep.subr.bf16.mxu0 %v1005
      %1020 = vmatpush1.bf16.msra.mxu0 %v1002
      %1021 = vmatprep.subr.bf16.mxu0 %v992
      %1022 = vmatpush1.bf16.msra.mxu0 %v991
      %1023 = vmatprep.subr.bf16.mxu0 0
      %1024 = vmatpush2.bf16.msra.mxu0 0
      %1025 = vmatprep.subr.bf16.mxu0 0
      %1026 = vmatpush2.bf16.msra.mxu0 0
      %1027 = vmatprep.subr.bf16.mxu0 0
      %1028 = vmatpush2.bf16.msra.mxu0 0
      %1029 = vmatprep.subr.bf16.mxu0 0
      %1030 = vmatpush2.bf16.msra.mxu0 0
      %1031 = vmatprep.subr.bf16.mxu0 0
      %1032 = vmatpush2.bf16.msra.mxu0 0
      %1033 = vmatprep.subr.bf16.mxu0 0
      %1034 = vmatpush2.bf16.msra.mxu0 0
      %1035 = vmatprep.subr.bf16.mxu0 0
      %1036 = vmatpush2.bf16.msra.mxu0 0
      %1037 = vmatprep.subr.bf16.mxu0 0
      %1038 = vmatpush2.bf16.msra.mxu0 0
      %1039 = vmatprep.mubr.bf16.mxu0 0
      %1040 = vmatmul.mubr.bf16.gmra.mxu0 %v999
      %v1041 = vpop.f32.mrf.mxu0
      %v1042 = vadd.f32 0.0, %v1041
      %v1043 = vpop.f32.mrf.mxu0
      %v1044 = vadd.f32 0.0, %v1043
      %v1045 = vpop.f32.mrf.mxu0
      %v1046 = vpop.f32.mrf.mxu0
      %1047 = vdwg.mxu0
      %v1049 = vsel %vm997, %v923, 0
      %v1052 = vsel %vm536, %v913, 0
      %v1055 = vsel %vm536, %v914, 0
      %1057 = vmatprep.subr.bf16.mxu0 0
      %1058 = vmatpush1.bf16.msra.mxu0 0
      %1059 = vmatprep.subr.bf16.mxu0 0
      %1060 = vmatpush1.bf16.msra.mxu0 0
      %1061 = vmatprep.subr.bf16.mxu0 0
      %1062 = vmatpush1.bf16.msra.mxu0 0
      %1063 = vmatprep.subr.bf16.mxu0 0
      %1064 = vmatpush1.bf16.msra.mxu0 0
      %1065 = vmatprep.subr.bf16.mxu0 0
      %1066 = vmatpush1.bf16.msra.mxu0 0
      %1067 = vmatprep.subr.bf16.mxu0 0
      %1068 = vmatpush1.bf16.msra.mxu0 0
      %1069 = vmatprep.subr.bf16.mxu0 %v1055
      %1070 = vmatpush1.bf16.msra.mxu0 %v1052
      %1071 = vmatprep.subr.bf16.mxu0 %v921
      %1072 = vmatpush1.bf16.msra.mxu0 %v917
      %1073 = vmatprep.subr.bf16.mxu0 0
      %1074 = vmatpush2.bf16.msra.mxu0 0
      %1075 = vmatprep.subr.bf16.mxu0 0
      %1076 = vmatpush2.bf16.msra.mxu0 0
      %1077 = vmatprep.subr.bf16.mxu0 0
      %1078 = vmatpush2.bf16.msra.mxu0 0
      %1079 = vmatprep.subr.bf16.mxu0 0
      %1080 = vmatpush2.bf16.msra.mxu0 0
      %1081 = vmatprep.subr.bf16.mxu0 0
      %1082 = vmatpush2.bf16.msra.mxu0 0
      %1083 = vmatprep.subr.bf16.mxu0 0
      %1084 = vmatpush2.bf16.msra.mxu0 0
      %1085 = vmatprep.subr.bf16.mxu0 0
      %1086 = vmatpush2.bf16.msra.mxu0 0
      %1087 = vmatprep.subr.bf16.mxu0 0
      %1088 = vmatpush2.bf16.msra.mxu0 0
      %1089 = vmatprep.mubr.bf16.mxu0 0
      %1090 = vmatmul.mubr.bf16.gmra.mxu0 %v1049
      %v1091 = vpop.f32.mrf.mxu0
      %v1092 = vadd.f32 %v1042, %v1091
      %v1093 = vpop.f32.mrf.mxu0
      %v1094 = vadd.f32 %v1044, %v1093
      %v1095 = vpop.f32.mrf.mxu0
      %v1096 = vpop.f32.mrf.mxu0
      %1097 = vdwg.mxu0
      %1098 = vrot.lane.b32.xlu0 %v863, 32
      %v1099 = vpop.permute.xlu0 %1098
      %v1100 = vrot.slane %v1099, 4
      %v1101 = vsel %vm639, %v1100, %v1099
      %v1104 = vmul.bf16 %v860, %v1101
      %v1105 = vmul.bf16 %v866, %v1100
      %1106 = vrot.lane.b32.xlu0 %v869, 34
      %v1107 = vpop.permute.xlu0 %1106
      %v1108 = vrot.slane %v1107, 4
      %v1109 = vsel %vm646, %v1108, %v1107
      %v1112 = vmul.bf16 %v860, %v1109
      %v1113 = vmul.bf16 %v866, %v1108
      %v1116 = vunpack.c.l.b16 %v1104
      %v1117 = vunpack.c.h.b16 %v1104
      %v1118 = vunpack.c.l.b16 %v1105
      %v1119 = vpack.c.b16 %v1116, %v1116
      %v1120 = vpack.c.b16 %v1117, %v1117
      %v1121 = vpack.c.b16 %v1118, %v1118
      %v1124 = vunpack.c.l.b16 %v1112
      %v1125 = vunpack.c.h.b16 %v1112
      %v1126 = vunpack.c.l.b16 %v1113
      %v1127 = vpack.c.b16 %v1124, %v1124
      %v1128 = vpack.c.b16 %v1125, %v1125
      %v1129 = vpack.c.b16 %v1126, %v1126
      %1130 = vrot.lane.b32.xlu0 %v1127, 126
      %v1131 = vpop.permute.xlu0 %1130
      %1132 = vrot.lane.b32.xlu0 %v1128, 126
      %v1133 = vpop.permute.xlu0 %1132
      %1134 = vrot.lane.b32.xlu0 %v1129, 126
      %v1135 = vpop.permute.xlu0 %1134
      %v1136 = vsel %vm425, %v1131, %v1133
      %v1137 = vsel %vm425, %v1133, %v1135
      %v1139 = vsel %vm536, %v1119, %v897
      %v1141 = vsel %vm536, %v1120, %v898
      %v1143 = vsel %vm536, %v1121, %v896
      %1144 = vrot.lane.b32.xlu0 %v973, 80
      %v1145 = vpop.permute.xlu0 %1144
      %1149 = vrot.lane.b32.xlu0 %v1139, 96
      %v1150 = vpop.permute.xlu0 %1149
      %1151 = vrot.lane.b32.xlu0 %v1141, 96
      %v1152 = vpop.permute.xlu0 %1151
      %1153 = vrot.lane.b32.xlu0 %v1143, 96
      %v1154 = vpop.permute.xlu0 %1153
      %1155 = vrot.lane.b32.xlu0 %v1136, 96
      %v1156 = vpop.permute.xlu0 %1155
      %1157 = vrot.lane.b32.xlu0 %v1137, 96
      %v1158 = vpop.permute.xlu0 %1157
      %1159 = vrot.lane.b32.xlu0 %v1135, 96
      %v1160 = vpop.permute.xlu0 %1159
      %v1161 = vsel %vm777, %v1150, %v1152
      %v1162 = vsel %vm777, %v1152, %v1154
      %v1163 = vsel %vm777, %v1156, %v1158
      %v1164 = vsel %vm777, %v1158, %v1160
      %v1168 = vsel %vm997, %v1145, 0
      %v1171 = vsel %vm536, %v1163, 0
      %v1174 = vsel %vm536, %v1164, 0
      %1176 = vmatprep.subr.bf16.mxu0 0
      %1177 = vmatpush1.bf16.msra.mxu0 0
      %1178 = vmatprep.subr.bf16.mxu0 0
      %1179 = vmatpush1.bf16.msra.mxu0 0
      %1180 = vmatprep.subr.bf16.mxu0 0
      %1181 = vmatpush1.bf16.msra.mxu0 0
      %1182 = vmatprep.subr.bf16.mxu0 0
      %1183 = vmatpush1.bf16.msra.mxu0 0
      %1184 = vmatprep.subr.bf16.mxu0 0
      %1185 = vmatpush1.bf16.msra.mxu0 0
      %1186 = vmatprep.subr.bf16.mxu0 0
      %1187 = vmatpush1.bf16.msra.mxu0 0
      %1188 = vmatprep.subr.bf16.mxu0 %v1174
      %1189 = vmatpush1.bf16.msra.mxu0 %v1171
      %1190 = vmatprep.subr.bf16.mxu0 %v1162
      %1191 = vmatpush1.bf16.msra.mxu0 %v1161
      %1192 = vmatprep.subr.bf16.mxu0 0
      %1193 = vmatpush2.bf16.msra.mxu0 0
      %1194 = vmatprep.subr.bf16.mxu0 0
      %1195 = vmatpush2.bf16.msra.mxu0 0
      %1196 = vmatprep.subr.bf16.mxu0 0
      %1197 = vmatpush2.bf16.msra.mxu0 0
      %1198 = vmatprep.subr.bf16.mxu0 0
      %1199 = vmatpush2.bf16.msra.mxu0 0
      %1200 = vmatprep.subr.bf16.mxu0 0
      %1201 = vmatpush2.bf16.msra.mxu0 0
      %1202 = vmatprep.subr.bf16.mxu0 0
      %1203 = vmatpush2.bf16.msra.mxu0 0
      %1204 = vmatprep.subr.bf16.mxu0 0
      %1205 = vmatpush2.bf16.msra.mxu0 0
      %1206 = vmatprep.subr.bf16.mxu0 0
      %1207 = vmatpush2.bf16.msra.mxu0 0
      %1208 = vmatprep.mubr.bf16.mxu0 0
      %1209 = vmatmul.mubr.bf16.gmra.mxu0 %v1168
      %v1210 = vpop.f32.mrf.mxu0
      %v1211 = vadd.f32 0.0, %v1210
      %v1212 = vpop.f32.mrf.mxu0
      %v1213 = vadd.f32 0.0, %v1212
      %v1214 = vpop.f32.mrf.mxu0
      %v1215 = vpop.f32.mrf.mxu0
      %1216 = vdwg.mxu0
      %v1217 = vadd.f32 %v1092, %v1211
      %v1218 = vadd.f32 %v1094, %v1213
      %v1219 = vld [vmem:[%s4] sm:$0xff]
      %1221 = vset.pattern.permute.xlu0 0
      %1222 = vperm.xlu0 %1221, %v1219
      %v1223 = vpop.permute.xlu0 %1222
      %v1225 = vadd.f32 %v1217, %v1223
      %v1226 = vadd.f32 %v1218, %v1223
      %v1227 = vmax.f32 %v1225, 0.0
      %v1228 = vmax.f32 %v1226, 0.0
      %v1229 = vpack.c.bf16 %v1227, %v1227
      %v1230 = vpack.c.bf16 %v1228, %v1228
      %v1233 = vunpack.c.l.b16 %v1229
      %v1234 = vunpack.c.l.b16 %v1230
      %v1235 = vpack.c.b16 %v1234, %v1233
      %1237 = vst [vmem:[%s224] sm:$0xff] %v1235
      %p1238 = scmp.lt.s32.totalorder %s16, 1
      %s1239 = scalar_select %p1238, %s16, 1
      %s1240 = smul.addr %s1239, 2
      %s1241 = smul.addr %s1240, 4
      %s1242 = scalar_lea.vmem %s5, %s1241
      // Predicated region
      $region41: #{seg_qyl_forward.6} parent=39 // pred_check
        %p1243 = pneg %p144
      $region42: #{seg_qyl_forward.6} parent=39 // pred_check_branch
        %1245 = sbr.rel (%p1243) target = $region44
      $region43: #{seg_qyl_forward.6} parent=39 // pred_region
        _
      $region44: #{seg_qyl_forward.6} parent=39 // pred_fallthru
        _
    $region40: #{seg_qyl_forward.6} parent=5 // pred_fallthru
      _
    %p1246 = scmp.le.s32.totalorder 2, %s11
    // Predicated region
    $region45: #{seg_qyl_forward.6} parent=5 // pred_check
      %p1247 = pneg %p1246
    $region46: #{seg_qyl_forward.6} parent=5 // pred_check_branch
      %1249 = sbr.rel (%p1247) target = $region48
    $region47: #{seg_qyl_forward.6} parent=5 // pred_region
      %s1250 = ssub.s32 %s11, 2
      // Predicated region
      $region49: #{seg_qyl_forward.6} parent=47 // pred_check
        %p1251 = pneg %p150
      $region50: #{seg_qyl_forward.6} parent=47 // pred_check_branch
        %1253 = sbr.rel (%p1251) target = $region52
      $region51: #{seg_qyl_forward.6} parent=47 // pred_region
        %p1254 = scmp.lt.s32.totalorder %s17, 1
        %s1255 = scalar_select %p1254, %s17, 1
        %s1256 = smul.addr %s1255, 2
        %s1257 = smul.addr %s1256, 4
        %s1258 = scalar_lea.vmem %s5, %s1257
      $region52: #{seg_qyl_forward.6} parent=47 // pred_fallthru
        _
    $region48: #{seg_qyl_forward.6} parent=5 // pred_fallthru
      _
  $region6: #{seg_qyl_forward.6} parent=0 // loop_footer
    %s15 = sadd.s32 1, %s11
  $region7: #{seg_qyl_forward.6} parent=0 // loop_footer_branch
    %10 = sbr.rel target = $region3
  $region8: #{seg_qyl_forward.6} parent=0 // loop_exit
    _

// kernel: seg_qyl_forward.7
$region0: #{seg_qyl_forward.7}
  #allocation0 [shape = 'u32[]', space=smem, size = 0x4, offset = 0x4, fixed_abs, tag = 'smem constant byte address 0x4 - core index']
  #allocation1 [shape = 'u32[144,128]{1,0:T(1,128)}', space=vmem, size = 0x12000, scoped, tag = 'internal scratch']
  #allocation2 [shape = 'bf16[8,82]{1,0:T(8,128)(2,1)}', space=vmem, size = 0x800, scoped, tag = 'scratch operand']
  #allocation3 [shape = 'bf16[16,82]{1,0:T(8,128)(2,1)}', space=vmem, size = 0x1000, scoped, tag = 'scratch operand']
  %s0 = inlined_call_operand.vmem [shape: bf16[2,8,64], index: 0, kind: input, shape index: {}]
  %s1 = inlined_call_operand.vmem [shape: bf16[16,72], index: 1, kind: input, shape index: {}]
  %s2 = inlined_call_operand.vmem [shape: f32[16,1], index: 2, kind: input, shape index: {}]
  %s3 = inlined_call_operand.vmem [shape: bf16[16,144], index: 3, kind: input, shape index: {}]
  %s4 = inlined_call_operand.vmem [shape: f32[16,1], index: 4, kind: input, shape index: {}]
  %s5 = inlined_call_operand.vmem [shape: bf16[2,16,64], index: 5, kind: output, shape index: {}]
  %s6 = sld [smem:[#allocation0]]
  $region53: #{seg_qyl_forward.7} parent=0
    _
  %s8 = ssub.s32 1, %s6
  %s9 = scalar_select 0, %s8, %s6
  loop: start=0, step=1, limit=4
  $region2: #{seg_qyl_forward.7} parent=0 // loop_pre_header
    _
  $region3: #{seg_qyl_forward.7} parent=0 // loop_header
    %s11 = sphi 0, %s15
    %p12 = scmp.ge.s32.totalorder %s11, 4
    %s21 = sphi 0, %s23
    %s24 = sphi 0, %s21
    %s25 = sphi 0, %s24
    %s41 = sphi 0, %s25
    %s45 = sphi 0, %s45
    %s47 = sphi 0, %s45
    %s48 = sphi 0, %s47
    %s62 = sphi 0, %s48
    %s66 = sphi 0, %s66
    %s68 = sphi 0, %s66
    %s69 = sphi 0, %s68
    %s83 = sphi 0, %s69
    %s87 = sphi 0, %s87
    %s89 = sphi 0, %s87
    %s90 = sphi 0, %s89
    %s104 = sphi 0, %s90
    %s108 = sphi 0, %s108
    %s110 = sphi 0, %s108
    %s111 = sphi 0, %s110
    %s125 = sphi 0, %s111
    %s131 = sphi 0, %s133
    %s134 = sphi 0, %s131
    %s135 = sphi 0, %s134
    %s151 = sphi 0, %s135
  $region4: #{seg_qyl_forward.7} parent=0 // loop_header_branch
    %14 = sbr.rel (%p12) target = $region8
  $region5: #{seg_qyl_forward.7} parent=0 // loop_body
    %s16 = ssub.s32 %s11, 1
    %s17 = ssub.s32 %s11, 2
    %s18 = sadd.s32 %s11, 1
    %s19 = ssub.s32 %s11, %s18
    %p20 = scmp.eq.s32.totalorder %s19, 0
    %s22 = sadd.s32 %s21, 1
    %s23 = scalar_select %p20, %s21, %s22
    %p26 = pneg %p20
    %p27 = scmp.eq.s32.totalorder %s11, 1
    %p28 = por %p26, %p27
    %p29 = scmp.ne.s32.totalorder %s21, %s24
    %p30 = scmp.eq.s32.totalorder %s11, 0
    %p31 = por %p29, %p30
    %p32 = scmp.ne.s32.totalorder %s21, %s24
    %p33 = scmp.eq.s32.totalorder %s16, 1
    %p34 = por %p32, %p33
    %p35 = scmp.ne.s32.totalorder %s24, %s25
    %p36 = scmp.eq.s32.totalorder %s16, 0
    %p37 = por %p35, %p36
    %p38 = scmp.ne.s32.totalorder %s24, %s25
    %p39 = scmp.eq.s32.totalorder %s17, 1
    %p40 = por %p38, %p39
    %p42 = scmp.ne.s32.totalorder %s25, %s41
    %p43 = scmp.eq.s32.totalorder %s17, 0
    %p44 = por %p42, %p43
    %s46 = sadd.s32 %s45, 1
    %p49 = scmp.eq.s32.totalorder %s11, 1
    %p50 = scmp.ne.s32.totalorder %s45, %s47
    %p51 = scmp.eq.s32.totalorder %s11, 0
    %p52 = por %p50, %p51
    %p53 = scmp.ne.s32.totalorder %s45, %s47
    %p54 = scmp.eq.s32.totalorder %s16, 1
    %p55 = por %p53, %p54
    %p56 = scmp.ne.s32.totalorder %s47, %s48
    %p57 = scmp.eq.s32.totalorder %s16, 0
    %p58 = por %p56, %p57
    %p59 = scmp.ne.s32.totalorder %s47, %s48
    %p60 = scmp.eq.s32.totalorder %s17, 1
    %p61 = por %p59, %p60
    %p63 = scmp.ne.s32.totalorder %s48, %s62
    %p64 = scmp.eq.s32.totalorder %s17, 0
    %p65 = por %p63, %p64
    %s67 = sadd.s32 %s66, 1
    %p70 = scmp.eq.s32.totalorder %s11, 1
    %p71 = scmp.ne.s32.totalorder %s66, %s68
    %p72 = scmp.eq.s32.totalorder %s11, 0
    %p73 = por %p71, %p72
    %p74 = scmp.ne.s32.totalorder %s66, %s68
    %p75 = scmp.eq.s32.totalorder %s16, 1
    %p76 = por %p74, %p75
    %p77 = scmp.ne.s32.totalorder %s68, %s69
    %p78 = scmp.eq.s32.totalorder %s16, 0
    %p79 = por %p77, %p78
    %p80 = scmp.ne.s32.totalorder %s68, %s69
    %p81 = scmp.eq.s32.totalorder %s17, 1
    %p82 = por %p80, %p81
    %p84 = scmp.ne.s32.totalorder %s69, %s83
    %p85 = scmp.eq.s32.totalorder %s17, 0
    %p86 = por %p84, %p85
    %s88 = sadd.s32 %s87, 1
    %p91 = scmp.eq.s32.totalorder %s11, 1
    %p92 = scmp.ne.s32.totalorder %s87, %s89
    %p93 = scmp.eq.s32.totalorder %s11, 0
    %p94 = por %p92, %p93
    %p95 = scmp.ne.s32.totalorder %s87, %s89
    %p96 = scmp.eq.s32.totalorder %s16, 1
    %p97 = por %p95, %p96
    %p98 = scmp.ne.s32.totalorder %s89, %s90
    %p99 = scmp.eq.s32.totalorder %s16, 0
    %p100 = por %p98, %p99
    %p101 = scmp.ne.s32.totalorder %s89, %s90
    %p102 = scmp.eq.s32.totalorder %s17, 1
    %p103 = por %p101, %p102
    %p105 = scmp.ne.s32.totalorder %s90, %s104
    %p106 = scmp.eq.s32.totalorder %s17, 0
    %p107 = por %p105, %p106
    %s109 = sadd.s32 %s108, 1
    %p112 = scmp.eq.s32.totalorder %s11, 1
    %p113 = scmp.ne.s32.totalorder %s108, %s110
    %p114 = scmp.eq.s32.totalorder %s11, 0
    %p115 = por %p113, %p114
    %p116 = scmp.ne.s32.totalorder %s108, %s110
    %p117 = scmp.eq.s32.totalorder %s16, 1
    %p118 = por %p116, %p117
    %p119 = scmp.ne.s32.totalorder %s110, %s111
    %p120 = scmp.eq.s32.totalorder %s16, 0
    %p121 = por %p119, %p120
    %p122 = scmp.ne.s32.totalorder %s110, %s111
    %p123 = scmp.eq.s32.totalorder %s17, 1
    %p124 = por %p122, %p123
    %p126 = scmp.ne.s32.totalorder %s111, %s125
    %p127 = scmp.eq.s32.totalorder %s17, 0
    %p128 = por %p126, %p127
    %s129 = ssub.s32 %s11, %s18
    %p130 = scmp.eq.s32.totalorder %s129, 0
    %s132 = sadd.s32 %s131, 1
    %s133 = scalar_select %p130, %s131, %s132
    %p136 = pneg %p130
    %p137 = scmp.eq.s32.totalorder %s11, 1
    %p138 = por %p136, %p137
    %p139 = scmp.ne.s32.totalorder %s131, %s134
    %p140 = scmp.eq.s32.totalorder %s11, 0
    %p141 = por %p139, %p140
    %p142 = scmp.ne.s32.totalorder %s131, %s134
    %p143 = scmp.eq.s32.totalorder %s16, 1
    %p144 = por %p142, %p143
    %p145 = scmp.ne.s32.totalorder %s134, %s135
    %p146 = scmp.eq.s32.totalorder %s16, 0
    %p147 = por %p145, %p146
    %p148 = scmp.ne.s32.totalorder %s134, %s135
    %p149 = scmp.eq.s32.totalorder %s17, 1
    %p150 = por %p148, %p149
    %p152 = scmp.ne.s32.totalorder %s135, %s151
    %p153 = scmp.eq.s32.totalorder %s17, 0
    %p154 = por %p152, %p153
    %p155 = scmp.le.s32.totalorder 1, %s11
    %p156 = scmp.lt.s32.totalorder %s11, 3
    %p157 = pnand %p155, %p156
    %p158 = pneg %p157
    // Predicated region
    $region9: #{seg_qyl_forward.7} parent=5 // pred_check
      _
    $region10: #{seg_qyl_forward.7} parent=5 // pred_check_branch
      %160 = sbr.rel (%p157) target = $region12
    $region11: #{seg_qyl_forward.7} parent=5 // pred_region
      %s161 = ssub.s32 %s11, 1
      // Predicated region
      $region13: #{seg_qyl_forward.7} parent=11 // pred_check
        %p162 = pneg %p58
      $region14: #{seg_qyl_forward.7} parent=11 // pred_check_branch
        %164 = sbr.rel (%p162) target = $region16
      $region15: #{seg_qyl_forward.7} parent=11 // pred_region
        _
      $region16: #{seg_qyl_forward.7} parent=11 // pred_fallthru
        _
      // Predicated region
      $region17: #{seg_qyl_forward.7} parent=11 // pred_check
        %p165 = pneg %p79
      $region18: #{seg_qyl_forward.7} parent=11 // pred_check_branch
        %167 = sbr.rel (%p165) target = $region20
      $region19: #{seg_qyl_forward.7} parent=11 // pred_region
        _
      $region20: #{seg_qyl_forward.7} parent=11 // pred_fallthru
        _
      // Predicated region
      $region21: #{seg_qyl_forward.7} parent=11 // pred_check
        %p168 = pneg %p100
      $region22: #{seg_qyl_forward.7} parent=11 // pred_check_branch
        %170 = sbr.rel (%p168) target = $region24
      $region23: #{seg_qyl_forward.7} parent=11 // pred_region
        _
      $region24: #{seg_qyl_forward.7} parent=11 // pred_fallthru
        _
      // Predicated region
      $region25: #{seg_qyl_forward.7} parent=11 // pred_check
        %p171 = pneg %p121
      $region26: #{seg_qyl_forward.7} parent=11 // pred_check_branch
        %173 = sbr.rel (%p171) target = $region28
      $region27: #{seg_qyl_forward.7} parent=11 // pred_region
        _
      $region28: #{seg_qyl_forward.7} parent=11 // pred_fallthru
        _
    $region12: #{seg_qyl_forward.7} parent=5 // pred_fallthru
      _
    %p174 = scmp.lt.s32.totalorder %s11, 2
    // Predicated region
    $region29: #{seg_qyl_forward.7} parent=5 // pred_check
      %p175 = pneg %p174
    $region30: #{seg_qyl_forward.7} parent=5 // pred_check_branch
      %177 = sbr.rel (%p175) target = $region32
    $region31: #{seg_qyl_forward.7} parent=5 // pred_region
      // Predicated region
      $region33: #{seg_qyl_forward.7} parent=31 // pred_check
        %p178 = pneg %p31
      $region34: #{seg_qyl_forward.7} parent=31 // pred_check_branch
        %180 = sbr.rel (%p178) target = $region36
      $region35: #{seg_qyl_forward.7} parent=31 // pred_region
        %p181 = scmp.lt.s32.totalorder %s11, 1
        %s182 = scalar_select %p181, %s11, 1
        %s183 = smul.addr %s182, 4
        %s184 = scalar_lea.vmem %s0, %s183
      $region36: #{seg_qyl_forward.7} parent=31 // pred_fallthru
        _
    $region32: #{seg_qyl_forward.7} parent=5 // pred_fallthru
      _
    %p185 = scmp.le.s32.totalorder 1, %s11
    %p186 = scmp.lt.s32.totalorder %s11, 3
    %p187 = pnand %p185, %p186
    %p188 = pneg %p187
    // Predicated region
    $region37: #{seg_qyl_forward.7} parent=5 // pred_check
      _
    $region38: #{seg_qyl_forward.7} parent=5 // pred_check_branch
      %190 = sbr.rel (%p187) target = $region40
    $region39: #{seg_qyl_forward.7} parent=5 // pred_region
      %s191 = ssub.s32 %s11, 1
      %p192 = scmp.lt.s32.totalorder %s16, 1
      %s193 = scalar_select %p192, %s16, 1
      %s194 = smul.addr %s193, 4
      %s195 = scalar_lea.vmem %s0, %s194
      %p196 = pneg %p37
      %p197 = pneg %p34
      %p198 = pneg %p58
      %p199 = pneg %p55
      %p200 = pneg %p79
      %p201 = pneg %p76
      %p202 = pneg %p100
      %p203 = pneg %p97
      %p204 = pneg %p121
      %p205 = pneg %p118
      %p206 = pneg %p147
      %p207 = pneg %p144
      %p208 = scmp.lt.s32.totalorder %s16, 1
      %s209 = scalar_select %p208, %s16, 1
      %s210 = smul.addr %s209, 2
      %s211 = smul.addr %s210, 4
      %s212 = scalar_lea.vmem %s5, %s211
      %p213 = scmp.lt.s32.totalorder %s16, 1
      %s214 = scalar_select %p213, %s16, 1
      %s215 = smul.addr %s214, 4
      %s216 = scalar_lea.vmem %s0, %s215
      %p217 = scmp.lt.s32.totalorder %s16, 1
      %s218 = scalar_select %p217, %s16, 1
      %s219 = smul.addr %s218, 2
      %s220 = smul.addr %s219, 4
      %s221 = scalar_lea.vmem %s5, %s220
      %v223 = vlaneseq
      %v224 = vand.u32 %v223, 127
      %vm225 = vcmp.lt.s32.totalorder %v224, 0
      %v226 = vsub.s32 0, %v224
      %v227 = vsel %vm225, %v226, %v224
      %v228 = vshrl.u32 %v227, 3
      %v229 = vand.u32 %v227, 7
      %v230 = vsub.s32 0, %v229
      %v231 = vsel %vm225, %v230, %v229
      %vm232 = vcmp.ne.s32.totalorder %v231, 0
      %vm233 = vcmp.lt.s32.totalorder %v231, 0
      %vm234 = vmand %vm233, %vm232
      %v235 = vadd.s32 %v231, 8
      %v236 = vsel %vm234, %v235, %v231
      %vm237 = vcmp.gt.s32.totalorder %v236, 0
      %v238 = vsel %vm237, 1, 0
      %v239 = vcvt.s32.f32 %v238
      %v240 = vpack.c.bf16 %v239, %v239
      %vm241 = vcmp.lt.s32.totalorder %v236, 7
      %v242 = vsel %vm241, 1, 0
      %v243 = vcvt.s32.f32 %v242
      %v244 = vpack.c.bf16 %v243, %v243
      %vm245 = vcmask 68608
      %246 = vst.msk [vmem:[#allocation2] sm:$0xf] %vm245, 0
      %vm247 = vcmask 667208
      %248 = vst.msk [vmem:[#allocation2] sm:$0xf] %vm247, 0
      %249 = vst.msk [vmem:[#allocation3] sm:$0xf] %vm245, 0
      %250 = vst.msk [vmem:[#allocation3 + $0x4] sm:$0xf] %vm245, 0
      %251 = vst.msk [vmem:[#allocation3] sm:$0xf] %vm247, 0
      %252 = vst.msk [vmem:[#allocation3 + $0x4] sm:$0xf] %vm247, 0
      %v253 = vld [vmem:[%s216] sm:$0xf]
      %255 = vrot.lane.b32.xlu0 %v253, 9
      %v256 = vpop.permute.xlu0 %255
      %vm258 = vcmask 592968
      %259 = vst.msk [vmem:[#allocation2] sm:$0xf] %vm258, %v256
      %v260 = vld [vmem:[#allocation2] sm:$0xf]
      %v261 = vmul.bf16 %v260, %v240
      %v263 = vunpack.c.l.b16 %v244
      %v264 = vpack.c.b16 %v263, %v263
      %265 = vrot.lane.b32.xlu0 %v264, 2
      %v266 = vpop.permute.xlu0 %265
      %v268 = vmul.bf16 %v260, %v266
      %v270 = vunpack.c.l.b16 %v260
      %v271 = vpack.c.b16 %v270, %v270
      %272 = vrot.lane.b32.xlu0 %v271, 127
      %v273 = vpop.permute.xlu0 %272
      %v275 = vunpack.c.l.b16 %v268
      %v276 = vpack.c.b16 %v275, %v275
      %277 = vrot.lane.b32.xlu0 %v276, 126
      %v278 = vpop.permute.xlu0 %277
      %vm279 = vcmask 1043456
      %v282 = vsel %vm279, %v261, %v273
      %v284 = vld [vmem:[%s1] sm:$0xf]
      %v285 = vld [vmem:[%s1 + $0x4] sm:$0xf]
      %v287 = vunpack.c.l.b16 %v240
      %v288 = vpack.c.b16 %v287, %v287
      %289 = vrot.lane.b32.xlu0 %v288, 8
      %v290 = vpop.permute.xlu0 %289
      %v292 = vmul.bf16 %v260, %v290
      %293 = vrot.lane.b32.xlu0 %v264, 10
      %v294 = vpop.permute.xlu0 %293
      %v296 = vmul.bf16 %v260, %v294
      %v298 = vunpack.c.l.b16 %v296
      %v299 = vpack.c.b16 %v298, %v298
      %300 = vrot.lane.b32.xlu0 %v299, 126
      %v301 = vpop.permute.xlu0 %300
      %v303 = vsel %vm279, %v292, %v273
      %v306 = vunpack.c.l.b16 %v284
      %v307 = vunpack.c.l.b16 %v285
      %v308 = vpack.c.b16 %v307, %v306
      %309 = vrot.lane.b32.xlu0 %v308, 104
      %v310 = vpop.permute.xlu0 %309
      %312 = vrot.lane.b32.xlu0 %v303, 120
      %v313 = vpop.permute.xlu0 %312
      %314 = vrot.lane.b32.xlu0 %v301, 120
      %v315 = vpop.permute.xlu0 %314
      %vm317 = vcmask 195584
      %v319 = vsel %vm317, %v310, 0
      %v322 = vsel %vm279, %v315, 0
      %324 = vmatprep.subr.bf16.mxu0 0
      %325 = vmatpush1.bf16.msra.mxu0 0
      %326 = vmatprep.subr.bf16.mxu0 0
      %327 = vmatpush1.bf16.msra.mxu0 0
      %328 = vmatprep.subr.bf16.mxu0 0
      %329 = vmatpush1.bf16.msra.mxu0 0
      %330 = vmatprep.subr.bf16.mxu0 0
      %331 = vmatpush1.bf16.msra.mxu0 0
      %332 = vmatprep.subr.bf16.mxu0 0
      %333 = vmatpush1.bf16.msra.mxu0 0
      %334 = vmatprep.subr.bf16.mxu0 0
      %335 = vmatpush1.bf16.msra.mxu0 0
      %336 = vmatprep.subr.bf16.mxu0 0
      %337 = vmatpush1.bf16.msra.mxu0 %v322
      %338 = vmatprep.subr.bf16.mxu0 0
      %339 = vmatpush1.bf16.msra.mxu0 %v313
      %340 = vmatprep.subr.bf16.mxu0 0
      %341 = vmatpush2.bf16.msra.mxu0 0
      %342 = vmatprep.subr.bf16.mxu0 0
      %343 = vmatpush2.bf16.msra.mxu0 0
      %344 = vmatprep.subr.bf16.mxu0 0
      %345 = vmatpush2.bf16.msra.mxu0 0
      %346 = vmatprep.subr.bf16.mxu0 0
      %347 = vmatpush2.bf16.msra.mxu0 0
      %348 = vmatprep.subr.bf16.mxu0 0
      %349 = vmatpush2.bf16.msra.mxu0 0
      %350 = vmatprep.subr.bf16.mxu0 0
      %351 = vmatpush2.bf16.msra.mxu0 0
      %352 = vmatprep.subr.bf16.mxu0 0
      %353 = vmatpush2.bf16.msra.mxu0 0
      %354 = vmatprep.subr.bf16.mxu0 0
      %355 = vmatpush2.bf16.msra.mxu0 0
      %356 = vmatprep.mubr.bf16.mxu0 0
      %357 = vmatmul.mubr.bf16.gmra.mxu0 %v319
      %v358 = vpop.f32.mrf.mxu0
      %v359 = vadd.f32 0.0, %v358
      %v360 = vpop.f32.mrf.mxu0
      %v361 = vpop.f32.mrf.mxu0
      %v362 = vadd.f32 0.0, %v361
      %v363 = vpop.f32.mrf.mxu0
      %364 = vdwg.mxu0
      %v366 = vsel %vm317, %v308, 0
      %v369 = vsel %vm279, %v278, 0
      %371 = vmatprep.subr.bf16.mxu0 0
      %372 = vmatpush1.bf16.msra.mxu0 0
      %373 = vmatprep.subr.bf16.mxu0 0
      %374 = vmatpush1.bf16.msra.mxu0 0
      %375 = vmatprep.subr.bf16.mxu0 0
      %376 = vmatpush1.bf16.msra.mxu0 0
      %377 = vmatprep.subr.bf16.mxu0 0
      %378 = vmatpush1.bf16.msra.mxu0 0
      %379 = vmatprep.subr.bf16.mxu0 0
      %380 = vmatpush1.bf16.msra.mxu0 0
      %381 = vmatprep.subr.bf16.mxu0 0
      %382 = vmatpush1.bf16.msra.mxu0 0
      %383 = vmatprep.subr.bf16.mxu0 0
      %384 = vmatpush1.bf16.msra.mxu0 %v369
      %385 = vmatprep.subr.bf16.mxu0 0
      %386 = vmatpush1.bf16.msra.mxu0 %v282
      %387 = vmatprep.subr.bf16.mxu0 0
      %388 = vmatpush2.bf16.msra.mxu0 0
      %389 = vmatprep.subr.bf16.mxu0 0
      %390 = vmatpush2.bf16.msra.mxu0 0
      %391 = vmatprep.subr.bf16.mxu0 0
      %392 = vmatpush2.bf16.msra.mxu0 0
      %393 = vmatprep.subr.bf16.mxu0 0
      %394 = vmatpush2.bf16.msra.mxu0 0
      %395 = vmatprep.subr.bf16.mxu0 0
      %396 = vmatpush2.bf16.msra.mxu0 0
      %397 = vmatprep.subr.bf16.mxu0 0
      %398 = vmatpush2.bf16.msra.mxu0 0
      %399 = vmatprep.subr.bf16.mxu0 0
      %400 = vmatpush2.bf16.msra.mxu0 0
      %401 = vmatprep.subr.bf16.mxu0 0
      %402 = vmatpush2.bf16.msra.mxu0 0
      %403 = vmatprep.mubr.bf16.mxu0 0
      %404 = vmatmul.mubr.bf16.gmra.mxu0 %v366
      %v405 = vpop.f32.mrf.mxu0
      %v406 = vadd.f32 %v359, %v405
      %v407 = vpop.f32.mrf.mxu0
      %v408 = vpop.f32.mrf.mxu0
      %v409 = vadd.f32 %v362, %v408
      %v410 = vpop.f32.mrf.mxu0
      %411 = vdwg.mxu0
      %412 = vrot.lane.b32.xlu0 %v288, 16
      %v413 = vpop.permute.xlu0 %412
      %v415 = vmul.bf16 %v260, %v413
      %416 = vrot.lane.b32.xlu0 %v264, 18
      %v417 = vpop.permute.xlu0 %416
      %v419 = vmul.bf16 %v260, %v417
      %v421 = vunpack.c.l.b16 %v419
      %v422 = vpack.c.b16 %v421, %v421
      %423 = vrot.lane.b32.xlu0 %v422, 126
      %v424 = vpop.permute.xlu0 %423
      %v426 = vsel %vm279, %v415, %v273
      %427 = vrot.lane.b32.xlu0 %v308, 80
      %v428 = vpop.permute.xlu0 %427
      %430 = vrot.lane.b32.xlu0 %v426, 112
      %v431 = vpop.permute.xlu0 %430
      %432 = vrot.lane.b32.xlu0 %v424, 112
      %v433 = vpop.permute.xlu0 %432
      %v436 = vsel %vm317, %v428, 0
      %v439 = vsel %vm279, %v433, 0
      %441 = vmatprep.subr.bf16.mxu0 0
      %442 = vmatpush1.bf16.msra.mxu0 0
      %443 = vmatprep.subr.bf16.mxu0 0
      %444 = vmatpush1.bf16.msra.mxu0 0
      %445 = vmatprep.subr.bf16.mxu0 0
      %446 = vmatpush1.bf16.msra.mxu0 0
      %447 = vmatprep.subr.bf16.mxu0 0
      %448 = vmatpush1.bf16.msra.mxu0 0
      %449 = vmatprep.subr.bf16.mxu0 0
      %450 = vmatpush1.bf16.msra.mxu0 0
      %451 = vmatprep.subr.bf16.mxu0 0
      %452 = vmatpush1.bf16.msra.mxu0 0
      %453 = vmatprep.subr.bf16.mxu0 0
      %454 = vmatpush1.bf16.msra.mxu0 %v439
      %455 = vmatprep.subr.bf16.mxu0 0
      %456 = vmatpush1.bf16.msra.mxu0 %v431
      %457 = vmatprep.subr.bf16.mxu0 0
      %458 = vmatpush2.bf16.msra.mxu0 0
      %459 = vmatprep.subr.bf16.mxu0 0
      %460 = vmatpush2.bf16.msra.mxu0 0
      %461 = vmatprep.subr.bf16.mxu0 0
      %462 = vmatpush2.bf16.msra.mxu0 0
      %463 = vmatprep.subr.bf16.mxu0 0
      %464 = vmatpush2.bf16.msra.mxu0 0
      %465 = vmatprep.subr.bf16.mxu0 0
      %466 = vmatpush2.bf16.msra.mxu0 0
      %467 = vmatprep.subr.bf16.mxu0 0
      %468 = vmatpush2.bf16.msra.mxu0 0
      %469 = vmatprep.subr.bf16.mxu0 0
      %470 = vmatpush2.bf16.msra.mxu0 0
      %471 = vmatprep.subr.bf16.mxu0 0
      %472 = vmatpush2.bf16.msra.mxu0 0
      %473 = vmatprep.mubr.bf16.mxu0 0
      %474 = vmatmul.mubr.bf16.gmra.mxu0 %v436
      %v475 = vpop.f32.mrf.mxu0
      %v476 = vadd.f32 0.0, %v475
      %v477 = vpop.f32.mrf.mxu0
      %v478 = vpop.f32.mrf.mxu0
      %v479 = vadd.f32 0.0, %v478
      %v480 = vpop.f32.mrf.mxu0
      %481 = vdwg.mxu0
      %v482 = vadd.f32 %v406, %v476
      %v483 = vadd.f32 %v409, %v479
      %v484 = vld [vmem:[%s2] sm:$0xff]
      %v485 = vld [vmem:[%s2 + $0x8] sm:$0xff]
      %487 = vset.pattern.permute.xlu0 0
      %488 = vperm.xlu0 %487, %v484
      %v489 = vpop.permute.xlu0 %488
      %492 = vset.pattern.permute.xlu0 0
      %493 = vperm.xlu0 %492, %v485
      %v494 = vpop.permute.xlu0 %493
      %v496 = vadd.f32 %v482, %v489
      %v497 = vadd.f32 %v483, %v494
      %v498 = vmax.f32 %v496, 0.0
      %v499 = vmax.f32 %v497, 0.0
      %v500 = vpack.c.bf16 %v499, %v498
      %v502 = vunpack.c.l.b16 %v500
      %v503 = vunpack.c.h.b16 %v500
      %v504 = vpack.c.b16 %v502, %v502
      %v505 = vpack.c.b16 %v503, %v503
      %506 = vrot.lane.b32.xlu0 %v504, 9
      %v507 = vpop.permute.xlu0 %506
      %508 = vrot.lane.b32.xlu0 %v505, 9
      %v509 = vpop.permute.xlu0 %508
      %512 = vst.msk [vmem:[#allocation3] sm:$0xf] %vm258, %v507
      %513 = vst.msk [vmem:[#allocation3 + $0x4] sm:$0xf] %vm258, %v509
      %v514 = vld [vmem:[#allocation3] sm:$0xf]
      %v515 = vld [vmem:[#allocation3 + $0x4] sm:$0xf]
      %v517 = vmul.bf16 %v514, %v288
      %v518 = vmul.bf16 %v515, %v288
      %v519 = vmul.bf16 %v514, %v266
      %v520 = vmul.bf16 %v515, %v266
      %v523 = vunpack.c.l.b16 %v517
      %v524 = vunpack.c.l.b16 %v518
      %v525 = vpack.c.b16 %v524, %v523
      %v529 = vunpack.c.l.b16 %v514
      %v530 = vunpack.c.l.b16 %v515
      %v531 = vpack.c.b16 %v530, %v529
      %532 = vrot.lane.b32.xlu0 %v531, 127
      %v533 = vpop.permute.xlu0 %532
      %v537 = vunpack.c.l.b16 %v519
      %v538 = vunpack.c.l.b16 %v520
      %v539 = vpack.c.b16 %v538, %v537
      %540 = vrot.lane.b32.xlu0 %v539, 126
      %v541 = vpop.permute.xlu0 %540
      %v543 = vld [vmem:[%s3] sm:$0xf]
      %v544 = vld [vmem:[%s3 + $0x8] sm:$0xf]
      %v545 = vmul.bf16 %v514, %v290
      %v546 = vmul.bf16 %v515, %v290
      %v547 = vmul.bf16 %v514, %v294
      %v548 = vmul.bf16 %v515, %v294
      %v551 = vunpack.c.l.b16 %v545
      %v552 = vunpack.c.l.b16 %v546
      %v553 = vpack.c.b16 %v552, %v551
      %v556 = vunpack.c.l.b16 %v547
      %v557 = vunpack.c.l.b16 %v548
      %v558 = vpack.c.b16 %v557, %v556
      %559 = vrot.lane.b32.xlu0 %v558, 126
      %v560 = vpop.permute.xlu0 %559
      %v563 = vunpack.c.l.b16 %v543
      %v564 = vunpack.c.l.b16 %v544
      %v565 = vpack.c.b16 %v564, %v563
      %566 = vrot.lane.b32.xlu0 %v565, 80
      %v567 = vpop.permute.xlu0 %566
      %568 = vrot.lane.b32.xlu0 %v553, 120
      %v569 = vpop.permute.xlu0 %568
      %570 = vrot.lane.b32.xlu0 %v533, 120
      %v571 = vpop.permute.xlu0 %570
      %572 = vrot.lane.b32.xlu0 %v560, 120
      %v573 = vpop.permute.xlu0 %572
      %vm577 = vcmask 392192
      %v579 = vsel %vm577, %v567, 0
      %581 = vmatprep.subr.bf16.mxu0 0
      %582 = vmatpush1.bf16.msra.mxu0 0
      %583 = vmatprep.subr.bf16.mxu0 0
      %584 = vmatpush1.bf16.msra.mxu0 0
      %585 = vmatprep.subr.bf16.mxu0 0
      %586 = vmatpush1.bf16.msra.mxu0 0
      %587 = vmatprep.subr.bf16.mxu0 0
      %588 = vmatpush1.bf16.msra.mxu0 0
      %589 = vmatprep.subr.bf16.mxu0 0
      %590 = vmatpush1.bf16.msra.mxu0 0
      %591 = vmatprep.subr.bf16.mxu0 0
      %592 = vmatpush1.bf16.msra.mxu0 %v573
      %593 = vmatprep.subr.bf16.mxu0 0
      %594 = vmatpush1.bf16.msra.mxu0 %v571
      %595 = vmatprep.subr.bf16.mxu0 0
      %596 = vmatpush1.bf16.msra.mxu0 %v569
      %597 = vmatprep.subr.bf16.mxu0 0
      %598 = vmatpush2.bf16.msra.mxu0 0
      %599 = vmatprep.subr.bf16.mxu0 0
      %600 = vmatpush2.bf16.msra.mxu0 0
      %601 = vmatprep.subr.bf16.mxu0 0
      %602 = vmatpush2.bf16.msra.mxu0 0
      %603 = vmatprep.subr.bf16.mxu0 0
      %604 = vmatpush2.bf16.msra.mxu0 0
      %605 = vmatprep.subr.bf16.mxu0 0
      %606 = vmatpush2.bf16.msra.mxu0 0
      %607 = vmatprep.subr.bf16.mxu0 0
      %608 = vmatpush2.bf16.msra.mxu0 0
      %609 = vmatprep.subr.bf16.mxu0 0
      %610 = vmatpush2.bf16.msra.mxu0 0
      %611 = vmatprep.subr.bf16.mxu0 0
      %612 = vmatpush2.bf16.msra.mxu0 0
      %613 = vmatprep.mubr.bf16.mxu0 0
      %614 = vmatmul.mubr.bf16.gmra.mxu0 %v579
      %v615 = vpop.f32.mrf.mxu0
      %v616 = vadd.f32 0.0, %v615
      %v617 = vpop.f32.mrf.mxu0
      %v618 = vpop.f32.mrf.mxu0
      %v619 = vadd.f32 0.0, %v618
      %v620 = vpop.f32.mrf.mxu0
      %621 = vdwg.mxu0
      %v623 = vsel %vm577, %v565, 0
      %625 = vmatprep.subr.bf16.mxu0 0
      %626 = vmatpush1.bf16.msra.mxu0 0
      %627 = vmatprep.subr.bf16.mxu0 0
      %628 = vmatpush1.bf16.msra.mxu0 0
      %629 = vmatprep.subr.bf16.mxu0 0
      %630 = vmatpush1.bf16.msra.mxu0 0
      %631 = vmatprep.subr.bf16.mxu0 0
      %632 = vmatpush1.bf16.msra.mxu0 0
      %633 = vmatprep.subr.bf16.mxu0 0
      %634 = vmatpush1.bf16.msra.mxu0 0
      %635 = vmatprep.subr.bf16.mxu0 0
      %636 = vmatpush1.bf16.msra.mxu0 %v541
      %637 = vmatprep.subr.bf16.mxu0 0
      %638 = vmatpush1.bf16.msra.mxu0 %v533
      %639 = vmatprep.subr.bf16.mxu0 0
      %640 = vmatpush1.bf16.msra.mxu0 %v525
      %641 = vmatprep.subr.bf16.mxu0 0
      %642 = vmatpush2.bf16.msra.mxu0 0
      %643 = vmatprep.subr.bf16.mxu0 0
      %644 = vmatpush2.bf16.msra.mxu0 0
      %645 = vmatprep.subr.bf16.mxu0 0
      %646 = vmatpush2.bf16.msra.mxu0 0
      %647 = vmatprep.subr.bf16.mxu0 0
      %648 = vmatpush2.bf16.msra.mxu0 0
      %649 = vmatprep.subr.bf16.mxu0 0
      %650 = vmatpush2.bf16.msra.mxu0 0
      %651 = vmatprep.subr.bf16.mxu0 0
      %652 = vmatpush2.bf16.msra.mxu0 0
      %653 = vmatprep.subr.bf16.mxu0 0
      %654 = vmatpush2.bf16.msra.mxu0 0
      %655 = vmatprep.subr.bf16.mxu0 0
      %656 = vmatpush2.bf16.msra.mxu0 0
      %657 = vmatprep.mubr.bf16.mxu0 0
      %658 = vmatmul.mubr.bf16.gmra.mxu0 %v623
      %v659 = vpop.f32.mrf.mxu0
      %v660 = vadd.f32 %v616, %v659
      %v661 = vpop.f32.mrf.mxu0
      %v662 = vpop.f32.mrf.mxu0
      %v663 = vadd.f32 %v619, %v662
      %v664 = vpop.f32.mrf.mxu0
      %665 = vdwg.mxu0
      %v666 = vmul.bf16 %v514, %v413
      %v667 = vmul.bf16 %v515, %v413
      %v668 = vmul.bf16 %v514, %v417
      %v669 = vmul.bf16 %v515, %v417
      %v672 = vunpack.c.l.b16 %v666
      %v673 = vunpack.c.l.b16 %v667
      %v674 = vpack.c.b16 %v673, %v672
      %v677 = vunpack.c.l.b16 %v668
      %v678 = vunpack.c.l.b16 %v669
      %v679 = vpack.c.b16 %v678, %v677
      %680 = vrot.lane.b32.xlu0 %v679, 126
      %v681 = vpop.permute.xlu0 %680
      %v682 = vld [vmem:[%s3] sm:$0xff]
      %v683 = vld [vmem:[%s3 + $0x8] sm:$0xff]
      %v686 = vunpack.c.l.b16 %v682
      %v687 = vunpack.c.h.b16 %v682
      %v688 = vunpack.c.l.b16 %v683
      %v689 = vunpack.c.h.b16 %v683
      %v690 = vpack.c.b16 %v688, %v686
      %v691 = vpack.c.b16 %v689, %v687
      %692 = vrot.lane.b32.xlu0 %v690, 32
      %v693 = vpop.permute.xlu0 %692
      %694 = vrot.lane.b32.xlu0 %v691, 32
      %v695 = vpop.permute.xlu0 %694
      %vm696 = vcmask 261120
      %v697 = vsel %vm696, %v693, %v695
      %698 = vrot.lane.b32.xlu0 %v674, 112
      %v699 = vpop.permute.xlu0 %698
      %700 = vrot.lane.b32.xlu0 %v533, 112
      %v701 = vpop.permute.xlu0 %700
      %702 = vrot.lane.b32.xlu0 %v681, 112
      %v703 = vpop.permute.xlu0 %702
      %v708 = vsel %vm577, %v697, 0
      %710 = vmatprep.subr.bf16.mxu0 0
      %711 = vmatpush1.bf16.msra.mxu0 0
      %712 = vmatprep.subr.bf16.mxu0 0
      %713 = vmatpush1.bf16.msra.mxu0 0
      %714 = vmatprep.subr.bf16.mxu0 0
      %715 = vmatpush1.bf16.msra.mxu0 0
      %716 = vmatprep.subr.bf16.mxu0 0
      %717 = vmatpush1.bf16.msra.mxu0 0
      %718 = vmatprep.subr.bf16.mxu0 0
      %719 = vmatpush1.bf16.msra.mxu0 0
      %720 = vmatprep.subr.bf16.mxu0 0
      %721 = vmatpush1.bf16.msra.mxu0 %v703
      %722 = vmatprep.subr.bf16.mxu0 0
      %723 = vmatpush1.bf16.msra.mxu0 %v701
      %724 = vmatprep.subr.bf16.mxu0 0
      %725 = vmatpush1.bf16.msra.mxu0 %v699
      %726 = vmatprep.subr.bf16.mxu0 0
      %727 = vmatpush2.bf16.msra.mxu0 0
      %728 = vmatprep.subr.bf16.mxu0 0
      %729 = vmatpush2.bf16.msra.mxu0 0
      %730 = vmatprep.subr.bf16.mxu0 0
      %731 = vmatpush2.bf16.msra.mxu0 0
      %732 = vmatprep.subr.bf16.mxu0 0
      %733 = vmatpush2.bf16.msra.mxu0 0
      %734 = vmatprep.subr.bf16.mxu0 0
      %735 = vmatpush2.bf16.msra.mxu0 0
      %736 = vmatprep.subr.bf16.mxu0 0
      %737 = vmatpush2.bf16.msra.mxu0 0
      %738 = vmatprep.subr.bf16.mxu0 0
      %739 = vmatpush2.bf16.msra.mxu0 0
      %740 = vmatprep.subr.bf16.mxu0 0
      %741 = vmatpush2.bf16.msra.mxu0 0
      %742 = vmatprep.mubr.bf16.mxu0 0
      %743 = vmatmul.mubr.bf16.gmra.mxu0 %v708
      %v744 = vpop.f32.mrf.mxu0
      %v745 = vadd.f32 0.0, %v744
      %v746 = vpop.f32.mrf.mxu0
      %v747 = vpop.f32.mrf.mxu0
      %v748 = vadd.f32 0.0, %v747
      %v749 = vpop.f32.mrf.mxu0
      %750 = vdwg.mxu0
      %v751 = vadd.f32 %v660, %v745
      %v752 = vadd.f32 %v663, %v748
      %v753 = vld [vmem:[%s4] sm:$0xff]
      %v754 = vld [vmem:[%s4 + $0x8] sm:$0xff]
      %756 = vset.pattern.permute.xlu0 0
      %757 = vperm.xlu0 %756, %v753
      %v758 = vpop.permute.xlu0 %757
      %761 = vset.pattern.permute.xlu0 0
      %762 = vperm.xlu0 %761, %v754
      %v763 = vpop.permute.xlu0 %762
      %v765 = vadd.f32 %v751, %v758
      %v766 = vadd.f32 %v752, %v763
      %v767 = vmax.f32 %v765, 0.0
      %v768 = vmax.f32 %v766, 0.0
      %v769 = vpack.c.bf16 %v768, %v767
      %v771 = vunpack.c.l.b16 %v769
      %v772 = vunpack.c.h.b16 %v769
      %v773 = vpack.c.b16 %v771, %v771
      %v774 = vpack.c.b16 %v772, %v772
      %vm777 = vcmask 519168
      %778 = vst.msk [vmem:[%s221] sm:$0xf] %vm777, %v773
      %779 = vst.msk [vmem:[%s221 + $0x4] sm:$0xf] %vm777, %v774
      %p780 = scmp.lt.s32.totalorder %s16, 1
      %s781 = scalar_select %p780, %s16, 1
      %s782 = smul.addr %s781, 2
      %s783 = smul.addr %s782, 4
      %s784 = scalar_lea.vmem %s5, %s783
      // Predicated region
      $region41: #{seg_qyl_forward.7} parent=39 // pred_check
        %p785 = pneg %p144
      $region42: #{seg_qyl_forward.7} parent=39 // pred_check_branch
        %787 = sbr.rel (%p785) target = $region44
      $region43: #{seg_qyl_forward.7} parent=39 // pred_region
        _
      $region44: #{seg_qyl_forward.7} parent=39 // pred_fallthru
        _
    $region40: #{seg_qyl_forward.7} parent=5 // pred_fallthru
      _
    %p788 = scmp.le.s32.totalorder 2, %s11
    // Predicated region
    $region45: #{seg_qyl_forward.7} parent=5 // pred_check
      %p789 = pneg %p788
    $region46: #{seg_qyl_forward.7} parent=5 // pred_check_branch
      %791 = sbr.rel (%p789) target = $region48
    $region47: #{seg_qyl_forward.7} parent=5 // pred_region
      %s792 = ssub.s32 %s11, 2
      // Predicated region
      $region49: #{seg_qyl_forward.7} parent=47 // pred_check
        %p793 = pneg %p150
      $region50: #{seg_qyl_forward.7} parent=47 // pred_check_branch
        %795 = sbr.rel (%p793) target = $region52
      $region51: #{seg_qyl_forward.7} parent=47 // pred_region
        %p796 = scmp.lt.s32.totalorder %s17, 1
        %s797 = scalar_select %p796, %s17, 1
        %s798 = smul.addr %s797, 2
        %s799 = smul.addr %s798, 4
        %s800 = scalar_lea.vmem %s5, %s799
      $region52: #{seg_qyl_forward.7} parent=47 // pred_fallthru
        _
    $region48: #{seg_qyl_forward.7} parent=5 // pred_fallthru
      _
  $region6: #{seg_qyl_forward.7} parent=0 // loop_footer
    %s15 = sadd.s32 1, %s11
  $region7: #{seg_qyl_forward.7} parent=0 // loop_footer_branch
    %10 = sbr.rel target = $region3
  $region8: #{seg_qyl_forward.7} parent=0 // loop_exit
    _

// kernel: seg_qyl_forward.8
$region0: #{seg_qyl_forward.8}
  #allocation0 [shape = 'u32[]', space=smem, size = 0x4, offset = 0x4, fixed_abs, tag = 'smem constant byte address 0x4 - core index']
  #allocation1 [shape = 'u32[144,128]{1,0:T(1,128)}', space=vmem, size = 0x12000, scoped, tag = 'internal scratch']
  #allocation2 [shape = 'bf16[16,26]{1,0:T(8,128)(2,1)}', space=vmem, size = 0x1000, scoped, tag = 'scratch operand']
  #allocation3 [shape = 'bf16[32,26]{1,0:T(8,128)(2,1)}', space=vmem, size = 0x2000, scoped, tag = 'scratch operand']
  %s0 = inlined_call_operand.vmem [shape: bf16[2,16,16], index: 0, kind: input, shape index: {}]
  %s1 = inlined_call_operand.vmem [shape: bf16[32,144], index: 1, kind: input, shape index: {}]
  %s2 = inlined_call_operand.vmem [shape: f32[32,1], index: 2, kind: input, shape index: {}]
  %s3 = inlined_call_operand.vmem [shape: bf16[32,288], index: 3, kind: input, shape index: {}]
  %s4 = inlined_call_operand.vmem [shape: f32[32,1], index: 4, kind: input, shape index: {}]
  %s5 = inlined_call_operand.vmem [shape: bf16[2,32,16], index: 5, kind: output, shape index: {}]
  %s6 = sld [smem:[#allocation0]]
  $region53: #{seg_qyl_forward.8} parent=0
    _
  %s8 = ssub.s32 1, %s6
  %s9 = scalar_select 0, %s8, %s6
  loop: start=0, step=1, limit=4
  $region2: #{seg_qyl_forward.8} parent=0 // loop_pre_header
    _
  $region3: #{seg_qyl_forward.8} parent=0 // loop_header
    %s11 = sphi 0, %s15
    %p12 = scmp.ge.s32.totalorder %s11, 4
    %s21 = sphi 0, %s23
    %s24 = sphi 0, %s21
    %s25 = sphi 0, %s24
    %s41 = sphi 0, %s25
    %s45 = sphi 0, %s45
    %s47 = sphi 0, %s45
    %s48 = sphi 0, %s47
    %s62 = sphi 0, %s48
    %s66 = sphi 0, %s66
    %s68 = sphi 0, %s66
    %s69 = sphi 0, %s68
    %s83 = sphi 0, %s69
    %s87 = sphi 0, %s87
    %s89 = sphi 0, %s87
    %s90 = sphi 0, %s89
    %s104 = sphi 0, %s90
    %s108 = sphi 0, %s108
    %s110 = sphi 0, %s108
    %s111 = sphi 0, %s110
    %s125 = sphi 0, %s111
    %s131 = sphi 0, %s133
    %s134 = sphi 0, %s131
    %s135 = sphi 0, %s134
    %s151 = sphi 0, %s135
  $region4: #{seg_qyl_forward.8} parent=0 // loop_header_branch
    %14 = sbr.rel (%p12) target = $region8
  $region5: #{seg_qyl_forward.8} parent=0 // loop_body
    %s16 = ssub.s32 %s11, 1
    %s17 = ssub.s32 %s11, 2
    %s18 = sadd.s32 %s11, 1
    %s19 = ssub.s32 %s11, %s18
    %p20 = scmp.eq.s32.totalorder %s19, 0
    %s22 = sadd.s32 %s21, 1
    %s23 = scalar_select %p20, %s21, %s22
    %p26 = pneg %p20
    %p27 = scmp.eq.s32.totalorder %s11, 1
    %p28 = por %p26, %p27
    %p29 = scmp.ne.s32.totalorder %s21, %s24
    %p30 = scmp.eq.s32.totalorder %s11, 0
    %p31 = por %p29, %p30
    %p32 = scmp.ne.s32.totalorder %s21, %s24
    %p33 = scmp.eq.s32.totalorder %s16, 1
    %p34 = por %p32, %p33
    %p35 = scmp.ne.s32.totalorder %s24, %s25
    %p36 = scmp.eq.s32.totalorder %s16, 0
    %p37 = por %p35, %p36
    %p38 = scmp.ne.s32.totalorder %s24, %s25
    %p39 = scmp.eq.s32.totalorder %s17, 1
    %p40 = por %p38, %p39
    %p42 = scmp.ne.s32.totalorder %s25, %s41
    %p43 = scmp.eq.s32.totalorder %s17, 0
    %p44 = por %p42, %p43
    %s46 = sadd.s32 %s45, 1
    %p49 = scmp.eq.s32.totalorder %s11, 1
    %p50 = scmp.ne.s32.totalorder %s45, %s47
    %p51 = scmp.eq.s32.totalorder %s11, 0
    %p52 = por %p50, %p51
    %p53 = scmp.ne.s32.totalorder %s45, %s47
    %p54 = scmp.eq.s32.totalorder %s16, 1
    %p55 = por %p53, %p54
    %p56 = scmp.ne.s32.totalorder %s47, %s48
    %p57 = scmp.eq.s32.totalorder %s16, 0
    %p58 = por %p56, %p57
    %p59 = scmp.ne.s32.totalorder %s47, %s48
    %p60 = scmp.eq.s32.totalorder %s17, 1
    %p61 = por %p59, %p60
    %p63 = scmp.ne.s32.totalorder %s48, %s62
    %p64 = scmp.eq.s32.totalorder %s17, 0
    %p65 = por %p63, %p64
    %s67 = sadd.s32 %s66, 1
    %p70 = scmp.eq.s32.totalorder %s11, 1
    %p71 = scmp.ne.s32.totalorder %s66, %s68
    %p72 = scmp.eq.s32.totalorder %s11, 0
    %p73 = por %p71, %p72
    %p74 = scmp.ne.s32.totalorder %s66, %s68
    %p75 = scmp.eq.s32.totalorder %s16, 1
    %p76 = por %p74, %p75
    %p77 = scmp.ne.s32.totalorder %s68, %s69
    %p78 = scmp.eq.s32.totalorder %s16, 0
    %p79 = por %p77, %p78
    %p80 = scmp.ne.s32.totalorder %s68, %s69
    %p81 = scmp.eq.s32.totalorder %s17, 1
    %p82 = por %p80, %p81
    %p84 = scmp.ne.s32.totalorder %s69, %s83
    %p85 = scmp.eq.s32.totalorder %s17, 0
    %p86 = por %p84, %p85
    %s88 = sadd.s32 %s87, 1
    %p91 = scmp.eq.s32.totalorder %s11, 1
    %p92 = scmp.ne.s32.totalorder %s87, %s89
    %p93 = scmp.eq.s32.totalorder %s11, 0
    %p94 = por %p92, %p93
    %p95 = scmp.ne.s32.totalorder %s87, %s89
    %p96 = scmp.eq.s32.totalorder %s16, 1
    %p97 = por %p95, %p96
    %p98 = scmp.ne.s32.totalorder %s89, %s90
    %p99 = scmp.eq.s32.totalorder %s16, 0
    %p100 = por %p98, %p99
    %p101 = scmp.ne.s32.totalorder %s89, %s90
    %p102 = scmp.eq.s32.totalorder %s17, 1
    %p103 = por %p101, %p102
    %p105 = scmp.ne.s32.totalorder %s90, %s104
    %p106 = scmp.eq.s32.totalorder %s17, 0
    %p107 = por %p105, %p106
    %s109 = sadd.s32 %s108, 1
    %p112 = scmp.eq.s32.totalorder %s11, 1
    %p113 = scmp.ne.s32.totalorder %s108, %s110
    %p114 = scmp.eq.s32.totalorder %s11, 0
    %p115 = por %p113, %p114
    %p116 = scmp.ne.s32.totalorder %s108, %s110
    %p117 = scmp.eq.s32.totalorder %s16, 1
    %p118 = por %p116, %p117
    %p119 = scmp.ne.s32.totalorder %s110, %s111
    %p120 = scmp.eq.s32.totalorder %s16, 0
    %p121 = por %p119, %p120
    %p122 = scmp.ne.s32.totalorder %s110, %s111
    %p123 = scmp.eq.s32.totalorder %s17, 1
    %p124 = por %p122, %p123
    %p126 = scmp.ne.s32.totalorder %s111, %s125
    %p127 = scmp.eq.s32.totalorder %s17, 0
    %p128 = por %p126, %p127
    %s129 = ssub.s32 %s11, %s18
    %p130 = scmp.eq.s32.totalorder %s129, 0
    %s132 = sadd.s32 %s131, 1
    %s133 = scalar_select %p130, %s131, %s132
    %p136 = pneg %p130
    %p137 = scmp.eq.s32.totalorder %s11, 1
    %p138 = por %p136, %p137
    %p139 = scmp.ne.s32.totalorder %s131, %s134
    %p140 = scmp.eq.s32.totalorder %s11, 0
    %p141 = por %p139, %p140
    %p142 = scmp.ne.s32.totalorder %s131, %s134
    %p143 = scmp.eq.s32.totalorder %s16, 1
    %p144 = por %p142, %p143
    %p145 = scmp.ne.s32.totalorder %s134, %s135
    %p146 = scmp.eq.s32.totalorder %s16, 0
    %p147 = por %p145, %p146
    %p148 = scmp.ne.s32.totalorder %s134, %s135
    %p149 = scmp.eq.s32.totalorder %s17, 1
    %p150 = por %p148, %p149
    %p152 = scmp.ne.s32.totalorder %s135, %s151
    %p153 = scmp.eq.s32.totalorder %s17, 0
    %p154 = por %p152, %p153
    %p155 = scmp.le.s32.totalorder 1, %s11
    %p156 = scmp.lt.s32.totalorder %s11, 3
    %p157 = pnand %p155, %p156
    %p158 = pneg %p157
    // Predicated region
    $region9: #{seg_qyl_forward.8} parent=5 // pred_check
      _
    $region10: #{seg_qyl_forward.8} parent=5 // pred_check_branch
      %160 = sbr.rel (%p157) target = $region12
    $region11: #{seg_qyl_forward.8} parent=5 // pred_region
      %s161 = ssub.s32 %s11, 1
      // Predicated region
      $region13: #{seg_qyl_forward.8} parent=11 // pred_check
        %p162 = pneg %p58
      $region14: #{seg_qyl_forward.8} parent=11 // pred_check_branch
        %164 = sbr.rel (%p162) target = $region16
      $region15: #{seg_qyl_forward.8} parent=11 // pred_region
        _
      $region16: #{seg_qyl_forward.8} parent=11 // pred_fallthru
        _
      // Predicated region
      $region17: #{seg_qyl_forward.8} parent=11 // pred_check
        %p165 = pneg %p79
      $region18: #{seg_qyl_forward.8} parent=11 // pred_check_branch
        %167 = sbr.rel (%p165) target = $region20
      $region19: #{seg_qyl_forward.8} parent=11 // pred_region
        _
      $region20: #{seg_qyl_forward.8} parent=11 // pred_fallthru
        _
      // Predicated region
      $region21: #{seg_qyl_forward.8} parent=11 // pred_check
        %p168 = pneg %p100
      $region22: #{seg_qyl_forward.8} parent=11 // pred_check_branch
        %170 = sbr.rel (%p168) target = $region24
      $region23: #{seg_qyl_forward.8} parent=11 // pred_region
        _
      $region24: #{seg_qyl_forward.8} parent=11 // pred_fallthru
        _
      // Predicated region
      $region25: #{seg_qyl_forward.8} parent=11 // pred_check
        %p171 = pneg %p121
      $region26: #{seg_qyl_forward.8} parent=11 // pred_check_branch
        %173 = sbr.rel (%p171) target = $region28
      $region27: #{seg_qyl_forward.8} parent=11 // pred_region
        _
      $region28: #{seg_qyl_forward.8} parent=11 // pred_fallthru
        _
    $region12: #{seg_qyl_forward.8} parent=5 // pred_fallthru
      _
    %p174 = scmp.lt.s32.totalorder %s11, 2
    // Predicated region
    $region29: #{seg_qyl_forward.8} parent=5 // pred_check
      %p175 = pneg %p174
    $region30: #{seg_qyl_forward.8} parent=5 // pred_check_branch
      %177 = sbr.rel (%p175) target = $region32
    $region31: #{seg_qyl_forward.8} parent=5 // pred_region
      // Predicated region
      $region33: #{seg_qyl_forward.8} parent=31 // pred_check
        %p178 = pneg %p31
      $region34: #{seg_qyl_forward.8} parent=31 // pred_check_branch
        %180 = sbr.rel (%p178) target = $region36
      $region35: #{seg_qyl_forward.8} parent=31 // pred_region
        %p181 = scmp.lt.s32.totalorder %s11, 1
        %s182 = scalar_select %p181, %s11, 1
        %s183 = smul.addr %s182, 2
        %s184 = smul.addr %s183, 4
        %s185 = scalar_lea.vmem %s0, %s184
      $region36: #{seg_qyl_forward.8} parent=31 // pred_fallthru
        _
    $region32: #{seg_qyl_forward.8} parent=5 // pred_fallthru
      _
    %p186 = scmp.le.s32.totalorder 1, %s11
    %p187 = scmp.lt.s32.totalorder %s11, 3
    %p188 = pnand %p186, %p187
    %p189 = pneg %p188
    // Predicated region
    $region37: #{seg_qyl_forward.8} parent=5 // pred_check
      _
    $region38: #{seg_qyl_forward.8} parent=5 // pred_check_branch
      %191 = sbr.rel (%p188) target = $region40
    $region39: #{seg_qyl_forward.8} parent=5 // pred_region
      %s192 = ssub.s32 %s11, 1
      %p193 = scmp.lt.s32.totalorder %s16, 1
      %s194 = scalar_select %p193, %s16, 1
      %s195 = smul.addr %s194, 2
      %s196 = smul.addr %s195, 4
      %s197 = scalar_lea.vmem %s0, %s196
      %p198 = pneg %p37
      %p199 = pneg %p34
      %p200 = pneg %p58
      %p201 = pneg %p55
      %p202 = pneg %p79
      %p203 = pneg %p76
      %p204 = pneg %p100
      %p205 = pneg %p97
      %p206 = pneg %p121
      %p207 = pneg %p118
      %p208 = pneg %p147
      %p209 = pneg %p144
      %p210 = scmp.lt.s32.totalorder %s16, 1
      %s211 = scalar_select %p210, %s16, 1
      %s212 = smul.addr %s211, 4
      %s213 = smul.addr %s212, 4
      %s214 = scalar_lea.vmem %s5, %s213
      %p215 = scmp.lt.s32.totalorder %s16, 1
      %s216 = scalar_select %p215, %s16, 1
      %s217 = smul.addr %s216, 2
      %s218 = smul.addr %s217, 4
      %s219 = scalar_lea.vmem %s0, %s218
      %p220 = scmp.lt.s32.totalorder %s16, 1
      %s221 = scalar_select %p220, %s16, 1
      %s222 = smul.addr %s221, 4
      %s223 = smul.addr %s222, 4
      %s224 = scalar_lea.vmem %s5, %s223
      %v226 = vlaneseq
      %v227 = vand.u32 %v226, 127
      %vm228 = vcmp.lt.s32.totalorder %v227, 0
      %v229 = vsub.s32 0, %v227
      %v230 = vsel %vm228, %v229, %v227
      %v231 = vshrl.u32 %v230, 2
      %v232 = vand.u32 %v230, 3
      %v233 = vsub.s32 0, %v232
      %v234 = vsel %vm228, %v233, %v232
      %vm235 = vcmp.ne.s32.totalorder %v234, 0
      %vm236 = vcmp.lt.s32.totalorder %v234, 0
      %vm237 = vmand %vm236, %vm235
      %v238 = vadd.s32 %v234, 4
      %v239 = vsel %vm237, %v238, %v234
      %vm240 = vcmp.gt.s32.totalorder %v239, 0
      %v241 = vsel %vm240, 1, 0
      %v242 = vcvt.s32.f32 %v241
      %v243 = vpack.c.bf16 %v242, %v242
      %vm244 = vcmp.lt.s32.totalorder %v239, 3
      %v245 = vsel %vm244, 1, 0
      %v246 = vcvt.s32.f32 %v245
      %v247 = vpack.c.bf16 %v246, %v246
      %vm248 = vcmask 35840
      %249 = vst.msk [vmem:[#allocation2] sm:$0xf] %vm248, 0
      %250 = vst.msk [vmem:[#allocation2 + $0x4] sm:$0xf] %vm248, 0
      %vm251 = vcmask 208040
      %252 = vst.msk [vmem:[#allocation2] sm:$0xf] %vm251, 0
      %253 = vst.msk [vmem:[#allocation2 + $0x4] sm:$0xf] %vm251, 0
      %254 = vst.msk [vmem:[#allocation3] sm:$0xf] %vm248, 0
      %255 = vst.msk [vmem:[#allocation3 + $0x4] sm:$0xf] %vm248, 0
      %256 = vst.msk [vmem:[#allocation3 + $0x8] sm:$0xf] %vm248, 0
      %257 = vst.msk [vmem:[#allocation3 + $0xc] sm:$0xf] %vm248, 0
      %258 = vst.msk [vmem:[#allocation3] sm:$0xf] %vm251, 0
      %259 = vst.msk [vmem:[#allocation3 + $0x4] sm:$0xf] %vm251, 0
      %260 = vst.msk [vmem:[#allocation3 + $0x8] sm:$0xf] %vm251, 0
      %261 = vst.msk [vmem:[#allocation3 + $0xc] sm:$0xf] %vm251, 0
      %v262 = vld [vmem:[%s219] sm:$0xf]
      %v263 = vld [vmem:[%s219 + $0x4] sm:$0xf]
      %266 = vrot.lane.b32.xlu0 %v262, 5
      %v267 = vpop.permute.xlu0 %266
      %268 = vrot.lane.b32.xlu0 %v263, 5
      %v269 = vpop.permute.xlu0 %268
      %vm272 = vcmask 166952
      %273 = vst.msk [vmem:[#allocation2] sm:$0xf] %vm272, %v267
      %274 = vst.msk [vmem:[#allocation2 + $0x4] sm:$0xf] %vm272, %v269
      %v275 = vld [vmem:[#allocation2] sm:$0xf]
      %v276 = vld [vmem:[#allocation2 + $0x4] sm:$0xf]
      %v278 = vunpack.c.l.b16 %v243
      %v279 = vpack.c.b16 %v278, %v278
      %v281 = vmul.bf16 %v275, %v279
      %v282 = vmul.bf16 %v276, %v279
      %v284 = vunpack.c.l.b16 %v247
      %v285 = vpack.c.b16 %v284, %v284
      %286 = vrot.lane.b32.xlu0 %v285, 2
      %v287 = vpop.permute.xlu0 %286
      %v289 = vmul.bf16 %v275, %v287
      %v290 = vmul.bf16 %v276, %v287
      %v293 = vunpack.c.l.b16 %v281
      %v294 = vunpack.c.l.b16 %v282
      %v295 = vpack.c.b16 %v294, %v293
      %v299 = vunpack.c.l.b16 %v275
      %v300 = vunpack.c.l.b16 %v276
      %v301 = vpack.c.b16 %v300, %v299
      %302 = vrot.lane.b32.xlu0 %v301, 127
      %v303 = vpop.permute.xlu0 %302
      %v307 = vunpack.c.l.b16 %v289
      %v308 = vunpack.c.l.b16 %v290
      %v309 = vpack.c.b16 %v308, %v307
      %310 = vrot.lane.b32.xlu0 %v309, 126
      %v311 = vpop.permute.xlu0 %310
      %v313 = vld [vmem:[%s1] sm:$0xf]
      %v314 = vld [vmem:[%s1 + $0x8] sm:$0xf]
      %v315 = vld [vmem:[%s1 + $0x10] sm:$0xf]
      %v316 = vld [vmem:[%s1 + $0x18] sm:$0xf]
      %317 = vrot.lane.b32.xlu0 %v279, 4
      %v318 = vpop.permute.xlu0 %317
      %v320 = vmul.bf16 %v275, %v318
      %v321 = vmul.bf16 %v276, %v318
      %322 = vrot.lane.b32.xlu0 %v285, 6
      %v323 = vpop.permute.xlu0 %322
      %v325 = vmul.bf16 %v275, %v323
      %v326 = vmul.bf16 %v276, %v323
      %v329 = vunpack.c.l.b16 %v320
      %v330 = vunpack.c.l.b16 %v321
      %v331 = vpack.c.b16 %v330, %v329
      %v334 = vunpack.c.l.b16 %v325
      %v335 = vunpack.c.l.b16 %v326
      %v336 = vpack.c.b16 %v335, %v334
      %337 = vrot.lane.b32.xlu0 %v336, 126
      %v338 = vpop.permute.xlu0 %337
      %v343 = vunpack.c.l.b16 %v313
      %v344 = vunpack.c.l.b16 %v314
      %v345 = vunpack.c.l.b16 %v315
      %v346 = vunpack.c.l.b16 %v316
      %v347 = vpack.c.b16 %v344, %v343
      %v348 = vpack.c.b16 %v346, %v345
      %349 = vrot.lane.b32.xlu0 %v347, 80
      %v350 = vpop.permute.xlu0 %349
      %351 = vrot.lane.b32.xlu0 %v348, 80
      %v352 = vpop.permute.xlu0 %351
      %353 = vrot.lane.b32.xlu0 %v331, 124
      %v354 = vpop.permute.xlu0 %353
      %355 = vrot.lane.b32.xlu0 %v303, 124
      %v356 = vpop.permute.xlu0 %355
      %357 = vrot.lane.b32.xlu0 %v338, 124
      %v358 = vpop.permute.xlu0 %357
      %vm362 = vcmask 392192
      %v364 = vsel %vm362, %v350, 0
      %v367 = vsel %vm362, %v352, 0
      %369 = vmatprep.subr.bf16.mxu0 0
      %370 = vmatpush1.bf16.msra.mxu0 0
      %371 = vmatprep.subr.bf16.mxu0 0
      %372 = vmatpush1.bf16.msra.mxu0 0
      %373 = vmatprep.subr.bf16.mxu0 0
      %374 = vmatpush1.bf16.msra.mxu0 0
      %375 = vmatprep.subr.bf16.mxu0 0
      %376 = vmatpush1.bf16.msra.mxu0 0
      %377 = vmatprep.subr.bf16.mxu0 0
      %378 = vmatpush1.bf16.msra.mxu0 0
      %379 = vmatprep.subr.bf16.mxu0 0
      %380 = vmatpush1.bf16.msra.mxu0 %v358
      %381 = vmatprep.subr.bf16.mxu0 0
      %382 = vmatpush1.bf16.msra.mxu0 %v356
      %383 = vmatprep.subr.bf16.mxu0 0
      %384 = vmatpush1.bf16.msra.mxu0 %v354
      %385 = vmatprep.subr.bf16.mxu0 0
      %386 = vmatpush2.bf16.msra.mxu0 0
      %387 = vmatprep.subr.bf16.mxu0 0
      %388 = vmatpush2.bf16.msra.mxu0 0
      %389 = vmatprep.subr.bf16.mxu0 0
      %390 = vmatpush2.bf16.msra.mxu0 0
      %391 = vmatprep.subr.bf16.mxu0 0
      %392 = vmatpush2.bf16.msra.mxu0 0
      %393 = vmatprep.subr.bf16.mxu0 0
      %394 = vmatpush2.bf16.msra.mxu0 0
      %395 = vmatprep.subr.bf16.mxu0 0
      %396 = vmatpush2.bf16.msra.mxu0 0
      %397 = vmatprep.subr.bf16.mxu0 0
      %398 = vmatpush2.bf16.msra.mxu0 0
      %399 = vmatprep.subr.bf16.mxu0 0
      %400 = vmatpush2.bf16.msra.mxu0 0
      %401 = vmatprep.mubr.bf16.mxu0 0
      %402 = vmatmul.mubr.bf16.gmra.mxu0 %v364
      %v403 = vpop.f32.mrf.mxu0
      %v404 = vadd.f32 0.0, %v403
      %v405 = vpop.f32.mrf.mxu0
      %v406 = vpop.f32.mrf.mxu0
      %v407 = vadd.f32 0.0, %v406
      %v408 = vpop.f32.mrf.mxu0
      %409 = vmatprep.mubr.bf16.mxu0 0
      %410 = vmatmul.mubr.bf16.gmra.mxu0 %v367
      %v411 = vpop.f32.mrf.mxu0
      %v412 = vadd.f32 0.0, %v411
      %v413 = vpop.f32.mrf.mxu0
      %v414 = vpop.f32.mrf.mxu0
      %v415 = vadd.f32 0.0, %v414
      %v416 = vpop.f32.mrf.mxu0
      %417 = vdwg.mxu0
      %v419 = vsel %vm362, %v347, 0
      %v422 = vsel %vm362, %v348, 0
      %424 = vmatprep.subr.bf16.mxu0 0
      %425 = vmatpush1.bf16.msra.mxu0 0
      %426 = vmatprep.subr.bf16.mxu0 0
      %427 = vmatpush1.bf16.msra.mxu0 0
      %428 = vmatprep.subr.bf16.mxu0 0
      %429 = vmatpush1.bf16.msra.mxu0 0
      %430 = vmatprep.subr.bf16.mxu0 0
      %431 = vmatpush1.bf16.msra.mxu0 0
      %432 = vmatprep.subr.bf16.mxu0 0
      %433 = vmatpush1.bf16.msra.mxu0 0
      %434 = vmatprep.subr.bf16.mxu0 0
      %435 = vmatpush1.bf16.msra.mxu0 %v311
      %436 = vmatprep.subr.bf16.mxu0 0
      %437 = vmatpush1.bf16.msra.mxu0 %v303
      %438 = vmatprep.subr.bf16.mxu0 0
      %439 = vmatpush1.bf16.msra.mxu0 %v295
      %440 = vmatprep.subr.bf16.mxu0 0
      %441 = vmatpush2.bf16.msra.mxu0 0
      %442 = vmatprep.subr.bf16.mxu0 0
      %443 = vmatpush2.bf16.msra.mxu0 0
      %444 = vmatprep.subr.bf16.mxu0 0
      %445 = vmatpush2.bf16.msra.mxu0 0
      %446 = vmatprep.subr.bf16.mxu0 0
      %447 = vmatpush2.bf16.msra.mxu0 0
      %448 = vmatprep.subr.bf16.mxu0 0
      %449 = vmatpush2.bf16.msra.mxu0 0
      %450 = vmatprep.subr.bf16.mxu0 0
      %451 = vmatpush2.bf16.msra.mxu0 0
      %452 = vmatprep.subr.bf16.mxu0 0
      %453 = vmatpush2.bf16.msra.mxu0 0
      %454 = vmatprep.subr.bf16.mxu0 0
      %455 = vmatpush2.bf16.msra.mxu0 0
      %456 = vmatprep.mubr.bf16.mxu0 0
      %457 = vmatmul.mubr.bf16.gmra.mxu0 %v419
      %v458 = vpop.f32.mrf.mxu0
      %v459 = vadd.f32 %v404, %v458
      %v460 = vpop.f32.mrf.mxu0
      %v461 = vpop.f32.mrf.mxu0
      %v462 = vadd.f32 %v407, %v461
      %v463 = vpop.f32.mrf.mxu0
      %464 = vmatprep.mubr.bf16.mxu0 0
      %465 = vmatmul.mubr.bf16.gmra.mxu0 %v422
      %v466 = vpop.f32.mrf.mxu0
      %v467 = vadd.f32 %v412, %v466
      %v468 = vpop.f32.mrf.mxu0
      %v469 = vpop.f32.mrf.mxu0
      %v470 = vadd.f32 %v415, %v469
      %v471 = vpop.f32.mrf.mxu0
      %472 = vdwg.mxu0
      %473 = vrot.lane.b32.xlu0 %v279, 8
      %v474 = vpop.permute.xlu0 %473
      %v476 = vmul.bf16 %v275, %v474
      %v477 = vmul.bf16 %v276, %v474
      %478 = vrot.lane.b32.xlu0 %v285, 10
      %v479 = vpop.permute.xlu0 %478
      %v481 = vmul.bf16 %v275, %v479
      %v482 = vmul.bf16 %v276, %v479
      %v485 = vunpack.c.l.b16 %v476
      %v486 = vunpack.c.l.b16 %v477
      %v487 = vpack.c.b16 %v486, %v485
      %v490 = vunpack.c.l.b16 %v481
      %v491 = vunpack.c.l.b16 %v482
      %v492 = vpack.c.b16 %v491, %v490
      %493 = vrot.lane.b32.xlu0 %v492, 126
      %v494 = vpop.permute.xlu0 %493
      %v495 = vld [vmem:[%s1] sm:$0xff]
      %v496 = vld [vmem:[%s1 + $0x8] sm:$0xff]
      %v497 = vld [vmem:[%s1 + $0x10] sm:$0xff]
      %v498 = vld [vmem:[%s1 + $0x18] sm:$0xff]
      %v503 = vunpack.c.l.b16 %v495
      %v504 = vunpack.c.h.b16 %v495
      %v505 = vunpack.c.l.b16 %v496
      %v506 = vunpack.c.h.b16 %v496
      %v507 = vunpack.c.l.b16 %v497
      %v508 = vunpack.c.h.b16 %v497
      %v509 = vunpack.c.l.b16 %v498
      %v510 = vunpack.c.h.b16 %v498
      %v511 = vpack.c.b16 %v505, %v503
      %v512 = vpack.c.b16 %v506, %v504
      %v513 = vpack.c.b16 %v509, %v507
      %v514 = vpack.c.b16 %v510, %v508
      %515 = vrot.lane.b32.xlu0 %v511, 32
      %v516 = vpop.permute.xlu0 %515
      %517 = vrot.lane.b32.xlu0 %v512, 32
      %v518 = vpop.permute.xlu0 %517
      %519 = vrot.lane.b32.xlu0 %v513, 32
      %v520 = vpop.permute.xlu0 %519
      %521 = vrot.lane.b32.xlu0 %v514, 32
      %v522 = vpop.permute.xlu0 %521
      %vm523 = vcmask 261120
      %v524 = vsel %vm523, %v516, %v518
      %v525 = vsel %vm523, %v520, %v522
      %526 = vrot.lane.b32.xlu0 %v487, 120
      %v527 = vpop.permute.xlu0 %526
      %528 = vrot.lane.b32.xlu0 %v303, 120
      %v529 = vpop.permute.xlu0 %528
      %530 = vrot.lane.b32.xlu0 %v494, 120
      %v531 = vpop.permute.xlu0 %530
      %v536 = vsel %vm362, %v524, 0
      %v539 = vsel %vm362, %v525, 0
      %541 = vmatprep.subr.bf16.mxu0 0
      %542 = vmatpush1.bf16.msra.mxu0 0
      %543 = vmatprep.subr.bf16.mxu0 0
      %544 = vmatpush1.bf16.msra.mxu0 0
      %545 = vmatprep.subr.bf16.mxu0 0
      %546 = vmatpush1.bf16.msra.mxu0 0
      %547 = vmatprep.subr.bf16.mxu0 0
      %548 = vmatpush1.bf16.msra.mxu0 0
      %549 = vmatprep.subr.bf16.mxu0 0
      %550 = vmatpush1.bf16.msra.mxu0 0
      %551 = vmatprep.subr.bf16.mxu0 0
      %552 = vmatpush1.bf16.msra.mxu0 %v531
      %553 = vmatprep.subr.bf16.mxu0 0
      %554 = vmatpush1.bf16.msra.mxu0 %v529
      %555 = vmatprep.subr.bf16.mxu0 0
      %556 = vmatpush1.bf16.msra.mxu0 %v527
      %557 = vmatprep.subr.bf16.mxu0 0
      %558 = vmatpush2.bf16.msra.mxu0 0
      %559 = vmatprep.subr.bf16.mxu0 0
      %560 = vmatpush2.bf16.msra.mxu0 0
      %561 = vmatprep.subr.bf16.mxu0 0
      %562 = vmatpush2.bf16.msra.mxu0 0
      %563 = vmatprep.subr.bf16.mxu0 0
      %564 = vmatpush2.bf16.msra.mxu0 0
      %565 = vmatprep.subr.bf16.mxu0 0
      %566 = vmatpush2.bf16.msra.mxu0 0
      %567 = vmatprep.subr.bf16.mxu0 0
      %568 = vmatpush2.bf16.msra.mxu0 0
      %569 = vmatprep.subr.bf16.mxu0 0
      %570 = vmatpush2.bf16.msra.mxu0 0
      %571 = vmatprep.subr.bf16.mxu0 0
      %572 = vmatpush2.bf16.msra.mxu0 0
      %573 = vmatprep.mubr.bf16.mxu0 0
      %574 = vmatmul.mubr.bf16.gmra.mxu0 %v536
      %v575 = vpop.f32.mrf.mxu0
      %v576 = vadd.f32 0.0, %v575
      %v577 = vpop.f32.mrf.mxu0
      %v578 = vpop.f32.mrf.mxu0
      %v579 = vadd.f32 0.0, %v578
      %v580 = vpop.f32.mrf.mxu0
      %581 = vmatprep.mubr.bf16.mxu0 0
      %582 = vmatmul.mubr.bf16.gmra.mxu0 %v539
      %v583 = vpop.f32.mrf.mxu0
      %v584 = vadd.f32 0.0, %v583
      %v585 = vpop.f32.mrf.mxu0
      %v586 = vpop.f32.mrf.mxu0
      %v587 = vadd.f32 0.0, %v586
      %v588 = vpop.f32.mrf.mxu0
      %589 = vdwg.mxu0
      %v590 = vadd.f32 %v459, %v576
      %v591 = vadd.f32 %v462, %v579
      %v592 = vadd.f32 %v467, %v584
      %v593 = vadd.f32 %v470, %v587
      %v594 = vld [vmem:[%s2] sm:$0xff]
      %v595 = vld [vmem:[%s2 + $0x8] sm:$0xff]
      %v596 = vld [vmem:[%s2 + $0x10] sm:$0xff]
      %v597 = vld [vmem:[%s2 + $0x18] sm:$0xff]
      %599 = vset.pattern.permute.xlu0 0
      %600 = vperm.xlu0 %599, %v594
      %v601 = vpop.permute.xlu0 %600
      %604 = vset.pattern.permute.xlu0 0
      %605 = vperm.xlu0 %604, %v595
      %v606 = vpop.permute.xlu0 %605
      %609 = vset.pattern.permute.xlu0 0
      %610 = vperm.xlu0 %609, %v596
      %v611 = vpop.permute.xlu0 %610
      %614 = vset.pattern.permute.xlu0 0
      %615 = vperm.xlu0 %614, %v597
      %v616 = vpop.permute.xlu0 %615
      %v618 = vadd.f32 %v590, %v601
      %v619 = vadd.f32 %v591, %v606
      %v620 = vadd.f32 %v592, %v611
      %v621 = vadd.f32 %v593, %v616
      %v622 = vmax.f32 %v618, 0.0
      %v623 = vmax.f32 %v619, 0.0
      %v624 = vmax.f32 %v620, 0.0
      %v625 = vmax.f32 %v621, 0.0
      %v626 = vpack.c.bf16 %v623, %v622
      %v627 = vpack.c.bf16 %v625, %v624
      %v630 = vunpack.c.l.b16 %v626
      %v631 = vunpack.c.h.b16 %v626
      %v632 = vunpack.c.l.b16 %v627
      %v633 = vunpack.c.h.b16 %v627
      %v634 = vpack.c.b16 %v630, %v630
      %v635 = vpack.c.b16 %v631, %v631
      %v636 = vpack.c.b16 %v632, %v632
      %v637 = vpack.c.b16 %v633, %v633
      %638 = vrot.lane.b32.xlu0 %v634, 5
      %v639 = vpop.permute.xlu0 %638
      %640 = vrot.lane.b32.xlu0 %v635, 5
      %v641 = vpop.permute.xlu0 %640
      %642 = vrot.lane.b32.xlu0 %v636, 5
      %v643 = vpop.permute.xlu0 %642
      %644 = vrot.lane.b32.xlu0 %v637, 5
      %v645 = vpop.permute.xlu0 %644
      %650 = vst.msk [vmem:[#allocation3] sm:$0xf] %vm272, %v639
      %651 = vst.msk [vmem:[#allocation3 + $0x4] sm:$0xf] %vm272, %v641
      %652 = vst.msk [vmem:[#allocation3 + $0x8] sm:$0xf] %vm272, %v643
      %653 = vst.msk [vmem:[#allocation3 + $0xc] sm:$0xf] %vm272, %v645
      %v654 = vld [vmem:[#allocation3] sm:$0xf]
      %v655 = vld [vmem:[#allocation3 + $0x4] sm:$0xf]
      %v656 = vld [vmem:[#allocation3 + $0x8] sm:$0xf]
      %v657 = vld [vmem:[#allocation3 + $0xc] sm:$0xf]
      %v658 = vmul.bf16 %v654, %v279
      %v659 = vmul.bf16 %v655, %v279
      %v660 = vmul.bf16 %v656, %v279
      %v661 = vmul.bf16 %v657, %v279
      %v662 = vmul.bf16 %v654, %v287
      %v663 = vmul.bf16 %v655, %v287
      %v664 = vmul.bf16 %v656, %v287
      %v665 = vmul.bf16 %v657, %v287
      %v670 = vunpack.c.l.b16 %v658
      %v671 = vunpack.c.l.b16 %v659
      %v672 = vunpack.c.l.b16 %v660
      %v673 = vunpack.c.l.b16 %v661
      %v674 = vpack.c.b16 %v671, %v670
      %v675 = vpack.c.b16 %v673, %v672
      %v682 = vunpack.c.l.b16 %v654
      %v683 = vunpack.c.l.b16 %v655
      %v684 = vunpack.c.l.b16 %v656
      %v685 = vunpack.c.l.b16 %v657
      %v686 = vpack.c.b16 %v683, %v682
      %v687 = vpack.c.b16 %v685, %v684
      %688 = vrot.lane.b32.xlu0 %v686, 127
      %v689 = vpop.permute.xlu0 %688
      %690 = vrot.lane.b32.xlu0 %v687, 127
      %v691 = vpop.permute.xlu0 %690
      %v698 = vunpack.c.l.b16 %v662
      %v699 = vunpack.c.l.b16 %v663
      %v700 = vunpack.c.l.b16 %v664
      %v701 = vunpack.c.l.b16 %v665
      %v702 = vpack.c.b16 %v699, %v698
      %v703 = vpack.c.b16 %v701, %v700
      %704 = vrot.lane.b32.xlu0 %v702, 126
      %v705 = vpop.permute.xlu0 %704
      %706 = vrot.lane.b32.xlu0 %v703, 126
      %v707 = vpop.permute.xlu0 %706
      %v710 = vld [vmem:[%s3] sm:$0xf]
      %v711 = vld [vmem:[%s3 + $0xc] sm:$0xf]
      %v712 = vld [vmem:[%s3 + $0x18] sm:$0xf]
      %v713 = vld [vmem:[%s3 + $0x24] sm:$0xf]
      %v714 = vmul.bf16 %v654, %v318
      %v715 = vmul.bf16 %v655, %v318
      %v716 = vmul.bf16 %v656, %v318
      %v717 = vmul.bf16 %v657, %v318
      %v718 = vmul.bf16 %v654, %v323
      %v719 = vmul.bf16 %v655, %v323
      %v720 = vmul.bf16 %v656, %v323
      %v721 = vmul.bf16 %v657, %v323
      %v726 = vunpack.c.l.b16 %v714
      %v727 = vunpack.c.l.b16 %v715
      %v728 = vunpack.c.l.b16 %v716
      %v729 = vunpack.c.l.b16 %v717
      %v730 = vpack.c.b16 %v727, %v726
      %v731 = vpack.c.b16 %v729, %v728
      %v736 = vunpack.c.l.b16 %v718
      %v737 = vunpack.c.l.b16 %v719
      %v738 = vunpack.c.l.b16 %v720
      %v739 = vunpack.c.l.b16 %v721
      %v740 = vpack.c.b16 %v737, %v736
      %v741 = vpack.c.b16 %v739, %v738
      %742 = vrot.lane.b32.xlu0 %v740, 126
      %v743 = vpop.permute.xlu0 %742
      %744 = vrot.lane.b32.xlu0 %v741, 126
      %v745 = vpop.permute.xlu0 %744
      %v746 = vld [vmem:[%s3] sm:$0xff]
      %v747 = vld [vmem:[%s3 + $0xc] sm:$0xff]
      %v748 = vld [vmem:[%s3 + $0x18] sm:$0xff]
      %v749 = vld [vmem:[%s3 + $0x24] sm:$0xff]
      %v754 = vunpack.c.l.b16 %v746
      %v755 = vunpack.c.h.b16 %v746
      %v756 = vunpack.c.l.b16 %v747
      %v757 = vunpack.c.h.b16 %v747
      %v758 = vunpack.c.l.b16 %v748
      %v759 = vunpack.c.h.b16 %v748
      %v760 = vunpack.c.l.b16 %v749
      %v761 = vunpack.c.h.b16 %v749
      %v762 = vpack.c.b16 %v756, %v754
      %v763 = vpack.c.b16 %v757, %v755
      %v764 = vpack.c.b16 %v760, %v758
      %v765 = vpack.c.b16 %v761, %v759
      %766 = vrot.lane.b32.xlu0 %v762, 32
      %v767 = vpop.permute.xlu0 %766
      %768 = vrot.lane.b32.xlu0 %v763, 32
      %v769 = vpop.permute.xlu0 %768
      %770 = vrot.lane.b32.xlu0 %v764, 32
      %v771 = vpop.permute.xlu0 %770
      %772 = vrot.lane.b32.xlu0 %v765, 32
      %v773 = vpop.permute.xlu0 %772
      %v774 = vsel %vm523, %v767, %v769
      %v775 = vsel %vm523, %v771, %v773
      %776 = vrot.lane.b32.xlu0 %v730, 124
      %v777 = vpop.permute.xlu0 %776
      %778 = vrot.lane.b32.xlu0 %v731, 124
      %v779 = vpop.permute.xlu0 %778
      %780 = vrot.lane.b32.xlu0 %v689, 124
      %v781 = vpop.permute.xlu0 %780
      %782 = vrot.lane.b32.xlu0 %v691, 124
      %v783 = vpop.permute.xlu0 %782
      %784 = vrot.lane.b32.xlu0 %v743, 124
      %v785 = vpop.permute.xlu0 %784
      %786 = vrot.lane.b32.xlu0 %v745, 124
      %v787 = vpop.permute.xlu0 %786
      %vm794 = vcmask 785408
      %v796 = vsel %vm794, %v774, 0
      %v799 = vsel %vm794, %v775, 0
      %801 = vmatprep.subr.bf16.mxu0 0
      %802 = vmatpush1.bf16.msra.mxu0 0
      %803 = vmatprep.subr.bf16.mxu0 0
      %804 = vmatpush1.bf16.msra.mxu0 0
      %805 = vmatprep.subr.bf16.mxu0 0
      %806 = vmatpush1.bf16.msra.mxu0 %v787
      %807 = vmatprep.subr.bf16.mxu0 0
      %808 = vmatpush1.bf16.msra.mxu0 %v785
      %809 = vmatprep.subr.bf16.mxu0 0
      %810 = vmatpush1.bf16.msra.mxu0 %v783
      %811 = vmatprep.subr.bf16.mxu0 0
      %812 = vmatpush1.bf16.msra.mxu0 %v781
      %813 = vmatprep.subr.bf16.mxu0 0
      %814 = vmatpush1.bf16.msra.mxu0 %v779
      %815 = vmatprep.subr.bf16.mxu0 0
      %816 = vmatpush1.bf16.msra.mxu0 %v777
      %817 = vmatprep.subr.bf16.mxu0 0
      %818 = vmatpush2.bf16.msra.mxu0 0
      %819 = vmatprep.subr.bf16.mxu0 0
      %820 = vmatpush2.bf16.msra.mxu0 0
      %821 = vmatprep.subr.bf16.mxu0 0
      %822 = vmatpush2.bf16.msra.mxu0 0
      %823 = vmatprep.subr.bf16.mxu0 0
      %824 = vmatpush2.bf16.msra.mxu0 0
      %825 = vmatprep.subr.bf16.mxu0 0
      %826 = vmatpush2.bf16.msra.mxu0 0
      %827 = vmatprep.subr.bf16.mxu0 0
      %828 = vmatpush2.bf16.msra.mxu0 0
      %829 = vmatprep.subr.bf16.mxu0 0
      %830 = vmatpush2.bf16.msra.mxu0 0
      %831 = vmatprep.subr.bf16.mxu0 0
      %832 = vmatpush2.bf16.msra.mxu0 0
      %833 = vmatprep.mubr.bf16.mxu0 0
      %834 = vmatmul.mubr.bf16.gmra.mxu0 %v796
      %v835 = vpop.f32.mrf.mxu0
      %v836 = vadd.f32 0.0, %v835
      %v837 = vpop.f32.mrf.mxu0
      %v838 = vpop.f32.mrf.mxu0
      %v839 = vadd.f32 0.0, %v838
      %v840 = vpop.f32.mrf.mxu0
      %841 = vmatprep.mubr.bf16.mxu0 0
      %842 = vmatmul.mubr.bf16.gmra.mxu0 %v799
      %v843 = vpop.f32.mrf.mxu0
      %v844 = vadd.f32 0.0, %v843
      %v845 = vpop.f32.mrf.mxu0
      %v846 = vpop.f32.mrf.mxu0
      %v847 = vadd.f32 0.0, %v846
      %v848 = vpop.f32.mrf.mxu0
      %849 = vdwg.mxu0
      %v854 = vunpack.c.l.b16 %v710
      %v855 = vunpack.c.l.b16 %v711
      %v856 = vunpack.c.l.b16 %v712
      %v857 = vunpack.c.l.b16 %v713
      %v858 = vpack.c.b16 %v855, %v854
      %v859 = vpack.c.b16 %v857, %v856
      %v861 = vsel %vm794, %v858, 0
      %v864 = vsel %vm794, %v859, 0
      %866 = vmatprep.subr.bf16.mxu0 0
      %867 = vmatpush1.bf16.msra.mxu0 0
      %868 = vmatprep.subr.bf16.mxu0 0
      %869 = vmatpush1.bf16.msra.mxu0 0
      %870 = vmatprep.subr.bf16.mxu0 0
      %871 = vmatpush1.bf16.msra.mxu0 %v707
      %872 = vmatprep.subr.bf16.mxu0 0
      %873 = vmatpush1.bf16.msra.mxu0 %v705
      %874 = vmatprep.subr.bf16.mxu0 0
      %875 = vmatpush1.bf16.msra.mxu0 %v691
      %876 = vmatprep.subr.bf16.mxu0 0
      %877 = vmatpush1.bf16.msra.mxu0 %v689
      %878 = vmatprep.subr.bf16.mxu0 0
      %879 = vmatpush1.bf16.msra.mxu0 %v675
      %880 = vmatprep.subr.bf16.mxu0 0
      %881 = vmatpush1.bf16.msra.mxu0 %v674
      %882 = vmatprep.subr.bf16.mxu0 0
      %883 = vmatpush2.bf16.msra.mxu0 0
      %884 = vmatprep.subr.bf16.mxu0 0
      %885 = vmatpush2.bf16.msra.mxu0 0
      %886 = vmatprep.subr.bf16.mxu0 0
      %887 = vmatpush2.bf16.msra.mxu0 0
      %888 = vmatprep.subr.bf16.mxu0 0
      %889 = vmatpush2.bf16.msra.mxu0 0
      %890 = vmatprep.subr.bf16.mxu0 0
      %891 = vmatpush2.bf16.msra.mxu0 0
      %892 = vmatprep.subr.bf16.mxu0 0
      %893 = vmatpush2.bf16.msra.mxu0 0
      %894 = vmatprep.subr.bf16.mxu0 0
      %895 = vmatpush2.bf16.msra.mxu0 0
      %896 = vmatprep.subr.bf16.mxu0 0
      %897 = vmatpush2.bf16.msra.mxu0 0
      %898 = vmatprep.mubr.bf16.mxu0 0
      %899 = vmatmul.mubr.bf16.gmra.mxu0 %v861
      %v900 = vpop.f32.mrf.mxu0
      %v901 = vadd.f32 %v836, %v900
      %v902 = vpop.f32.mrf.mxu0
      %v903 = vpop.f32.mrf.mxu0
      %v904 = vadd.f32 %v839, %v903
      %v905 = vpop.f32.mrf.mxu0
      %906 = vmatprep.mubr.bf16.mxu0 0
      %907 = vmatmul.mubr.bf16.gmra.mxu0 %v864
      %v908 = vpop.f32.mrf.mxu0
      %v909 = vadd.f32 %v844, %v908
      %v910 = vpop.f32.mrf.mxu0
      %v911 = vpop.f32.mrf.mxu0
      %v912 = vadd.f32 %v847, %v911
      %v913 = vpop.f32.mrf.mxu0
      %914 = vdwg.mxu0
      %v915 = vmul.bf16 %v654, %v474
      %v916 = vmul.bf16 %v655, %v474
      %v917 = vmul.bf16 %v656, %v474
      %v918 = vmul.bf16 %v657, %v474
      %v919 = vmul.bf16 %v654, %v479
      %v920 = vmul.bf16 %v655, %v479
      %v921 = vmul.bf16 %v656, %v479
      %v922 = vmul.bf16 %v657, %v479
      %v927 = vunpack.c.l.b16 %v915
      %v928 = vunpack.c.l.b16 %v916
      %v929 = vunpack.c.l.b16 %v917
      %v930 = vunpack.c.l.b16 %v918
      %v931 = vpack.c.b16 %v928, %v927
      %v932 = vpack.c.b16 %v930, %v929
      %v937 = vunpack.c.l.b16 %v919
      %v938 = vunpack.c.l.b16 %v920
      %v939 = vunpack.c.l.b16 %v921
      %v940 = vunpack.c.l.b16 %v922
      %v941 = vpack.c.b16 %v938, %v937
      %v942 = vpack.c.b16 %v940, %v939
      %943 = vrot.lane.b32.xlu0 %v941, 126
      %v944 = vpop.permute.xlu0 %943
      %945 = vrot.lane.b32.xlu0 %v942, 126
      %v946 = vpop.permute.xlu0 %945
      %v947 = vld [vmem:[%s3 + $0x4] sm:$0xff]
      %v948 = vld [vmem:[%s3 + $0x10] sm:$0xff]
      %v949 = vld [vmem:[%s3 + $0x1c] sm:$0xff]
      %v950 = vld [vmem:[%s3 + $0x28] sm:$0xff]
      %v955 = vunpack.c.l.b16 %v947
      %v956 = vunpack.c.h.b16 %v947
      %v957 = vunpack.c.l.b16 %v948
      %v958 = vunpack.c.h.b16 %v948
      %v959 = vunpack.c.l.b16 %v949
      %v960 = vunpack.c.h.b16 %v949
      %v961 = vunpack.c.l.b16 %v950
      %v962 = vunpack.c.h.b16 %v950
      %v963 = vpack.c.b16 %v957, %v955
      %v964 = vpack.c.b16 %v958, %v956
      %v965 = vpack.c.b16 %v961, %v959
      %v966 = vpack.c.b16 %v962, %v960
      %967 = vrot.lane.b32.xlu0 %v963, 64
      %v968 = vpop.permute.xlu0 %967
      %969 = vrot.lane.b32.xlu0 %v964, 64
      %v970 = vpop.permute.xlu0 %969
      %971 = vrot.lane.b32.xlu0 %v965, 64
      %v972 = vpop.permute.xlu0 %971
      %973 = vrot.lane.b32.xlu0 %v966, 64
      %v974 = vpop.permute.xlu0 %973
      %vm975 = vcmask 523264
      %v976 = vsel %vm975, %v968, %v970
      %v977 = vsel %vm975, %v972, %v974
      %978 = vrot.lane.b32.xlu0 %v931, 120
      %v979 = vpop.permute.xlu0 %978
      %980 = vrot.lane.b32.xlu0 %v932, 120
      %v981 = vpop.permute.xlu0 %980
      %982 = vrot.lane.b32.xlu0 %v689, 120
      %v983 = vpop.permute.xlu0 %982
      %984 = vrot.lane.b32.xlu0 %v691, 120
      %v985 = vpop.permute.xlu0 %984
      %986 = vrot.lane.b32.xlu0 %v944, 120
      %v987 = vpop.permute.xlu0 %986
      %988 = vrot.lane.b32.xlu0 %v946, 120
      %v989 = vpop.permute.xlu0 %988
      %v997 = vsel %vm794, %v976, 0
      %v1000 = vsel %vm794, %v977, 0
      %1002 = vmatprep.subr.bf16.mxu0 0
      %1003 = vmatpush1.bf16.msra.mxu0 0
      %1004 = vmatprep.subr.bf16.mxu0 0
      %1005 = vmatpush1.bf16.msra.mxu0 0
      %1006 = vmatprep.subr.bf16.mxu0 0
      %1007 = vmatpush1.bf16.msra.mxu0 %v989
      %1008 = vmatprep.subr.bf16.mxu0 0
      %1009 = vmatpush1.bf16.msra.mxu0 %v987
      %1010 = vmatprep.subr.bf16.mxu0 0
      %1011 = vmatpush1.bf16.msra.mxu0 %v985
      %1012 = vmatprep.subr.bf16.mxu0 0
      %1013 = vmatpush1.bf16.msra.mxu0 %v983
      %1014 = vmatprep.subr.bf16.mxu0 0
      %1015 = vmatpush1.bf16.msra.mxu0 %v981
      %1016 = vmatprep.subr.bf16.mxu0 0
      %1017 = vmatpush1.bf16.msra.mxu0 %v979
      %1018 = vmatprep.subr.bf16.mxu0 0
      %1019 = vmatpush2.bf16.msra.mxu0 0
      %1020 = vmatprep.subr.bf16.mxu0 0
      %1021 = vmatpush2.bf16.msra.mxu0 0
      %1022 = vmatprep.subr.bf16.mxu0 0
      %1023 = vmatpush2.bf16.msra.mxu0 0
      %1024 = vmatprep.subr.bf16.mxu0 0
      %1025 = vmatpush2.bf16.msra.mxu0 0
      %1026 = vmatprep.subr.bf16.mxu0 0
      %1027 = vmatpush2.bf16.msra.mxu0 0
      %1028 = vmatprep.subr.bf16.mxu0 0
      %1029 = vmatpush2.bf16.msra.mxu0 0
      %1030 = vmatprep.subr.bf16.mxu0 0
      %1031 = vmatpush2.bf16.msra.mxu0 0
      %1032 = vmatprep.subr.bf16.mxu0 0
      %1033 = vmatpush2.bf16.msra.mxu0 0
      %1034 = vmatprep.mubr.bf16.mxu0 0
      %1035 = vmatmul.mubr.bf16.gmra.mxu0 %v997
      %v1036 = vpop.f32.mrf.mxu0
      %v1037 = vadd.f32 0.0, %v1036
      %v1038 = vpop.f32.mrf.mxu0
      %v1039 = vpop.f32.mrf.mxu0
      %v1040 = vadd.f32 0.0, %v1039
      %v1041 = vpop.f32.mrf.mxu0
      %1042 = vmatprep.mubr.bf16.mxu0 0
      %1043 = vmatmul.mubr.bf16.gmra.mxu0 %v1000
      %v1044 = vpop.f32.mrf.mxu0
      %v1045 = vadd.f32 0.0, %v1044
      %v1046 = vpop.f32.mrf.mxu0
      %v1047 = vpop.f32.mrf.mxu0
      %v1048 = vadd.f32 0.0, %v1047
      %v1049 = vpop.f32.mrf.mxu0
      %1050 = vdwg.mxu0
      %v1051 = vadd.f32 %v901, %v1037
      %v1052 = vadd.f32 %v904, %v1040
      %v1053 = vadd.f32 %v909, %v1045
      %v1054 = vadd.f32 %v912, %v1048
      %v1055 = vld [vmem:[%s4] sm:$0xff]
      %v1056 = vld [vmem:[%s4 + $0x8] sm:$0xff]
      %v1057 = vld [vmem:[%s4 + $0x10] sm:$0xff]
      %v1058 = vld [vmem:[%s4 + $0x18] sm:$0xff]
      %1060 = vset.pattern.permute.xlu0 0
      %1061 = vperm.xlu0 %1060, %v1055
      %v1062 = vpop.permute.xlu0 %1061
      %1065 = vset.pattern.permute.xlu0 0
      %1066 = vperm.xlu0 %1065, %v1056
      %v1067 = vpop.permute.xlu0 %1066
      %1070 = vset.pattern.permute.xlu0 0
      %1071 = vperm.xlu0 %1070, %v1057
      %v1072 = vpop.permute.xlu0 %1071
      %1075 = vset.pattern.permute.xlu0 0
      %1076 = vperm.xlu0 %1075, %v1058
      %v1077 = vpop.permute.xlu0 %1076
      %v1079 = vadd.f32 %v1051, %v1062
      %v1080 = vadd.f32 %v1052, %v1067
      %v1081 = vadd.f32 %v1053, %v1072
      %v1082 = vadd.f32 %v1054, %v1077
      %v1083 = vmax.f32 %v1079, 0.0
      %v1084 = vmax.f32 %v1080, 0.0
      %v1085 = vmax.f32 %v1081, 0.0
      %v1086 = vmax.f32 %v1082, 0.0
      %v1087 = vpack.c.bf16 %v1084, %v1083
      %v1088 = vpack.c.bf16 %v1086, %v1085
      %v1091 = vunpack.c.l.b16 %v1087
      %v1092 = vunpack.c.h.b16 %v1087
      %v1093 = vunpack.c.l.b16 %v1088
      %v1094 = vunpack.c.h.b16 %v1088
      %v1095 = vpack.c.b16 %v1091, %v1091
      %v1096 = vpack.c.b16 %v1092, %v1092
      %v1097 = vpack.c.b16 %v1093, %v1093
      %v1098 = vpack.c.b16 %v1094, %v1094
      %vm1103 = vcmask 125952
      %1104 = vst.msk [vmem:[%s224] sm:$0xf] %vm1103, %v1095
      %1105 = vst.msk [vmem:[%s224 + $0x4] sm:$0xf] %vm1103, %v1096
      %1106 = vst.msk [vmem:[%s224 + $0x8] sm:$0xf] %vm1103, %v1097
      %1107 = vst.msk [vmem:[%s224 + $0xc] sm:$0xf] %vm1103, %v1098
      %p1108 = scmp.lt.s32.totalorder %s16, 1
      %s1109 = scalar_select %p1108, %s16, 1
      %s1110 = smul.addr %s1109, 4
      %s1111 = smul.addr %s1110, 4
      %s1112 = scalar_lea.vmem %s5, %s1111
      // Predicated region
      $region41: #{seg_qyl_forward.8} parent=39 // pred_check
        %p1113 = pneg %p144
      $region42: #{seg_qyl_forward.8} parent=39 // pred_check_branch
        %1115 = sbr.rel (%p1113) target = $region44
      $region43: #{seg_qyl_forward.8} parent=39 // pred_region
        _
      $region44: #{seg_qyl_forward.8} parent=39 // pred_fallthru
        _
    $region40: #{seg_qyl_forward.8} parent=5 // pred_fallthru
      _
    %p1116 = scmp.le.s32.totalorder 2, %s11
    // Predicated region
    $region45: #{seg_qyl_forward.8} parent=5 // pred_check
      %p1117 = pneg %p1116
    $region46: #{seg_qyl_forward.8} parent=5 // pred_check_branch
      %1119 = sbr.rel (%p1117) target = $region48
    $region47: #{seg_qyl_forward.8} parent=5 // pred_region
      %s1120 = ssub.s32 %s11, 2
      // Predicated region
      $region49: #{seg_qyl_forward.8} parent=47 // pred_check
        %p1121 = pneg %p150
      $region50: #{seg_qyl_forward.8} parent=47 // pred_check_branch
        %1123 = sbr.rel (%p1121) target = $region52
      $region51: #{seg_qyl_forward.8} parent=47 // pred_region
        %p1124 = scmp.lt.s32.totalorder %s17, 1
        %s1125 = scalar_select %p1124, %s17, 1
        %s1126 = smul.addr %s1125, 4
        %s1127 = smul.addr %s1126, 4
        %s1128 = scalar_lea.vmem %s5, %s1127
      $region52: #{seg_qyl_forward.8} parent=47 // pred_fallthru
        _
    $region48: #{seg_qyl_forward.8} parent=5 // pred_fallthru
      _
  $region6: #{seg_qyl_forward.8} parent=0 // loop_footer
    %s15 = sadd.s32 1, %s11
  $region7: #{seg_qyl_forward.8} parent=0 // loop_footer_branch
    %10 = sbr.rel target = $region3
  $region8: #{seg_qyl_forward.8} parent=0 // loop_exit
    _

// kernel: seg_qyl_forward.10
$region0: #{seg_qyl_forward.10}
  #allocation0 [shape = 'u32[]', space=smem, size = 0x4, offset = 0x4, fixed_abs, tag = 'smem constant byte address 0x4 - core index']
  #allocation1 [shape = 'u32[144,128]{1,0:T(1,128)}', space=vmem, size = 0x12000, scoped, tag = 'internal scratch']
  #allocation2 [shape = 'bf16[48,82]{1,0:T(8,128)(2,1)}', space=vmem, size = 0x3000, scoped, tag = 'scratch operand']
  #allocation3 [shape = 'bf16[16,82]{1,0:T(8,128)(2,1)}', space=vmem, size = 0x1000, scoped, tag = 'scratch operand']
  %s0 = inlined_call_operand.vmem [shape: bf16[2,16,64], index: 0, kind: input, shape index: {}]
  %s1 = inlined_call_operand.vmem [shape: bf16[2,32,64], index: 1, kind: input, shape index: {}]
  %s2 = inlined_call_operand.vmem [shape: bf16[16,432], index: 2, kind: input, shape index: {}]
  %s3 = inlined_call_operand.vmem [shape: f32[16,1], index: 3, kind: input, shape index: {}]
  %s4 = inlined_call_operand.vmem [shape: bf16[16,144], index: 4, kind: input, shape index: {}]
  %s5 = inlined_call_operand.vmem [shape: f32[16,1], index: 5, kind: input, shape index: {}]
  %s6 = inlined_call_operand.vmem [shape: bf16[2,16,64], index: 6, kind: output, shape index: {}]
  %s7 = sld [smem:[#allocation0]]
  $region57: #{seg_qyl_forward.10} parent=0
    _
  %s9 = ssub.s32 1, %s7
  %s10 = scalar_select 0, %s9, %s7
  loop: start=0, step=1, limit=4
  $region2: #{seg_qyl_forward.10} parent=0 // loop_pre_header
    _
  $region3: #{seg_qyl_forward.10} parent=0 // loop_header
    %s12 = sphi 0, %s16
    %p13 = scmp.ge.s32.totalorder %s12, 4
    %s22 = sphi 0, %s24
    %s25 = sphi 0, %s22
    %s26 = sphi 0, %s25
    %s42 = sphi 0, %s26
    %s48 = sphi 0, %s50
    %s51 = sphi 0, %s48
    %s52 = sphi 0, %s51
    %s68 = sphi 0, %s52
    %s72 = sphi 0, %s72
    %s74 = sphi 0, %s72
    %s75 = sphi 0, %s74
    %s89 = sphi 0, %s75
    %s93 = sphi 0, %s93
    %s95 = sphi 0, %s93
    %s96 = sphi 0, %s95
    %s110 = sphi 0, %s96
    %s114 = sphi 0, %s114
    %s116 = sphi 0, %s114
    %s117 = sphi 0, %s116
    %s131 = sphi 0, %s117
    %s135 = sphi 0, %s135
    %s137 = sphi 0, %s135
    %s138 = sphi 0, %s137
    %s152 = sphi 0, %s138
    %s158 = sphi 0, %s160
    %s161 = sphi 0, %s158
    %s162 = sphi 0, %s161
    %s178 = sphi 0, %s162
  $region4: #{seg_qyl_forward.10} parent=0 // loop_header_branch
    %15 = sbr.rel (%p13) target = $region8
  $region5: #{seg_qyl_forward.10} parent=0 // loop_body
    %s17 = ssub.s32 %s12, 1
    %s18 = ssub.s32 %s12, 2
    %s19 = sadd.s32 %s12, 1
    %s20 = ssub.s32 %s12, %s19
    %p21 = scmp.eq.s32.totalorder %s20, 0
    %s23 = sadd.s32 %s22, 1
    %s24 = scalar_select %p21, %s22, %s23
    %p27 = pneg %p21
    %p28 = scmp.eq.s32.totalorder %s12, 1
    %p29 = por %p27, %p28
    %p30 = scmp.ne.s32.totalorder %s22, %s25
    %p31 = scmp.eq.s32.totalorder %s12, 0
    %p32 = por %p30, %p31
    %p33 = scmp.ne.s32.totalorder %s22, %s25
    %p34 = scmp.eq.s32.totalorder %s17, 1
    %p35 = por %p33, %p34
    %p36 = scmp.ne.s32.totalorder %s25, %s26
    %p37 = scmp.eq.s32.totalorder %s17, 0
    %p38 = por %p36, %p37
    %p39 = scmp.ne.s32.totalorder %s25, %s26
    %p40 = scmp.eq.s32.totalorder %s18, 1
    %p41 = por %p39, %p40
    %p43 = scmp.ne.s32.totalorder %s26, %s42
    %p44 = scmp.eq.s32.totalorder %s18, 0
    %p45 = por %p43, %p44
    %s46 = ssub.s32 %s12, %s19
    %p47 = scmp.eq.s32.totalorder %s46, 0
    %s49 = sadd.s32 %s48, 1
    %s50 = scalar_select %p47, %s48, %s49
    %p53 = pneg %p47
    %p54 = scmp.eq.s32.totalorder %s12, 1
    %p55 = por %p53, %p54
    %p56 = scmp.ne.s32.totalorder %s48, %s51
    %p57 = scmp.eq.s32.totalorder %s12, 0
    %p58 = por %p56, %p57
    %p59 = scmp.ne.s32.totalorder %s48, %s51
    %p60 = scmp.eq.s32.totalorder %s17, 1
    %p61 = por %p59, %p60
    %p62 = scmp.ne.s32.totalorder %s51, %s52
    %p63 = scmp.eq.s32.totalorder %s17, 0
    %p64 = por %p62, %p63
    %p65 = scmp.ne.s32.totalorder %s51, %s52
    %p66 = scmp.eq.s32.totalorder %s18, 1
    %p67 = por %p65, %p66
    %p69 = scmp.ne.s32.totalorder %s52, %s68
    %p70 = scmp.eq.s32.totalorder %s18, 0
    %p71 = por %p69, %p70
    %s73 = sadd.s32 %s72, 1
    %p76 = scmp.eq.s32.totalorder %s12, 1
    %p77 = scmp.ne.s32.totalorder %s72, %s74
    %p78 = scmp.eq.s32.totalorder %s12, 0
    %p79 = por %p77, %p78
    %p80 = scmp.ne.s32.totalorder %s72, %s74
    %p81 = scmp.eq.s32.totalorder %s17, 1
    %p82 = por %p80, %p81
    %p83 = scmp.ne.s32.totalorder %s74, %s75
    %p84 = scmp.eq.s32.totalorder %s17, 0
    %p85 = por %p83, %p84
    %p86 = scmp.ne.s32.totalorder %s74, %s75
    %p87 = scmp.eq.s32.totalorder %s18, 1
    %p88 = por %p86, %p87
    %p90 = scmp.ne.s32.totalorder %s75, %s89
    %p91 = scmp.eq.s32.totalorder %s18, 0
    %p92 = por %p90, %p91
    %s94 = sadd.s32 %s93, 1
    %p97 = scmp.eq.s32.totalorder %s12, 1
    %p98 = scmp.ne.s32.totalorder %s93, %s95
    %p99 = scmp.eq.s32.totalorder %s12, 0
    %p100 = por %p98, %p99
    %p101 = scmp.ne.s32.totalorder %s93, %s95
    %p102 = scmp.eq.s32.totalorder %s17, 1
    %p103 = por %p101, %p102
    %p104 = scmp.ne.s32.totalorder %s95, %s96
    %p105 = scmp.eq.s32.totalorder %s17, 0
    %p106 = por %p104, %p105
    %p107 = scmp.ne.s32.totalorder %s95, %s96
    %p108 = scmp.eq.s32.totalorder %s18, 1
    %p109 = por %p107, %p108
    %p111 = scmp.ne.s32.totalorder %s96, %s110
    %p112 = scmp.eq.s32.totalorder %s18, 0
    %p113 = por %p111, %p112
    %s115 = sadd.s32 %s114, 1
    %p118 = scmp.eq.s32.totalorder %s12, 1
    %p119 = scmp.ne.s32.totalorder %s114, %s116
    %p120 = scmp.eq.s32.totalorder %s12, 0
    %p121 = por %p119, %p120
    %p122 = scmp.ne.s32.totalorder %s114, %s116
    %p123 = scmp.eq.s32.totalorder %s17, 1
    %p124 = por %p122, %p123
    %p125 = scmp.ne.s32.totalorder %s116, %s117
    %p126 = scmp.eq.s32.totalorder %s17, 0
    %p127 = por %p125, %p126
    %p128 = scmp.ne.s32.totalorder %s116, %s117
    %p129 = scmp.eq.s32.totalorder %s18, 1
    %p130 = por %p128, %p129
    %p132 = scmp.ne.s32.totalorder %s117, %s131
    %p133 = scmp.eq.s32.totalorder %s18, 0
    %p134 = por %p132, %p133
    %s136 = sadd.s32 %s135, 1
    %p139 = scmp.eq.s32.totalorder %s12, 1
    %p140 = scmp.ne.s32.totalorder %s135, %s137
    %p141 = scmp.eq.s32.totalorder %s12, 0
    %p142 = por %p140, %p141
    %p143 = scmp.ne.s32.totalorder %s135, %s137
    %p144 = scmp.eq.s32.totalorder %s17, 1
    %p145 = por %p143, %p144
    %p146 = scmp.ne.s32.totalorder %s137, %s138
    %p147 = scmp.eq.s32.totalorder %s17, 0
    %p148 = por %p146, %p147
    %p149 = scmp.ne.s32.totalorder %s137, %s138
    %p150 = scmp.eq.s32.totalorder %s18, 1
    %p151 = por %p149, %p150
    %p153 = scmp.ne.s32.totalorder %s138, %s152
    %p154 = scmp.eq.s32.totalorder %s18, 0
    %p155 = por %p153, %p154
    %s156 = ssub.s32 %s12, %s19
    %p157 = scmp.eq.s32.totalorder %s156, 0
    %s159 = sadd.s32 %s158, 1
    %s160 = scalar_select %p157, %s158, %s159
    %p163 = pneg %p157
    %p164 = scmp.eq.s32.totalorder %s12, 1
    %p165 = por %p163, %p164
    %p166 = scmp.ne.s32.totalorder %s158, %s161
    %p167 = scmp.eq.s32.totalorder %s12, 0
    %p168 = por %p166, %p167
    %p169 = scmp.ne.s32.totalorder %s158, %s161
    %p170 = scmp.eq.s32.totalorder %s17, 1
    %p171 = por %p169, %p170
    %p172 = scmp.ne.s32.totalorder %s161, %s162
    %p173 = scmp.eq.s32.totalorder %s17, 0
    %p174 = por %p172, %p173
    %p175 = scmp.ne.s32.totalorder %s161, %s162
    %p176 = scmp.eq.s32.totalorder %s18, 1
    %p177 = por %p175, %p176
    %p179 = scmp.ne.s32.totalorder %s162, %s178
    %p180 = scmp.eq.s32.totalorder %s18, 0
    %p181 = por %p179, %p180
    %p182 = scmp.le.s32.totalorder 1, %s12
    %p183 = scmp.lt.s32.totalorder %s12, 3
    %p184 = pnand %p182, %p183
    %p185 = pneg %p184
    // Predicated region
    $region9: #{seg_qyl_forward.10} parent=5 // pred_check
      _
    $region10: #{seg_qyl_forward.10} parent=5 // pred_check_branch
      %187 = sbr.rel (%p184) target = $region12
    $region11: #{seg_qyl_forward.10} parent=5 // pred_region
      %s188 = ssub.s32 %s12, 1
      // Predicated region
      $region13: #{seg_qyl_forward.10} parent=11 // pred_check
        %p189 = pneg %p85
      $region14: #{seg_qyl_forward.10} parent=11 // pred_check_branch
        %191 = sbr.rel (%p189) target = $region16
      $region15: #{seg_qyl_forward.10} parent=11 // pred_region
        _
      $region16: #{seg_qyl_forward.10} parent=11 // pred_fallthru
        _
      // Predicated region
      $region17: #{seg_qyl_forward.10} parent=11 // pred_check
        %p192 = pneg %p106
      $region18: #{seg_qyl_forward.10} parent=11 // pred_check_branch
        %194 = sbr.rel (%p192) target = $region20
      $region19: #{seg_qyl_forward.10} parent=11 // pred_region
        _
      $region20: #{seg_qyl_forward.10} parent=11 // pred_fallthru
        _
      // Predicated region
      $region21: #{seg_qyl_forward.10} parent=11 // pred_check
        %p195 = pneg %p127
      $region22: #{seg_qyl_forward.10} parent=11 // pred_check_branch
        %197 = sbr.rel (%p195) target = $region24
      $region23: #{seg_qyl_forward.10} parent=11 // pred_region
        _
      $region24: #{seg_qyl_forward.10} parent=11 // pred_fallthru
        _
      // Predicated region
      $region25: #{seg_qyl_forward.10} parent=11 // pred_check
        %p198 = pneg %p148
      $region26: #{seg_qyl_forward.10} parent=11 // pred_check_branch
        %200 = sbr.rel (%p198) target = $region28
      $region27: #{seg_qyl_forward.10} parent=11 // pred_region
        _
      $region28: #{seg_qyl_forward.10} parent=11 // pred_fallthru
        _
    $region12: #{seg_qyl_forward.10} parent=5 // pred_fallthru
      _
    %p201 = scmp.lt.s32.totalorder %s12, 2
    // Predicated region
    $region29: #{seg_qyl_forward.10} parent=5 // pred_check
      %p202 = pneg %p201
    $region30: #{seg_qyl_forward.10} parent=5 // pred_check_branch
      %204 = sbr.rel (%p202) target = $region32
    $region31: #{seg_qyl_forward.10} parent=5 // pred_region
      // Predicated region
      $region33: #{seg_qyl_forward.10} parent=31 // pred_check
        %p205 = pneg %p32
      $region34: #{seg_qyl_forward.10} parent=31 // pred_check_branch
        %207 = sbr.rel (%p205) target = $region36
      $region35: #{seg_qyl_forward.10} parent=31 // pred_region
        %p208 = scmp.lt.s32.totalorder %s12, 1
        %s209 = scalar_select %p208, %s12, 1
        %s210 = smul.addr %s209, 2
        %s211 = smul.addr %s210, 4
        %s212 = scalar_lea.vmem %s0, %s211
      $region36: #{seg_qyl_forward.10} parent=31 // pred_fallthru
        _
      // Predicated region
      $region37: #{seg_qyl_forward.10} parent=31 // pred_check
        %p213 = pneg %p58
      $region38: #{seg_qyl_forward.10} parent=31 // pred_check_branch
        %215 = sbr.rel (%p213) target = $region40
      $region39: #{seg_qyl_forward.10} parent=31 // pred_region
        %p216 = scmp.lt.s32.totalorder %s12, 1
        %s217 = scalar_select %p216, %s12, 1
        %s218 = smul.addr %s217, 4
        %s219 = smul.addr %s218, 4
        %s220 = scalar_lea.vmem %s1, %s219
      $region40: #{seg_qyl_forward.10} parent=31 // pred_fallthru
        _
    $region32: #{seg_qyl_forward.10} parent=5 // pred_fallthru
      _
    %p221 = scmp.le.s32.totalorder 1, %s12
    %p222 = scmp.lt.s32.totalorder %s12, 3
    %p223 = pnand %p221, %p222
    %p224 = pneg %p223
    // Predicated region
    $region41: #{seg_qyl_forward.10} parent=5 // pred_check
      _
    $region42: #{seg_qyl_forward.10} parent=5 // pred_check_branch
      %226 = sbr.rel (%p223) target = $region44
    $region43: #{seg_qyl_forward.10} parent=5 // pred_region
      %s227 = ssub.s32 %s12, 1
      %p228 = scmp.lt.s32.totalorder %s17, 1
      %s229 = scalar_select %p228, %s17, 1
      %s230 = smul.addr %s229, 2
      %s231 = smul.addr %s230, 4
      %s232 = scalar_lea.vmem %s0, %s231
      %p233 = pneg %p38
      %p234 = pneg %p35
      %p235 = scmp.lt.s32.totalorder %s17, 1
      %s236 = scalar_select %p235, %s17, 1
      %s237 = smul.addr %s236, 4
      %s238 = smul.addr %s237, 4
      %s239 = scalar_lea.vmem %s1, %s238
      %p240 = pneg %p64
      %p241 = pneg %p61
      %p242 = pneg %p85
      %p243 = pneg %p82
      %p244 = pneg %p106
      %p245 = pneg %p103
      %p246 = pneg %p127
      %p247 = pneg %p124
      %p248 = pneg %p148
      %p249 = pneg %p145
      %p250 = pneg %p174
      %p251 = pneg %p171
      %p252 = scmp.lt.s32.totalorder %s17, 1
      %s253 = scalar_select %p252, %s17, 1
      %s254 = smul.addr %s253, 2
      %s255 = smul.addr %s254, 4
      %s256 = scalar_lea.vmem %s6, %s255
      %p257 = scmp.lt.s32.totalorder %s17, 1
      %s258 = scalar_select %p257, %s17, 1
      %s259 = smul.addr %s258, 2
      %s260 = smul.addr %s259, 4
      %s261 = scalar_lea.vmem %s0, %s260
      %p262 = scmp.lt.s32.totalorder %s17, 1
      %s263 = scalar_select %p262, %s17, 1
      %s264 = smul.addr %s263, 4
      %s265 = smul.addr %s264, 4
      %s266 = scalar_lea.vmem %s1, %s265
      %p267 = scmp.lt.s32.totalorder %s17, 1
      %s268 = scalar_select %p267, %s17, 1
      %s269 = smul.addr %s268, 2
      %s270 = smul.addr %s269, 4
      %s271 = scalar_lea.vmem %s6, %s270
      %v273 = vlaneseq
      %v274 = vand.u32 %v273, 127
      %vm275 = vcmp.lt.s32.totalorder %v274, 0
      %v276 = vsub.s32 0, %v274
      %v277 = vsel %vm275, %v276, %v274
      %v278 = vshrl.u32 %v277, 3
      %v279 = vand.u32 %v277, 7
      %v280 = vsub.s32 0, %v279
      %v281 = vsel %vm275, %v280, %v279
      %vm282 = vcmp.ne.s32.totalorder %v281, 0
      %vm283 = vcmp.lt.s32.totalorder %v281, 0
      %vm284 = vmand %vm283, %vm282
      %v285 = vadd.s32 %v281, 8
      %v286 = vsel %vm284, %v285, %v281
      %vm287 = vcmp.gt.s32.totalorder %v286, 0
      %v288 = vsel %vm287, 1, 0
      %v289 = vcvt.s32.f32 %v288
      %v290 = vpack.c.bf16 %v289, %v289
      %vm291 = vcmp.lt.s32.totalorder %v286, 7
      %v292 = vsel %vm291, 1, 0
      %v293 = vcvt.s32.f32 %v292
      %v294 = vpack.c.bf16 %v293, %v293
      %vm295 = vcmask 68608
      %296 = vst.msk [vmem:[#allocation2] sm:$0xf] %vm295, 0
      %297 = vst.msk [vmem:[#allocation2 + $0x4] sm:$0xf] %vm295, 0
      %298 = vst.msk [vmem:[#allocation2 + $0x8] sm:$0xf] %vm295, 0
      %299 = vst.msk [vmem:[#allocation2 + $0xc] sm:$0xf] %vm295, 0
      %300 = vst.msk [vmem:[#allocation2 + $0x10] sm:$0xf] %vm295, 0
      %301 = vst.msk [vmem:[#allocation2 + $0x14] sm:$0xf] %vm295, 0
      %vm302 = vcmask 667208
      %303 = vst.msk [vmem:[#allocation2] sm:$0xf] %vm302, 0
      %304 = vst.msk [vmem:[#allocation2 + $0x4] sm:$0xf] %vm302, 0
      %305 = vst.msk [vmem:[#allocation2 + $0x8] sm:$0xf] %vm302, 0
      %306 = vst.msk [vmem:[#allocation2 + $0xc] sm:$0xf] %vm302, 0
      %307 = vst.msk [vmem:[#allocation2 + $0x10] sm:$0xf] %vm302, 0
      %308 = vst.msk [vmem:[#allocation2 + $0x14] sm:$0xf] %vm302, 0
      %309 = vst.msk [vmem:[#allocation3] sm:$0xf] %vm295, 0
      %310 = vst.msk [vmem:[#allocation3 + $0x4] sm:$0xf] %vm295, 0
      %311 = vst.msk [vmem:[#allocation3] sm:$0xf] %vm302, 0
      %312 = vst.msk [vmem:[#allocation3 + $0x4] sm:$0xf] %vm302, 0
      %v313 = vld [vmem:[%s261] sm:$0xf]
      %v314 = vld [vmem:[%s261 + $0x4] sm:$0xf]
      %317 = vrot.lane.b32.xlu0 %v313, 9
      %v318 = vpop.permute.xlu0 %317
      %319 = vrot.lane.b32.xlu0 %v314, 9
      %v320 = vpop.permute.xlu0 %319
      %vm323 = vcmask 592968
      %324 = vst.msk [vmem:[#allocation2] sm:$0xf] %vm323, %v318
      %325 = vst.msk [vmem:[#allocation2 + $0x4] sm:$0xf] %vm323, %v320
      %v326 = vld [vmem:[%s266] sm:$0xf]
      %v327 = vld [vmem:[%s266 + $0x4] sm:$0xf]
      %v328 = vld [vmem:[%s266 + $0x8] sm:$0xf]
      %v329 = vld [vmem:[%s266 + $0xc] sm:$0xf]
      %334 = vrot.lane.b32.xlu0 %v326, 9
      %v335 = vpop.permute.xlu0 %334
      %336 = vrot.lane.b32.xlu0 %v327, 9
      %v337 = vpop.permute.xlu0 %336
      %338 = vrot.lane.b32.xlu0 %v328, 9
      %v339 = vpop.permute.xlu0 %338
      %340 = vrot.lane.b32.xlu0 %v329, 9
      %v341 = vpop.permute.xlu0 %340
      %346 = vst.msk [vmem:[#allocation2 + $0x8] sm:$0xf] %vm323, %v335
      %347 = vst.msk [vmem:[#allocation2 + $0xc] sm:$0xf] %vm323, %v337
      %348 = vst.msk [vmem:[#allocation2 + $0x10] sm:$0xf] %vm323, %v339
      %349 = vst.msk [vmem:[#allocation2 + $0x14] sm:$0xf] %vm323, %v341
      %v350 = vld [vmem:[#allocation2] sm:$0xf]
      %v351 = vld [vmem:[#allocation2 + $0x4] sm:$0xf]
      %v352 = vld [vmem:[#allocation2 + $0x8] sm:$0xf]
      %v353 = vld [vmem:[#allocation2 + $0xc] sm:$0xf]
      %v354 = vld [vmem:[#allocation2 + $0x10] sm:$0xf]
      %v355 = vld [vmem:[#allocation2 + $0x14] sm:$0xf]
      %v357 = vunpack.c.l.b16 %v290
      %v358 = vpack.c.b16 %v357, %v357
      %v360 = vmul.bf16 %v350, %v358
      %v361 = vmul.bf16 %v351, %v358
      %v362 = vmul.bf16 %v352, %v358
      %v363 = vmul.bf16 %v353, %v358
      %v364 = vmul.bf16 %v354, %v358
      %v365 = vmul.bf16 %v355, %v358
      %v367 = vunpack.c.l.b16 %v294
      %v368 = vpack.c.b16 %v367, %v367
      %369 = vrot.lane.b32.xlu0 %v368, 2
      %v370 = vpop.permute.xlu0 %369
      %v372 = vmul.bf16 %v350, %v370
      %v373 = vmul.bf16 %v351, %v370
      %v374 = vmul.bf16 %v352, %v370
      %v375 = vmul.bf16 %v353, %v370
      %v376 = vmul.bf16 %v354, %v370
      %v377 = vmul.bf16 %v355, %v370
      %v384 = vunpack.c.l.b16 %v360
      %v385 = vunpack.c.l.b16 %v361
      %v386 = vunpack.c.l.b16 %v362
      %v387 = vunpack.c.l.b16 %v363
      %v388 = vunpack.c.l.b16 %v364
      %v389 = vunpack.c.l.b16 %v365
      %v390 = vpack.c.b16 %v385, %v384
      %v391 = vpack.c.b16 %v387, %v386
      %v392 = vpack.c.b16 %v389, %v388
      %v402 = vunpack.c.l.b16 %v350
      %v403 = vunpack.c.l.b16 %v351
      %v404 = vunpack.c.l.b16 %v352
      %v405 = vunpack.c.l.b16 %v353
      %v406 = vunpack.c.l.b16 %v354
      %v407 = vunpack.c.l.b16 %v355
      %v408 = vpack.c.b16 %v403, %v402
      %v409 = vpack.c.b16 %v405, %v404
      %v410 = vpack.c.b16 %v407, %v406
      %411 = vrot.lane.b32.xlu0 %v408, 127
      %v412 = vpop.permute.xlu0 %411
      %413 = vrot.lane.b32.xlu0 %v409, 127
      %v414 = vpop.permute.xlu0 %413
      %415 = vrot.lane.b32.xlu0 %v410, 127
      %v416 = vpop.permute.xlu0 %415
      %v426 = vunpack.c.l.b16 %v372
      %v427 = vunpack.c.l.b16 %v373
      %v428 = vunpack.c.l.b16 %v374
      %v429 = vunpack.c.l.b16 %v375
      %v430 = vunpack.c.l.b16 %v376
      %v431 = vunpack.c.l.b16 %v377
      %v432 = vpack.c.b16 %v427, %v426
      %v433 = vpack.c.b16 %v429, %v428
      %v434 = vpack.c.b16 %v431, %v430
      %435 = vrot.lane.b32.xlu0 %v432, 126
      %v436 = vpop.permute.xlu0 %435
      %437 = vrot.lane.b32.xlu0 %v433, 126
      %v438 = vpop.permute.xlu0 %437
      %439 = vrot.lane.b32.xlu0 %v434, 126
      %v440 = vpop.permute.xlu0 %439
      %v444 = vld [vmem:[%s2] sm:$0xff]
      %v445 = vld [vmem:[%s2 + $0x10] sm:$0xff]
      %446 = vrot.lane.b32.xlu0 %v358, 8
      %v447 = vpop.permute.xlu0 %446
      %v449 = vmul.bf16 %v350, %v447
      %v450 = vmul.bf16 %v351, %v447
      %v451 = vmul.bf16 %v352, %v447
      %v452 = vmul.bf16 %v353, %v447
      %v453 = vmul.bf16 %v354, %v447
      %v454 = vmul.bf16 %v355, %v447
      %455 = vrot.lane.b32.xlu0 %v368, 10
      %v456 = vpop.permute.xlu0 %455
      %v458 = vmul.bf16 %v350, %v456
      %v459 = vmul.bf16 %v351, %v456
      %v460 = vmul.bf16 %v352, %v456
      %v461 = vmul.bf16 %v353, %v456
      %v462 = vmul.bf16 %v354, %v456
      %v463 = vmul.bf16 %v355, %v456
      %v470 = vunpack.c.l.b16 %v449
      %v471 = vunpack.c.l.b16 %v450
      %v472 = vunpack.c.l.b16 %v451
      %v473 = vunpack.c.l.b16 %v452
      %v474 = vunpack.c.l.b16 %v453
      %v475 = vunpack.c.l.b16 %v454
      %v476 = vpack.c.b16 %v471, %v470
      %v477 = vpack.c.b16 %v473, %v472
      %v478 = vpack.c.b16 %v475, %v474
      %v485 = vunpack.c.l.b16 %v458
      %v486 = vunpack.c.l.b16 %v459
      %v487 = vunpack.c.l.b16 %v460
      %v488 = vunpack.c.l.b16 %v461
      %v489 = vunpack.c.l.b16 %v462
      %v490 = vunpack.c.l.b16 %v463
      %v491 = vpack.c.b16 %v486, %v485
      %v492 = vpack.c.b16 %v488, %v487
      %v493 = vpack.c.b16 %v490, %v489
      %494 = vrot.lane.b32.xlu0 %v491, 126
      %v495 = vpop.permute.xlu0 %494
      %496 = vrot.lane.b32.xlu0 %v492, 126
      %v497 = vpop.permute.xlu0 %496
      %498 = vrot.lane.b32.xlu0 %v493, 126
      %v499 = vpop.permute.xlu0 %498
      %v500 = vld [vmem:[%s2 + $0x4] sm:$0xff]
      %v501 = vld [vmem:[%s2 + $0x14] sm:$0xff]
      %v504 = vunpack.c.l.b16 %v500
      %v505 = vunpack.c.h.b16 %v500
      %v506 = vunpack.c.l.b16 %v501
      %v507 = vunpack.c.h.b16 %v501
      %v508 = vpack.c.b16 %v506, %v504
      %v509 = vpack.c.b16 %v507, %v505
      %510 = vrot.lane.b32.xlu0 %v508, 112
      %v511 = vpop.permute.xlu0 %510
      %512 = vrot.lane.b32.xlu0 %v509, 112
      %v513 = vpop.permute.xlu0 %512
      %vm514 = vcmask 916480
      %v515 = vsel %vm514, %v511, %v513
      %517 = vrot.lane.b32.xlu0 %v476, 120
      %v518 = vpop.permute.xlu0 %517
      %519 = vrot.lane.b32.xlu0 %v477, 120
      %v520 = vpop.permute.xlu0 %519
      %521 = vrot.lane.b32.xlu0 %v478, 120
      %v522 = vpop.permute.xlu0 %521
      %523 = vrot.lane.b32.xlu0 %v412, 120
      %v524 = vpop.permute.xlu0 %523
      %525 = vrot.lane.b32.xlu0 %v414, 120
      %v526 = vpop.permute.xlu0 %525
      %527 = vrot.lane.b32.xlu0 %v416, 120
      %v528 = vpop.permute.xlu0 %527
      %529 = vrot.lane.b32.xlu0 %v495, 120
      %v530 = vpop.permute.xlu0 %529
      %531 = vrot.lane.b32.xlu0 %v497, 120
      %v532 = vpop.permute.xlu0 %531
      %533 = vrot.lane.b32.xlu0 %v499, 120
      %v534 = vpop.permute.xlu0 %533
      %vm544 = vcmask 130048
      %v546 = vsel %vm544, %v513, 0
      %548 = vmatprep.subr.bf16.mxu0 0
      %549 = vmatpush1.bf16.msra.mxu0 %v532
      %550 = vmatprep.subr.bf16.mxu0 0
      %551 = vmatpush1.bf16.msra.mxu0 %v530
      %552 = vmatprep.subr.bf16.mxu0 0
      %553 = vmatpush1.bf16.msra.mxu0 %v528
      %554 = vmatprep.subr.bf16.mxu0 0
      %555 = vmatpush1.bf16.msra.mxu0 %v526
      %556 = vmatprep.subr.bf16.mxu0 0
      %557 = vmatpush1.bf16.msra.mxu0 %v524
      %558 = vmatprep.subr.bf16.mxu0 0
      %559 = vmatpush1.bf16.msra.mxu0 %v522
      %560 = vmatprep.subr.bf16.mxu0 0
      %561 = vmatpush1.bf16.msra.mxu0 %v520
      %562 = vmatprep.subr.bf16.mxu0 0
      %563 = vmatpush1.bf16.msra.mxu0 %v518
      %564 = vmatprep.subr.bf16.mxu0 0
      %565 = vmatpush2.bf16.msra.mxu0 0
      %566 = vmatprep.subr.bf16.mxu0 0
      %567 = vmatpush2.bf16.msra.mxu0 0
      %568 = vmatprep.subr.bf16.mxu0 0
      %569 = vmatpush2.bf16.msra.mxu0 0
      %570 = vmatprep.subr.bf16.mxu0 0
      %571 = vmatpush2.bf16.msra.mxu0 0
      %572 = vmatprep.subr.bf16.mxu0 0
      %573 = vmatpush2.bf16.msra.mxu0 0
      %574 = vmatprep.subr.bf16.mxu0 0
      %575 = vmatpush2.bf16.msra.mxu0 0
      %576 = vmatprep.subr.bf16.mxu0 0
      %577 = vmatpush2.bf16.msra.mxu0 0
      %578 = vmatprep.subr.bf16.mxu0 0
      %579 = vmatpush2.bf16.msra.mxu0 %v534
      %580 = vmatprep.mubr.bf16.mxu0 %v546
      %581 = vmatmul.mubr.bf16.gmra.mxu0 %v515
      %v582 = vpop.f32.mrf.mxu0
      %v583 = vadd.f32 0.0, %v582
      %v584 = vpop.f32.mrf.mxu0
      %v585 = vpop.f32.mrf.mxu0
      %v586 = vadd.f32 0.0, %v585
      %v587 = vpop.f32.mrf.mxu0
      %588 = vdwg.mxu0
      %v591 = vunpack.c.l.b16 %v444
      %v592 = vunpack.c.h.b16 %v444
      %v593 = vunpack.c.l.b16 %v445
      %v594 = vunpack.c.h.b16 %v445
      %v595 = vpack.c.b16 %v593, %v591
      %v596 = vpack.c.b16 %v594, %v592
      %v599 = vsel %vm544, %v596, 0
      %601 = vmatprep.subr.bf16.mxu0 0
      %602 = vmatpush1.bf16.msra.mxu0 %v438
      %603 = vmatprep.subr.bf16.mxu0 0
      %604 = vmatpush1.bf16.msra.mxu0 %v436
      %605 = vmatprep.subr.bf16.mxu0 0
      %606 = vmatpush1.bf16.msra.mxu0 %v416
      %607 = vmatprep.subr.bf16.mxu0 0
      %608 = vmatpush1.bf16.msra.mxu0 %v414
      %609 = vmatprep.subr.bf16.mxu0 0
      %610 = vmatpush1.bf16.msra.mxu0 %v412
      %611 = vmatprep.subr.bf16.mxu0 0
      %612 = vmatpush1.bf16.msra.mxu0 %v392
      %613 = vmatprep.subr.bf16.mxu0 0
      %614 = vmatpush1.bf16.msra.mxu0 %v391
      %615 = vmatprep.subr.bf16.mxu0 0
      %616 = vmatpush1.bf16.msra.mxu0 %v390
      %617 = vmatprep.subr.bf16.mxu0 0
      %618 = vmatpush2.bf16.msra.mxu0 0
      %619 = vmatprep.subr.bf16.mxu0 0
      %620 = vmatpush2.bf16.msra.mxu0 0
      %621 = vmatprep.subr.bf16.mxu0 0
      %622 = vmatpush2.bf16.msra.mxu0 0
      %623 = vmatprep.subr.bf16.mxu0 0
      %624 = vmatpush2.bf16.msra.mxu0 0
      %625 = vmatprep.subr.bf16.mxu0 0
      %626 = vmatpush2.bf16.msra.mxu0 0
      %627 = vmatprep.subr.bf16.mxu0 0
      %628 = vmatpush2.bf16.msra.mxu0 0
      %629 = vmatprep.subr.bf16.mxu0 0
      %630 = vmatpush2.bf16.msra.mxu0 0
      %631 = vmatprep.subr.bf16.mxu0 0
      %632 = vmatpush2.bf16.msra.mxu0 %v440
      %633 = vmatprep.mubr.bf16.mxu0 %v599
      %634 = vmatmul.mubr.bf16.gmra.mxu0 %v595
      %v635 = vpop.f32.mrf.mxu0
      %v636 = vadd.f32 %v583, %v635
      %v637 = vpop.f32.mrf.mxu0
      %v638 = vpop.f32.mrf.mxu0
      %v639 = vadd.f32 %v586, %v638
      %v640 = vpop.f32.mrf.mxu0
      %641 = vdwg.mxu0
      %642 = vrot.lane.b32.xlu0 %v358, 16
      %v643 = vpop.permute.xlu0 %642
      %v645 = vmul.bf16 %v350, %v643
      %v646 = vmul.bf16 %v351, %v643
      %v647 = vmul.bf16 %v352, %v643
      %v648 = vmul.bf16 %v353, %v643
      %v649 = vmul.bf16 %v354, %v643
      %v650 = vmul.bf16 %v355, %v643
      %651 = vrot.lane.b32.xlu0 %v368, 18
      %v652 = vpop.permute.xlu0 %651
      %v654 = vmul.bf16 %v350, %v652
      %v655 = vmul.bf16 %v351, %v652
      %v656 = vmul.bf16 %v352, %v652
      %v657 = vmul.bf16 %v353, %v652
      %v658 = vmul.bf16 %v354, %v652
      %v659 = vmul.bf16 %v355, %v652
      %v666 = vunpack.c.l.b16 %v645
      %v667 = vunpack.c.l.b16 %v646
      %v668 = vunpack.c.l.b16 %v647
      %v669 = vunpack.c.l.b16 %v648
      %v670 = vunpack.c.l.b16 %v649
      %v671 = vunpack.c.l.b16 %v650
      %v672 = vpack.c.b16 %v667, %v666
      %v673 = vpack.c.b16 %v669, %v668
      %v674 = vpack.c.b16 %v671, %v670
      %v681 = vunpack.c.l.b16 %v654
      %v682 = vunpack.c.l.b16 %v655
      %v683 = vunpack.c.l.b16 %v656
      %v684 = vunpack.c.l.b16 %v657
      %v685 = vunpack.c.l.b16 %v658
      %v686 = vunpack.c.l.b16 %v659
      %v687 = vpack.c.b16 %v682, %v681
      %v688 = vpack.c.b16 %v684, %v683
      %v689 = vpack.c.b16 %v686, %v685
      %690 = vrot.lane.b32.xlu0 %v687, 126
      %v691 = vpop.permute.xlu0 %690
      %692 = vrot.lane.b32.xlu0 %v688, 126
      %v693 = vpop.permute.xlu0 %692
      %694 = vrot.lane.b32.xlu0 %v689, 126
      %v695 = vpop.permute.xlu0 %694
      %v696 = vld [vmem:[%s2 + $0x8] sm:$0xff]
      %v697 = vld [vmem:[%s2 + $0x18] sm:$0xff]
      %v700 = vunpack.c.l.b16 %v696
      %v701 = vunpack.c.h.b16 %v696
      %v702 = vunpack.c.l.b16 %v697
      %v703 = vunpack.c.h.b16 %v697
      %v704 = vpack.c.b16 %v702, %v700
      %v705 = vpack.c.b16 %v703, %v701
      %706 = vrot.lane.b32.xlu0 %v704, 96
      %v707 = vpop.permute.xlu0 %706
      %708 = vrot.lane.b32.xlu0 %v705, 96
      %v709 = vpop.permute.xlu0 %708
      %vm710 = vcmask 785408
      %v711 = vsel %vm710, %v707, %v709
      %713 = vrot.lane.b32.xlu0 %v672, 112
      %v714 = vpop.permute.xlu0 %713
      %715 = vrot.lane.b32.xlu0 %v673, 112
      %v716 = vpop.permute.xlu0 %715
      %717 = vrot.lane.b32.xlu0 %v674, 112
      %v718 = vpop.permute.xlu0 %717
      %719 = vrot.lane.b32.xlu0 %v412, 112
      %v720 = vpop.permute.xlu0 %719
      %721 = vrot.lane.b32.xlu0 %v414, 112
      %v722 = vpop.permute.xlu0 %721
      %723 = vrot.lane.b32.xlu0 %v416, 112
      %v724 = vpop.permute.xlu0 %723
      %725 = vrot.lane.b32.xlu0 %v691, 112
      %v726 = vpop.permute.xlu0 %725
      %727 = vrot.lane.b32.xlu0 %v693, 112
      %v728 = vpop.permute.xlu0 %727
      %729 = vrot.lane.b32.xlu0 %v695, 112
      %v730 = vpop.permute.xlu0 %729
      %v741 = vsel %vm544, %v709, 0
      %743 = vmatprep.subr.bf16.mxu0 0
      %744 = vmatpush1.bf16.msra.mxu0 %v728
      %745 = vmatprep.subr.bf16.mxu0 0
      %746 = vmatpush1.bf16.msra.mxu0 %v726
      %747 = vmatprep.subr.bf16.mxu0 0
      %748 = vmatpush1.bf16.msra.mxu0 %v724
      %749 = vmatprep.subr.bf16.mxu0 0
      %750 = vmatpush1.bf16.msra.mxu0 %v722
      %751 = vmatprep.subr.bf16.mxu0 0
      %752 = vmatpush1.bf16.msra.mxu0 %v720
      %753 = vmatprep.subr.bf16.mxu0 0
      %754 = vmatpush1.bf16.msra.mxu0 %v718
      %755 = vmatprep.subr.bf16.mxu0 0
      %756 = vmatpush1.bf16.msra.mxu0 %v716
      %757 = vmatprep.subr.bf16.mxu0 0
      %758 = vmatpush1.bf16.msra.mxu0 %v714
      %759 = vmatprep.subr.bf16.mxu0 0
      %760 = vmatpush2.bf16.msra.mxu0 0
      %761 = vmatprep.subr.bf16.mxu0 0
      %762 = vmatpush2.bf16.msra.mxu0 0
      %763 = vmatprep.subr.bf16.mxu0 0
      %764 = vmatpush2.bf16.msra.mxu0 0
      %765 = vmatprep.subr.bf16.mxu0 0
      %766 = vmatpush2.bf16.msra.mxu0 0
      %767 = vmatprep.subr.bf16.mxu0 0
      %768 = vmatpush2.bf16.msra.mxu0 0
      %769 = vmatprep.subr.bf16.mxu0 0
      %770 = vmatpush2.bf16.msra.mxu0 0
      %771 = vmatprep.subr.bf16.mxu0 0
      %772 = vmatpush2.bf16.msra.mxu0 0
      %773 = vmatprep.subr.bf16.mxu0 0
      %774 = vmatpush2.bf16.msra.mxu0 %v730
      %775 = vmatprep.mubr.bf16.mxu0 %v741
      %776 = vmatmul.mubr.bf16.gmra.mxu0 %v711
      %v777 = vpop.f32.mrf.mxu0
      %v778 = vadd.f32 0.0, %v777
      %v779 = vpop.f32.mrf.mxu0
      %v780 = vpop.f32.mrf.mxu0
      %v781 = vadd.f32 0.0, %v780
      %v782 = vpop.f32.mrf.mxu0
      %783 = vdwg.mxu0
      %v784 = vadd.f32 %v636, %v778
      %v785 = vadd.f32 %v639, %v781
      %v786 = vld [vmem:[%s3] sm:$0xff]
      %v787 = vld [vmem:[%s3 + $0x8] sm:$0xff]
      %789 = vset.pattern.permute.xlu0 0
      %790 = vperm.xlu0 %789, %v786
      %v791 = vpop.permute.xlu0 %790
      %794 = vset.pattern.permute.xlu0 0
      %795 = vperm.xlu0 %794, %v787
      %v796 = vpop.permute.xlu0 %795
      %v798 = vadd.f32 %v784, %v791
      %v799 = vadd.f32 %v785, %v796
      %v800 = vmax.f32 %v798, 0.0
      %v801 = vmax.f32 %v799, 0.0
      %v802 = vpack.c.bf16 %v801, %v800
      %v804 = vunpack.c.l.b16 %v802
      %v805 = vunpack.c.h.b16 %v802
      %v806 = vpack.c.b16 %v804, %v804
      %v807 = vpack.c.b16 %v805, %v805
      %808 = vrot.lane.b32.xlu0 %v806, 9
      %v809 = vpop.permute.xlu0 %808
      %810 = vrot.lane.b32.xlu0 %v807, 9
      %v811 = vpop.permute.xlu0 %810
      %814 = vst.msk [vmem:[#allocation3] sm:$0xf] %vm323, %v809
      %815 = vst.msk [vmem:[#allocation3 + $0x4] sm:$0xf] %vm323, %v811
      %v816 = vld [vmem:[#allocation3] sm:$0xf]
      %v817 = vld [vmem:[#allocation3 + $0x4] sm:$0xf]
      %v818 = vmul.bf16 %v816, %v358
      %v819 = vmul.bf16 %v817, %v358
      %v820 = vmul.bf16 %v816, %v370
      %v821 = vmul.bf16 %v817, %v370
      %v824 = vunpack.c.l.b16 %v818
      %v825 = vunpack.c.l.b16 %v819
      %v826 = vpack.c.b16 %v825, %v824
      %v830 = vunpack.c.l.b16 %v816
      %v831 = vunpack.c.l.b16 %v817
      %v832 = vpack.c.b16 %v831, %v830
      %833 = vrot.lane.b32.xlu0 %v832, 127
      %v834 = vpop.permute.xlu0 %833
      %v838 = vunpack.c.l.b16 %v820
      %v839 = vunpack.c.l.b16 %v821
      %v840 = vpack.c.b16 %v839, %v838
      %841 = vrot.lane.b32.xlu0 %v840, 126
      %v842 = vpop.permute.xlu0 %841
      %v844 = vld [vmem:[%s4] sm:$0xf]
      %v845 = vld [vmem:[%s4 + $0x8] sm:$0xf]
      %v846 = vmul.bf16 %v816, %v447
      %v847 = vmul.bf16 %v817, %v447
      %v848 = vmul.bf16 %v816, %v456
      %v849 = vmul.bf16 %v817, %v456
      %v852 = vunpack.c.l.b16 %v846
      %v853 = vunpack.c.l.b16 %v847
      %v854 = vpack.c.b16 %v853, %v852
      %v857 = vunpack.c.l.b16 %v848
      %v858 = vunpack.c.l.b16 %v849
      %v859 = vpack.c.b16 %v858, %v857
      %860 = vrot.lane.b32.xlu0 %v859, 126
      %v861 = vpop.permute.xlu0 %860
      %v864 = vunpack.c.l.b16 %v844
      %v865 = vunpack.c.l.b16 %v845
      %v866 = vpack.c.b16 %v865, %v864
      %867 = vrot.lane.b32.xlu0 %v866, 80
      %v868 = vpop.permute.xlu0 %867
      %869 = vrot.lane.b32.xlu0 %v854, 120
      %v870 = vpop.permute.xlu0 %869
      %871 = vrot.lane.b32.xlu0 %v834, 120
      %v872 = vpop.permute.xlu0 %871
      %873 = vrot.lane.b32.xlu0 %v861, 120
      %v874 = vpop.permute.xlu0 %873
      %vm878 = vcmask 392192
      %v880 = vsel %vm878, %v868, 0
      %882 = vmatprep.subr.bf16.mxu0 0
      %883 = vmatpush1.bf16.msra.mxu0 0
      %884 = vmatprep.subr.bf16.mxu0 0
      %885 = vmatpush1.bf16.msra.mxu0 0
      %886 = vmatprep.subr.bf16.mxu0 0
      %887 = vmatpush1.bf16.msra.mxu0 0
      %888 = vmatprep.subr.bf16.mxu0 0
      %889 = vmatpush1.bf16.msra.mxu0 0
      %890 = vmatprep.subr.bf16.mxu0 0
      %891 = vmatpush1.bf16.msra.mxu0 0
      %892 = vmatprep.subr.bf16.mxu0 0
      %893 = vmatpush1.bf16.msra.mxu0 %v874
      %894 = vmatprep.subr.bf16.mxu0 0
      %895 = vmatpush1.bf16.msra.mxu0 %v872
      %896 = vmatprep.subr.bf16.mxu0 0
      %897 = vmatpush1.bf16.msra.mxu0 %v870
      %898 = vmatprep.subr.bf16.mxu0 0
      %899 = vmatpush2.bf16.msra.mxu0 0
      %900 = vmatprep.subr.bf16.mxu0 0
      %901 = vmatpush2.bf16.msra.mxu0 0
      %902 = vmatprep.subr.bf16.mxu0 0
      %903 = vmatpush2.bf16.msra.mxu0 0
      %904 = vmatprep.subr.bf16.mxu0 0
      %905 = vmatpush2.bf16.msra.mxu0 0
      %906 = vmatprep.subr.bf16.mxu0 0
      %907 = vmatpush2.bf16.msra.mxu0 0
      %908 = vmatprep.subr.bf16.mxu0 0
      %909 = vmatpush2.bf16.msra.mxu0 0
      %910 = vmatprep.subr.bf16.mxu0 0
      %911 = vmatpush2.bf16.msra.mxu0 0
      %912 = vmatprep.subr.bf16.mxu0 0
      %913 = vmatpush2.bf16.msra.mxu0 0
      %914 = vmatprep.mubr.bf16.mxu0 0
      %915 = vmatmul.mubr.bf16.gmra.mxu0 %v880
      %v916 = vpop.f32.mrf.mxu0
      %v917 = vadd.f32 0.0, %v916
      %v918 = vpop.f32.mrf.mxu0
      %v919 = vpop.f32.mrf.mxu0
      %v920 = vadd.f32 0.0, %v919
      %v921 = vpop.f32.mrf.mxu0
      %922 = vdwg.mxu0
      %v924 = vsel %vm878, %v866, 0
      %926 = vmatprep.subr.bf16.mxu0 0
      %927 = vmatpush1.bf16.msra.mxu0 0
      %928 = vmatprep.subr.bf16.mxu0 0
      %929 = vmatpush1.bf16.msra.mxu0 0
      %930 = vmatprep.subr.bf16.mxu0 0
      %931 = vmatpush1.bf16.msra.mxu0 0
      %932 = vmatprep.subr.bf16.mxu0 0
      %933 = vmatpush1.bf16.msra.mxu0 0
      %934 = vmatprep.subr.bf16.mxu0 0
      %935 = vmatpush1.bf16.msra.mxu0 0
      %936 = vmatprep.subr.bf16.mxu0 0
      %937 = vmatpush1.bf16.msra.mxu0 %v842
      %938 = vmatprep.subr.bf16.mxu0 0
      %939 = vmatpush1.bf16.msra.mxu0 %v834
      %940 = vmatprep.subr.bf16.mxu0 0
      %941 = vmatpush1.bf16.msra.mxu0 %v826
      %942 = vmatprep.subr.bf16.mxu0 0
      %943 = vmatpush2.bf16.msra.mxu0 0
      %944 = vmatprep.subr.bf16.mxu0 0
      %945 = vmatpush2.bf16.msra.mxu0 0
      %946 = vmatprep.subr.bf16.mxu0 0
      %947 = vmatpush2.bf16.msra.mxu0 0
      %948 = vmatprep.subr.bf16.mxu0 0
      %949 = vmatpush2.bf16.msra.mxu0 0
      %950 = vmatprep.subr.bf16.mxu0 0
      %951 = vmatpush2.bf16.msra.mxu0 0
      %952 = vmatprep.subr.bf16.mxu0 0
      %953 = vmatpush2.bf16.msra.mxu0 0
      %954 = vmatprep.subr.bf16.mxu0 0
      %955 = vmatpush2.bf16.msra.mxu0 0
      %956 = vmatprep.subr.bf16.mxu0 0
      %957 = vmatpush2.bf16.msra.mxu0 0
      %958 = vmatprep.mubr.bf16.mxu0 0
      %959 = vmatmul.mubr.bf16.gmra.mxu0 %v924
      %v960 = vpop.f32.mrf.mxu0
      %v961 = vadd.f32 %v917, %v960
      %v962 = vpop.f32.mrf.mxu0
      %v963 = vpop.f32.mrf.mxu0
      %v964 = vadd.f32 %v920, %v963
      %v965 = vpop.f32.mrf.mxu0
      %966 = vdwg.mxu0
      %v967 = vmul.bf16 %v816, %v643
      %v968 = vmul.bf16 %v817, %v643
      %v969 = vmul.bf16 %v816, %v652
      %v970 = vmul.bf16 %v817, %v652
      %v973 = vunpack.c.l.b16 %v967
      %v974 = vunpack.c.l.b16 %v968
      %v975 = vpack.c.b16 %v974, %v973
      %v978 = vunpack.c.l.b16 %v969
      %v979 = vunpack.c.l.b16 %v970
      %v980 = vpack.c.b16 %v979, %v978
      %981 = vrot.lane.b32.xlu0 %v980, 126
      %v982 = vpop.permute.xlu0 %981
      %v983 = vld [vmem:[%s4] sm:$0xff]
      %v984 = vld [vmem:[%s4 + $0x8] sm:$0xff]
      %v987 = vunpack.c.l.b16 %v983
      %v988 = vunpack.c.h.b16 %v983
      %v989 = vunpack.c.l.b16 %v984
      %v990 = vunpack.c.h.b16 %v984
      %v991 = vpack.c.b16 %v989, %v987
      %v992 = vpack.c.b16 %v990, %v988
      %993 = vrot.lane.b32.xlu0 %v991, 32
      %v994 = vpop.permute.xlu0 %993
      %995 = vrot.lane.b32.xlu0 %v992, 32
      %v996 = vpop.permute.xlu0 %995
      %vm997 = vcmask 261120
      %v998 = vsel %vm997, %v994, %v996
      %999 = vrot.lane.b32.xlu0 %v975, 112
      %v1000 = vpop.permute.xlu0 %999
      %1001 = vrot.lane.b32.xlu0 %v834, 112
      %v1002 = vpop.permute.xlu0 %1001
      %1003 = vrot.lane.b32.xlu0 %v982, 112
      %v1004 = vpop.permute.xlu0 %1003
      %v1009 = vsel %vm878, %v998, 0
      %1011 = vmatprep.subr.bf16.mxu0 0
      %1012 = vmatpush1.bf16.msra.mxu0 0
      %1013 = vmatprep.subr.bf16.mxu0 0
      %1014 = vmatpush1.bf16.msra.mxu0 0
      %1015 = vmatprep.subr.bf16.mxu0 0
      %1016 = vmatpush1.bf16.msra.mxu0 0
      %1017 = vmatprep.subr.bf16.mxu0 0
      %1018 = vmatpush1.bf16.msra.mxu0 0
      %1019 = vmatprep.subr.bf16.mxu0 0
      %1020 = vmatpush1.bf16.msra.mxu0 0
      %1021 = vmatprep.subr.bf16.mxu0 0
      %1022 = vmatpush1.bf16.msra.mxu0 %v1004
      %1023 = vmatprep.subr.bf16.mxu0 0
      %1024 = vmatpush1.bf16.msra.mxu0 %v1002
      %1025 = vmatprep.subr.bf16.mxu0 0
      %1026 = vmatpush1.bf16.msra.mxu0 %v1000
      %1027 = vmatprep.subr.bf16.mxu0 0
      %1028 = vmatpush2.bf16.msra.mxu0 0
      %1029 = vmatprep.subr.bf16.mxu0 0
      %1030 = vmatpush2.bf16.msra.mxu0 0
      %1031 = vmatprep.subr.bf16.mxu0 0
      %1032 = vmatpush2.bf16.msra.mxu0 0
      %1033 = vmatprep.subr.bf16.mxu0 0
      %1034 = vmatpush2.bf16.msra.mxu0 0
      %1035 = vmatprep.subr.bf16.mxu0 0
      %1036 = vmatpush2.bf16.msra.mxu0 0
      %1037 = vmatprep.subr.bf16.mxu0 0
      %1038 = vmatpush2.bf16.msra.mxu0 0
      %1039 = vmatprep.subr.bf16.mxu0 0
      %1040 = vmatpush2.bf16.msra.mxu0 0
      %1041 = vmatprep.subr.bf16.mxu0 0
      %1042 = vmatpush2.bf16.msra.mxu0 0
      %1043 = vmatprep.mubr.bf16.mxu0 0
      %1044 = vmatmul.mubr.bf16.gmra.mxu0 %v1009
      %v1045 = vpop.f32.mrf.mxu0
      %v1046 = vadd.f32 0.0, %v1045
      %v1047 = vpop.f32.mrf.mxu0
      %v1048 = vpop.f32.mrf.mxu0
      %v1049 = vadd.f32 0.0, %v1048
      %v1050 = vpop.f32.mrf.mxu0
      %1051 = vdwg.mxu0
      %v1052 = vadd.f32 %v961, %v1046
      %v1053 = vadd.f32 %v964, %v1049
      %v1054 = vld [vmem:[%s5] sm:$0xff]
      %v1055 = vld [vmem:[%s5 + $0x8] sm:$0xff]
      %1057 = vset.pattern.permute.xlu0 0
      %1058 = vperm.xlu0 %1057, %v1054
      %v1059 = vpop.permute.xlu0 %1058
      %1062 = vset.pattern.permute.xlu0 0
      %1063 = vperm.xlu0 %1062, %v1055
      %v1064 = vpop.permute.xlu0 %1063
      %v1066 = vadd.f32 %v1052, %v1059
      %v1067 = vadd.f32 %v1053, %v1064
      %v1068 = vmax.f32 %v1066, 0.0
      %v1069 = vmax.f32 %v1067, 0.0
      %v1070 = vpack.c.bf16 %v1069, %v1068
      %v1072 = vunpack.c.l.b16 %v1070
      %v1073 = vunpack.c.h.b16 %v1070
      %v1074 = vpack.c.b16 %v1072, %v1072
      %v1075 = vpack.c.b16 %v1073, %v1073
      %vm1078 = vcmask 519168
      %1079 = vst.msk [vmem:[%s271] sm:$0xf] %vm1078, %v1074
      %1080 = vst.msk [vmem:[%s271 + $0x4] sm:$0xf] %vm1078, %v1075
      %p1081 = scmp.lt.s32.totalorder %s17, 1
      %s1082 = scalar_select %p1081, %s17, 1
      %s1083 = smul.addr %s1082, 2
      %s1084 = smul.addr %s1083, 4
      %s1085 = scalar_lea.vmem %s6, %s1084
      // Predicated region
      $region45: #{seg_qyl_forward.10} parent=43 // pred_check
        %p1086 = pneg %p171
      $region46: #{seg_qyl_forward.10} parent=43 // pred_check_branch
        %1088 = sbr.rel (%p1086) target = $region48
      $region47: #{seg_qyl_forward.10} parent=43 // pred_region
        _
      $region48: #{seg_qyl_forward.10} parent=43 // pred_fallthru
        _
    $region44: #{seg_qyl_forward.10} parent=5 // pred_fallthru
      _
    %p1089 = scmp.le.s32.totalorder 2, %s12
    // Predicated region
    $region49: #{seg_qyl_forward.10} parent=5 // pred_check
      %p1090 = pneg %p1089
    $region50: #{seg_qyl_forward.10} parent=5 // pred_check_branch
      %1092 = sbr.rel (%p1090) target = $region52
    $region51: #{seg_qyl_forward.10} parent=5 // pred_region
      %s1093 = ssub.s32 %s12, 2
      // Predicated region
      $region53: #{seg_qyl_forward.10} parent=51 // pred_check
        %p1094 = pneg %p177
      $region54: #{seg_qyl_forward.10} parent=51 // pred_check_branch
        %1096 = sbr.rel (%p1094) target = $region56
      $region55: #{seg_qyl_forward.10} parent=51 // pred_region
        %p1097 = scmp.lt.s32.totalorder %s18, 1
        %s1098 = scalar_select %p1097, %s18, 1
        %s1099 = smul.addr %s1098, 2
        %s1100 = smul.addr %s1099, 4
        %s1101 = scalar_lea.vmem %s6, %s1100
      $region56: #{seg_qyl_forward.10} parent=51 // pred_fallthru
        _
    $region52: #{seg_qyl_forward.10} parent=5 // pred_fallthru
      _
  $region6: #{seg_qyl_forward.10} parent=0 // loop_footer
    %s16 = sadd.s32 1, %s12
  $region7: #{seg_qyl_forward.10} parent=0 // loop_footer_branch
    %11 = sbr.rel target = $region3
  $region8: #{seg_qyl_forward.10} parent=0 // loop_exit
    _

// kernel: seg_qyl_forward.11
$region0: #{seg_qyl_forward.11}
  #allocation0 [shape = 'u32[]', space=smem, size = 0x4, offset = 0x4, fixed_abs, tag = 'smem constant byte address 0x4 - core index']
  #allocation1 [shape = 'u32[144,128]{1,0:T(1,128)}', space=vmem, size = 0x12000, scoped, tag = 'internal scratch']
  #allocation2 [shape = 'bf16[32,290]{1,0:T(8,128)(2,1)}', space=vmem, size = 0x6000, scoped, tag = 'scratch operand']
  #allocation3 [shape = 'bf16[8,290]{1,0:T(8,128)(2,1)}', space=vmem, size = 0x1800, scoped, tag = 'scratch operand']
  %s0 = inlined_call_operand.vmem [shape: bf16[2,8,256], index: 0, kind: input, shape index: {}]
  %s1 = inlined_call_operand.vmem [shape: bf16[2,8,256], index: 1, kind: input, shape index: {}]
  %s2 = inlined_call_operand.vmem [shape: bf16[2,16,256], index: 2, kind: input, shape index: {}]
  %s3 = inlined_call_operand.vmem [shape: bf16[8,288], index: 3, kind: input, shape index: {}]
  %s4 = inlined_call_operand.vmem [shape: f32[8,1], index: 4, kind: input, shape index: {}]
  %s5 = inlined_call_operand.vmem [shape: bf16[8,72], index: 5, kind: input, shape index: {}]
  %s6 = inlined_call_operand.vmem [shape: f32[8,1], index: 6, kind: input, shape index: {}]
  %s7 = inlined_call_operand.vmem [shape: bf16[4,8], index: 7, kind: input, shape index: {}]
  %s8 = inlined_call_operand.vmem [shape: f32[4,1], index: 8, kind: input, shape index: {}]
  %s9 = inlined_call_operand.vmem [shape: bf16[2,4,256], index: 9, kind: output, shape index: {}]
  %s10 = sld [smem:[#allocation0]]
  $region69: #{seg_qyl_forward.11} parent=0
    _
  %s12 = ssub.s32 1, %s10
  %s13 = scalar_select 0, %s12, %s10
  loop: start=0, step=1, limit=4
  $region2: #{seg_qyl_forward.11} parent=0 // loop_pre_header
    _
  $region3: #{seg_qyl_forward.11} parent=0 // loop_header
    %s15 = sphi 0, %s19
    %p16 = scmp.ge.s32.totalorder %s15, 4
    %s25 = sphi 0, %s27
    %s28 = sphi 0, %s25
    %s29 = sphi 0, %s28
    %s45 = sphi 0, %s29
    %s51 = sphi 0, %s53
    %s54 = sphi 0, %s51
    %s55 = sphi 0, %s54
    %s71 = sphi 0, %s55
    %s77 = sphi 0, %s79
    %s80 = sphi 0, %s77
    %s81 = sphi 0, %s80
    %s97 = sphi 0, %s81
    %s101 = sphi 0, %s101
    %s103 = sphi 0, %s101
    %s104 = sphi 0, %s103
    %s118 = sphi 0, %s104
    %s122 = sphi 0, %s122
    %s124 = sphi 0, %s122
    %s125 = sphi 0, %s124
    %s139 = sphi 0, %s125
    %s143 = sphi 0, %s143
    %s145 = sphi 0, %s143
    %s146 = sphi 0, %s145
    %s160 = sphi 0, %s146
    %s164 = sphi 0, %s164
    %s166 = sphi 0, %s164
    %s167 = sphi 0, %s166
    %s181 = sphi 0, %s167
    %s185 = sphi 0, %s185
    %s187 = sphi 0, %s185
    %s188 = sphi 0, %s187
    %s202 = sphi 0, %s188
    %s206 = sphi 0, %s206
    %s208 = sphi 0, %s206
    %s209 = sphi 0, %s208
    %s223 = sphi 0, %s209
    %s229 = sphi 0, %s231
    %s232 = sphi 0, %s229
    %s233 = sphi 0, %s232
    %s249 = sphi 0, %s233
  $region4: #{seg_qyl_forward.11} parent=0 // loop_header_branch
    %18 = sbr.rel (%p16) target = $region8
  $region5: #{seg_qyl_forward.11} parent=0 // loop_body
    %s20 = ssub.s32 %s15, 1
    %s21 = ssub.s32 %s15, 2
    %s22 = sadd.s32 %s15, 1
    %s23 = ssub.s32 %s15, %s22
    %p24 = scmp.eq.s32.totalorder %s23, 0
    %s26 = sadd.s32 %s25, 1
    %s27 = scalar_select %p24, %s25, %s26
    %p30 = pneg %p24
    %p31 = scmp.eq.s32.totalorder %s15, 1
    %p32 = por %p30, %p31
    %p33 = scmp.ne.s32.totalorder %s25, %s28
    %p34 = scmp.eq.s32.totalorder %s15, 0
    %p35 = por %p33, %p34
    %p36 = scmp.ne.s32.totalorder %s25, %s28
    %p37 = scmp.eq.s32.totalorder %s20, 1
    %p38 = por %p36, %p37
    %p39 = scmp.ne.s32.totalorder %s28, %s29
    %p40 = scmp.eq.s32.totalorder %s20, 0
    %p41 = por %p39, %p40
    %p42 = scmp.ne.s32.totalorder %s28, %s29
    %p43 = scmp.eq.s32.totalorder %s21, 1
    %p44 = por %p42, %p43
    %p46 = scmp.ne.s32.totalorder %s29, %s45
    %p47 = scmp.eq.s32.totalorder %s21, 0
    %p48 = por %p46, %p47
    %s49 = ssub.s32 %s15, %s22
    %p50 = scmp.eq.s32.totalorder %s49, 0
    %s52 = sadd.s32 %s51, 1
    %s53 = scalar_select %p50, %s51, %s52
    %p56 = pneg %p50
    %p57 = scmp.eq.s32.totalorder %s15, 1
    %p58 = por %p56, %p57
    %p59 = scmp.ne.s32.totalorder %s51, %s54
    %p60 = scmp.eq.s32.totalorder %s15, 0
    %p61 = por %p59, %p60
    %p62 = scmp.ne.s32.totalorder %s51, %s54
    %p63 = scmp.eq.s32.totalorder %s20, 1
    %p64 = por %p62, %p63
    %p65 = scmp.ne.s32.totalorder %s54, %s55
    %p66 = scmp.eq.s32.totalorder %s20, 0
    %p67 = por %p65, %p66
    %p68 = scmp.ne.s32.totalorder %s54, %s55
    %p69 = scmp.eq.s32.totalorder %s21, 1
    %p70 = por %p68, %p69
    %p72 = scmp.ne.s32.totalorder %s55, %s71
    %p73 = scmp.eq.s32.totalorder %s21, 0
    %p74 = por %p72, %p73
    %s75 = ssub.s32 %s15, %s22
    %p76 = scmp.eq.s32.totalorder %s75, 0
    %s78 = sadd.s32 %s77, 1
    %s79 = scalar_select %p76, %s77, %s78
    %p82 = pneg %p76
    %p83 = scmp.eq.s32.totalorder %s15, 1
    %p84 = por %p82, %p83
    %p85 = scmp.ne.s32.totalorder %s77, %s80
    %p86 = scmp.eq.s32.totalorder %s15, 0
    %p87 = por %p85, %p86
    %p88 = scmp.ne.s32.totalorder %s77, %s80
    %p89 = scmp.eq.s32.totalorder %s20, 1
    %p90 = por %p88, %p89
    %p91 = scmp.ne.s32.totalorder %s80, %s81
    %p92 = scmp.eq.s32.totalorder %s20, 0
    %p93 = por %p91, %p92
    %p94 = scmp.ne.s32.totalorder %s80, %s81
    %p95 = scmp.eq.s32.totalorder %s21, 1
    %p96 = por %p94, %p95
    %p98 = scmp.ne.s32.totalorder %s81, %s97
    %p99 = scmp.eq.s32.totalorder %s21, 0
    %p100 = por %p98, %p99
    %s102 = sadd.s32 %s101, 1
    %p105 = scmp.eq.s32.totalorder %s15, 1
    %p106 = scmp.ne.s32.totalorder %s101, %s103
    %p107 = scmp.eq.s32.totalorder %s15, 0
    %p108 = por %p106, %p107
    %p109 = scmp.ne.s32.totalorder %s101, %s103
    %p110 = scmp.eq.s32.totalorder %s20, 1
    %p111 = por %p109, %p110
    %p112 = scmp.ne.s32.totalorder %s103, %s104
    %p113 = scmp.eq.s32.totalorder %s20, 0
    %p114 = por %p112, %p113
    %p115 = scmp.ne.s32.totalorder %s103, %s104
    %p116 = scmp.eq.s32.totalorder %s21, 1
    %p117 = por %p115, %p116
    %p119 = scmp.ne.s32.totalorder %s104, %s118
    %p120 = scmp.eq.s32.totalorder %s21, 0
    %p121 = por %p119, %p120
    %s123 = sadd.s32 %s122, 1
    %p126 = scmp.eq.s32.totalorder %s15, 1
    %p127 = scmp.ne.s32.totalorder %s122, %s124
    %p128 = scmp.eq.s32.totalorder %s15, 0
    %p129 = por %p127, %p128
    %p130 = scmp.ne.s32.totalorder %s122, %s124
    %p131 = scmp.eq.s32.totalorder %s20, 1
    %p132 = por %p130, %p131
    %p133 = scmp.ne.s32.totalorder %s124, %s125
    %p134 = scmp.eq.s32.totalorder %s20, 0
    %p135 = por %p133, %p134
    %p136 = scmp.ne.s32.totalorder %s124, %s125
    %p137 = scmp.eq.s32.totalorder %s21, 1
    %p138 = por %p136, %p137
    %p140 = scmp.ne.s32.totalorder %s125, %s139
    %p141 = scmp.eq.s32.totalorder %s21, 0
    %p142 = por %p140, %p141
    %s144 = sadd.s32 %s143, 1
    %p147 = scmp.eq.s32.totalorder %s15, 1
    %p148 = scmp.ne.s32.totalorder %s143, %s145
    %p149 = scmp.eq.s32.totalorder %s15, 0
    %p150 = por %p148, %p149
    %p151 = scmp.ne.s32.totalorder %s143, %s145
    %p152 = scmp.eq.s32.totalorder %s20, 1
    %p153 = por %p151, %p152
    %p154 = scmp.ne.s32.totalorder %s145, %s146
    %p155 = scmp.eq.s32.totalorder %s20, 0
    %p156 = por %p154, %p155
    %p157 = scmp.ne.s32.totalorder %s145, %s146
    %p158 = scmp.eq.s32.totalorder %s21, 1
    %p159 = por %p157, %p158
    %p161 = scmp.ne.s32.totalorder %s146, %s160
    %p162 = scmp.eq.s32.totalorder %s21, 0
    %p163 = por %p161, %p162
    %s165 = sadd.s32 %s164, 1
    %p168 = scmp.eq.s32.totalorder %s15, 1
    %p169 = scmp.ne.s32.totalorder %s164, %s166
    %p170 = scmp.eq.s32.totalorder %s15, 0
    %p171 = por %p169, %p170
    %p172 = scmp.ne.s32.totalorder %s164, %s166
    %p173 = scmp.eq.s32.totalorder %s20, 1
    %p174 = por %p172, %p173
    %p175 = scmp.ne.s32.totalorder %s166, %s167
    %p176 = scmp.eq.s32.totalorder %s20, 0
    %p177 = por %p175, %p176
    %p178 = scmp.ne.s32.totalorder %s166, %s167
    %p179 = scmp.eq.s32.totalorder %s21, 1
    %p180 = por %p178, %p179
    %p182 = scmp.ne.s32.totalorder %s167, %s181
    %p183 = scmp.eq.s32.totalorder %s21, 0
    %p184 = por %p182, %p183
    %s186 = sadd.s32 %s185, 1
    %p189 = scmp.eq.s32.totalorder %s15, 1
    %p190 = scmp.ne.s32.totalorder %s185, %s187
    %p191 = scmp.eq.s32.totalorder %s15, 0
    %p192 = por %p190, %p191
    %p193 = scmp.ne.s32.totalorder %s185, %s187
    %p194 = scmp.eq.s32.totalorder %s20, 1
    %p195 = por %p193, %p194
    %p196 = scmp.ne.s32.totalorder %s187, %s188
    %p197 = scmp.eq.s32.totalorder %s20, 0
    %p198 = por %p196, %p197
    %p199 = scmp.ne.s32.totalorder %s187, %s188
    %p200 = scmp.eq.s32.totalorder %s21, 1
    %p201 = por %p199, %p200
    %p203 = scmp.ne.s32.totalorder %s188, %s202
    %p204 = scmp.eq.s32.totalorder %s21, 0
    %p205 = por %p203, %p204
    %s207 = sadd.s32 %s206, 1
    %p210 = scmp.eq.s32.totalorder %s15, 1
    %p211 = scmp.ne.s32.totalorder %s206, %s208
    %p212 = scmp.eq.s32.totalorder %s15, 0
    %p213 = por %p211, %p212
    %p214 = scmp.ne.s32.totalorder %s206, %s208
    %p215 = scmp.eq.s32.totalorder %s20, 1
    %p216 = por %p214, %p215
    %p217 = scmp.ne.s32.totalorder %s208, %s209
    %p218 = scmp.eq.s32.totalorder %s20, 0
    %p219 = por %p217, %p218
    %p220 = scmp.ne.s32.totalorder %s208, %s209
    %p221 = scmp.eq.s32.totalorder %s21, 1
    %p222 = por %p220, %p221
    %p224 = scmp.ne.s32.totalorder %s209, %s223
    %p225 = scmp.eq.s32.totalorder %s21, 0
    %p226 = por %p224, %p225
    %s227 = ssub.s32 %s15, %s22
    %p228 = scmp.eq.s32.totalorder %s227, 0
    %s230 = sadd.s32 %s229, 1
    %s231 = scalar_select %p228, %s229, %s230
    %p234 = pneg %p228
    %p235 = scmp.eq.s32.totalorder %s15, 1
    %p236 = por %p234, %p235
    %p237 = scmp.ne.s32.totalorder %s229, %s232
    %p238 = scmp.eq.s32.totalorder %s15, 0
    %p239 = por %p237, %p238
    %p240 = scmp.ne.s32.totalorder %s229, %s232
    %p241 = scmp.eq.s32.totalorder %s20, 1
    %p242 = por %p240, %p241
    %p243 = scmp.ne.s32.totalorder %s232, %s233
    %p244 = scmp.eq.s32.totalorder %s20, 0
    %p245 = por %p243, %p244
    %p246 = scmp.ne.s32.totalorder %s232, %s233
    %p247 = scmp.eq.s32.totalorder %s21, 1
    %p248 = por %p246, %p247
    %p250 = scmp.ne.s32.totalorder %s233, %s249
    %p251 = scmp.eq.s32.totalorder %s21, 0
    %p252 = por %p250, %p251
    %p253 = scmp.le.s32.totalorder 1, %s15
    %p254 = scmp.lt.s32.totalorder %s15, 3
    %p255 = pnand %p253, %p254
    %p256 = pneg %p255
    // Predicated region
    $region9: #{seg_qyl_forward.11} parent=5 // pred_check
      _
    $region10: #{seg_qyl_forward.11} parent=5 // pred_check_branch
      %258 = sbr.rel (%p255) target = $region12
    $region11: #{seg_qyl_forward.11} parent=5 // pred_region
      %s259 = ssub.s32 %s15, 1
      // Predicated region
      $region13: #{seg_qyl_forward.11} parent=11 // pred_check
        %p260 = pneg %p114
      $region14: #{seg_qyl_forward.11} parent=11 // pred_check_branch
        %262 = sbr.rel (%p260) target = $region16
      $region15: #{seg_qyl_forward.11} parent=11 // pred_region
        _
      $region16: #{seg_qyl_forward.11} parent=11 // pred_fallthru
        _
      // Predicated region
      $region17: #{seg_qyl_forward.11} parent=11 // pred_check
        %p263 = pneg %p135
      $region18: #{seg_qyl_forward.11} parent=11 // pred_check_branch
        %265 = sbr.rel (%p263) target = $region20
      $region19: #{seg_qyl_forward.11} parent=11 // pred_region
        _
      $region20: #{seg_qyl_forward.11} parent=11 // pred_fallthru
        _
      // Predicated region
      $region21: #{seg_qyl_forward.11} parent=11 // pred_check
        %p266 = pneg %p156
      $region22: #{seg_qyl_forward.11} parent=11 // pred_check_branch
        %268 = sbr.rel (%p266) target = $region24
      $region23: #{seg_qyl_forward.11} parent=11 // pred_region
        _
      $region24: #{seg_qyl_forward.11} parent=11 // pred_fallthru
        _
      // Predicated region
      $region25: #{seg_qyl_forward.11} parent=11 // pred_check
        %p269 = pneg %p177
      $region26: #{seg_qyl_forward.11} parent=11 // pred_check_branch
        %271 = sbr.rel (%p269) target = $region28
      $region27: #{seg_qyl_forward.11} parent=11 // pred_region
        _
      $region28: #{seg_qyl_forward.11} parent=11 // pred_fallthru
        _
      // Predicated region
      $region29: #{seg_qyl_forward.11} parent=11 // pred_check
        %p272 = pneg %p198
      $region30: #{seg_qyl_forward.11} parent=11 // pred_check_branch
        %274 = sbr.rel (%p272) target = $region32
      $region31: #{seg_qyl_forward.11} parent=11 // pred_region
        _
      $region32: #{seg_qyl_forward.11} parent=11 // pred_fallthru
        _
      // Predicated region
      $region33: #{seg_qyl_forward.11} parent=11 // pred_check
        %p275 = pneg %p219
      $region34: #{seg_qyl_forward.11} parent=11 // pred_check_branch
        %277 = sbr.rel (%p275) target = $region36
      $region35: #{seg_qyl_forward.11} parent=11 // pred_region
        _
      $region36: #{seg_qyl_forward.11} parent=11 // pred_fallthru
        _
    $region12: #{seg_qyl_forward.11} parent=5 // pred_fallthru
      _
    %p278 = scmp.lt.s32.totalorder %s15, 2
    // Predicated region
    $region37: #{seg_qyl_forward.11} parent=5 // pred_check
      %p279 = pneg %p278
    $region38: #{seg_qyl_forward.11} parent=5 // pred_check_branch
      %281 = sbr.rel (%p279) target = $region40
    $region39: #{seg_qyl_forward.11} parent=5 // pred_region
      // Predicated region
      $region41: #{seg_qyl_forward.11} parent=39 // pred_check
        %p282 = pneg %p35
      $region42: #{seg_qyl_forward.11} parent=39 // pred_check_branch
        %284 = sbr.rel (%p282) target = $region44
      $region43: #{seg_qyl_forward.11} parent=39 // pred_region
        %p285 = scmp.lt.s32.totalorder %s15, 1
        %s286 = scalar_select %p285, %s15, 1
        %s287 = smul.addr %s286, 2
        %s288 = smul.addr %s287, 4
        %s289 = scalar_lea.vmem %s0, %s288
      $region44: #{seg_qyl_forward.11} parent=39 // pred_fallthru
        _
      // Predicated region
      $region45: #{seg_qyl_forward.11} parent=39 // pred_check
        %p290 = pneg %p61
      $region46: #{seg_qyl_forward.11} parent=39 // pred_check_branch
        %292 = sbr.rel (%p290) target = $region48
      $region47: #{seg_qyl_forward.11} parent=39 // pred_region
        %p293 = scmp.lt.s32.totalorder %s15, 1
        %s294 = scalar_select %p293, %s15, 1
        %s295 = smul.addr %s294, 2
        %s296 = smul.addr %s295, 4
        %s297 = scalar_lea.vmem %s1, %s296
      $region48: #{seg_qyl_forward.11} parent=39 // pred_fallthru
        _
      // Predicated region
      $region49: #{seg_qyl_forward.11} parent=39 // pred_check
        %p298 = pneg %p87
      $region50: #{seg_qyl_forward.11} parent=39 // pred_check_branch
        %300 = sbr.rel (%p298) target = $region52
      $region51: #{seg_qyl_forward.11} parent=39 // pred_region
        %p301 = scmp.lt.s32.totalorder %s15, 1
        %s302 = scalar_select %p301, %s15, 1
        %s303 = smul.addr %s302, 4
        %s304 = smul.addr %s303, 4
        %s305 = scalar_lea.vmem %s2, %s304
      $region52: #{seg_qyl_forward.11} parent=39 // pred_fallthru
        _
    $region40: #{seg_qyl_forward.11} parent=5 // pred_fallthru
      _
    %p306 = scmp.le.s32.totalorder 1, %s15
    %p307 = scmp.lt.s32.totalorder %s15, 3
    %p308 = pnand %p306, %p307
    %p309 = pneg %p308
    // Predicated region
    $region53: #{seg_qyl_forward.11} parent=5 // pred_check
      _
    $region54: #{seg_qyl_forward.11} parent=5 // pred_check_branch
      %311 = sbr.rel (%p308) target = $region56
    $region55: #{seg_qyl_forward.11} parent=5 // pred_region
      %s312 = ssub.s32 %s15, 1
      %p313 = scmp.lt.s32.totalorder %s20, 1
      %s314 = scalar_select %p313, %s20, 1
      %s315 = smul.addr %s314, 2
      %s316 = smul.addr %s315, 4
      %s317 = scalar_lea.vmem %s0, %s316
      %p318 = pneg %p41
      %p319 = pneg %p38
      %p320 = scmp.lt.s32.totalorder %s20, 1
      %s321 = scalar_select %p320, %s20, 1
      %s322 = smul.addr %s321, 2
      %s323 = smul.addr %s322, 4
      %s324 = scalar_lea.vmem %s1, %s323
      %p325 = pneg %p67
      %p326 = pneg %p64
      %p327 = scmp.lt.s32.totalorder %s20, 1
      %s328 = scalar_select %p327, %s20, 1
      %s329 = smul.addr %s328, 4
      %s330 = smul.addr %s329, 4
      %s331 = scalar_lea.vmem %s2, %s330
      %p332 = pneg %p93
      %p333 = pneg %p90
      %p334 = pneg %p114
      %p335 = pneg %p111
      %p336 = pneg %p135
      %p337 = pneg %p132
      %p338 = pneg %p156
      %p339 = pneg %p153
      %p340 = pneg %p177
      %p341 = pneg %p174
      %p342 = pneg %p198
      %p343 = pneg %p195
      %p344 = pneg %p219
      %p345 = pneg %p216
      %p346 = pneg %p245
      %p347 = pneg %p242
      %p348 = scmp.lt.s32.totalorder %s20, 1
      %s349 = scalar_select %p348, %s20, 1
      %s350 = smul.addr %s349, 2
      %s351 = smul.addr %s350, 2
      %s352 = scalar_lea.vmem %s9, %s351
      %p353 = scmp.lt.s32.totalorder %s20, 1
      %s354 = scalar_select %p353, %s20, 1
      %s355 = smul.addr %s354, 2
      %s356 = smul.addr %s355, 4
      %s357 = scalar_lea.vmem %s0, %s356
      %p358 = scmp.lt.s32.totalorder %s20, 1
      %s359 = scalar_select %p358, %s20, 1
      %s360 = smul.addr %s359, 2
      %s361 = smul.addr %s360, 4
      %s362 = scalar_lea.vmem %s1, %s361
      %p363 = scmp.lt.s32.totalorder %s20, 1
      %s364 = scalar_select %p363, %s20, 1
      %s365 = smul.addr %s364, 4
      %s366 = smul.addr %s365, 4
      %s367 = scalar_lea.vmem %s2, %s366
      %p368 = scmp.lt.s32.totalorder %s20, 1
      %s369 = scalar_select %p368, %s20, 1
      %s370 = smul.addr %s369, 2
      %s371 = smul.addr %s370, 2
      %s372 = scalar_lea.vmem %s9, %s371
      %v374 = vlaneseq
      %v375 = vand.u32 %v374, 127
      %v376 = vadd.s32 %v375, 128
      %vm377 = vcmp.lt.s32.totalorder %v375, 0
      %v378 = vsub.s32 0, %v375
      %v379 = vsel %vm377, %v378, %v375
      %v380 = vshrl.u32 %v379, 4
      %v381 = vand.u32 %v379, 15
      %v382 = vsub.s32 0, %v381
      %v383 = vsel %vm377, %v382, %v381
      %vm384 = vcmp.lt.s32.totalorder %v376, 0
      %v385 = vsub.s32 0, %v376
      %v386 = vsel %vm384, %v385, %v376
      %v387 = vshrl.u32 %v386, 4
      %v388 = vand.u32 %v386, 15
      %v389 = vsub.s32 0, %v388
      %v390 = vsel %vm384, %v389, %v388
      %vm391 = vcmp.ne.s32.totalorder %v383, 0
      %vm392 = vcmp.ne.s32.totalorder %v390, 0
      %vm393 = vcmp.lt.s32.totalorder %v383, 0
      %vm394 = vcmp.lt.s32.totalorder %v390, 0
      %vm395 = vmand %vm393, %vm391
      %vm396 = vmand %vm394, %vm392
      %v397 = vadd.s32 %v383, 16
      %v398 = vadd.s32 %v390, 16
      %v399 = vsel %vm395, %v397, %v383
      %v400 = vsel %vm396, %v398, %v390
      %vm401 = vcmp.gt.s32.totalorder %v399, 0
      %vm402 = vcmp.gt.s32.totalorder %v400, 0
      %v403 = vsel %vm401, 1, 0
      %v404 = vsel %vm402, 1, 0
      %v405 = vcvt.s32.f32 %v403
      %v406 = vcvt.s32.f32 %v404
      %v407 = vpack.c.bf16 %v405, %v405
      %v408 = vpack.c.bf16 %v406, %v406
      %vm409 = vcmp.lt.s32.totalorder %v399, 15
      %vm410 = vcmp.lt.s32.totalorder %v400, 15
      %v411 = vsel %vm409, 1, 0
      %v412 = vsel %vm410, 1, 0
      %v413 = vcvt.s32.f32 %v411
      %v414 = vcvt.s32.f32 %v412
      %v415 = vpack.c.bf16 %v413, %v413
      %v416 = vpack.c.bf16 %v414, %v414
      %vm417 = vcmask 134144
      %418 = vst.msk [vmem:[#allocation2] sm:$0xf] %vm417, 0
      %419 = vst.msk [vmem:[#allocation2 + $0xc] sm:$0xf] %vm417, 0
      %420 = vst.msk [vmem:[#allocation2 + $0x18] sm:$0xf] %vm417, 0
      %421 = vst.msk [vmem:[#allocation2 + $0x24] sm:$0xf] %vm417, 0
      %vm422 = vcmask 273544
      %423 = vst.msk [vmem:[#allocation2 + $0x8] sm:$0xf] %vm422, 0
      %424 = vst.msk [vmem:[#allocation2 + $0x14] sm:$0xf] %vm422, 0
      %425 = vst.msk [vmem:[#allocation2 + $0x20] sm:$0xf] %vm422, 0
      %426 = vst.msk [vmem:[#allocation2 + $0x2c] sm:$0xf] %vm422, 0
      %427 = vst.msk [vmem:[#allocation3] sm:$0xf] %vm417, 0
      %428 = vst.msk [vmem:[#allocation3 + $0x8] sm:$0xf] %vm422, 0
      %v429 = vld [vmem:[%s357] sm:$0xff]
      %431 = vrot.lane.b32.xlu0 %v429, 17
      %v432 = vpop.permute.xlu0 %431
      %v433 = vrot.slane %v432, 4
      %vm434 = vcmask 138240
      %v435 = vsel %vm434, %v433, %v432
      %vm438 = vcmask 1043592
      %vm439 = vcmask 1047556
      %vm440 = vmor %vm439, %vm438
      %441 = vst.msk [vmem:[#allocation2] sm:$0xff] %vm440, %v435
      %442 = vst.msk [vmem:[#allocation2 + $0x8] sm:$0xf] %vm417, %v433
      %v443 = vld [vmem:[%s362] sm:$0xff]
      %445 = vrot.lane.b32.xlu0 %v443, 17
      %v446 = vpop.permute.xlu0 %445
      %v447 = vrot.slane %v446, 4
      %v448 = vsel %vm434, %v447, %v446
      %451 = vst.msk [vmem:[#allocation2 + $0xc] sm:$0xff] %vm440, %v448
      %452 = vst.msk [vmem:[#allocation2 + $0x14] sm:$0xf] %vm417, %v447
      %v453 = vld [vmem:[%s367] sm:$0xff]
      %v454 = vld [vmem:[%s367 + $0x8] sm:$0xff]
      %457 = vrot.lane.b32.xlu0 %v453, 17
      %v458 = vpop.permute.xlu0 %457
      %459 = vrot.lane.b32.xlu0 %v454, 17
      %v460 = vpop.permute.xlu0 %459
      %v461 = vrot.slane %v458, 4
      %v462 = vrot.slane %v460, 4
      %v463 = vsel %vm434, %v461, %v458
      %v464 = vsel %vm434, %v462, %v460
      %469 = vst.msk [vmem:[#allocation2 + $0x18] sm:$0xff] %vm440, %v463
      %470 = vst.msk [vmem:[#allocation2 + $0x20] sm:$0xf] %vm417, %v461
      %471 = vst.msk [vmem:[#allocation2 + $0x24] sm:$0xff] %vm440, %v464
      %472 = vst.msk [vmem:[#allocation2 + $0x2c] sm:$0xf] %vm417, %v462
      %v473 = vld [vmem:[#allocation2] sm:$0xff]
      %v474 = vld [vmem:[#allocation2 + $0xc] sm:$0xff]
      %v475 = vld [vmem:[#allocation2 + $0x18] sm:$0xff]
      %v476 = vld [vmem:[#allocation2 + $0x24] sm:$0xff]
      %v479 = vunpack.c.l.b16 %v407
      %v480 = vunpack.c.l.b16 %v408
      %v481 = vpack.c.b16 %v480, %v479
      %v483 = vmul.bf16 %v473, %v481
      %v484 = vmul.bf16 %v474, %v481
      %v485 = vmul.bf16 %v475, %v481
      %v486 = vmul.bf16 %v476, %v481
      %v487 = vld [vmem:[#allocation2 + $0x8] sm:$0xf]
      %v488 = vld [vmem:[#allocation2 + $0x14] sm:$0xf]
      %v489 = vld [vmem:[#allocation2 + $0x20] sm:$0xf]
      %v490 = vld [vmem:[#allocation2 + $0x2c] sm:$0xf]
      %v493 = vunpack.c.l.b16 %v415
      %v494 = vunpack.c.l.b16 %v416
      %v495 = vpack.c.b16 %v494, %v493
      %496 = vrot.lane.b32.xlu0 %v495, 2
      %v497 = vpop.permute.xlu0 %496
      %v498 = vrot.slane %v497, 4
      %vm499 = vcmask 15360
      %v500 = vsel %vm499, %v498, %v497
      %v503 = vmul.bf16 %v473, %v500
      %v504 = vmul.bf16 %v487, %v498
      %v505 = vmul.bf16 %v474, %v500
      %v506 = vmul.bf16 %v488, %v498
      %v507 = vmul.bf16 %v475, %v500
      %v508 = vmul.bf16 %v489, %v498
      %v509 = vmul.bf16 %v476, %v500
      %v510 = vmul.bf16 %v490, %v498
      %v515 = vunpack.c.l.b16 %v483
      %v516 = vunpack.c.h.b16 %v483
      %v517 = vunpack.c.l.b16 %v484
      %v518 = vunpack.c.h.b16 %v484
      %v519 = vunpack.c.l.b16 %v485
      %v520 = vunpack.c.h.b16 %v485
      %v521 = vunpack.c.l.b16 %v486
      %v522 = vunpack.c.h.b16 %v486
      %v523 = vpack.c.b16 %v517, %v515
      %v524 = vpack.c.b16 %v518, %v516
      %v525 = vpack.c.b16 %v521, %v519
      %v526 = vpack.c.b16 %v522, %v520
      %v539 = vunpack.c.l.b16 %v473
      %v540 = vunpack.c.h.b16 %v473
      %v541 = vunpack.c.l.b16 %v487
      %v542 = vunpack.c.l.b16 %v474
      %v543 = vunpack.c.h.b16 %v474
      %v544 = vunpack.c.l.b16 %v488
      %v545 = vunpack.c.l.b16 %v475
      %v546 = vunpack.c.h.b16 %v475
      %v547 = vunpack.c.l.b16 %v489
      %v548 = vunpack.c.l.b16 %v476
      %v549 = vunpack.c.h.b16 %v476
      %v550 = vunpack.c.l.b16 %v490
      %v551 = vpack.c.b16 %v542, %v539
      %v552 = vpack.c.b16 %v543, %v540
      %v553 = vpack.c.b16 %v544, %v541
      %v554 = vpack.c.b16 %v548, %v545
      %v555 = vpack.c.b16 %v549, %v546
      %v556 = vpack.c.b16 %v550, %v547
      %557 = vrot.lane.b32.xlu0 %v551, 127
      %v558 = vpop.permute.xlu0 %557
      %559 = vrot.lane.b32.xlu0 %v552, 127
      %v560 = vpop.permute.xlu0 %559
      %561 = vrot.lane.b32.xlu0 %v553, 127
      %v562 = vpop.permute.xlu0 %561
      %563 = vrot.lane.b32.xlu0 %v554, 127
      %v564 = vpop.permute.xlu0 %563
      %565 = vrot.lane.b32.xlu0 %v555, 127
      %v566 = vpop.permute.xlu0 %565
      %567 = vrot.lane.b32.xlu0 %v556, 127
      %v568 = vpop.permute.xlu0 %567
      %vm569 = vcmask 1039360
      %v570 = vsel %vm569, %v558, %v560
      %v571 = vsel %vm569, %v560, %v562
      %v572 = vsel %vm569, %v564, %v566
      %v573 = vsel %vm569, %v566, %v568
      %v586 = vunpack.c.l.b16 %v503
      %v587 = vunpack.c.h.b16 %v503
      %v588 = vunpack.c.l.b16 %v504
      %v589 = vunpack.c.l.b16 %v505
      %v590 = vunpack.c.h.b16 %v505
      %v591 = vunpack.c.l.b16 %v506
      %v592 = vunpack.c.l.b16 %v507
      %v593 = vunpack.c.h.b16 %v507
      %v594 = vunpack.c.l.b16 %v508
      %v595 = vunpack.c.l.b16 %v509
      %v596 = vunpack.c.h.b16 %v509
      %v597 = vunpack.c.l.b16 %v510
      %v598 = vpack.c.b16 %v589, %v586
      %v599 = vpack.c.b16 %v590, %v587
      %v600 = vpack.c.b16 %v591, %v588
      %v601 = vpack.c.b16 %v595, %v592
      %v602 = vpack.c.b16 %v596, %v593
      %v603 = vpack.c.b16 %v597, %v594
      %604 = vrot.lane.b32.xlu0 %v598, 126
      %v605 = vpop.permute.xlu0 %604
      %606 = vrot.lane.b32.xlu0 %v599, 126
      %v607 = vpop.permute.xlu0 %606
      %608 = vrot.lane.b32.xlu0 %v600, 126
      %v609 = vpop.permute.xlu0 %608
      %610 = vrot.lane.b32.xlu0 %v601, 126
      %v611 = vpop.permute.xlu0 %610
      %612 = vrot.lane.b32.xlu0 %v602, 126
      %v613 = vpop.permute.xlu0 %612
      %614 = vrot.lane.b32.xlu0 %v603, 126
      %v615 = vpop.permute.xlu0 %614
      %vm616 = vcmask 1031168
      %v617 = vsel %vm616, %v605, %v607
      %v618 = vsel %vm616, %v607, %v609
      %v619 = vsel %vm616, %v611, %v613
      %v620 = vsel %vm616, %v613, %v615
      %v625 = vld [vmem:[%s3] sm:$0xf]
      %626 = vrot.lane.b32.xlu0 %v481, 16
      %v627 = vpop.permute.xlu0 %626
      %v628 = vrot.slane %v627, 4
      %vm629 = vcmask 130048
      %v630 = vsel %vm629, %v628, %v627
      %v633 = vmul.bf16 %v473, %v630
      %v634 = vmul.bf16 %v487, %v628
      %v635 = vmul.bf16 %v474, %v630
      %v636 = vmul.bf16 %v488, %v628
      %v637 = vmul.bf16 %v475, %v630
      %v638 = vmul.bf16 %v489, %v628
      %v639 = vmul.bf16 %v476, %v630
      %v640 = vmul.bf16 %v490, %v628
      %641 = vrot.lane.b32.xlu0 %v495, 18
      %v642 = vpop.permute.xlu0 %641
      %v643 = vrot.slane %v642, 4
      %vm644 = vcmask 146432
      %v645 = vsel %vm644, %v643, %v642
      %v648 = vmul.bf16 %v473, %v645
      %v649 = vmul.bf16 %v487, %v643
      %v650 = vmul.bf16 %v474, %v645
      %v651 = vmul.bf16 %v488, %v643
      %v652 = vmul.bf16 %v475, %v645
      %v653 = vmul.bf16 %v489, %v643
      %v654 = vmul.bf16 %v476, %v645
      %v655 = vmul.bf16 %v490, %v643
      %v664 = vunpack.c.l.b16 %v633
      %v665 = vunpack.c.h.b16 %v633
      %v666 = vunpack.c.l.b16 %v634
      %v667 = vunpack.c.l.b16 %v635
      %v668 = vunpack.c.h.b16 %v635
      %v669 = vunpack.c.l.b16 %v636
      %v670 = vunpack.c.l.b16 %v637
      %v671 = vunpack.c.h.b16 %v637
      %v672 = vunpack.c.l.b16 %v638
      %v673 = vunpack.c.l.b16 %v639
      %v674 = vunpack.c.h.b16 %v639
      %v675 = vunpack.c.l.b16 %v640
      %v676 = vpack.c.b16 %v667, %v664
      %v677 = vpack.c.b16 %v668, %v665
      %v678 = vpack.c.b16 %v669, %v666
      %v679 = vpack.c.b16 %v673, %v670
      %v680 = vpack.c.b16 %v674, %v671
      %v681 = vpack.c.b16 %v675, %v672
      %v690 = vunpack.c.l.b16 %v648
      %v691 = vunpack.c.h.b16 %v648
      %v692 = vunpack.c.l.b16 %v649
      %v693 = vunpack.c.l.b16 %v650
      %v694 = vunpack.c.h.b16 %v650
      %v695 = vunpack.c.l.b16 %v651
      %v696 = vunpack.c.l.b16 %v652
      %v697 = vunpack.c.h.b16 %v652
      %v698 = vunpack.c.l.b16 %v653
      %v699 = vunpack.c.l.b16 %v654
      %v700 = vunpack.c.h.b16 %v654
      %v701 = vunpack.c.l.b16 %v655
      %v702 = vpack.c.b16 %v693, %v690
      %v703 = vpack.c.b16 %v694, %v691
      %v704 = vpack.c.b16 %v695, %v692
      %v705 = vpack.c.b16 %v699, %v696
      %v706 = vpack.c.b16 %v700, %v697
      %v707 = vpack.c.b16 %v701, %v698
      %708 = vrot.lane.b32.xlu0 %v702, 126
      %v709 = vpop.permute.xlu0 %708
      %710 = vrot.lane.b32.xlu0 %v703, 126
      %v711 = vpop.permute.xlu0 %710
      %712 = vrot.lane.b32.xlu0 %v704, 126
      %v713 = vpop.permute.xlu0 %712
      %714 = vrot.lane.b32.xlu0 %v705, 126
      %v715 = vpop.permute.xlu0 %714
      %716 = vrot.lane.b32.xlu0 %v706, 126
      %v717 = vpop.permute.xlu0 %716
      %718 = vrot.lane.b32.xlu0 %v707, 126
      %v719 = vpop.permute.xlu0 %718
      %v720 = vsel %vm616, %v709, %v711
      %v721 = vsel %vm616, %v711, %v713
      %v722 = vsel %vm616, %v715, %v717
      %v723 = vsel %vm616, %v717, %v719
      %v724 = vld [vmem:[%s3] sm:$0xff]
      %v726 = vunpack.c.l.b16 %v724
      %v727 = vunpack.c.h.b16 %v724
      %v728 = vpack.c.b16 %v726, %v726
      %v729 = vpack.c.b16 %v727, %v727
      %730 = vrot.lane.b32.xlu0 %v728, 32
      %v731 = vpop.permute.xlu0 %730
      %732 = vrot.lane.b32.xlu0 %v729, 32
      %v733 = vpop.permute.xlu0 %732
      %vm734 = vcmask 261120
      %v735 = vsel %vm734, %v731, %v733
      %736 = vrot.lane.b32.xlu0 %v676, 112
      %v737 = vpop.permute.xlu0 %736
      %738 = vrot.lane.b32.xlu0 %v677, 112
      %v739 = vpop.permute.xlu0 %738
      %740 = vrot.lane.b32.xlu0 %v678, 112
      %v741 = vpop.permute.xlu0 %740
      %742 = vrot.lane.b32.xlu0 %v679, 112
      %v743 = vpop.permute.xlu0 %742
      %744 = vrot.lane.b32.xlu0 %v680, 112
      %v745 = vpop.permute.xlu0 %744
      %746 = vrot.lane.b32.xlu0 %v681, 112
      %v747 = vpop.permute.xlu0 %746
      %748 = vrot.lane.b32.xlu0 %v570, 112
      %v749 = vpop.permute.xlu0 %748
      %750 = vrot.lane.b32.xlu0 %v571, 112
      %v751 = vpop.permute.xlu0 %750
      %752 = vrot.lane.b32.xlu0 %v562, 112
      %v753 = vpop.permute.xlu0 %752
      %754 = vrot.lane.b32.xlu0 %v572, 112
      %v755 = vpop.permute.xlu0 %754
      %756 = vrot.lane.b32.xlu0 %v573, 112
      %v757 = vpop.permute.xlu0 %756
      %758 = vrot.lane.b32.xlu0 %v568, 112
      %v759 = vpop.permute.xlu0 %758
      %760 = vrot.lane.b32.xlu0 %v720, 112
      %v761 = vpop.permute.xlu0 %760
      %762 = vrot.lane.b32.xlu0 %v721, 112
      %v763 = vpop.permute.xlu0 %762
      %764 = vrot.lane.b32.xlu0 %v713, 112
      %v765 = vpop.permute.xlu0 %764
      %766 = vrot.lane.b32.xlu0 %v722, 112
      %v767 = vpop.permute.xlu0 %766
      %768 = vrot.lane.b32.xlu0 %v723, 112
      %v769 = vpop.permute.xlu0 %768
      %770 = vrot.lane.b32.xlu0 %v719, 112
      %v771 = vpop.permute.xlu0 %770
      %vm772 = vcmask 916480
      %v773 = vsel %vm772, %v737, %v739
      %v774 = vsel %vm772, %v739, %v741
      %v775 = vsel %vm772, %v743, %v745
      %v776 = vsel %vm772, %v745, %v747
      %v777 = vsel %vm772, %v749, %v751
      %v778 = vsel %vm772, %v751, %v753
      %v779 = vsel %vm772, %v755, %v757
      %v780 = vsel %vm772, %v757, %v759
      %v781 = vsel %vm772, %v761, %v763
      %v782 = vsel %vm772, %v763, %v765
      %v783 = vsel %vm772, %v767, %v769
      %v784 = vsel %vm772, %v769, %v771
      %vm797 = vcmask 785408
      %v799 = vsel %vm797, %v735, 0
      %801 = vmatprep.subr.bf16.mxu0 0
      %802 = vmatpush1.bf16.msra.mxu0 0
      %803 = vmatprep.subr.bf16.mxu0 0
      %804 = vmatpush1.bf16.msra.mxu0 0
      %805 = vmatprep.subr.bf16.mxu0 %v784
      %806 = vmatpush1.bf16.msra.mxu0 %v783
      %807 = vmatprep.subr.bf16.mxu0 %v782
      %808 = vmatpush1.bf16.msra.mxu0 %v781
      %809 = vmatprep.subr.bf16.mxu0 %v780
      %810 = vmatpush1.bf16.msra.mxu0 %v779
      %811 = vmatprep.subr.bf16.mxu0 %v778
      %812 = vmatpush1.bf16.msra.mxu0 %v777
      %813 = vmatprep.subr.bf16.mxu0 %v776
      %814 = vmatpush1.bf16.msra.mxu0 %v775
      %815 = vmatprep.subr.bf16.mxu0 %v774
      %816 = vmatpush1.bf16.msra.mxu0 %v773
      %817 = vmatprep.subr.bf16.mxu0 0
      %818 = vmatpush2.bf16.msra.mxu0 0
      %819 = vmatprep.subr.bf16.mxu0 0
      %820 = vmatpush2.bf16.msra.mxu0 0
      %821 = vmatprep.subr.bf16.mxu0 0
      %822 = vmatpush2.bf16.msra.mxu0 0
      %823 = vmatprep.subr.bf16.mxu0 0
      %824 = vmatpush2.bf16.msra.mxu0 0
      %825 = vmatprep.subr.bf16.mxu0 0
      %826 = vmatpush2.bf16.msra.mxu0 0
      %827 = vmatprep.subr.bf16.mxu0 0
      %828 = vmatpush2.bf16.msra.mxu0 0
      %829 = vmatprep.subr.bf16.mxu0 0
      %830 = vmatpush2.bf16.msra.mxu0 0
      %831 = vmatprep.subr.bf16.mxu0 0
      %832 = vmatpush2.bf16.msra.mxu0 0
      %833 = vmatprep.mubr.bf16.mxu0 0
      %834 = vmatmul.mubr.bf16.gmra.mxu0 %v799
      %v835 = vpop.f32.mrf.mxu0
      %v836 = vadd.f32 0.0, %v835
      %v837 = vpop.f32.mrf.mxu0
      %v838 = vadd.f32 0.0, %v837
      %v839 = vpop.f32.mrf.mxu0
      %v840 = vpop.f32.mrf.mxu0
      %841 = vdwg.mxu0
      %v843 = vsel %vm797, %v625, 0
      %845 = vmatprep.subr.bf16.mxu0 0
      %846 = vmatpush1.bf16.msra.mxu0 0
      %847 = vmatprep.subr.bf16.mxu0 0
      %848 = vmatpush1.bf16.msra.mxu0 0
      %849 = vmatprep.subr.bf16.mxu0 %v620
      %850 = vmatpush1.bf16.msra.mxu0 %v619
      %851 = vmatprep.subr.bf16.mxu0 %v618
      %852 = vmatpush1.bf16.msra.mxu0 %v617
      %853 = vmatprep.subr.bf16.mxu0 %v573
      %854 = vmatpush1.bf16.msra.mxu0 %v572
      %855 = vmatprep.subr.bf16.mxu0 %v571
      %856 = vmatpush1.bf16.msra.mxu0 %v570
      %857 = vmatprep.subr.bf16.mxu0 %v526
      %858 = vmatpush1.bf16.msra.mxu0 %v525
      %859 = vmatprep.subr.bf16.mxu0 %v524
      %860 = vmatpush1.bf16.msra.mxu0 %v523
      %861 = vmatprep.subr.bf16.mxu0 0
      %862 = vmatpush2.bf16.msra.mxu0 0
      %863 = vmatprep.subr.bf16.mxu0 0
      %864 = vmatpush2.bf16.msra.mxu0 0
      %865 = vmatprep.subr.bf16.mxu0 0
      %866 = vmatpush2.bf16.msra.mxu0 0
      %867 = vmatprep.subr.bf16.mxu0 0
      %868 = vmatpush2.bf16.msra.mxu0 0
      %869 = vmatprep.subr.bf16.mxu0 0
      %870 = vmatpush2.bf16.msra.mxu0 0
      %871 = vmatprep.subr.bf16.mxu0 0
      %872 = vmatpush2.bf16.msra.mxu0 0
      %873 = vmatprep.subr.bf16.mxu0 0
      %874 = vmatpush2.bf16.msra.mxu0 0
      %875 = vmatprep.subr.bf16.mxu0 0
      %876 = vmatpush2.bf16.msra.mxu0 0
      %877 = vmatprep.mubr.bf16.mxu0 0
      %878 = vmatmul.mubr.bf16.gmra.mxu0 %v843
      %v879 = vpop.f32.mrf.mxu0
      %v880 = vadd.f32 %v836, %v879
      %v881 = vpop.f32.mrf.mxu0
      %v882 = vadd.f32 %v838, %v881
      %v883 = vpop.f32.mrf.mxu0
      %v884 = vpop.f32.mrf.mxu0
      %885 = vdwg.mxu0
      %886 = vrot.lane.b32.xlu0 %v481, 32
      %v887 = vpop.permute.xlu0 %886
      %v888 = vrot.slane %v887, 4
      %v889 = vsel %vm734, %v888, %v887
      %v892 = vmul.bf16 %v473, %v889
      %v893 = vmul.bf16 %v487, %v888
      %v894 = vmul.bf16 %v474, %v889
      %v895 = vmul.bf16 %v488, %v888
      %v896 = vmul.bf16 %v475, %v889
      %v897 = vmul.bf16 %v489, %v888
      %v898 = vmul.bf16 %v476, %v889
      %v899 = vmul.bf16 %v490, %v888
      %900 = vrot.lane.b32.xlu0 %v495, 34
      %v901 = vpop.permute.xlu0 %900
      %v902 = vrot.slane %v901, 4
      %vm903 = vcmask 277504
      %v904 = vsel %vm903, %v902, %v901
      %v907 = vmul.bf16 %v473, %v904
      %v908 = vmul.bf16 %v487, %v902
      %v909 = vmul.bf16 %v474, %v904
      %v910 = vmul.bf16 %v488, %v902
      %v911 = vmul.bf16 %v475, %v904
      %v912 = vmul.bf16 %v489, %v902
      %v913 = vmul.bf16 %v476, %v904
      %v914 = vmul.bf16 %v490, %v902
      %v923 = vunpack.c.l.b16 %v892
      %v924 = vunpack.c.h.b16 %v892
      %v925 = vunpack.c.l.b16 %v893
      %v926 = vunpack.c.l.b16 %v894
      %v927 = vunpack.c.h.b16 %v894
      %v928 = vunpack.c.l.b16 %v895
      %v929 = vunpack.c.l.b16 %v896
      %v930 = vunpack.c.h.b16 %v896
      %v931 = vunpack.c.l.b16 %v897
      %v932 = vunpack.c.l.b16 %v898
      %v933 = vunpack.c.h.b16 %v898
      %v934 = vunpack.c.l.b16 %v899
      %v935 = vpack.c.b16 %v926, %v923
      %v936 = vpack.c.b16 %v927, %v924
      %v937 = vpack.c.b16 %v928, %v925
      %v938 = vpack.c.b16 %v932, %v929
      %v939 = vpack.c.b16 %v933, %v930
      %v940 = vpack.c.b16 %v934, %v931
      %v949 = vunpack.c.l.b16 %v907
      %v950 = vunpack.c.h.b16 %v907
      %v951 = vunpack.c.l.b16 %v908
      %v952 = vunpack.c.l.b16 %v909
      %v953 = vunpack.c.h.b16 %v909
      %v954 = vunpack.c.l.b16 %v910
      %v955 = vunpack.c.l.b16 %v911
      %v956 = vunpack.c.h.b16 %v911
      %v957 = vunpack.c.l.b16 %v912
      %v958 = vunpack.c.l.b16 %v913
      %v959 = vunpack.c.h.b16 %v913
      %v960 = vunpack.c.l.b16 %v914
      %v961 = vpack.c.b16 %v952, %v949
      %v962 = vpack.c.b16 %v953, %v950
      %v963 = vpack.c.b16 %v954, %v951
      %v964 = vpack.c.b16 %v958, %v955
      %v965 = vpack.c.b16 %v959, %v956
      %v966 = vpack.c.b16 %v960, %v957
      %967 = vrot.lane.b32.xlu0 %v961, 126
      %v968 = vpop.permute.xlu0 %967
      %969 = vrot.lane.b32.xlu0 %v962, 126
      %v970 = vpop.permute.xlu0 %969
      %971 = vrot.lane.b32.xlu0 %v963, 126
      %v972 = vpop.permute.xlu0 %971
      %973 = vrot.lane.b32.xlu0 %v964, 126
      %v974 = vpop.permute.xlu0 %973
      %975 = vrot.lane.b32.xlu0 %v965, 126
      %v976 = vpop.permute.xlu0 %975
      %977 = vrot.lane.b32.xlu0 %v966, 126
      %v978 = vpop.permute.xlu0 %977
      %v979 = vsel %vm616, %v968, %v970
      %v980 = vsel %vm616, %v970, %v972
      %v981 = vsel %vm616, %v974, %v976
      %v982 = vsel %vm616, %v976, %v978
      %v983 = vld [vmem:[%s3 + $0x4] sm:$0xff]
      %v985 = vunpack.c.l.b16 %v983
      %v986 = vunpack.c.h.b16 %v983
      %v987 = vpack.c.b16 %v985, %v985
      %v988 = vpack.c.b16 %v986, %v986
      %989 = vrot.lane.b32.xlu0 %v987, 64
      %v990 = vpop.permute.xlu0 %989
      %991 = vrot.lane.b32.xlu0 %v988, 64
      %v992 = vpop.permute.xlu0 %991
      %vm993 = vcmask 523264
      %v994 = vsel %vm993, %v990, %v992
      %995 = vrot.lane.b32.xlu0 %v935, 96
      %v996 = vpop.permute.xlu0 %995
      %997 = vrot.lane.b32.xlu0 %v936, 96
      %v998 = vpop.permute.xlu0 %997
      %999 = vrot.lane.b32.xlu0 %v937, 96
      %v1000 = vpop.permute.xlu0 %999
      %1001 = vrot.lane.b32.xlu0 %v938, 96
      %v1002 = vpop.permute.xlu0 %1001
      %1003 = vrot.lane.b32.xlu0 %v939, 96
      %v1004 = vpop.permute.xlu0 %1003
      %1005 = vrot.lane.b32.xlu0 %v940, 96
      %v1006 = vpop.permute.xlu0 %1005
      %1007 = vrot.lane.b32.xlu0 %v570, 96
      %v1008 = vpop.permute.xlu0 %1007
      %1009 = vrot.lane.b32.xlu0 %v571, 96
      %v1010 = vpop.permute.xlu0 %1009
      %1011 = vrot.lane.b32.xlu0 %v562, 96
      %v1012 = vpop.permute.xlu0 %1011
      %1013 = vrot.lane.b32.xlu0 %v572, 96
      %v1014 = vpop.permute.xlu0 %1013
      %1015 = vrot.lane.b32.xlu0 %v573, 96
      %v1016 = vpop.permute.xlu0 %1015
      %1017 = vrot.lane.b32.xlu0 %v568, 96
      %v1018 = vpop.permute.xlu0 %1017
      %1019 = vrot.lane.b32.xlu0 %v979, 96
      %v1020 = vpop.permute.xlu0 %1019
      %1021 = vrot.lane.b32.xlu0 %v980, 96
      %v1022 = vpop.permute.xlu0 %1021
      %1023 = vrot.lane.b32.xlu0 %v972, 96
      %v1024 = vpop.permute.xlu0 %1023
      %1025 = vrot.lane.b32.xlu0 %v981, 96
      %v1026 = vpop.permute.xlu0 %1025
      %1027 = vrot.lane.b32.xlu0 %v982, 96
      %v1028 = vpop.permute.xlu0 %1027
      %1029 = vrot.lane.b32.xlu0 %v978, 96
      %v1030 = vpop.permute.xlu0 %1029
      %vm1031 = vcmask 785408
      %v1032 = vsel %vm1031, %v996, %v998
      %v1033 = vsel %vm1031, %v998, %v1000
      %v1034 = vsel %vm1031, %v1002, %v1004
      %v1035 = vsel %vm1031, %v1004, %v1006
      %v1036 = vsel %vm1031, %v1008, %v1010
      %v1037 = vsel %vm1031, %v1010, %v1012
      %v1038 = vsel %vm1031, %v1014, %v1016
      %v1039 = vsel %vm1031, %v1016, %v1018
      %v1040 = vsel %vm1031, %v1020, %v1022
      %v1041 = vsel %vm1031, %v1022, %v1024
      %v1042 = vsel %vm1031, %v1026, %v1028
      %v1043 = vsel %vm1031, %v1028, %v1030
      %v1057 = vsel %vm797, %v994, 0
      %1059 = vmatprep.subr.bf16.mxu0 0
      %1060 = vmatpush1.bf16.msra.mxu0 0
      %1061 = vmatprep.subr.bf16.mxu0 0
      %1062 = vmatpush1.bf16.msra.mxu0 0
      %1063 = vmatprep.subr.bf16.mxu0 %v1043
      %1064 = vmatpush1.bf16.msra.mxu0 %v1042
      %1065 = vmatprep.subr.bf16.mxu0 %v1041
      %1066 = vmatpush1.bf16.msra.mxu0 %v1040
      %1067 = vmatprep.subr.bf16.mxu0 %v1039
      %1068 = vmatpush1.bf16.msra.mxu0 %v1038
      %1069 = vmatprep.subr.bf16.mxu0 %v1037
      %1070 = vmatpush1.bf16.msra.mxu0 %v1036
      %1071 = vmatprep.subr.bf16.mxu0 %v1035
      %1072 = vmatpush1.bf16.msra.mxu0 %v1034
      %1073 = vmatprep.subr.bf16.mxu0 %v1033
      %1074 = vmatpush1.bf16.msra.mxu0 %v1032
      %1075 = vmatprep.subr.bf16.mxu0 0
      %1076 = vmatpush2.bf16.msra.mxu0 0
      %1077 = vmatprep.subr.bf16.mxu0 0
      %1078 = vmatpush2.bf16.msra.mxu0 0
      %1079 = vmatprep.subr.bf16.mxu0 0
      %1080 = vmatpush2.bf16.msra.mxu0 0
      %1081 = vmatprep.subr.bf16.mxu0 0
      %1082 = vmatpush2.bf16.msra.mxu0 0
      %1083 = vmatprep.subr.bf16.mxu0 0
      %1084 = vmatpush2.bf16.msra.mxu0 0
      %1085 = vmatprep.subr.bf16.mxu0 0
      %1086 = vmatpush2.bf16.msra.mxu0 0
      %1087 = vmatprep.subr.bf16.mxu0 0
      %1088 = vmatpush2.bf16.msra.mxu0 0
      %1089 = vmatprep.subr.bf16.mxu0 0
      %1090 = vmatpush2.bf16.msra.mxu0 0
      %1091 = vmatprep.mubr.bf16.mxu0 0
      %1092 = vmatmul.mubr.bf16.gmra.mxu0 %v1057
      %v1093 = vpop.f32.mrf.mxu0
      %v1094 = vadd.f32 0.0, %v1093
      %v1095 = vpop.f32.mrf.mxu0
      %v1096 = vadd.f32 0.0, %v1095
      %v1097 = vpop.f32.mrf.mxu0
      %v1098 = vpop.f32.mrf.mxu0
      %1099 = vdwg.mxu0
      %v1100 = vadd.f32 %v880, %v1094
      %v1101 = vadd.f32 %v882, %v1096
      %v1102 = vld [vmem:[%s4] sm:$0xff]
      %1104 = vset.pattern.permute.xlu0 0
      %1105 = vperm.xlu0 %1104, %v1102
      %v1106 = vpop.permute.xlu0 %1105
      %v1108 = vadd.f32 %v1100, %v1106
      %v1109 = vadd.f32 %v1101, %v1106
      %v1110 = vmax.f32 %v1108, 0.0
      %v1111 = vmax.f32 %v1109, 0.0
      %v1112 = vpack.c.bf16 %v1110, %v1110
      %v1113 = vpack.c.bf16 %v1111, %v1111
      %v1116 = vunpack.c.l.b16 %v1112
      %v1117 = vunpack.c.l.b16 %v1113
      %v1118 = vpack.c.b16 %v1117, %v1116
      %1119 = vrot.lane.b32.xlu0 %v1118, 17
      %v1120 = vpop.permute.xlu0 %1119
      %v1121 = vrot.slane %v1120, 4
      %v1122 = vsel %vm434, %v1121, %v1120
      %1125 = vst.msk [vmem:[#allocation3] sm:$0xff] %vm440, %v1122
      %1126 = vst.msk [vmem:[#allocation3 + $0x8] sm:$0xf] %vm417, %v1121
      %v1127 = vld [vmem:[#allocation3] sm:$0xff]
      %v1128 = vmul.bf16 %v1127, %v481
      %v1129 = vld [vmem:[#allocation3 + $0x8] sm:$0xf]
      %v1130 = vmul.bf16 %v1127, %v500
      %v1131 = vmul.bf16 %v1129, %v498
      %v1133 = vunpack.c.l.b16 %v1128
      %v1134 = vunpack.c.h.b16 %v1128
      %v1135 = vpack.c.b16 %v1133, %v1133
      %v1136 = vpack.c.b16 %v1134, %v1134
      %v1139 = vunpack.c.l.b16 %v1127
      %v1140 = vunpack.c.h.b16 %v1127
      %v1141 = vunpack.c.l.b16 %v1129
      %v1142 = vpack.c.b16 %v1139, %v1139
      %v1143 = vpack.c.b16 %v1140, %v1140
      %v1144 = vpack.c.b16 %v1141, %v1141
      %1145 = vrot.lane.b32.xlu0 %v1142, 127
      %v1146 = vpop.permute.xlu0 %1145
      %1147 = vrot.lane.b32.xlu0 %v1143, 127
      %v1148 = vpop.permute.xlu0 %1147
      %1149 = vrot.lane.b32.xlu0 %v1144, 127
      %v1150 = vpop.permute.xlu0 %1149
      %v1151 = vsel %vm569, %v1146, %v1148
      %v1152 = vsel %vm569, %v1148, %v1150
      %v1155 = vunpack.c.l.b16 %v1130
      %v1156 = vunpack.c.h.b16 %v1130
      %v1157 = vunpack.c.l.b16 %v1131
      %v1158 = vpack.c.b16 %v1155, %v1155
      %v1159 = vpack.c.b16 %v1156, %v1156
      %v1160 = vpack.c.b16 %v1157, %v1157
      %1161 = vrot.lane.b32.xlu0 %v1158, 126
      %v1162 = vpop.permute.xlu0 %1161
      %1163 = vrot.lane.b32.xlu0 %v1159, 126
      %v1164 = vpop.permute.xlu0 %1163
      %1165 = vrot.lane.b32.xlu0 %v1160, 126
      %v1166 = vpop.permute.xlu0 %1165
      %v1167 = vsel %vm616, %v1162, %v1164
      %v1168 = vsel %vm616, %v1164, %v1166
      %vm1169 = vcmask 1043456
      %v1172 = vsel %vm1169, %v1135, %v1151
      %v1176 = vsel %vm1169, %v1136, %v1152
      %v1178 = vld [vmem:[%s5] sm:$0xf]
      %v1179 = vmul.bf16 %v1127, %v630
      %v1180 = vmul.bf16 %v1129, %v628
      %v1181 = vmul.bf16 %v1127, %v645
      %v1182 = vmul.bf16 %v1129, %v643
      %v1185 = vunpack.c.l.b16 %v1179
      %v1186 = vunpack.c.h.b16 %v1179
      %v1187 = vunpack.c.l.b16 %v1180
      %v1188 = vpack.c.b16 %v1185, %v1185
      %v1189 = vpack.c.b16 %v1186, %v1186
      %v1190 = vpack.c.b16 %v1187, %v1187
      %v1193 = vunpack.c.l.b16 %v1181
      %v1194 = vunpack.c.h.b16 %v1181
      %v1195 = vunpack.c.l.b16 %v1182
      %v1196 = vpack.c.b16 %v1193, %v1193
      %v1197 = vpack.c.b16 %v1194, %v1194
      %v1198 = vpack.c.b16 %v1195, %v1195
      %1199 = vrot.lane.b32.xlu0 %v1196, 126
      %v1200 = vpop.permute.xlu0 %1199
      %1201 = vrot.lane.b32.xlu0 %v1197, 126
      %v1202 = vpop.permute.xlu0 %1201
      %1203 = vrot.lane.b32.xlu0 %v1198, 126
      %v1204 = vpop.permute.xlu0 %1203
      %v1205 = vsel %vm616, %v1200, %v1202
      %v1206 = vsel %vm616, %v1202, %v1204
      %v1208 = vsel %vm1169, %v1188, %v1151
      %v1210 = vsel %vm1169, %v1189, %v1152
      %v1213 = vsel %vm1169, %v1190, %v1150
      %v1215 = vunpack.c.l.b16 %v1178
      %v1216 = vpack.c.b16 %v1215, %v1215
      %1217 = vrot.lane.b32.xlu0 %v1216, 104
      %v1218 = vpop.permute.xlu0 %1217
      %1222 = vrot.lane.b32.xlu0 %v1208, 112
      %v1223 = vpop.permute.xlu0 %1222
      %1224 = vrot.lane.b32.xlu0 %v1210, 112
      %v1225 = vpop.permute.xlu0 %1224
      %1226 = vrot.lane.b32.xlu0 %v1213, 112
      %v1227 = vpop.permute.xlu0 %1226
      %1228 = vrot.lane.b32.xlu0 %v1205, 112
      %v1229 = vpop.permute.xlu0 %1228
      %1230 = vrot.lane.b32.xlu0 %v1206, 112
      %v1231 = vpop.permute.xlu0 %1230
      %1232 = vrot.lane.b32.xlu0 %v1204, 112
      %v1233 = vpop.permute.xlu0 %1232
      %v1234 = vsel %vm772, %v1223, %v1225
      %v1235 = vsel %vm772, %v1225, %v1227
      %v1236 = vsel %vm772, %v1229, %v1231
      %v1237 = vsel %vm772, %v1231, %v1233
      %vm1240 = vcmask 195584
      %v1242 = vsel %vm1240, %v1218, 0
      %v1245 = vsel %vm1169, %v1236, 0
      %v1248 = vsel %vm1169, %v1237, 0
      %1250 = vmatprep.subr.bf16.mxu0 0
      %1251 = vmatpush1.bf16.msra.mxu0 0
      %1252 = vmatprep.subr.bf16.mxu0 0
      %1253 = vmatpush1.bf16.msra.mxu0 0
      %1254 = vmatprep.subr.bf16.mxu0 0
      %1255 = vmatpush1.bf16.msra.mxu0 0
      %1256 = vmatprep.subr.bf16.mxu0 0
      %1257 = vmatpush1.bf16.msra.mxu0 0
      %1258 = vmatprep.subr.bf16.mxu0 0
      %1259 = vmatpush1.bf16.msra.mxu0 0
      %1260 = vmatprep.subr.bf16.mxu0 0
      %1261 = vmatpush1.bf16.msra.mxu0 0
      %1262 = vmatprep.subr.bf16.mxu0 %v1248
      %1263 = vmatpush1.bf16.msra.mxu0 %v1245
      %1264 = vmatprep.subr.bf16.mxu0 %v1235
      %1265 = vmatpush1.bf16.msra.mxu0 %v1234
      %1266 = vmatprep.subr.bf16.mxu0 0
      %1267 = vmatpush2.bf16.msra.mxu0 0
      %1268 = vmatprep.subr.bf16.mxu0 0
      %1269 = vmatpush2.bf16.msra.mxu0 0
      %1270 = vmatprep.subr.bf16.mxu0 0
      %1271 = vmatpush2.bf16.msra.mxu0 0
      %1272 = vmatprep.subr.bf16.mxu0 0
      %1273 = vmatpush2.bf16.msra.mxu0 0
      %1274 = vmatprep.subr.bf16.mxu0 0
      %1275 = vmatpush2.bf16.msra.mxu0 0
      %1276 = vmatprep.subr.bf16.mxu0 0
      %1277 = vmatpush2.bf16.msra.mxu0 0
      %1278 = vmatprep.subr.bf16.mxu0 0
      %1279 = vmatpush2.bf16.msra.mxu0 0
      %1280 = vmatprep.subr.bf16.mxu0 0
      %1281 = vmatpush2.bf16.msra.mxu0 0
      %1282 = vmatprep.mubr.bf16.mxu0 0
      %1283 = vmatmul.mubr.bf16.gmra.mxu0 %v1242
      %v1284 = vpop.f32.mrf.mxu0
      %v1285 = vadd.f32 0.0, %v1284
      %v1286 = vpop.f32.mrf.mxu0
      %v1287 = vadd.f32 0.0, %v1286
      %v1288 = vpop.f32.mrf.mxu0
      %v1289 = vpop.f32.mrf.mxu0
      %1290 = vdwg.mxu0
      %v1292 = vsel %vm1240, %v1178, 0
      %v1295 = vsel %vm1169, %v1167, 0
      %v1298 = vsel %vm1169, %v1168, 0
      %1300 = vmatprep.subr.bf16.mxu0 0
      %1301 = vmatpush1.bf16.msra.mxu0 0
      %1302 = vmatprep.subr.bf16.mxu0 0
      %1303 = vmatpush1.bf16.msra.mxu0 0
      %1304 = vmatprep.subr.bf16.mxu0 0
      %1305 = vmatpush1.bf16.msra.mxu0 0
      %1306 = vmatprep.subr.bf16.mxu0 0
      %1307 = vmatpush1.bf16.msra.mxu0 0
      %1308 = vmatprep.subr.bf16.mxu0 0
      %1309 = vmatpush1.bf16.msra.mxu0 0
      %1310 = vmatprep.subr.bf16.mxu0 0
      %1311 = vmatpush1.bf16.msra.mxu0 0
      %1312 = vmatprep.subr.bf16.mxu0 %v1298
      %1313 = vmatpush1.bf16.msra.mxu0 %v1295
      %1314 = vmatprep.subr.bf16.mxu0 %v1176
      %1315 = vmatpush1.bf16.msra.mxu0 %v1172
      %1316 = vmatprep.subr.bf16.mxu0 0
      %1317 = vmatpush2.bf16.msra.mxu0 0
      %1318 = vmatprep.subr.bf16.mxu0 0
      %1319 = vmatpush2.bf16.msra.mxu0 0
      %1320 = vmatprep.subr.bf16.mxu0 0
      %1321 = vmatpush2.bf16.msra.mxu0 0
      %1322 = vmatprep.subr.bf16.mxu0 0
      %1323 = vmatpush2.bf16.msra.mxu0 0
      %1324 = vmatprep.subr.bf16.mxu0 0
      %1325 = vmatpush2.bf16.msra.mxu0 0
      %1326 = vmatprep.subr.bf16.mxu0 0
      %1327 = vmatpush2.bf16.msra.mxu0 0
      %1328 = vmatprep.subr.bf16.mxu0 0
      %1329 = vmatpush2.bf16.msra.mxu0 0
      %1330 = vmatprep.subr.bf16.mxu0 0
      %1331 = vmatpush2.bf16.msra.mxu0 0
      %1332 = vmatprep.mubr.bf16.mxu0 0
      %1333 = vmatmul.mubr.bf16.gmra.mxu0 %v1292
      %v1334 = vpop.f32.mrf.mxu0
      %v1335 = vadd.f32 %v1285, %v1334
      %v1336 = vpop.f32.mrf.mxu0
      %v1337 = vadd.f32 %v1287, %v1336
      %v1338 = vpop.f32.mrf.mxu0
      %v1339 = vpop.f32.mrf.mxu0
      %1340 = vdwg.mxu0
      %v1341 = vmul.bf16 %v1127, %v889
      %v1342 = vmul.bf16 %v1129, %v888
      %v1343 = vmul.bf16 %v1127, %v904
      %v1344 = vmul.bf16 %v1129, %v902
      %v1347 = vunpack.c.l.b16 %v1341
      %v1348 = vunpack.c.h.b16 %v1341
      %v1349 = vunpack.c.l.b16 %v1342
      %v1350 = vpack.c.b16 %v1347, %v1347
      %v1351 = vpack.c.b16 %v1348, %v1348
      %v1352 = vpack.c.b16 %v1349, %v1349
      %v1355 = vunpack.c.l.b16 %v1343
      %v1356 = vunpack.c.h.b16 %v1343
      %v1357 = vunpack.c.l.b16 %v1344
      %v1358 = vpack.c.b16 %v1355, %v1355
      %v1359 = vpack.c.b16 %v1356, %v1356
      %v1360 = vpack.c.b16 %v1357, %v1357
      %1361 = vrot.lane.b32.xlu0 %v1358, 126
      %v1362 = vpop.permute.xlu0 %1361
      %1363 = vrot.lane.b32.xlu0 %v1359, 126
      %v1364 = vpop.permute.xlu0 %1363
      %1365 = vrot.lane.b32.xlu0 %v1360, 126
      %v1366 = vpop.permute.xlu0 %1365
      %v1367 = vsel %vm616, %v1362, %v1364
      %v1368 = vsel %vm616, %v1364, %v1366
      %v1370 = vsel %vm1169, %v1350, %v1151
      %v1372 = vsel %vm1169, %v1351, %v1152
      %v1374 = vsel %vm1169, %v1352, %v1150
      %1375 = vrot.lane.b32.xlu0 %v1216, 80
      %v1376 = vpop.permute.xlu0 %1375
      %1380 = vrot.lane.b32.xlu0 %v1370, 96
      %v1381 = vpop.permute.xlu0 %1380
      %1382 = vrot.lane.b32.xlu0 %v1372, 96
      %v1383 = vpop.permute.xlu0 %1382
      %1384 = vrot.lane.b32.xlu0 %v1374, 96
      %v1385 = vpop.permute.xlu0 %1384
      %1386 = vrot.lane.b32.xlu0 %v1367, 96
      %v1387 = vpop.permute.xlu0 %1386
      %1388 = vrot.lane.b32.xlu0 %v1368, 96
      %v1389 = vpop.permute.xlu0 %1388
      %1390 = vrot.lane.b32.xlu0 %v1366, 96
      %v1391 = vpop.permute.xlu0 %1390
      %v1392 = vsel %vm1031, %v1381, %v1383
      %v1393 = vsel %vm1031, %v1383, %v1385
      %v1394 = vsel %vm1031, %v1387, %v1389
      %v1395 = vsel %vm1031, %v1389, %v1391
      %v1399 = vsel %vm1240, %v1376, 0
      %v1402 = vsel %vm1169, %v1394, 0
      %v1405 = vsel %vm1169, %v1395, 0
      %1407 = vmatprep.subr.bf16.mxu0 0
      %1408 = vmatpush1.bf16.msra.mxu0 0
      %1409 = vmatprep.subr.bf16.mxu0 0
      %1410 = vmatpush1.bf16.msra.mxu0 0
      %1411 = vmatprep.subr.bf16.mxu0 0
      %1412 = vmatpush1.bf16.msra.mxu0 0
      %1413 = vmatprep.subr.bf16.mxu0 0
      %1414 = vmatpush1.bf16.msra.mxu0 0
      %1415 = vmatprep.subr.bf16.mxu0 0
      %1416 = vmatpush1.bf16.msra.mxu0 0
      %1417 = vmatprep.subr.bf16.mxu0 0
      %1418 = vmatpush1.bf16.msra.mxu0 0
      %1419 = vmatprep.subr.bf16.mxu0 %v1405
      %1420 = vmatpush1.bf16.msra.mxu0 %v1402
      %1421 = vmatprep.subr.bf16.mxu0 %v1393
      %1422 = vmatpush1.bf16.msra.mxu0 %v1392
      %1423 = vmatprep.subr.bf16.mxu0 0
      %1424 = vmatpush2.bf16.msra.mxu0 0
      %1425 = vmatprep.subr.bf16.mxu0 0
      %1426 = vmatpush2.bf16.msra.mxu0 0
      %1427 = vmatprep.subr.bf16.mxu0 0
      %1428 = vmatpush2.bf16.msra.mxu0 0
      %1429 = vmatprep.subr.bf16.mxu0 0
      %1430 = vmatpush2.bf16.msra.mxu0 0
      %1431 = vmatprep.subr.bf16.mxu0 0
      %1432 = vmatpush2.bf16.msra.mxu0 0
      %1433 = vmatprep.subr.bf16.mxu0 0
      %1434 = vmatpush2.bf16.msra.mxu0 0
      %1435 = vmatprep.subr.bf16.mxu0 0
      %1436 = vmatpush2.bf16.msra.mxu0 0
      %1437 = vmatprep.subr.bf16.mxu0 0
      %1438 = vmatpush2.bf16.msra.mxu0 0
      %1439 = vmatprep.mubr.bf16.mxu0 0
      %1440 = vmatmul.mubr.bf16.gmra.mxu0 %v1399
      %v1441 = vpop.f32.mrf.mxu0
      %v1442 = vadd.f32 0.0, %v1441
      %v1443 = vpop.f32.mrf.mxu0
      %v1444 = vadd.f32 0.0, %v1443
      %v1445 = vpop.f32.mrf.mxu0
      %v1446 = vpop.f32.mrf.mxu0
      %1447 = vdwg.mxu0
      %v1448 = vadd.f32 %v1335, %v1442
      %v1449 = vadd.f32 %v1337, %v1444
      %v1450 = vld [vmem:[%s6] sm:$0xff]
      %1452 = vset.pattern.permute.xlu0 0
      %1453 = vperm.xlu0 %1452, %v1450
      %v1454 = vpop.permute.xlu0 %1453
      %v1456 = vadd.f32 %v1448, %v1454
      %v1457 = vadd.f32 %v1449, %v1454
      %v1458 = vmax.f32 %v1456, 0.0
      %v1459 = vmax.f32 %v1457, 0.0
      %v1460 = vld [vmem:[%s7] sm:$0x3]
      %v1461 = vpack.c.bf16 %v1458, %v1458
      %v1462 = vpack.c.bf16 %v1459, %v1459
      %v1463 = vld [vmem:[%s8] sm:$0xf]
      %1465 = vset.pattern.permute.xlu0 0
      %1466 = vperm.xlu0 %1465, %v1463
      %v1467 = vpop.permute.xlu0 %1466
      %vm1469 = vcmask 64512
      %v1471 = vsel %vm1469, %v1460, 0
      %v1474 = vsel %vm1169, %v1461, 0
      %v1477 = vsel %vm1169, %v1462, 0
      %1479 = vmatprep.subr.bf16.mxu0 0
      %1480 = vmatpush1.bf16.msra.mxu0 0
      %1481 = vmatprep.subr.bf16.mxu0 0
      %1482 = vmatpush1.bf16.msra.mxu0 0
      %1483 = vmatprep.subr.bf16.mxu0 0
      %1484 = vmatpush1.bf16.msra.mxu0 0
      %1485 = vmatprep.subr.bf16.mxu0 0
      %1486 = vmatpush1.bf16.msra.mxu0 0
      %1487 = vmatprep.subr.bf16.mxu0 0
      %1488 = vmatpush1.bf16.msra.mxu0 0
      %1489 = vmatprep.subr.bf16.mxu0 0
      %1490 = vmatpush1.bf16.msra.mxu0 0
      %1491 = vmatprep.subr.bf16.mxu0 0
      %1492 = vmatpush1.bf16.msra.mxu0 0
      %1493 = vmatprep.subr.bf16.mxu0 %v1477
      %1494 = vmatpush1.bf16.msra.mxu0 %v1474
      %1495 = vmatprep.subr.bf16.mxu0 0
      %1496 = vmatpush2.bf16.msra.mxu0 0
      %1497 = vmatprep.subr.bf16.mxu0 0
      %1498 = vmatpush2.bf16.msra.mxu0 0
      %1499 = vmatprep.subr.bf16.mxu0 0
      %1500 = vmatpush2.bf16.msra.mxu0 0
      %1501 = vmatprep.subr.bf16.mxu0 0
      %1502 = vmatpush2.bf16.msra.mxu0 0
      %1503 = vmatprep.subr.bf16.mxu0 0
      %1504 = vmatpush2.bf16.msra.mxu0 0
      %1505 = vmatprep.subr.bf16.mxu0 0
      %1506 = vmatpush2.bf16.msra.mxu0 0
      %1507 = vmatprep.subr.bf16.mxu0 0
      %1508 = vmatpush2.bf16.msra.mxu0 0
      %1509 = vmatprep.subr.bf16.mxu0 0
      %1510 = vmatpush2.bf16.msra.mxu0 0
      %1511 = vmatprep.mubr.bf16.mxu0 0
      %1512 = vmatmul.mubr.bf16.gmra.mxu0 %v1471
      %v1513 = vpop.f32.mrf.mxu0
      %v1514 = vadd.f32 %v1467, %v1513
      %v1515 = vpop.f32.mrf.mxu0
      %v1516 = vadd.f32 %v1467, %v1515
      %v1517 = vpop.f32.mrf.mxu0
      %v1518 = vpop.f32.mrf.mxu0
      %1519 = vdwg.mxu0
      %v1520 = vpack.c.bf16 %v1514, %v1514
      %v1521 = vpack.c.bf16 %v1516, %v1516
      %v1524 = vcombine.low %v1520, %v1521
      %v1526 = vunpack.c.l.s4 1983009808
      %v1527 = vunpack.c.0.s8 %v1526
      %v1528 = vlaneseq
      %v1529 = vshrl.u32 %v1528, 7
      %v1530 = vsub.s32 %v1527, %v1529
      %v1531 = vrot.slane %v1524, %v1530
      %1533 = vst [vmem:[%s372] sm:$0xf] %v1531
      %p1534 = scmp.lt.s32.totalorder %s20, 1
      %s1535 = scalar_select %p1534, %s20, 1
      %s1536 = smul.addr %s1535, 2
      %s1537 = smul.addr %s1536, 2
      %s1538 = scalar_lea.vmem %s9, %s1537
      // Predicated region
      $region57: #{seg_qyl_forward.11} parent=55 // pred_check
        %p1539 = pneg %p242
      $region58: #{seg_qyl_forward.11} parent=55 // pred_check_branch
        %1541 = sbr.rel (%p1539) target = $region60
      $region59: #{seg_qyl_forward.11} parent=55 // pred_region
        _
      $region60: #{seg_qyl_forward.11} parent=55 // pred_fallthru
        _
    $region56: #{seg_qyl_forward.11} parent=5 // pred_fallthru
      _
    %p1542 = scmp.le.s32.totalorder 2, %s15
    // Predicated region
    $region61: #{seg_qyl_forward.11} parent=5 // pred_check
      %p1543 = pneg %p1542
    $region62: #{seg_qyl_forward.11} parent=5 // pred_check_branch
      %1545 = sbr.rel (%p1543) target = $region64
    $region63: #{seg_qyl_forward.11} parent=5 // pred_region
      %s1546 = ssub.s32 %s15, 2
      // Predicated region
      $region65: #{seg_qyl_forward.11} parent=63 // pred_check
        %p1547 = pneg %p248
      $region66: #{seg_qyl_forward.11} parent=63 // pred_check_branch
        %1549 = sbr.rel (%p1547) target = $region68
      $region67: #{seg_qyl_forward.11} parent=63 // pred_region
        %p1550 = scmp.lt.s32.totalorder %s21, 1
        %s1551 = scalar_select %p1550, %s21, 1
        %s1552 = smul.addr %s1551, 2
        %s1553 = smul.addr %s1552, 2
        %s1554 = scalar_lea.vmem %s9, %s1553
      $region68: #{seg_qyl_forward.11} parent=63 // pred_fallthru
        _
    $region64: #{seg_qyl_forward.11} parent=5 // pred_fallthru
      _
  $region6: #{seg_qyl_forward.11} parent=0 // loop_footer
    %s19 = sadd.s32 1, %s15
  $region7: #{seg_qyl_forward.11} parent=0 // loop_footer_branch
    %14 = sbr.rel target = $region3
  $region8: #{seg_qyl_forward.11} parent=0 // loop_exit
    _

// kernel: seg_qyl_forward.9
$region0: #{seg_qyl_forward.9}
  #allocation0 [shape = 'u32[]', space=smem, size = 0x4, offset = 0x4, fixed_abs, tag = 'smem constant byte address 0x4 - core index']
  #allocation1 [shape = 'u32[144,128]{1,0:T(1,128)}', space=vmem, size = 0x12000, scoped, tag = 'internal scratch']
  #allocation2 [shape = 'bf16[24,290]{1,0:T(8,128)(2,1)}', space=vmem, size = 0x4800, scoped, tag = 'scratch operand']
  #allocation3 [shape = 'bf16[8,290]{1,0:T(8,128)(2,1)}', space=vmem, size = 0x1800, scoped, tag = 'scratch operand']
  %s0 = inlined_call_operand.vmem [shape: bf16[2,8,256], index: 0, kind: input, shape index: {}]
  %s1 = inlined_call_operand.vmem [shape: bf16[2,16,256], index: 1, kind: input, shape index: {}]
  %s2 = inlined_call_operand.vmem [shape: bf16[8,216], index: 2, kind: input, shape index: {}]
  %s3 = inlined_call_operand.vmem [shape: f32[8,1], index: 3, kind: input, shape index: {}]
  %s4 = inlined_call_operand.vmem [shape: bf16[8,72], index: 4, kind: input, shape index: {}]
  %s5 = inlined_call_operand.vmem [shape: f32[8,1], index: 5, kind: input, shape index: {}]
  %s6 = inlined_call_operand.vmem [shape: bf16[2,8,256], index: 6, kind: output, shape index: {}]
  %s7 = sld [smem:[#allocation0]]
  $region57: #{seg_qyl_forward.9} parent=0
    _
  %s9 = ssub.s32 1, %s7
  %s10 = scalar_select 0, %s9, %s7
  loop: start=0, step=1, limit=4
  $region2: #{seg_qyl_forward.9} parent=0 // loop_pre_header
    _
  $region3: #{seg_qyl_forward.9} parent=0 // loop_header
    %s12 = sphi 0, %s16
    %p13 = scmp.ge.s32.totalorder %s12, 4
    %s22 = sphi 0, %s24
    %s25 = sphi 0, %s22
    %s26 = sphi 0, %s25
    %s42 = sphi 0, %s26
    %s48 = sphi 0, %s50
    %s51 = sphi 0, %s48
    %s52 = sphi 0, %s51
    %s68 = sphi 0, %s52
    %s72 = sphi 0, %s72
    %s74 = sphi 0, %s72
    %s75 = sphi 0, %s74
    %s89 = sphi 0, %s75
    %s93 = sphi 0, %s93
    %s95 = sphi 0, %s93
    %s96 = sphi 0, %s95
    %s110 = sphi 0, %s96
    %s114 = sphi 0, %s114
    %s116 = sphi 0, %s114
    %s117 = sphi 0, %s116
    %s131 = sphi 0, %s117
    %s135 = sphi 0, %s135
    %s137 = sphi 0, %s135
    %s138 = sphi 0, %s137
    %s152 = sphi 0, %s138
    %s158 = sphi 0, %s160
    %s161 = sphi 0, %s158
    %s162 = sphi 0, %s161
    %s178 = sphi 0, %s162
  $region4: #{seg_qyl_forward.9} parent=0 // loop_header_branch
    %15 = sbr.rel (%p13) target = $region8
  $region5: #{seg_qyl_forward.9} parent=0 // loop_body
    %s17 = ssub.s32 %s12, 1
    %s18 = ssub.s32 %s12, 2
    %s19 = sadd.s32 %s12, 1
    %s20 = ssub.s32 %s12, %s19
    %p21 = scmp.eq.s32.totalorder %s20, 0
    %s23 = sadd.s32 %s22, 1
    %s24 = scalar_select %p21, %s22, %s23
    %p27 = pneg %p21
    %p28 = scmp.eq.s32.totalorder %s12, 1
    %p29 = por %p27, %p28
    %p30 = scmp.ne.s32.totalorder %s22, %s25
    %p31 = scmp.eq.s32.totalorder %s12, 0
    %p32 = por %p30, %p31
    %p33 = scmp.ne.s32.totalorder %s22, %s25
    %p34 = scmp.eq.s32.totalorder %s17, 1
    %p35 = por %p33, %p34
    %p36 = scmp.ne.s32.totalorder %s25, %s26
    %p37 = scmp.eq.s32.totalorder %s17, 0
    %p38 = por %p36, %p37
    %p39 = scmp.ne.s32.totalorder %s25, %s26
    %p40 = scmp.eq.s32.totalorder %s18, 1
    %p41 = por %p39, %p40
    %p43 = scmp.ne.s32.totalorder %s26, %s42
    %p44 = scmp.eq.s32.totalorder %s18, 0
    %p45 = por %p43, %p44
    %s46 = ssub.s32 %s12, %s19
    %p47 = scmp.eq.s32.totalorder %s46, 0
    %s49 = sadd.s32 %s48, 1
    %s50 = scalar_select %p47, %s48, %s49
    %p53 = pneg %p47
    %p54 = scmp.eq.s32.totalorder %s12, 1
    %p55 = por %p53, %p54
    %p56 = scmp.ne.s32.totalorder %s48, %s51
    %p57 = scmp.eq.s32.totalorder %s12, 0
    %p58 = por %p56, %p57
    %p59 = scmp.ne.s32.totalorder %s48, %s51
    %p60 = scmp.eq.s32.totalorder %s17, 1
    %p61 = por %p59, %p60
    %p62 = scmp.ne.s32.totalorder %s51, %s52
    %p63 = scmp.eq.s32.totalorder %s17, 0
    %p64 = por %p62, %p63
    %p65 = scmp.ne.s32.totalorder %s51, %s52
    %p66 = scmp.eq.s32.totalorder %s18, 1
    %p67 = por %p65, %p66
    %p69 = scmp.ne.s32.totalorder %s52, %s68
    %p70 = scmp.eq.s32.totalorder %s18, 0
    %p71 = por %p69, %p70
    %s73 = sadd.s32 %s72, 1
    %p76 = scmp.eq.s32.totalorder %s12, 1
    %p77 = scmp.ne.s32.totalorder %s72, %s74
    %p78 = scmp.eq.s32.totalorder %s12, 0
    %p79 = por %p77, %p78
    %p80 = scmp.ne.s32.totalorder %s72, %s74
    %p81 = scmp.eq.s32.totalorder %s17, 1
    %p82 = por %p80, %p81
    %p83 = scmp.ne.s32.totalorder %s74, %s75
    %p84 = scmp.eq.s32.totalorder %s17, 0
    %p85 = por %p83, %p84
    %p86 = scmp.ne.s32.totalorder %s74, %s75
    %p87 = scmp.eq.s32.totalorder %s18, 1
    %p88 = por %p86, %p87
    %p90 = scmp.ne.s32.totalorder %s75, %s89
    %p91 = scmp.eq.s32.totalorder %s18, 0
    %p92 = por %p90, %p91
    %s94 = sadd.s32 %s93, 1
    %p97 = scmp.eq.s32.totalorder %s12, 1
    %p98 = scmp.ne.s32.totalorder %s93, %s95
    %p99 = scmp.eq.s32.totalorder %s12, 0
    %p100 = por %p98, %p99
    %p101 = scmp.ne.s32.totalorder %s93, %s95
    %p102 = scmp.eq.s32.totalorder %s17, 1
    %p103 = por %p101, %p102
    %p104 = scmp.ne.s32.totalorder %s95, %s96
    %p105 = scmp.eq.s32.totalorder %s17, 0
    %p106 = por %p104, %p105
    %p107 = scmp.ne.s32.totalorder %s95, %s96
    %p108 = scmp.eq.s32.totalorder %s18, 1
    %p109 = por %p107, %p108
    %p111 = scmp.ne.s32.totalorder %s96, %s110
    %p112 = scmp.eq.s32.totalorder %s18, 0
    %p113 = por %p111, %p112
    %s115 = sadd.s32 %s114, 1
    %p118 = scmp.eq.s32.totalorder %s12, 1
    %p119 = scmp.ne.s32.totalorder %s114, %s116
    %p120 = scmp.eq.s32.totalorder %s12, 0
    %p121 = por %p119, %p120
    %p122 = scmp.ne.s32.totalorder %s114, %s116
    %p123 = scmp.eq.s32.totalorder %s17, 1
    %p124 = por %p122, %p123
    %p125 = scmp.ne.s32.totalorder %s116, %s117
    %p126 = scmp.eq.s32.totalorder %s17, 0
    %p127 = por %p125, %p126
    %p128 = scmp.ne.s32.totalorder %s116, %s117
    %p129 = scmp.eq.s32.totalorder %s18, 1
    %p130 = por %p128, %p129
    %p132 = scmp.ne.s32.totalorder %s117, %s131
    %p133 = scmp.eq.s32.totalorder %s18, 0
    %p134 = por %p132, %p133
    %s136 = sadd.s32 %s135, 1
    %p139 = scmp.eq.s32.totalorder %s12, 1
    %p140 = scmp.ne.s32.totalorder %s135, %s137
    %p141 = scmp.eq.s32.totalorder %s12, 0
    %p142 = por %p140, %p141
    %p143 = scmp.ne.s32.totalorder %s135, %s137
    %p144 = scmp.eq.s32.totalorder %s17, 1
    %p145 = por %p143, %p144
    %p146 = scmp.ne.s32.totalorder %s137, %s138
    %p147 = scmp.eq.s32.totalorder %s17, 0
    %p148 = por %p146, %p147
    %p149 = scmp.ne.s32.totalorder %s137, %s138
    %p150 = scmp.eq.s32.totalorder %s18, 1
    %p151 = por %p149, %p150
    %p153 = scmp.ne.s32.totalorder %s138, %s152
    %p154 = scmp.eq.s32.totalorder %s18, 0
    %p155 = por %p153, %p154
    %s156 = ssub.s32 %s12, %s19
    %p157 = scmp.eq.s32.totalorder %s156, 0
    %s159 = sadd.s32 %s158, 1
    %s160 = scalar_select %p157, %s158, %s159
    %p163 = pneg %p157
    %p164 = scmp.eq.s32.totalorder %s12, 1
    %p165 = por %p163, %p164
    %p166 = scmp.ne.s32.totalorder %s158, %s161
    %p167 = scmp.eq.s32.totalorder %s12, 0
    %p168 = por %p166, %p167
    %p169 = scmp.ne.s32.totalorder %s158, %s161
    %p170 = scmp.eq.s32.totalorder %s17, 1
    %p171 = por %p169, %p170
    %p172 = scmp.ne.s32.totalorder %s161, %s162
    %p173 = scmp.eq.s32.totalorder %s17, 0
    %p174 = por %p172, %p173
    %p175 = scmp.ne.s32.totalorder %s161, %s162
    %p176 = scmp.eq.s32.totalorder %s18, 1
    %p177 = por %p175, %p176
    %p179 = scmp.ne.s32.totalorder %s162, %s178
    %p180 = scmp.eq.s32.totalorder %s18, 0
    %p181 = por %p179, %p180
    %p182 = scmp.le.s32.totalorder 1, %s12
    %p183 = scmp.lt.s32.totalorder %s12, 3
    %p184 = pnand %p182, %p183
    %p185 = pneg %p184
    // Predicated region
    $region9: #{seg_qyl_forward.9} parent=5 // pred_check
      _
    $region10: #{seg_qyl_forward.9} parent=5 // pred_check_branch
      %187 = sbr.rel (%p184) target = $region12
    $region11: #{seg_qyl_forward.9} parent=5 // pred_region
      %s188 = ssub.s32 %s12, 1
      // Predicated region
      $region13: #{seg_qyl_forward.9} parent=11 // pred_check
        %p189 = pneg %p85
      $region14: #{seg_qyl_forward.9} parent=11 // pred_check_branch
        %191 = sbr.rel (%p189) target = $region16
      $region15: #{seg_qyl_forward.9} parent=11 // pred_region
        _
      $region16: #{seg_qyl_forward.9} parent=11 // pred_fallthru
        _
      // Predicated region
      $region17: #{seg_qyl_forward.9} parent=11 // pred_check
        %p192 = pneg %p106
      $region18: #{seg_qyl_forward.9} parent=11 // pred_check_branch
        %194 = sbr.rel (%p192) target = $region20
      $region19: #{seg_qyl_forward.9} parent=11 // pred_region
        _
      $region20: #{seg_qyl_forward.9} parent=11 // pred_fallthru
        _
      // Predicated region
      $region21: #{seg_qyl_forward.9} parent=11 // pred_check
        %p195 = pneg %p127
      $region22: #{seg_qyl_forward.9} parent=11 // pred_check_branch
        %197 = sbr.rel (%p195) target = $region24
      $region23: #{seg_qyl_forward.9} parent=11 // pred_region
        _
      $region24: #{seg_qyl_forward.9} parent=11 // pred_fallthru
        _
      // Predicated region
      $region25: #{seg_qyl_forward.9} parent=11 // pred_check
        %p198 = pneg %p148
      $region26: #{seg_qyl_forward.9} parent=11 // pred_check_branch
        %200 = sbr.rel (%p198) target = $region28
      $region27: #{seg_qyl_forward.9} parent=11 // pred_region
        _
      $region28: #{seg_qyl_forward.9} parent=11 // pred_fallthru
        _
    $region12: #{seg_qyl_forward.9} parent=5 // pred_fallthru
      _
    %p201 = scmp.lt.s32.totalorder %s12, 2
    // Predicated region
    $region29: #{seg_qyl_forward.9} parent=5 // pred_check
      %p202 = pneg %p201
    $region30: #{seg_qyl_forward.9} parent=5 // pred_check_branch
      %204 = sbr.rel (%p202) target = $region32
    $region31: #{seg_qyl_forward.9} parent=5 // pred_region
      // Predicated region
      $region33: #{seg_qyl_forward.9} parent=31 // pred_check
        %p205 = pneg %p32
      $region34: #{seg_qyl_forward.9} parent=31 // pred_check_branch
        %207 = sbr.rel (%p205) target = $region36
      $region35: #{seg_qyl_forward.9} parent=31 // pred_region
        %p208 = scmp.lt.s32.totalorder %s12, 1
        %s209 = scalar_select %p208, %s12, 1
        %s210 = smul.addr %s209, 2
        %s211 = smul.addr %s210, 4
        %s212 = scalar_lea.vmem %s0, %s211
      $region36: #{seg_qyl_forward.9} parent=31 // pred_fallthru
        _
      // Predicated region
      $region37: #{seg_qyl_forward.9} parent=31 // pred_check
        %p213 = pneg %p58
      $region38: #{seg_qyl_forward.9} parent=31 // pred_check_branch
        %215 = sbr.rel (%p213) target = $region40
      $region39: #{seg_qyl_forward.9} parent=31 // pred_region
        %p216 = scmp.lt.s32.totalorder %s12, 1
        %s217 = scalar_select %p216, %s12, 1
        %s218 = smul.addr %s217, 4
        %s219 = smul.addr %s218, 4
        %s220 = scalar_lea.vmem %s1, %s219
      $region40: #{seg_qyl_forward.9} parent=31 // pred_fallthru
        _
    $region32: #{seg_qyl_forward.9} parent=5 // pred_fallthru
      _
    %p221 = scmp.le.s32.totalorder 1, %s12
    %p222 = scmp.lt.s32.totalorder %s12, 3
    %p223 = pnand %p221, %p222
    %p224 = pneg %p223
    // Predicated region
    $region41: #{seg_qyl_forward.9} parent=5 // pred_check
      _
    $region42: #{seg_qyl_forward.9} parent=5 // pred_check_branch
      %226 = sbr.rel (%p223) target = $region44
    $region43: #{seg_qyl_forward.9} parent=5 // pred_region
      %s227 = ssub.s32 %s12, 1
      %p228 = scmp.lt.s32.totalorder %s17, 1
      %s229 = scalar_select %p228, %s17, 1
      %s230 = smul.addr %s229, 2
      %s231 = smul.addr %s230, 4
      %s232 = scalar_lea.vmem %s0, %s231
      %p233 = pneg %p38
      %p234 = pneg %p35
      %p235 = scmp.lt.s32.totalorder %s17, 1
      %s236 = scalar_select %p235, %s17, 1
      %s237 = smul.addr %s236, 4
      %s238 = smul.addr %s237, 4
      %s239 = scalar_lea.vmem %s1, %s238
      %p240 = pneg %p64
      %p241 = pneg %p61
      %p242 = pneg %p85
      %p243 = pneg %p82
      %p244 = pneg %p106
      %p245 = pneg %p103
      %p246 = pneg %p127
      %p247 = pneg %p124
      %p248 = pneg %p148
      %p249 = pneg %p145
      %p250 = pneg %p174
      %p251 = pneg %p171
      %p252 = scmp.lt.s32.totalorder %s17, 1
      %s253 = scalar_select %p252, %s17, 1
      %s254 = smul.addr %s253, 2
      %s255 = smul.addr %s254, 4
      %s256 = scalar_lea.vmem %s6, %s255
      %p257 = scmp.lt.s32.totalorder %s17, 1
      %s258 = scalar_select %p257, %s17, 1
      %s259 = smul.addr %s258, 2
      %s260 = smul.addr %s259, 4
      %s261 = scalar_lea.vmem %s0, %s260
      %p262 = scmp.lt.s32.totalorder %s17, 1
      %s263 = scalar_select %p262, %s17, 1
      %s264 = smul.addr %s263, 4
      %s265 = smul.addr %s264, 4
      %s266 = scalar_lea.vmem %s1, %s265
      %p267 = scmp.lt.s32.totalorder %s17, 1
      %s268 = scalar_select %p267, %s17, 1
      %s269 = smul.addr %s268, 2
      %s270 = smul.addr %s269, 4
      %s271 = scalar_lea.vmem %s6, %s270
      %v273 = vlaneseq
      %v274 = vand.u32 %v273, 127
      %v275 = vadd.s32 %v274, 128
      %vm276 = vcmp.lt.s32.totalorder %v274, 0
      %v277 = vsub.s32 0, %v274
      %v278 = vsel %vm276, %v277, %v274
      %v279 = vshrl.u32 %v278, 4
      %v280 = vand.u32 %v278, 15
      %v281 = vsub.s32 0, %v280
      %v282 = vsel %vm276, %v281, %v280
      %vm283 = vcmp.lt.s32.totalorder %v275, 0
      %v284 = vsub.s32 0, %v275
      %v285 = vsel %vm283, %v284, %v275
      %v286 = vshrl.u32 %v285, 4
      %v287 = vand.u32 %v285, 15
      %v288 = vsub.s32 0, %v287
      %v289 = vsel %vm283, %v288, %v287
      %vm290 = vcmp.ne.s32.totalorder %v282, 0
      %vm291 = vcmp.ne.s32.totalorder %v289, 0
      %vm292 = vcmp.lt.s32.totalorder %v282, 0
      %vm293 = vcmp.lt.s32.totalorder %v289, 0
      %vm294 = vmand %vm292, %vm290
      %vm295 = vmand %vm293, %vm291
      %v296 = vadd.s32 %v282, 16
      %v297 = vadd.s32 %v289, 16
      %v298 = vsel %vm294, %v296, %v282
      %v299 = vsel %vm295, %v297, %v289
      %vm300 = vcmp.gt.s32.totalorder %v298, 0
      %vm301 = vcmp.gt.s32.totalorder %v299, 0
      %v302 = vsel %vm300, 1, 0
      %v303 = vsel %vm301, 1, 0
      %v304 = vcvt.s32.f32 %v302
      %v305 = vcvt.s32.f32 %v303
      %v306 = vpack.c.bf16 %v304, %v304
      %v307 = vpack.c.bf16 %v305, %v305
      %vm308 = vcmp.lt.s32.totalorder %v298, 15
      %vm309 = vcmp.lt.s32.totalorder %v299, 15
      %v310 = vsel %vm308, 1, 0
      %v311 = vsel %vm309, 1, 0
      %v312 = vcvt.s32.f32 %v310
      %v313 = vcvt.s32.f32 %v311
      %v314 = vpack.c.bf16 %v312, %v312
      %v315 = vpack.c.bf16 %v313, %v313
      %vm316 = vcmask 134144
      %317 = vst.msk [vmem:[#allocation2] sm:$0xf] %vm316, 0
      %318 = vst.msk [vmem:[#allocation2 + $0xc] sm:$0xf] %vm316, 0
      %319 = vst.msk [vmem:[#allocation2 + $0x18] sm:$0xf] %vm316, 0
      %vm320 = vcmask 273544
      %321 = vst.msk [vmem:[#allocation2 + $0x8] sm:$0xf] %vm320, 0
      %322 = vst.msk [vmem:[#allocation2 + $0x14] sm:$0xf] %vm320, 0
      %323 = vst.msk [vmem:[#allocation2 + $0x20] sm:$0xf] %vm320, 0
      %324 = vst.msk [vmem:[#allocation3] sm:$0xf] %vm316, 0
      %325 = vst.msk [vmem:[#allocation3 + $0x8] sm:$0xf] %vm320, 0
      %v326 = vld [vmem:[%s261] sm:$0xff]
      %328 = vrot.lane.b32.xlu0 %v326, 17
      %v329 = vpop.permute.xlu0 %328
      %v330 = vrot.slane %v329, 4
      %vm331 = vcmask 138240
      %v332 = vsel %vm331, %v330, %v329
      %vm335 = vcmask 1043592
      %vm336 = vcmask 1047556
      %vm337 = vmor %vm336, %vm335
      %338 = vst.msk [vmem:[#allocation2] sm:$0xff] %vm337, %v332
      %339 = vst.msk [vmem:[#allocation2 + $0x8] sm:$0xf] %vm316, %v330
      %v340 = vld [vmem:[%s266] sm:$0xff]
      %v341 = vld [vmem:[%s266 + $0x8] sm:$0xff]
      %344 = vrot.lane.b32.xlu0 %v340, 17
      %v345 = vpop.permute.xlu0 %344
      %346 = vrot.lane.b32.xlu0 %v341, 17
      %v347 = vpop.permute.xlu0 %346
      %v348 = vrot.slane %v345, 4
      %v349 = vrot.slane %v347, 4
      %v350 = vsel %vm331, %v348, %v345
      %v351 = vsel %vm331, %v349, %v347
      %356 = vst.msk [vmem:[#allocation2 + $0xc] sm:$0xff] %vm337, %v350
      %357 = vst.msk [vmem:[#allocation2 + $0x14] sm:$0xf] %vm316, %v348
      %358 = vst.msk [vmem:[#allocation2 + $0x18] sm:$0xff] %vm337, %v351
      %359 = vst.msk [vmem:[#allocation2 + $0x20] sm:$0xf] %vm316, %v349
      %v360 = vld [vmem:[#allocation2] sm:$0xff]
      %v361 = vld [vmem:[#allocation2 + $0xc] sm:$0xff]
      %v362 = vld [vmem:[#allocation2 + $0x18] sm:$0xff]
      %v365 = vunpack.c.l.b16 %v306
      %v366 = vunpack.c.l.b16 %v307
      %v367 = vpack.c.b16 %v366, %v365
      %v369 = vmul.bf16 %v360, %v367
      %v370 = vmul.bf16 %v361, %v367
      %v371 = vmul.bf16 %v362, %v367
      %v372 = vld [vmem:[#allocation2 + $0x8] sm:$0xf]
      %v373 = vld [vmem:[#allocation2 + $0x14] sm:$0xf]
      %v374 = vld [vmem:[#allocation2 + $0x20] sm:$0xf]
      %v377 = vunpack.c.l.b16 %v314
      %v378 = vunpack.c.l.b16 %v315
      %v379 = vpack.c.b16 %v378, %v377
      %380 = vrot.lane.b32.xlu0 %v379, 2
      %v381 = vpop.permute.xlu0 %380
      %v382 = vrot.slane %v381, 4
      %vm383 = vcmask 15360
      %v384 = vsel %vm383, %v382, %v381
      %v387 = vmul.bf16 %v360, %v384
      %v388 = vmul.bf16 %v372, %v382
      %v389 = vmul.bf16 %v361, %v384
      %v390 = vmul.bf16 %v373, %v382
      %v391 = vmul.bf16 %v362, %v384
      %v392 = vmul.bf16 %v374, %v382
      %v396 = vunpack.c.l.b16 %v369
      %v397 = vunpack.c.h.b16 %v369
      %v398 = vunpack.c.l.b16 %v370
      %v399 = vunpack.c.h.b16 %v370
      %v400 = vunpack.c.l.b16 %v371
      %v401 = vunpack.c.h.b16 %v371
      %v402 = vpack.c.b16 %v398, %v396
      %v403 = vpack.c.b16 %v399, %v397
      %v404 = vpack.c.b16 %v400, %v400
      %v405 = vpack.c.b16 %v401, %v401
      %v414 = vunpack.c.l.b16 %v360
      %v415 = vunpack.c.h.b16 %v360
      %v416 = vunpack.c.l.b16 %v372
      %v417 = vunpack.c.l.b16 %v361
      %v418 = vunpack.c.h.b16 %v361
      %v419 = vunpack.c.l.b16 %v373
      %v420 = vunpack.c.l.b16 %v362
      %v421 = vunpack.c.h.b16 %v362
      %v422 = vunpack.c.l.b16 %v374
      %v423 = vpack.c.b16 %v414, %v414
      %v424 = vpack.c.b16 %v415, %v415
      %v425 = vpack.c.b16 %v416, %v416
      %v426 = vpack.c.b16 %v420, %v417
      %v427 = vpack.c.b16 %v421, %v418
      %v428 = vpack.c.b16 %v422, %v419
      %429 = vrot.lane.b32.xlu0 %v423, 127
      %v430 = vpop.permute.xlu0 %429
      %431 = vrot.lane.b32.xlu0 %v424, 127
      %v432 = vpop.permute.xlu0 %431
      %433 = vrot.lane.b32.xlu0 %v425, 127
      %v434 = vpop.permute.xlu0 %433
      %435 = vrot.lane.b32.xlu0 %v426, 127
      %v436 = vpop.permute.xlu0 %435
      %437 = vrot.lane.b32.xlu0 %v427, 127
      %v438 = vpop.permute.xlu0 %437
      %439 = vrot.lane.b32.xlu0 %v428, 127
      %v440 = vpop.permute.xlu0 %439
      %vm441 = vcmask 1039360
      %v442 = vsel %vm441, %v430, %v432
      %v443 = vsel %vm441, %v432, %v434
      %v444 = vsel %vm441, %v436, %v438
      %v445 = vsel %vm441, %v438, %v440
      %v454 = vunpack.c.l.b16 %v387
      %v455 = vunpack.c.h.b16 %v387
      %v456 = vunpack.c.l.b16 %v388
      %v457 = vunpack.c.l.b16 %v389
      %v458 = vunpack.c.h.b16 %v389
      %v459 = vunpack.c.l.b16 %v390
      %v460 = vunpack.c.l.b16 %v391
      %v461 = vunpack.c.h.b16 %v391
      %v462 = vunpack.c.l.b16 %v392
      %v463 = vpack.c.b16 %v457, %v454
      %v464 = vpack.c.b16 %v458, %v455
      %v465 = vpack.c.b16 %v459, %v456
      %v466 = vpack.c.b16 %v460, %v460
      %v467 = vpack.c.b16 %v461, %v461
      %v468 = vpack.c.b16 %v462, %v462
      %469 = vrot.lane.b32.xlu0 %v463, 126
      %v470 = vpop.permute.xlu0 %469
      %471 = vrot.lane.b32.xlu0 %v464, 126
      %v472 = vpop.permute.xlu0 %471
      %473 = vrot.lane.b32.xlu0 %v465, 126
      %v474 = vpop.permute.xlu0 %473
      %475 = vrot.lane.b32.xlu0 %v466, 126
      %v476 = vpop.permute.xlu0 %475
      %477 = vrot.lane.b32.xlu0 %v467, 126
      %v478 = vpop.permute.xlu0 %477
      %479 = vrot.lane.b32.xlu0 %v468, 126
      %v480 = vpop.permute.xlu0 %479
      %vm481 = vcmask 1031168
      %v482 = vsel %vm481, %v470, %v472
      %v483 = vsel %vm481, %v472, %v474
      %v484 = vsel %vm481, %v476, %v478
      %v485 = vsel %vm481, %v478, %v480
      %vm488 = vcmask 1043456
      %v491 = vsel %vm488, %v404, %v442
      %v495 = vsel %vm488, %v405, %v443
      %v497 = vld [vmem:[%s2] sm:$0xf]
      %498 = vrot.lane.b32.xlu0 %v367, 16
      %v499 = vpop.permute.xlu0 %498
      %v500 = vrot.slane %v499, 4
      %vm501 = vcmask 130048
      %v502 = vsel %vm501, %v500, %v499
      %v505 = vmul.bf16 %v360, %v502
      %v506 = vmul.bf16 %v372, %v500
      %v507 = vmul.bf16 %v361, %v502
      %v508 = vmul.bf16 %v373, %v500
      %v509 = vmul.bf16 %v362, %v502
      %v510 = vmul.bf16 %v374, %v500
      %511 = vrot.lane.b32.xlu0 %v379, 18
      %v512 = vpop.permute.xlu0 %511
      %v513 = vrot.slane %v512, 4
      %vm514 = vcmask 146432
      %v515 = vsel %vm514, %v513, %v512
      %v518 = vmul.bf16 %v360, %v515
      %v519 = vmul.bf16 %v372, %v513
      %v520 = vmul.bf16 %v361, %v515
      %v521 = vmul.bf16 %v373, %v513
      %v522 = vmul.bf16 %v362, %v515
      %v523 = vmul.bf16 %v374, %v513
      %v530 = vunpack.c.l.b16 %v505
      %v531 = vunpack.c.h.b16 %v505
      %v532 = vunpack.c.l.b16 %v506
      %v533 = vunpack.c.l.b16 %v507
      %v534 = vunpack.c.h.b16 %v507
      %v535 = vunpack.c.l.b16 %v508
      %v536 = vunpack.c.l.b16 %v509
      %v537 = vunpack.c.h.b16 %v509
      %v538 = vunpack.c.l.b16 %v510
      %v539 = vpack.c.b16 %v533, %v530
      %v540 = vpack.c.b16 %v534, %v531
      %v541 = vpack.c.b16 %v535, %v532
      %v542 = vpack.c.b16 %v536, %v536
      %v543 = vpack.c.b16 %v537, %v537
      %v544 = vpack.c.b16 %v538, %v538
      %v551 = vunpack.c.l.b16 %v518
      %v552 = vunpack.c.h.b16 %v518
      %v553 = vunpack.c.l.b16 %v519
      %v554 = vunpack.c.l.b16 %v520
      %v555 = vunpack.c.h.b16 %v520
      %v556 = vunpack.c.l.b16 %v521
      %v557 = vunpack.c.l.b16 %v522
      %v558 = vunpack.c.h.b16 %v522
      %v559 = vunpack.c.l.b16 %v523
      %v560 = vpack.c.b16 %v554, %v551
      %v561 = vpack.c.b16 %v555, %v552
      %v562 = vpack.c.b16 %v556, %v553
      %v563 = vpack.c.b16 %v557, %v557
      %v564 = vpack.c.b16 %v558, %v558
      %v565 = vpack.c.b16 %v559, %v559
      %566 = vrot.lane.b32.xlu0 %v560, 126
      %v567 = vpop.permute.xlu0 %566
      %568 = vrot.lane.b32.xlu0 %v561, 126
      %v569 = vpop.permute.xlu0 %568
      %570 = vrot.lane.b32.xlu0 %v562, 126
      %v571 = vpop.permute.xlu0 %570
      %572 = vrot.lane.b32.xlu0 %v563, 126
      %v573 = vpop.permute.xlu0 %572
      %574 = vrot.lane.b32.xlu0 %v564, 126
      %v575 = vpop.permute.xlu0 %574
      %576 = vrot.lane.b32.xlu0 %v565, 126
      %v577 = vpop.permute.xlu0 %576
      %v578 = vsel %vm481, %v567, %v569
      %v579 = vsel %vm481, %v569, %v571
      %v580 = vsel %vm481, %v573, %v575
      %v581 = vsel %vm481, %v575, %v577
      %v583 = vsel %vm488, %v542, %v442
      %v585 = vsel %vm488, %v543, %v443
      %v588 = vsel %vm488, %v544, %v434
      %v589 = vld [vmem:[%s2] sm:$0xff]
      %v591 = vunpack.c.l.b16 %v589
      %v592 = vunpack.c.h.b16 %v589
      %v593 = vpack.c.b16 %v591, %v591
      %v594 = vpack.c.b16 %v592, %v592
      %595 = vrot.lane.b32.xlu0 %v593, 56
      %v596 = vpop.permute.xlu0 %595
      %597 = vrot.lane.b32.xlu0 %v594, 56
      %v598 = vpop.permute.xlu0 %597
      %vm599 = vcmask 457728
      %v600 = vsel %vm599, %v596, %v598
      %604 = vrot.lane.b32.xlu0 %v539, 112
      %v605 = vpop.permute.xlu0 %604
      %606 = vrot.lane.b32.xlu0 %v540, 112
      %v607 = vpop.permute.xlu0 %606
      %608 = vrot.lane.b32.xlu0 %v541, 112
      %v609 = vpop.permute.xlu0 %608
      %610 = vrot.lane.b32.xlu0 %v583, 112
      %v611 = vpop.permute.xlu0 %610
      %612 = vrot.lane.b32.xlu0 %v585, 112
      %v613 = vpop.permute.xlu0 %612
      %614 = vrot.lane.b32.xlu0 %v588, 112
      %v615 = vpop.permute.xlu0 %614
      %616 = vrot.lane.b32.xlu0 %v444, 112
      %v617 = vpop.permute.xlu0 %616
      %618 = vrot.lane.b32.xlu0 %v445, 112
      %v619 = vpop.permute.xlu0 %618
      %620 = vrot.lane.b32.xlu0 %v440, 112
      %v621 = vpop.permute.xlu0 %620
      %622 = vrot.lane.b32.xlu0 %v578, 112
      %v623 = vpop.permute.xlu0 %622
      %624 = vrot.lane.b32.xlu0 %v579, 112
      %v625 = vpop.permute.xlu0 %624
      %626 = vrot.lane.b32.xlu0 %v571, 112
      %v627 = vpop.permute.xlu0 %626
      %628 = vrot.lane.b32.xlu0 %v580, 112
      %v629 = vpop.permute.xlu0 %628
      %630 = vrot.lane.b32.xlu0 %v581, 112
      %v631 = vpop.permute.xlu0 %630
      %632 = vrot.lane.b32.xlu0 %v577, 112
      %v633 = vpop.permute.xlu0 %632
      %vm634 = vcmask 916480
      %v635 = vsel %vm634, %v605, %v607
      %v636 = vsel %vm634, %v607, %v609
      %v637 = vsel %vm634, %v611, %v613
      %v638 = vsel %vm634, %v613, %v615
      %v639 = vsel %vm634, %v617, %v619
      %v640 = vsel %vm634, %v619, %v621
      %v641 = vsel %vm634, %v623, %v625
      %v642 = vsel %vm634, %v625, %v627
      %v643 = vsel %vm634, %v629, %v631
      %v644 = vsel %vm634, %v631, %v633
      %vm653 = vcmask 588800
      %v655 = vsel %vm653, %v600, 0
      %v658 = vsel %vm488, %v643, 0
      %v661 = vsel %vm488, %v644, 0
      %663 = vmatprep.subr.bf16.mxu0 0
      %664 = vmatpush1.bf16.msra.mxu0 0
      %665 = vmatprep.subr.bf16.mxu0 0
      %666 = vmatpush1.bf16.msra.mxu0 0
      %667 = vmatprep.subr.bf16.mxu0 0
      %668 = vmatpush1.bf16.msra.mxu0 0
      %669 = vmatprep.subr.bf16.mxu0 %v661
      %670 = vmatpush1.bf16.msra.mxu0 %v658
      %671 = vmatprep.subr.bf16.mxu0 %v642
      %672 = vmatpush1.bf16.msra.mxu0 %v641
      %673 = vmatprep.subr.bf16.mxu0 %v640
      %674 = vmatpush1.bf16.msra.mxu0 %v639
      %675 = vmatprep.subr.bf16.mxu0 %v638
      %676 = vmatpush1.bf16.msra.mxu0 %v637
      %677 = vmatprep.subr.bf16.mxu0 %v636
      %678 = vmatpush1.bf16.msra.mxu0 %v635
      %679 = vmatprep.subr.bf16.mxu0 0
      %680 = vmatpush2.bf16.msra.mxu0 0
      %681 = vmatprep.subr.bf16.mxu0 0
      %682 = vmatpush2.bf16.msra.mxu0 0
      %683 = vmatprep.subr.bf16.mxu0 0
      %684 = vmatpush2.bf16.msra.mxu0 0
      %685 = vmatprep.subr.bf16.mxu0 0
      %686 = vmatpush2.bf16.msra.mxu0 0
      %687 = vmatprep.subr.bf16.mxu0 0
      %688 = vmatpush2.bf16.msra.mxu0 0
      %689 = vmatprep.subr.bf16.mxu0 0
      %690 = vmatpush2.bf16.msra.mxu0 0
      %691 = vmatprep.subr.bf16.mxu0 0
      %692 = vmatpush2.bf16.msra.mxu0 0
      %693 = vmatprep.subr.bf16.mxu0 0
      %694 = vmatpush2.bf16.msra.mxu0 0
      %695 = vmatprep.mubr.bf16.mxu0 0
      %696 = vmatmul.mubr.bf16.gmra.mxu0 %v655
      %v697 = vpop.f32.mrf.mxu0
      %v698 = vadd.f32 0.0, %v697
      %v699 = vpop.f32.mrf.mxu0
      %v700 = vadd.f32 0.0, %v699
      %v701 = vpop.f32.mrf.mxu0
      %v702 = vpop.f32.mrf.mxu0
      %703 = vdwg.mxu0
      %v705 = vsel %vm653, %v497, 0
      %v708 = vsel %vm488, %v484, 0
      %v711 = vsel %vm488, %v485, 0
      %713 = vmatprep.subr.bf16.mxu0 0
      %714 = vmatpush1.bf16.msra.mxu0 0
      %715 = vmatprep.subr.bf16.mxu0 0
      %716 = vmatpush1.bf16.msra.mxu0 0
      %717 = vmatprep.subr.bf16.mxu0 0
      %718 = vmatpush1.bf16.msra.mxu0 0
      %719 = vmatprep.subr.bf16.mxu0 %v711
      %720 = vmatpush1.bf16.msra.mxu0 %v708
      %721 = vmatprep.subr.bf16.mxu0 %v483
      %722 = vmatpush1.bf16.msra.mxu0 %v482
      %723 = vmatprep.subr.bf16.mxu0 %v445
      %724 = vmatpush1.bf16.msra.mxu0 %v444
      %725 = vmatprep.subr.bf16.mxu0 %v495
      %726 = vmatpush1.bf16.msra.mxu0 %v491
      %727 = vmatprep.subr.bf16.mxu0 %v403
      %728 = vmatpush1.bf16.msra.mxu0 %v402
      %729 = vmatprep.subr.bf16.mxu0 0
      %730 = vmatpush2.bf16.msra.mxu0 0
      %731 = vmatprep.subr.bf16.mxu0 0
      %732 = vmatpush2.bf16.msra.mxu0 0
      %733 = vmatprep.subr.bf16.mxu0 0
      %734 = vmatpush2.bf16.msra.mxu0 0
      %735 = vmatprep.subr.bf16.mxu0 0
      %736 = vmatpush2.bf16.msra.mxu0 0
      %737 = vmatprep.subr.bf16.mxu0 0
      %738 = vmatpush2.bf16.msra.mxu0 0
      %739 = vmatprep.subr.bf16.mxu0 0
      %740 = vmatpush2.bf16.msra.mxu0 0
      %741 = vmatprep.subr.bf16.mxu0 0
      %742 = vmatpush2.bf16.msra.mxu0 0
      %743 = vmatprep.subr.bf16.mxu0 0
      %744 = vmatpush2.bf16.msra.mxu0 0
      %745 = vmatprep.mubr.bf16.mxu0 0
      %746 = vmatmul.mubr.bf16.gmra.mxu0 %v705
      %v747 = vpop.f32.mrf.mxu0
      %v748 = vadd.f32 %v698, %v747
      %v749 = vpop.f32.mrf.mxu0
      %v750 = vadd.f32 %v700, %v749
      %v751 = vpop.f32.mrf.mxu0
      %v752 = vpop.f32.mrf.mxu0
      %753 = vdwg.mxu0
      %754 = vrot.lane.b32.xlu0 %v367, 32
      %v755 = vpop.permute.xlu0 %754
      %v756 = vrot.slane %v755, 4
      %vm757 = vcmask 261120
      %v758 = vsel %vm757, %v756, %v755
      %v761 = vmul.bf16 %v360, %v758
      %v762 = vmul.bf16 %v372, %v756
      %v763 = vmul.bf16 %v361, %v758
      %v764 = vmul.bf16 %v373, %v756
      %v765 = vmul.bf16 %v362, %v758
      %v766 = vmul.bf16 %v374, %v756
      %767 = vrot.lane.b32.xlu0 %v379, 34
      %v768 = vpop.permute.xlu0 %767
      %v769 = vrot.slane %v768, 4
      %vm770 = vcmask 277504
      %v771 = vsel %vm770, %v769, %v768
      %v774 = vmul.bf16 %v360, %v771
      %v775 = vmul.bf16 %v372, %v769
      %v776 = vmul.bf16 %v361, %v771
      %v777 = vmul.bf16 %v373, %v769
      %v778 = vmul.bf16 %v362, %v771
      %v779 = vmul.bf16 %v374, %v769
      %v786 = vunpack.c.l.b16 %v761
      %v787 = vunpack.c.h.b16 %v761
      %v788 = vunpack.c.l.b16 %v762
      %v789 = vunpack.c.l.b16 %v763
      %v790 = vunpack.c.h.b16 %v763
      %v791 = vunpack.c.l.b16 %v764
      %v792 = vunpack.c.l.b16 %v765
      %v793 = vunpack.c.h.b16 %v765
      %v794 = vunpack.c.l.b16 %v766
      %v795 = vpack.c.b16 %v789, %v786
      %v796 = vpack.c.b16 %v790, %v787
      %v797 = vpack.c.b16 %v791, %v788
      %v798 = vpack.c.b16 %v792, %v792
      %v799 = vpack.c.b16 %v793, %v793
      %v800 = vpack.c.b16 %v794, %v794
      %v807 = vunpack.c.l.b16 %v774
      %v808 = vunpack.c.h.b16 %v774
      %v809 = vunpack.c.l.b16 %v775
      %v810 = vunpack.c.l.b16 %v776
      %v811 = vunpack.c.h.b16 %v776
      %v812 = vunpack.c.l.b16 %v777
      %v813 = vunpack.c.l.b16 %v778
      %v814 = vunpack.c.h.b16 %v778
      %v815 = vunpack.c.l.b16 %v779
      %v816 = vpack.c.b16 %v810, %v807
      %v817 = vpack.c.b16 %v811, %v808
      %v818 = vpack.c.b16 %v812, %v809
      %v819 = vpack.c.b16 %v813, %v813
      %v820 = vpack.c.b16 %v814, %v814
      %v821 = vpack.c.b16 %v815, %v815
      %822 = vrot.lane.b32.xlu0 %v816, 126
      %v823 = vpop.permute.xlu0 %822
      %824 = vrot.lane.b32.xlu0 %v817, 126
      %v825 = vpop.permute.xlu0 %824
      %826 = vrot.lane.b32.xlu0 %v818, 126
      %v827 = vpop.permute.xlu0 %826
      %828 = vrot.lane.b32.xlu0 %v819, 126
      %v829 = vpop.permute.xlu0 %828
      %830 = vrot.lane.b32.xlu0 %v820, 126
      %v831 = vpop.permute.xlu0 %830
      %832 = vrot.lane.b32.xlu0 %v821, 126
      %v833 = vpop.permute.xlu0 %832
      %v834 = vsel %vm481, %v823, %v825
      %v835 = vsel %vm481, %v825, %v827
      %v836 = vsel %vm481, %v829, %v831
      %v837 = vsel %vm481, %v831, %v833
      %v839 = vsel %vm488, %v798, %v442
      %v841 = vsel %vm488, %v799, %v443
      %v843 = vsel %vm488, %v800, %v434
      %v844 = vld [vmem:[%s2 + $0x4] sm:$0xf]
      %v846 = vunpack.c.l.b16 %v844
      %v847 = vpack.c.b16 %v846, %v846
      %848 = vrot.lane.b32.xlu0 %v847, 112
      %v849 = vpop.permute.xlu0 %848
      %853 = vrot.lane.b32.xlu0 %v795, 96
      %v854 = vpop.permute.xlu0 %853
      %855 = vrot.lane.b32.xlu0 %v796, 96
      %v856 = vpop.permute.xlu0 %855
      %857 = vrot.lane.b32.xlu0 %v797, 96
      %v858 = vpop.permute.xlu0 %857
      %859 = vrot.lane.b32.xlu0 %v839, 96
      %v860 = vpop.permute.xlu0 %859
      %861 = vrot.lane.b32.xlu0 %v841, 96
      %v862 = vpop.permute.xlu0 %861
      %863 = vrot.lane.b32.xlu0 %v843, 96
      %v864 = vpop.permute.xlu0 %863
      %865 = vrot.lane.b32.xlu0 %v444, 96
      %v866 = vpop.permute.xlu0 %865
      %867 = vrot.lane.b32.xlu0 %v445, 96
      %v868 = vpop.permute.xlu0 %867
      %869 = vrot.lane.b32.xlu0 %v440, 96
      %v870 = vpop.permute.xlu0 %869
      %871 = vrot.lane.b32.xlu0 %v834, 96
      %v872 = vpop.permute.xlu0 %871
      %873 = vrot.lane.b32.xlu0 %v835, 96
      %v874 = vpop.permute.xlu0 %873
      %875 = vrot.lane.b32.xlu0 %v827, 96
      %v876 = vpop.permute.xlu0 %875
      %877 = vrot.lane.b32.xlu0 %v836, 96
      %v878 = vpop.permute.xlu0 %877
      %879 = vrot.lane.b32.xlu0 %v837, 96
      %v880 = vpop.permute.xlu0 %879
      %881 = vrot.lane.b32.xlu0 %v833, 96
      %v882 = vpop.permute.xlu0 %881
      %vm883 = vcmask 785408
      %v884 = vsel %vm883, %v854, %v856
      %v885 = vsel %vm883, %v856, %v858
      %v886 = vsel %vm883, %v860, %v862
      %v887 = vsel %vm883, %v862, %v864
      %v888 = vsel %vm883, %v866, %v868
      %v889 = vsel %vm883, %v868, %v870
      %v890 = vsel %vm883, %v872, %v874
      %v891 = vsel %vm883, %v874, %v876
      %v892 = vsel %vm883, %v878, %v880
      %v893 = vsel %vm883, %v880, %v882
      %v903 = vsel %vm653, %v849, 0
      %v906 = vsel %vm488, %v892, 0
      %v909 = vsel %vm488, %v893, 0
      %911 = vmatprep.subr.bf16.mxu0 0
      %912 = vmatpush1.bf16.msra.mxu0 0
      %913 = vmatprep.subr.bf16.mxu0 0
      %914 = vmatpush1.bf16.msra.mxu0 0
      %915 = vmatprep.subr.bf16.mxu0 0
      %916 = vmatpush1.bf16.msra.mxu0 0
      %917 = vmatprep.subr.bf16.mxu0 %v909
      %918 = vmatpush1.bf16.msra.mxu0 %v906
      %919 = vmatprep.subr.bf16.mxu0 %v891
      %920 = vmatpush1.bf16.msra.mxu0 %v890
      %921 = vmatprep.subr.bf16.mxu0 %v889
      %922 = vmatpush1.bf16.msra.mxu0 %v888
      %923 = vmatprep.subr.bf16.mxu0 %v887
      %924 = vmatpush1.bf16.msra.mxu0 %v886
      %925 = vmatprep.subr.bf16.mxu0 %v885
      %926 = vmatpush1.bf16.msra.mxu0 %v884
      %927 = vmatprep.subr.bf16.mxu0 0
      %928 = vmatpush2.bf16.msra.mxu0 0
      %929 = vmatprep.subr.bf16.mxu0 0
      %930 = vmatpush2.bf16.msra.mxu0 0
      %931 = vmatprep.subr.bf16.mxu0 0
      %932 = vmatpush2.bf16.msra.mxu0 0
      %933 = vmatprep.subr.bf16.mxu0 0
      %934 = vmatpush2.bf16.msra.mxu0 0
      %935 = vmatprep.subr.bf16.mxu0 0
      %936 = vmatpush2.bf16.msra.mxu0 0
      %937 = vmatprep.subr.bf16.mxu0 0
      %938 = vmatpush2.bf16.msra.mxu0 0
      %939 = vmatprep.subr.bf16.mxu0 0
      %940 = vmatpush2.bf16.msra.mxu0 0
      %941 = vmatprep.subr.bf16.mxu0 0
      %942 = vmatpush2.bf16.msra.mxu0 0
      %943 = vmatprep.mubr.bf16.mxu0 0
      %944 = vmatmul.mubr.bf16.gmra.mxu0 %v903
      %v945 = vpop.f32.mrf.mxu0
      %v946 = vadd.f32 0.0, %v945
      %v947 = vpop.f32.mrf.mxu0
      %v948 = vadd.f32 0.0, %v947
      %v949 = vpop.f32.mrf.mxu0
      %v950 = vpop.f32.mrf.mxu0
      %951 = vdwg.mxu0
      %v952 = vadd.f32 %v748, %v946
      %v953 = vadd.f32 %v750, %v948
      %v954 = vld [vmem:[%s3] sm:$0xff]
      %956 = vset.pattern.permute.xlu0 0
      %957 = vperm.xlu0 %956, %v954
      %v958 = vpop.permute.xlu0 %957
      %v960 = vadd.f32 %v952, %v958
      %v961 = vadd.f32 %v953, %v958
      %v962 = vmax.f32 %v960, 0.0
      %v963 = vmax.f32 %v961, 0.0
      %v964 = vpack.c.bf16 %v962, %v962
      %v965 = vpack.c.bf16 %v963, %v963
      %v968 = vunpack.c.l.b16 %v964
      %v969 = vunpack.c.l.b16 %v965
      %v970 = vpack.c.b16 %v969, %v968
      %971 = vrot.lane.b32.xlu0 %v970, 17
      %v972 = vpop.permute.xlu0 %971
      %v973 = vrot.slane %v972, 4
      %v974 = vsel %vm331, %v973, %v972
      %977 = vst.msk [vmem:[#allocation3] sm:$0xff] %vm337, %v974
      %978 = vst.msk [vmem:[#allocation3 + $0x8] sm:$0xf] %vm316, %v973
      %v979 = vld [vmem:[#allocation3] sm:$0xff]
      %v980 = vmul.bf16 %v979, %v367
      %v981 = vld [vmem:[#allocation3 + $0x8] sm:$0xf]
      %v982 = vmul.bf16 %v979, %v384
      %v983 = vmul.bf16 %v981, %v382
      %v985 = vunpack.c.l.b16 %v980
      %v986 = vunpack.c.h.b16 %v980
      %v987 = vpack.c.b16 %v985, %v985
      %v988 = vpack.c.b16 %v986, %v986
      %v991 = vunpack.c.l.b16 %v979
      %v992 = vunpack.c.h.b16 %v979
      %v993 = vunpack.c.l.b16 %v981
      %v994 = vpack.c.b16 %v991, %v991
      %v995 = vpack.c.b16 %v992, %v992
      %v996 = vpack.c.b16 %v993, %v993
      %997 = vrot.lane.b32.xlu0 %v994, 127
      %v998 = vpop.permute.xlu0 %997
      %999 = vrot.lane.b32.xlu0 %v995, 127
      %v1000 = vpop.permute.xlu0 %999
      %1001 = vrot.lane.b32.xlu0 %v996, 127
      %v1002 = vpop.permute.xlu0 %1001
      %v1003 = vsel %vm441, %v998, %v1000
      %v1004 = vsel %vm441, %v1000, %v1002
      %v1007 = vunpack.c.l.b16 %v982
      %v1008 = vunpack.c.h.b16 %v982
      %v1009 = vunpack.c.l.b16 %v983
      %v1010 = vpack.c.b16 %v1007, %v1007
      %v1011 = vpack.c.b16 %v1008, %v1008
      %v1012 = vpack.c.b16 %v1009, %v1009
      %1013 = vrot.lane.b32.xlu0 %v1010, 126
      %v1014 = vpop.permute.xlu0 %1013
      %1015 = vrot.lane.b32.xlu0 %v1011, 126
      %v1016 = vpop.permute.xlu0 %1015
      %1017 = vrot.lane.b32.xlu0 %v1012, 126
      %v1018 = vpop.permute.xlu0 %1017
      %v1019 = vsel %vm481, %v1014, %v1016
      %v1020 = vsel %vm481, %v1016, %v1018
      %v1023 = vsel %vm488, %v987, %v1003
      %v1027 = vsel %vm488, %v988, %v1004
      %v1029 = vld [vmem:[%s4] sm:$0xf]
      %v1030 = vmul.bf16 %v979, %v502
      %v1031 = vmul.bf16 %v981, %v500
      %v1032 = vmul.bf16 %v979, %v515
      %v1033 = vmul.bf16 %v981, %v513
      %v1036 = vunpack.c.l.b16 %v1030
      %v1037 = vunpack.c.h.b16 %v1030
      %v1038 = vunpack.c.l.b16 %v1031
      %v1039 = vpack.c.b16 %v1036, %v1036
      %v1040 = vpack.c.b16 %v1037, %v1037
      %v1041 = vpack.c.b16 %v1038, %v1038
      %v1044 = vunpack.c.l.b16 %v1032
      %v1045 = vunpack.c.h.b16 %v1032
      %v1046 = vunpack.c.l.b16 %v1033
      %v1047 = vpack.c.b16 %v1044, %v1044
      %v1048 = vpack.c.b16 %v1045, %v1045
      %v1049 = vpack.c.b16 %v1046, %v1046
      %1050 = vrot.lane.b32.xlu0 %v1047, 126
      %v1051 = vpop.permute.xlu0 %1050
      %1052 = vrot.lane.b32.xlu0 %v1048, 126
      %v1053 = vpop.permute.xlu0 %1052
      %1054 = vrot.lane.b32.xlu0 %v1049, 126
      %v1055 = vpop.permute.xlu0 %1054
      %v1056 = vsel %vm481, %v1051, %v1053
      %v1057 = vsel %vm481, %v1053, %v1055
      %v1059 = vsel %vm488, %v1039, %v1003
      %v1061 = vsel %vm488, %v1040, %v1004
      %v1064 = vsel %vm488, %v1041, %v1002
      %v1066 = vunpack.c.l.b16 %v1029
      %v1067 = vpack.c.b16 %v1066, %v1066
      %1068 = vrot.lane.b32.xlu0 %v1067, 104
      %v1069 = vpop.permute.xlu0 %1068
      %1073 = vrot.lane.b32.xlu0 %v1059, 112
      %v1074 = vpop.permute.xlu0 %1073
      %1075 = vrot.lane.b32.xlu0 %v1061, 112
      %v1076 = vpop.permute.xlu0 %1075
      %1077 = vrot.lane.b32.xlu0 %v1064, 112
      %v1078 = vpop.permute.xlu0 %1077
      %1079 = vrot.lane.b32.xlu0 %v1056, 112
      %v1080 = vpop.permute.xlu0 %1079
      %1081 = vrot.lane.b32.xlu0 %v1057, 112
      %v1082 = vpop.permute.xlu0 %1081
      %1083 = vrot.lane.b32.xlu0 %v1055, 112
      %v1084 = vpop.permute.xlu0 %1083
      %v1085 = vsel %vm634, %v1074, %v1076
      %v1086 = vsel %vm634, %v1076, %v1078
      %v1087 = vsel %vm634, %v1080, %v1082
      %v1088 = vsel %vm634, %v1082, %v1084
      %vm1091 = vcmask 195584
      %v1093 = vsel %vm1091, %v1069, 0
      %v1096 = vsel %vm488, %v1087, 0
      %v1099 = vsel %vm488, %v1088, 0
      %1101 = vmatprep.subr.bf16.mxu0 0
      %1102 = vmatpush1.bf16.msra.mxu0 0
      %1103 = vmatprep.subr.bf16.mxu0 0
      %1104 = vmatpush1.bf16.msra.mxu0 0
      %1105 = vmatprep.subr.bf16.mxu0 0
      %1106 = vmatpush1.bf16.msra.mxu0 0
      %1107 = vmatprep.subr.bf16.mxu0 0
      %1108 = vmatpush1.bf16.msra.mxu0 0
      %1109 = vmatprep.subr.bf16.mxu0 0
      %1110 = vmatpush1.bf16.msra.mxu0 0
      %1111 = vmatprep.subr.bf16.mxu0 0
      %1112 = vmatpush1.bf16.msra.mxu0 0
      %1113 = vmatprep.subr.bf16.mxu0 %v1099
      %1114 = vmatpush1.bf16.msra.mxu0 %v1096
      %1115 = vmatprep.subr.bf16.mxu0 %v1086
      %1116 = vmatpush1.bf16.msra.mxu0 %v1085
      %1117 = vmatprep.subr.bf16.mxu0 0
      %1118 = vmatpush2.bf16.msra.mxu0 0
      %1119 = vmatprep.subr.bf16.mxu0 0
      %1120 = vmatpush2.bf16.msra.mxu0 0
      %1121 = vmatprep.subr.bf16.mxu0 0
      %1122 = vmatpush2.bf16.msra.mxu0 0
      %1123 = vmatprep.subr.bf16.mxu0 0
      %1124 = vmatpush2.bf16.msra.mxu0 0
      %1125 = vmatprep.subr.bf16.mxu0 0
      %1126 = vmatpush2.bf16.msra.mxu0 0
      %1127 = vmatprep.subr.bf16.mxu0 0
      %1128 = vmatpush2.bf16.msra.mxu0 0
      %1129 = vmatprep.subr.bf16.mxu0 0
      %1130 = vmatpush2.bf16.msra.mxu0 0
      %1131 = vmatprep.subr.bf16.mxu0 0
      %1132 = vmatpush2.bf16.msra.mxu0 0
      %1133 = vmatprep.mubr.bf16.mxu0 0
      %1134 = vmatmul.mubr.bf16.gmra.mxu0 %v1093
      %v1135 = vpop.f32.mrf.mxu0
      %v1136 = vadd.f32 0.0, %v1135
      %v1137 = vpop.f32.mrf.mxu0
      %v1138 = vadd.f32 0.0, %v1137
      %v1139 = vpop.f32.mrf.mxu0
      %v1140 = vpop.f32.mrf.mxu0
      %1141 = vdwg.mxu0
      %v1143 = vsel %vm1091, %v1029, 0
      %v1146 = vsel %vm488, %v1019, 0
      %v1149 = vsel %vm488, %v1020, 0
      %1151 = vmatprep.subr.bf16.mxu0 0
      %1152 = vmatpush1.bf16.msra.mxu0 0
      %1153 = vmatprep.subr.bf16.mxu0 0
      %1154 = vmatpush1.bf16.msra.mxu0 0
      %1155 = vmatprep.subr.bf16.mxu0 0
      %1156 = vmatpush1.bf16.msra.mxu0 0
      %1157 = vmatprep.subr.bf16.mxu0 0
      %1158 = vmatpush1.bf16.msra.mxu0 0
      %1159 = vmatprep.subr.bf16.mxu0 0
      %1160 = vmatpush1.bf16.msra.mxu0 0
      %1161 = vmatprep.subr.bf16.mxu0 0
      %1162 = vmatpush1.bf16.msra.mxu0 0
      %1163 = vmatprep.subr.bf16.mxu0 %v1149
      %1164 = vmatpush1.bf16.msra.mxu0 %v1146
      %1165 = vmatprep.subr.bf16.mxu0 %v1027
      %1166 = vmatpush1.bf16.msra.mxu0 %v1023
      %1167 = vmatprep.subr.bf16.mxu0 0
      %1168 = vmatpush2.bf16.msra.mxu0 0
      %1169 = vmatprep.subr.bf16.mxu0 0
      %1170 = vmatpush2.bf16.msra.mxu0 0
      %1171 = vmatprep.subr.bf16.mxu0 0
      %1172 = vmatpush2.bf16.msra.mxu0 0
      %1173 = vmatprep.subr.bf16.mxu0 0
      %1174 = vmatpush2.bf16.msra.mxu0 0
      %1175 = vmatprep.subr.bf16.mxu0 0
      %1176 = vmatpush2.bf16.msra.mxu0 0
      %1177 = vmatprep.subr.bf16.mxu0 0
      %1178 = vmatpush2.bf16.msra.mxu0 0
      %1179 = vmatprep.subr.bf16.mxu0 0
      %1180 = vmatpush2.bf16.msra.mxu0 0
      %1181 = vmatprep.subr.bf16.mxu0 0
      %1182 = vmatpush2.bf16.msra.mxu0 0
      %1183 = vmatprep.mubr.bf16.mxu0 0
      %1184 = vmatmul.mubr.bf16.gmra.mxu0 %v1143
      %v1185 = vpop.f32.mrf.mxu0
      %v1186 = vadd.f32 %v1136, %v1185
      %v1187 = vpop.f32.mrf.mxu0
      %v1188 = vadd.f32 %v1138, %v1187
      %v1189 = vpop.f32.mrf.mxu0
      %v1190 = vpop.f32.mrf.mxu0
      %1191 = vdwg.mxu0
      %v1192 = vmul.bf16 %v979, %v758
      %v1193 = vmul.bf16 %v981, %v756
      %v1194 = vmul.bf16 %v979, %v771
      %v1195 = vmul.bf16 %v981, %v769
      %v1198 = vunpack.c.l.b16 %v1192
      %v1199 = vunpack.c.h.b16 %v1192
      %v1200 = vunpack.c.l.b16 %v1193
      %v1201 = vpack.c.b16 %v1198, %v1198
      %v1202 = vpack.c.b16 %v1199, %v1199
      %v1203 = vpack.c.b16 %v1200, %v1200
      %v1206 = vunpack.c.l.b16 %v1194
      %v1207 = vunpack.c.h.b16 %v1194
      %v1208 = vunpack.c.l.b16 %v1195
      %v1209 = vpack.c.b16 %v1206, %v1206
      %v1210 = vpack.c.b16 %v1207, %v1207
      %v1211 = vpack.c.b16 %v1208, %v1208
      %1212 = vrot.lane.b32.xlu0 %v1209, 126
      %v1213 = vpop.permute.xlu0 %1212
      %1214 = vrot.lane.b32.xlu0 %v1210, 126
      %v1215 = vpop.permute.xlu0 %1214
      %1216 = vrot.lane.b32.xlu0 %v1211, 126
      %v1217 = vpop.permute.xlu0 %1216
      %v1218 = vsel %vm481, %v1213, %v1215
      %v1219 = vsel %vm481, %v1215, %v1217
      %v1221 = vsel %vm488, %v1201, %v1003
      %v1223 = vsel %vm488, %v1202, %v1004
      %v1225 = vsel %vm488, %v1203, %v1002
      %1226 = vrot.lane.b32.xlu0 %v1067, 80
      %v1227 = vpop.permute.xlu0 %1226
      %1231 = vrot.lane.b32.xlu0 %v1221, 96
      %v1232 = vpop.permute.xlu0 %1231
      %1233 = vrot.lane.b32.xlu0 %v1223, 96
      %v1234 = vpop.permute.xlu0 %1233
      %1235 = vrot.lane.b32.xlu0 %v1225, 96
      %v1236 = vpop.permute.xlu0 %1235
      %1237 = vrot.lane.b32.xlu0 %v1218, 96
      %v1238 = vpop.permute.xlu0 %1237
      %1239 = vrot.lane.b32.xlu0 %v1219, 96
      %v1240 = vpop.permute.xlu0 %1239
      %1241 = vrot.lane.b32.xlu0 %v1217, 96
      %v1242 = vpop.permute.xlu0 %1241
      %v1243 = vsel %vm883, %v1232, %v1234
      %v1244 = vsel %vm883, %v1234, %v1236
      %v1245 = vsel %vm883, %v1238, %v1240
      %v1246 = vsel %vm883, %v1240, %v1242
      %v1250 = vsel %vm1091, %v1227, 0
      %v1253 = vsel %vm488, %v1245, 0
      %v1256 = vsel %vm488, %v1246, 0
      %1258 = vmatprep.subr.bf16.mxu0 0
      %1259 = vmatpush1.bf16.msra.mxu0 0
      %1260 = vmatprep.subr.bf16.mxu0 0
      %1261 = vmatpush1.bf16.msra.mxu0 0
      %1262 = vmatprep.subr.bf16.mxu0 0
      %1263 = vmatpush1.bf16.msra.mxu0 0
      %1264 = vmatprep.subr.bf16.mxu0 0
      %1265 = vmatpush1.bf16.msra.mxu0 0
      %1266 = vmatprep.subr.bf16.mxu0 0
      %1267 = vmatpush1.bf16.msra.mxu0 0
      %1268 = vmatprep.subr.bf16.mxu0 0
      %1269 = vmatpush1.bf16.msra.mxu0 0
      %1270 = vmatprep.subr.bf16.mxu0 %v1256
      %1271 = vmatpush1.bf16.msra.mxu0 %v1253
      %1272 = vmatprep.subr.bf16.mxu0 %v1244
      %1273 = vmatpush1.bf16.msra.mxu0 %v1243
      %1274 = vmatprep.subr.bf16.mxu0 0
      %1275 = vmatpush2.bf16.msra.mxu0 0
      %1276 = vmatprep.subr.bf16.mxu0 0
      %1277 = vmatpush2.bf16.msra.mxu0 0
      %1278 = vmatprep.subr.bf16.mxu0 0
      %1279 = vmatpush2.bf16.msra.mxu0 0
      %1280 = vmatprep.subr.bf16.mxu0 0
      %1281 = vmatpush2.bf16.msra.mxu0 0
      %1282 = vmatprep.subr.bf16.mxu0 0
      %1283 = vmatpush2.bf16.msra.mxu0 0
      %1284 = vmatprep.subr.bf16.mxu0 0
      %1285 = vmatpush2.bf16.msra.mxu0 0
      %1286 = vmatprep.subr.bf16.mxu0 0
      %1287 = vmatpush2.bf16.msra.mxu0 0
      %1288 = vmatprep.subr.bf16.mxu0 0
      %1289 = vmatpush2.bf16.msra.mxu0 0
      %1290 = vmatprep.mubr.bf16.mxu0 0
      %1291 = vmatmul.mubr.bf16.gmra.mxu0 %v1250
      %v1292 = vpop.f32.mrf.mxu0
      %v1293 = vadd.f32 0.0, %v1292
      %v1294 = vpop.f32.mrf.mxu0
      %v1295 = vadd.f32 0.0, %v1294
      %v1296 = vpop.f32.mrf.mxu0
      %v1297 = vpop.f32.mrf.mxu0
      %1298 = vdwg.mxu0
      %v1299 = vadd.f32 %v1186, %v1293
      %v1300 = vadd.f32 %v1188, %v1295
      %v1301 = vld [vmem:[%s5] sm:$0xff]
      %1303 = vset.pattern.permute.xlu0 0
      %1304 = vperm.xlu0 %1303, %v1301
      %v1305 = vpop.permute.xlu0 %1304
      %v1307 = vadd.f32 %v1299, %v1305
      %v1308 = vadd.f32 %v1300, %v1305
      %v1309 = vmax.f32 %v1307, 0.0
      %v1310 = vmax.f32 %v1308, 0.0
      %v1311 = vpack.c.bf16 %v1309, %v1309
      %v1312 = vpack.c.bf16 %v1310, %v1310
      %v1315 = vunpack.c.l.b16 %v1311
      %v1316 = vunpack.c.l.b16 %v1312
      %v1317 = vpack.c.b16 %v1316, %v1315
      %1319 = vst [vmem:[%s271] sm:$0xff] %v1317
      %p1320 = scmp.lt.s32.totalorder %s17, 1
      %s1321 = scalar_select %p1320, %s17, 1
      %s1322 = smul.addr %s1321, 2
      %s1323 = smul.addr %s1322, 4
      %s1324 = scalar_lea.vmem %s6, %s1323
      // Predicated region
      $region45: #{seg_qyl_forward.9} parent=43 // pred_check
        %p1325 = pneg %p171
      $region46: #{seg_qyl_forward.9} parent=43 // pred_check_branch
        %1327 = sbr.rel (%p1325) target = $region48
      $region47: #{seg_qyl_forward.9} parent=43 // pred_region
        _
      $region48: #{seg_qyl_forward.9} parent=43 // pred_fallthru
        _
    $region44: #{seg_qyl_forward.9} parent=5 // pred_fallthru
      _
    %p1328 = scmp.le.s32.totalorder 2, %s12
    // Predicated region
    $region49: #{seg_qyl_forward.9} parent=5 // pred_check
      %p1329 = pneg %p1328
    $region50: #{seg_qyl_forward.9} parent=5 // pred_check_branch
      %1331 = sbr.rel (%p1329) target = $region52
    $region51: #{seg_qyl_forward.9} parent=5 // pred_region
      %s1332 = ssub.s32 %s12, 2
      // Predicated region
      $region53: #{seg_qyl_forward.9} parent=51 // pred_check
        %p1333 = pneg %p177
      $region54: #{seg_qyl_forward.9} parent=51 // pred_check_branch
        %1335 = sbr.rel (%p1333) target = $region56
      $region55: #{seg_qyl_forward.9} parent=51 // pred_region
        %p1336 = scmp.lt.s32.totalorder %s18, 1
        %s1337 = scalar_select %p1336, %s18, 1
        %s1338 = smul.addr %s1337, 2
        %s1339 = smul.addr %s1338, 4
        %s1340 = scalar_lea.vmem %s6, %s1339
      $region56: #{seg_qyl_forward.9} parent=51 // pred_fallthru
        _
    $region52: #{seg_qyl_forward.9} parent=5 // pred_fallthru
      _
  $region6: #{seg_qyl_forward.9} parent=0 // loop_footer
    %s16 = sadd.s32 1, %s12
  $region7: #{seg_qyl_forward.9} parent=0 // loop_footer_branch
    %11 = sbr.rel target = $region3
  $region8: #{seg_qyl_forward.9} parent=0 // loop_exit
    _

</llo_original>
